<compile_context>
chip_gen: v6e
topology: v6e:2x2x1
jax: 0.10.0
libtpu: 0.0.40
codegen_flags: <defaults>
</compile_context>

<pallas_src>
import jax
import jax.numpy as jnp
import numpy as np
from jax.experimental import pallas as pl
from jax.experimental.pallas import tpu as pltpu

# Matmul operand dtype for the MXU. Keep f32 to match PyTorch f32 numerics here;
# set to jnp.bfloat16 on v6e/v7x for ~2x MXU throughput (accumulation stays f32
# via preferred_element_type; loosen the test tolerance accordingly).
MM_DTYPE = jnp.float32


def _round_up(x, m):
    return ((x + m - 1) // m) * m


def _make_dense_block_kernel(N, H, W, Cpad, c_in, growth, num_layers, mm_dtype):
    NHW = N * H * W
    inv_n = float(1.0 / NHW)

    def kernel(feat_ref, gamma_ref, beta_ref, w_ref, b_ref, o_ref, pad_ref):
        # o_ref (N, H, W, Cpad) is the dense feature buffer, VMEM-resident for the
        # whole kernel. Channels [0:c_in] hold the input, the rest start at zero.
        o_ref[...] = feat_ref[...]

        # Zero the halo'd scratch once; the interior is fully overwritten every
        # layer so the 1-pixel halo stays zero across layers.
        pad_ref[...] = jnp.zeros(pad_ref.shape, pad_ref.dtype)

        for l in range(num_layers):
            x = o_ref[...].reshape(NHW, Cpad)  # lane-dense (last dim = Cpad)

            # --- BatchNorm2d, training-mode batch stats, one pass ------------
            s1 = jnp.sum(x, axis=0, keepdims=True)          # (1, Cpad)
            s2 = jnp.sum(x * x, axis=0, keepdims=True)      # (1, Cpad)
            mean = s1 * inv_n
            var = jnp.maximum(s2 * inv_n - mean * mean, 0.0)  # biased variance
            scale = gamma_ref[l] * jax.lax.rsqrt(var + 1e-5)  # (1, Cpad)
            shift = beta_ref[l] - mean * scale
            # Padded / not-yet-written channels are identically zero -> stay zero.
            y = jnp.maximum(x * scale + shift, 0.0)           # BN + ReLU fused

            # --- write interior of the zero-halo scratch ----------------------
            pad_ref[:, 1:H + 1, 1:W + 1, :] = y.reshape(N, H, W, Cpad)

            # --- im2col: 9 spatial taps concatenated on the (128-aligned) -----
            # channel axis -> one lane-dense (NHW, 9*Cpad) patch matrix.
            taps = [
                pad_ref[:, kh:kh + H, kw:kw + W, :].reshape(NHW, Cpad)
                for kh in range(3) for kw in range(3)
            ]
            patches = jnp.concatenate(taps, axis=-1)          # (NHW, 9*Cpad)

            # --- single MXU matmul (K = 9*Cpad, N = Cpad, both 128-multiples) -
            # Packed weight/bias already place this layer's `growth` output
            # channels at their slot [c0:c0+growth] (zeros elsewhere), so the
            # dense-concat update is a full-width lane-dense add + store.
            out = jnp.dot(patches.astype(mm_dtype), w_ref[l].astype(mm_dtype),
                          preferred_element_type=jnp.float32)
            out = out + b_ref[l]                              # (NHW, Cpad)
            o_ref[...] = (x + out).reshape(N, H, W, Cpad)

    return kernel


def _pack_params(params, c_in, growth, Cpad):
    """Pad/pack per-layer BN + conv params into lane-dense, layer-stacked arrays.

    gamma/beta : (L, 1, Cpad)    -- valid channels hold the BN affine params
    w_pack     : (L, 9*Cpad, Cpad) im2col weight; rows (kh*3+kw)*Cpad + ci,
                 output columns placed at [c0:c0+growth] for layer l (zeros else)
    b_pack     : (L, 1, Cpad)    -- conv bias placed at [c0:c0+growth]
    """
    gammas, betas, ws, bs = [], [], [], []
    for l, (gamma, beta, w, b) in enumerate(params):
        cin_l = gamma.shape[0]
        c0 = c_in + l * growth
        g = jnp.ones((1, Cpad), jnp.float32).at[0, :cin_l].set(gamma)
        be = jnp.zeros((1, Cpad), jnp.float32).at[0, :cin_l].set(beta)
        wp = jnp.zeros((3, 3, Cpad, Cpad), jnp.float32)
        wp = wp.at[:, :, :cin_l, c0:c0 + growth].set(w)
        bp = jnp.zeros((1, Cpad), jnp.float32).at[0, c0:c0 + growth].set(b)
        gammas.append(g)
        betas.append(be)
        ws.append(wp.reshape(9 * Cpad, Cpad))
        bs.append(bp)
    return jnp.stack(gammas), jnp.stack(betas), jnp.stack(ws), jnp.stack(bs)


def dense_block_forward(x_nchw, params):
    """DenseBlock.forward: for each block, Y = blk(X); X = concat(X, Y) on channels."""
    N, c_in, H, W = x_nchw.shape
    L = len(params)
    growth = params[0][3].shape[0]
    c_total = c_in + L * growth
    Cpad = max(128, _round_up(c_total, 128))

    # NCHW -> NHWC, pad channels to Cpad so every kernel access is lane-dense.
    x_nhwc = jnp.transpose(x_nchw, (0, 2, 3, 1))
    feat_in = jnp.pad(x_nhwc, ((0, 0), (0, 0), (0, 0), (0, Cpad - c_in)))

    gamma_p, beta_p, w_p, b_p = _pack_params(params, c_in, growth, Cpad)

    kernel = _make_dense_block_kernel(N, H, W, Cpad, c_in, growth, L, MM_DTYPE)
    vm = pl.BlockSpec(memory_space=pltpu.MemorySpace.VMEM)

    out = pl.pallas_call(
        kernel,
        out_shape=jax.ShapeDtypeStruct((N, H, W, Cpad), jnp.float32),
        in_specs=[vm, vm, vm, vm, vm],
        out_specs=vm,
        scratch_shapes=[pltpu.VMEM((N, H + 2, W + 2, Cpad), jnp.float32)],
    )(feat_in, gamma_p, beta_p, w_p, b_p)

    out = out[..., :c_total]                   # drop channel padding
    return jnp.transpose(out, (0, 3, 1, 2))    # NHWC -> NCHW


def init_params(key, num_convs, input_channels, num_channels):
    """Deterministic init matching the module's shapes (BN: w=1,b=0; Conv: uniform)."""
    params = []
    for i in range(num_convs):
        cin_i = input_channels + num_channels * i
        key, k1, k2 = jax.random.split(key, 3)
        gamma = jnp.ones((cin_i,), jnp.float32)
        beta = jnp.zeros((cin_i,), jnp.float32)
        bound = 1.0 / np.sqrt(cin_i * 9)
        w = jax.random.uniform(k1, (3, 3, cin_i, num_channels), jnp.float32, -bound, bound)
        b = jax.random.uniform(k2, (num_channels,), jnp.float32, -bound, bound)
        params.append((gamma, beta, w, b))
    return params


def ref_forward(x_nchw, params):
    """Pure-JAX reference (NCHW, mirrors PyTorch semantics) for correctness check."""
    x = x_nchw
    for (gamma, beta, w, b) in params:
        mean = jnp.mean(x, axis=(0, 2, 3), keepdims=True)
        var = jnp.mean((x - mean) ** 2, axis=(0, 2, 3), keepdims=True)
        y = (x - mean) * jax.lax.rsqrt(var + 1e-5)
        y = y * gamma.reshape(1, -1, 1, 1) + beta.reshape(1, -1, 1, 1)
        y = jnp.maximum(y, 0.0)
        w_oihw = jnp.transpose(w, (3, 2, 0, 1))  # (kh,kw,Ci,Co) -> OIHW
        y = jax.lax.conv_general_dilated(
            y, w_oihw, window_strides=(1, 1), padding="SAME",
            dimension_numbers=("NCHW", "OIHW", "NCHW"),
            precision=jax.lax.Precision.HIGHEST)
        y = y + b.reshape(1, -1, 1, 1)
        x = jnp.concatenate([x, y], axis=1)
    return x


if __name__ == "__main__":
    key = jax.random.PRNGKey(0)
    kx, kp = jax.random.split(key)

    # DenseBlock(num_convs=2, input_channels=4, num_channels=8), input NCHW
    N, C_in, H, W = 2, 4, 16, 16
    num_convs, growth = 2, 8

    x = jax.random.normal(kx, (N, C_in, H, W), jnp.float32)
    params = init_params(kp, num_convs, C_in, growth)

    out = dense_block_forward(x, params)
    out = jax.block_until_ready(out)

    assert out.shape == (N, C_in + num_convs * growth, H, W), out.shape

    ref = ref_forward(x, params)
    np.testing.assert_allclose(np.asarray(out), np.asarray(ref), rtol=2e-4, atol=2e-4)

    print("KERNEL_OK")
</pallas_src>

<mosaic_0001>
module attributes {stable_mosaic.version = 11 : i64} {
  func.func @kernel(%arg0: memref<2x16x16x128xf32, #tpu.memory_space<vmem>>, %arg1: memref<2x1x128xf32, #tpu.memory_space<vmem>>, %arg2: memref<2x1x128xf32, #tpu.memory_space<vmem>>, %arg3: memref<2x1152x128xf32, #tpu.memory_space<vmem>>, %arg4: memref<2x1x128xf32, #tpu.memory_space<vmem>>, %arg5: memref<2x16x16x128xf32, #tpu.memory_space<vmem>>, %arg6: memref<2x18x18x128xf32, #tpu.memory_space<vmem>>) attributes {dimension_semantics = [], scalar_prefetch = 0 : i64, scratch_operands = 1 : i64, tpu.core_type = #tpu.core_type<tc>} {
    %c0 = arith.constant 0 : index
    %c0_0 = arith.constant 0 : index
    %c0_1 = arith.constant 0 : index
    %c0_2 = arith.constant 0 : index
    %0 = vector.load %arg0[%c0, %c0_0, %c0_1, %c0_2] : memref<2x16x16x128xf32, #tpu.memory_space<vmem>>, vector<2x16x16x128xf32>
    %c0_3 = arith.constant 0 : index
    %c0_4 = arith.constant 0 : index
    %c0_5 = arith.constant 0 : index
    %c0_6 = arith.constant 0 : index
    %1 = vector.load %arg5[%c0_3, %c0_4, %c0_5, %c0_6] : memref<2x16x16x128xf32, #tpu.memory_space<vmem>>, vector<2x16x16x128xf32>
    tpu.vector_store %arg5[%c0_3, %c0_4, %c0_5, %c0_6], %0 {strides = array<i32>} : memref<2x16x16x128xf32, #tpu.memory_space<vmem>>, vector<2x16x16x128xf32>,
    %cst = arith.constant 0.000000e+00 : f32
    %2 = vector.broadcast %cst : f32 to vector<2x18x18x128xf32>
    %c0_7 = arith.constant 0 : index
    %c0_8 = arith.constant 0 : index
    %c0_9 = arith.constant 0 : index
    %c0_10 = arith.constant 0 : index
    %3 = vector.load %arg6[%c0_7, %c0_8, %c0_9, %c0_10] : memref<2x18x18x128xf32, #tpu.memory_space<vmem>>, vector<2x18x18x128xf32>
    tpu.vector_store %arg6[%c0_7, %c0_8, %c0_9, %c0_10], %2 {strides = array<i32>} : memref<2x18x18x128xf32, #tpu.memory_space<vmem>>, vector<2x18x18x128xf32>,
    %c0_11 = arith.constant 0 : index
    %c0_12 = arith.constant 0 : index
    %c0_13 = arith.constant 0 : index
    %c0_14 = arith.constant 0 : index
    %4 = vector.load %arg5[%c0_11, %c0_12, %c0_13, %c0_14] : memref<2x16x16x128xf32, #tpu.memory_space<vmem>>, vector<2x16x16x128xf32>
    %5 = vector.shape_cast %4 : vector<2x16x16x128xf32> to vector<512x128xf32>
    %cst_15 = arith.constant dense<0.000000e+00> : vector<128xf32>
    %6 = vector.multi_reduction <add>, %5, %cst_15 [0] : vector<512x128xf32> to vector<128xf32>
    %7 = vector.shape_cast %6 : vector<128xf32> to vector<1x128xf32>
    %8 = arith.mulf %5, %5 : vector<512x128xf32>
    %cst_16 = arith.constant dense<0.000000e+00> : vector<128xf32>
    %9 = vector.multi_reduction <add>, %8, %cst_16 [0] : vector<512x128xf32> to vector<128xf32>
    %10 = vector.shape_cast %9 : vector<128xf32> to vector<1x128xf32>
    %cst_17 = arith.constant 0.001953125 : f32
    %11 = vector.broadcast %cst_17 : f32 to vector<1x128xf32>
    %12 = arith.mulf %7, %11 : vector<1x128xf32>
    %cst_18 = arith.constant 0.001953125 : f32
    %13 = vector.broadcast %cst_18 : f32 to vector<1x128xf32>
    %14 = arith.mulf %10, %13 : vector<1x128xf32>
    %15 = arith.mulf %12, %12 : vector<1x128xf32>
    %16 = arith.subf %14, %15 : vector<1x128xf32>
    %cst_19 = arith.constant 0.000000e+00 : f32
    %17 = vector.broadcast %cst_19 : f32 to vector<1x128xf32>
    %18 = arith.maximumf %16, %17 : vector<1x128xf32>
    %c0_20 = arith.constant 0 : index
    %c0_21 = arith.constant 0 : index
    %c0_22 = arith.constant 0 : index
    %19 = vector.load %arg1[%c0_20, %c0_21, %c0_22] : memref<2x1x128xf32, #tpu.memory_space<vmem>>, vector<1x1x128xf32>
    %20 = vector.shape_cast %19 : vector<1x1x128xf32> to vector<1x128xf32>
    %cst_23 = arith.constant 9.99999974E-6 : f32
    %21 = vector.broadcast %cst_23 : f32 to vector<1x128xf32>
    %22 = arith.addf %18, %21 : vector<1x128xf32>
    %23 = math.rsqrt %22 : vector<1x128xf32>
    %24 = arith.mulf %20, %23 : vector<1x128xf32>
    %c0_24 = arith.constant 0 : index
    %c0_25 = arith.constant 0 : index
    %c0_26 = arith.constant 0 : index
    %25 = vector.load %arg2[%c0_24, %c0_25, %c0_26] : memref<2x1x128xf32, #tpu.memory_space<vmem>>, vector<1x1x128xf32>
    %26 = vector.shape_cast %25 : vector<1x1x128xf32> to vector<1x128xf32>
    %27 = arith.mulf %12, %24 : vector<1x128xf32>
    %28 = arith.subf %26, %27 : vector<1x128xf32>
    %29 = vector.broadcast %24 : vector<1x128xf32> to vector<512x128xf32>
    %30 = arith.mulf %5, %29 : vector<512x128xf32>
    %31 = vector.broadcast %28 : vector<1x128xf32> to vector<512x128xf32>
    %32 = arith.addf %30, %31 : vector<512x128xf32>
    %cst_27 = arith.constant 0.000000e+00 : f32
    %33 = vector.broadcast %cst_27 : f32 to vector<512x128xf32>
    %34 = arith.maximumf %32, %33 : vector<512x128xf32>
    %35 = vector.shape_cast %34 : vector<512x128xf32> to vector<2x16x16x128xf32>
    %c0_28 = arith.constant 0 : index
    %c1 = arith.constant 1 : index
    %c1_29 = arith.constant 1 : index
    %c0_30 = arith.constant 0 : index
    %36 = vector.load %arg6[%c0_28, %c1, %c1_29, %c0_30] : memref<2x18x18x128xf32, #tpu.memory_space<vmem>>, vector<2x16x16x128xf32>
    tpu.vector_store %arg6[%c0_28, %c1, %c1_29, %c0_30], %35 {strides = array<i32>} : memref<2x18x18x128xf32, #tpu.memory_space<vmem>>, vector<2x16x16x128xf32>,
    %c0_31 = arith.constant 0 : index
    %c0_32 = arith.constant 0 : index
    %c0_33 = arith.constant 0 : index
    %c0_34 = arith.constant 0 : index
    %37 = vector.load %arg6[%c0_31, %c0_32, %c0_33, %c0_34] : memref<2x18x18x128xf32, #tpu.memory_space<vmem>>, vector<2x16x16x128xf32>
    %38 = vector.shape_cast %37 : vector<2x16x16x128xf32> to vector<512x128xf32>
    %c0_35 = arith.constant 0 : index
    %c0_36 = arith.constant 0 : index
    %c1_37 = arith.constant 1 : index
    %c0_38 = arith.constant 0 : index
    %39 = vector.load %arg6[%c0_35, %c0_36, %c1_37, %c0_38] : memref<2x18x18x128xf32, #tpu.memory_space<vmem>>, vector<2x16x16x128xf32>
    %40 = vector.shape_cast %39 : vector<2x16x16x128xf32> to vector<512x128xf32>
    %c0_39 = arith.constant 0 : index
    %c0_40 = arith.constant 0 : index
    %c2 = arith.constant 2 : index
    %c0_41 = arith.constant 0 : index
    %41 = vector.load %arg6[%c0_39, %c0_40, %c2, %c0_41] : memref<2x18x18x128xf32, #tpu.memory_space<vmem>>, vector<2x16x16x128xf32>
    %42 = vector.shape_cast %41 : vector<2x16x16x128xf32> to vector<512x128xf32>
    %c0_42 = arith.constant 0 : index
    %c1_43 = arith.constant 1 : index
    %c0_44 = arith.constant 0 : index
    %c0_45 = arith.constant 0 : index
    %43 = vector.load %arg6[%c0_42, %c1_43, %c0_44, %c0_45] : memref<2x18x18x128xf32, #tpu.memory_space<vmem>>, vector<2x16x16x128xf32>
    %44 = vector.shape_cast %43 : vector<2x16x16x128xf32> to vector<512x128xf32>
    %c0_46 = arith.constant 0 : index
    %c1_47 = arith.constant 1 : index
    %c1_48 = arith.constant 1 : index
    %c0_49 = arith.constant 0 : index
    %45 = vector.load %arg6[%c0_46, %c1_47, %c1_48, %c0_49] : memref<2x18x18x128xf32, #tpu.memory_space<vmem>>, vector<2x16x16x128xf32>
    %46 = vector.shape_cast %45 : vector<2x16x16x128xf32> to vector<512x128xf32>
    %c0_50 = arith.constant 0 : index
    %c1_51 = arith.constant 1 : index
    %c2_52 = arith.constant 2 : index
    %c0_53 = arith.constant 0 : index
    %47 = vector.load %arg6[%c0_50, %c1_51, %c2_52, %c0_53] : memref<2x18x18x128xf32, #tpu.memory_space<vmem>>, vector<2x16x16x128xf32>
    %48 = vector.shape_cast %47 : vector<2x16x16x128xf32> to vector<512x128xf32>
    %c0_54 = arith.constant 0 : index
    %c2_55 = arith.constant 2 : index
    %c0_56 = arith.constant 0 : index
    %c0_57 = arith.constant 0 : index
    %49 = vector.load %arg6[%c0_54, %c2_55, %c0_56, %c0_57] : memref<2x18x18x128xf32, #tpu.memory_space<vmem>>, vector<2x16x16x128xf32>
    %50 = vector.shape_cast %49 : vector<2x16x16x128xf32> to vector<512x128xf32>
    %c0_58 = arith.constant 0 : index
    %c2_59 = arith.constant 2 : index
    %c1_60 = arith.constant 1 : index
    %c0_61 = arith.constant 0 : index
    %51 = vector.load %arg6[%c0_58, %c2_59, %c1_60, %c0_61] : memref<2x18x18x128xf32, #tpu.memory_space<vmem>>, vector<2x16x16x128xf32>
    %52 = vector.shape_cast %51 : vector<2x16x16x128xf32> to vector<512x128xf32>
    %c0_62 = arith.constant 0 : index
    %c2_63 = arith.constant 2 : index
    %c2_64 = arith.constant 2 : index
    %c0_65 = arith.constant 0 : index
    %53 = vector.load %arg6[%c0_62, %c2_63, %c2_64, %c0_65] : memref<2x18x18x128xf32, #tpu.memory_space<vmem>>, vector<2x16x16x128xf32>
    %54 = vector.shape_cast %53 : vector<2x16x16x128xf32> to vector<512x128xf32>
    %55 = tpu.concatenate %38, %40, %42, %44, %46, %48, %50, %52, %54 in 1 : vector<512x128xf32>, vector<512x128xf32>, vector<512x128xf32>, vector<512x128xf32>, vector<512x128xf32>, vector<512x128xf32>, vector<512x128xf32>, vector<512x128xf32>, vector<512x128xf32> -> vector<512x1152xf32>
    %c0_66 = arith.constant 0 : index
    %c0_67 = arith.constant 0 : index
    %c0_68 = arith.constant 0 : index
    %56 = vector.load %arg3[%c0_66, %c0_67, %c0_68] : memref<2x1152x128xf32, #tpu.memory_space<vmem>>, vector<1x1152x128xf32>
    %57 = vector.shape_cast %56 : vector<1x1152x128xf32> to vector<1152x128xf32>
    %cst_69 = arith.constant dense<0.000000e+00> : vector<512x128xf32>
    %58 = tpu.matmul %55, %57, %cst_69 {dimension_numbers = #tpu.dot_dimension_numbers<[1], [0], [0], [1], [0, 0, 1, 1], [], []>} : vector<512x1152xf32>, vector<1152x128xf32>, vector<512x128xf32> -> vector<512x128xf32>
    %c0_70 = arith.constant 0 : index
    %c0_71 = arith.constant 0 : index
    %c0_72 = arith.constant 0 : index
    %59 = vector.load %arg4[%c0_70, %c0_71, %c0_72] : memref<2x1x128xf32, #tpu.memory_space<vmem>>, vector<1x1x128xf32>
    %60 = vector.shape_cast %59 : vector<1x1x128xf32> to vector<1x128xf32>
    %61 = vector.broadcast %60 : vector<1x128xf32> to vector<512x128xf32>
    %62 = arith.addf %58, %61 : vector<512x128xf32>
    %63 = arith.addf %5, %62 : vector<512x128xf32>
    %64 = vector.shape_cast %63 : vector<512x128xf32> to vector<2x16x16x128xf32>
    %c0_73 = arith.constant 0 : index
    %c0_74 = arith.constant 0 : index
    %c0_75 = arith.constant 0 : index
    %c0_76 = arith.constant 0 : index
    %65 = vector.load %arg5[%c0_73, %c0_74, %c0_75, %c0_76] : memref<2x16x16x128xf32, #tpu.memory_space<vmem>>, vector<2x16x16x128xf32>
    tpu.vector_store %arg5[%c0_73, %c0_74, %c0_75, %c0_76], %64 {strides = array<i32>} : memref<2x16x16x128xf32, #tpu.memory_space<vmem>>, vector<2x16x16x128xf32>,
    %c0_77 = arith.constant 0 : index
    %c0_78 = arith.constant 0 : index
    %c0_79 = arith.constant 0 : index
    %c0_80 = arith.constant 0 : index
    %66 = vector.load %arg5[%c0_77, %c0_78, %c0_79, %c0_80] : memref<2x16x16x128xf32, #tpu.memory_space<vmem>>, vector<2x16x16x128xf32>
    %67 = vector.shape_cast %66 : vector<2x16x16x128xf32> to vector<512x128xf32>
    %cst_81 = arith.constant dense<0.000000e+00> : vector<128xf32>
    %68 = vector.multi_reduction <add>, %67, %cst_81 [0] : vector<512x128xf32> to vector<128xf32>
    %69 = vector.shape_cast %68 : vector<128xf32> to vector<1x128xf32>
    %70 = arith.mulf %67, %67 : vector<512x128xf32>
    %cst_82 = arith.constant dense<0.000000e+00> : vector<128xf32>
    %71 = vector.multi_reduction <add>, %70, %cst_82 [0] : vector<512x128xf32> to vector<128xf32>
    %72 = vector.shape_cast %71 : vector<128xf32> to vector<1x128xf32>
    %cst_83 = arith.constant 0.001953125 : f32
    %73 = vector.broadcast %cst_83 : f32 to vector<1x128xf32>
    %74 = arith.mulf %69, %73 : vector<1x128xf32>
    %cst_84 = arith.constant 0.001953125 : f32
    %75 = vector.broadcast %cst_84 : f32 to vector<1x128xf32>
    %76 = arith.mulf %72, %75 : vector<1x128xf32>
    %77 = arith.mulf %74, %74 : vector<1x128xf32>
    %78 = arith.subf %76, %77 : vector<1x128xf32>
    %cst_85 = arith.constant 0.000000e+00 : f32
    %79 = vector.broadcast %cst_85 : f32 to vector<1x128xf32>
    %80 = arith.maximumf %78, %79 : vector<1x128xf32>
    %c1_86 = arith.constant 1 : index
    %c0_87 = arith.constant 0 : index
    %c0_88 = arith.constant 0 : index
    %81 = vector.load %arg1[%c1_86, %c0_87, %c0_88] : memref<2x1x128xf32, #tpu.memory_space<vmem>>, vector<1x1x128xf32>
    %82 = vector.shape_cast %81 : vector<1x1x128xf32> to vector<1x128xf32>
    %cst_89 = arith.constant 9.99999974E-6 : f32
    %83 = vector.broadcast %cst_89 : f32 to vector<1x128xf32>
    %84 = arith.addf %80, %83 : vector<1x128xf32>
    %85 = math.rsqrt %84 : vector<1x128xf32>
    %86 = arith.mulf %82, %85 : vector<1x128xf32>
    %c1_90 = arith.constant 1 : index
    %c0_91 = arith.constant 0 : index
    %c0_92 = arith.constant 0 : index
    %87 = vector.load %arg2[%c1_90, %c0_91, %c0_92] : memref<2x1x128xf32, #tpu.memory_space<vmem>>, vector<1x1x128xf32>
    %88 = vector.shape_cast %87 : vector<1x1x128xf32> to vector<1x128xf32>
    %89 = arith.mulf %74, %86 : vector<1x128xf32>
    %90 = arith.subf %88, %89 : vector<1x128xf32>
    %91 = vector.broadcast %86 : vector<1x128xf32> to vector<512x128xf32>
    %92 = arith.mulf %67, %91 : vector<512x128xf32>
    %93 = vector.broadcast %90 : vector<1x128xf32> to vector<512x128xf32>
    %94 = arith.addf %92, %93 : vector<512x128xf32>
    %cst_93 = arith.constant 0.000000e+00 : f32
    %95 = vector.broadcast %cst_93 : f32 to vector<512x128xf32>
    %96 = arith.maximumf %94, %95 : vector<512x128xf32>
    %97 = vector.shape_cast %96 : vector<512x128xf32> to vector<2x16x16x128xf32>
    %c0_94 = arith.constant 0 : index
    %c1_95 = arith.constant 1 : index
    %c1_96 = arith.constant 1 : index
    %c0_97 = arith.constant 0 : index
    %98 = vector.load %arg6[%c0_94, %c1_95, %c1_96, %c0_97] : memref<2x18x18x128xf32, #tpu.memory_space<vmem>>, vector<2x16x16x128xf32>
    tpu.vector_store %arg6[%c0_94, %c1_95, %c1_96, %c0_97], %97 {strides = array<i32>} : memref<2x18x18x128xf32, #tpu.memory_space<vmem>>, vector<2x16x16x128xf32>,
    %c0_98 = arith.constant 0 : index
    %c0_99 = arith.constant 0 : index
    %c0_100 = arith.constant 0 : index
    %c0_101 = arith.constant 0 : index
    %99 = vector.load %arg6[%c0_98, %c0_99, %c0_100, %c0_101] : memref<2x18x18x128xf32, #tpu.memory_space<vmem>>, vector<2x16x16x128xf32>
    %100 = vector.shape_cast %99 : vector<2x16x16x128xf32> to vector<512x128xf32>
    %c0_102 = arith.constant 0 : index
    %c0_103 = arith.constant 0 : index
    %c1_104 = arith.constant 1 : index
    %c0_105 = arith.constant 0 : index
    %101 = vector.load %arg6[%c0_102, %c0_103, %c1_104, %c0_105] : memref<2x18x18x128xf32, #tpu.memory_space<vmem>>, vector<2x16x16x128xf32>
    %102 = vector.shape_cast %101 : vector<2x16x16x128xf32> to vector<512x128xf32>
    %c0_106 = arith.constant 0 : index
    %c0_107 = arith.constant 0 : index
    %c2_108 = arith.constant 2 : index
    %c0_109 = arith.constant 0 : index
    %103 = vector.load %arg6[%c0_106, %c0_107, %c2_108, %c0_109] : memref<2x18x18x128xf32, #tpu.memory_space<vmem>>, vector<2x16x16x128xf32>
    %104 = vector.shape_cast %103 : vector<2x16x16x128xf32> to vector<512x128xf32>
    %c0_110 = arith.constant 0 : index
    %c1_111 = arith.constant 1 : index
    %c0_112 = arith.constant 0 : index
    %c0_113 = arith.constant 0 : index
    %105 = vector.load %arg6[%c0_110, %c1_111, %c0_112, %c0_113] : memref<2x18x18x128xf32, #tpu.memory_space<vmem>>, vector<2x16x16x128xf32>
    %106 = vector.shape_cast %105 : vector<2x16x16x128xf32> to vector<512x128xf32>
    %c0_114 = arith.constant 0 : index
    %c1_115 = arith.constant 1 : index
    %c1_116 = arith.constant 1 : index
    %c0_117 = arith.constant 0 : index
    %107 = vector.load %arg6[%c0_114, %c1_115, %c1_116, %c0_117] : memref<2x18x18x128xf32, #tpu.memory_space<vmem>>, vector<2x16x16x128xf32>
    %108 = vector.shape_cast %107 : vector<2x16x16x128xf32> to vector<512x128xf32>
    %c0_118 = arith.constant 0 : index
    %c1_119 = arith.constant 1 : index
    %c2_120 = arith.constant 2 : index
    %c0_121 = arith.constant 0 : index
    %109 = vector.load %arg6[%c0_118, %c1_119, %c2_120, %c0_121] : memref<2x18x18x128xf32, #tpu.memory_space<vmem>>, vector<2x16x16x128xf32>
    %110 = vector.shape_cast %109 : vector<2x16x16x128xf32> to vector<512x128xf32>
    %c0_122 = arith.constant 0 : index
    %c2_123 = arith.constant 2 : index
    %c0_124 = arith.constant 0 : index
    %c0_125 = arith.constant 0 : index
    %111 = vector.load %arg6[%c0_122, %c2_123, %c0_124, %c0_125] : memref<2x18x18x128xf32, #tpu.memory_space<vmem>>, vector<2x16x16x128xf32>
    %112 = vector.shape_cast %111 : vector<2x16x16x128xf32> to vector<512x128xf32>
    %c0_126 = arith.constant 0 : index
    %c2_127 = arith.constant 2 : index
    %c1_128 = arith.constant 1 : index
    %c0_129 = arith.constant 0 : index
    %113 = vector.load %arg6[%c0_126, %c2_127, %c1_128, %c0_129] : memref<2x18x18x128xf32, #tpu.memory_space<vmem>>, vector<2x16x16x128xf32>
    %114 = vector.shape_cast %113 : vector<2x16x16x128xf32> to vector<512x128xf32>
    %c0_130 = arith.constant 0 : index
    %c2_131 = arith.constant 2 : index
    %c2_132 = arith.constant 2 : index
    %c0_133 = arith.constant 0 : index
    %115 = vector.load %arg6[%c0_130, %c2_131, %c2_132, %c0_133] : memref<2x18x18x128xf32, #tpu.memory_space<vmem>>, vector<2x16x16x128xf32>
    %116 = vector.shape_cast %115 : vector<2x16x16x128xf32> to vector<512x128xf32>
    %117 = tpu.concatenate %100, %102, %104, %106, %108, %110, %112, %114, %116 in 1 : vector<512x128xf32>, vector<512x128xf32>, vector<512x128xf32>, vector<512x128xf32>, vector<512x128xf32>, vector<512x128xf32>, vector<512x128xf32>, vector<512x128xf32>, vector<512x128xf32> -> vector<512x1152xf32>
    %c1_134 = arith.constant 1 : index
    %c0_135 = arith.constant 0 : index
    %c0_136 = arith.constant 0 : index
    %118 = vector.load %arg3[%c1_134, %c0_135, %c0_136] : memref<2x1152x128xf32, #tpu.memory_space<vmem>>, vector<1x1152x128xf32>
    %119 = vector.shape_cast %118 : vector<1x1152x128xf32> to vector<1152x128xf32>
    %cst_137 = arith.constant dense<0.000000e+00> : vector<512x128xf32>
    %120 = tpu.matmul %117, %119, %cst_137 {dimension_numbers = #tpu.dot_dimension_numbers<[1], [0], [0], [1], [0, 0, 1, 1], [], []>} : vector<512x1152xf32>, vector<1152x128xf32>, vector<512x128xf32> -> vector<512x128xf32>
    %c1_138 = arith.constant 1 : index
    %c0_139 = arith.constant 0 : index
    %c0_140 = arith.constant 0 : index
    %121 = vector.load %arg4[%c1_138, %c0_139, %c0_140] : memref<2x1x128xf32, #tpu.memory_space<vmem>>, vector<1x1x128xf32>
    %122 = vector.shape_cast %121 : vector<1x1x128xf32> to vector<1x128xf32>
    %123 = vector.broadcast %122 : vector<1x128xf32> to vector<512x128xf32>
    %124 = arith.addf %120, %123 : vector<512x128xf32>
    %125 = arith.addf %67, %124 : vector<512x128xf32>
    %126 = vector.shape_cast %125 : vector<512x128xf32> to vector<2x16x16x128xf32>
    %c0_141 = arith.constant 0 : index
    %c0_142 = arith.constant 0 : index
    %c0_143 = arith.constant 0 : index
    %c0_144 = arith.constant 0 : index
    %127 = vector.load %arg5[%c0_141, %c0_142, %c0_143, %c0_144] : memref<2x16x16x128xf32, #tpu.memory_space<vmem>>, vector<2x16x16x128xf32>
    tpu.vector_store %arg5[%c0_141, %c0_142, %c0_143, %c0_144], %126 {strides = array<i32>} : memref<2x16x16x128xf32, #tpu.memory_space<vmem>>, vector<2x16x16x128xf32>,
    return
  }
}

</mosaic_0001>

<llo_original>
// kernel: tpu_custom_call.1
$region0: #{tpu_custom_call.1}
  #allocation0 [shape = 'u32[]', space=smem, size = 0x4, offset = 0x4, fixed_abs, tag = 'smem constant byte address 0x4 - core index']
  #allocation1 [shape = 'u32[144,128]{1,0:T(1,128)}', space=vmem, size = 0x12000, scoped, tag = 'internal scratch']
  #allocation2 [shape = 'f32[2,18,18,128]{3,2,1,0:T(8,128)}', space=vmem, size = 0x6c000, scoped, tag = 'scratch operand']
  %s0 = inlined_call_operand.hbm [shape: f32[2,16,16,128], index: 0, kind: input, shape index: {}]
  %s1 = inlined_call_operand.hbm [shape: f32[2,1,128], index: 1, kind: input, shape index: {}]
  %s2 = inlined_call_operand.hbm [shape: f32[2,1,128], index: 2, kind: input, shape index: {}]
  %s3 = inlined_call_operand.hbm [shape: f32[2,1152,128], index: 3, kind: input, shape index: {}]
  %s4 = inlined_call_operand.hbm [shape: f32[2,1,128], index: 4, kind: input, shape index: {}]
  %s5 = inlined_call_operand.hbm [shape: f32[2,16,16,128], index: 5, kind: output, shape index: {}]
  %s6 = sld [smem:[#allocation0]]
  $region50: #{tpu_custom_call.1} parent=0
    _
  %s8 = ssub.s32 1, %s6
  %s9 = scalar_select 0, %s8, %s6
  $region1: #{tpu_custom_call.1} parent=0
    #allocation3 [shape = 'u8[262144]{0}', space=vmem, size = 0x40000, scoped, tag = 'input window, operand 0, single buffered']
    #allocation4 [shape = 's32[1]{0}', space=sflag, size = 0x4, scoped, tag = 'scoped memory for tpu_custom_call.1']
    #allocation5 [shape = 's32[1]{0}', space=sflag, size = 0x4, scoped, tag = 'scoped memory for tpu_custom_call.1']
    #allocation6 [shape = 'u8[1024]{0}', space=vmem, size = 0x400, scoped, tag = 'input window, operand 1, single buffered']
    #allocation7 [shape = 's32[1]{0}', space=sflag, size = 0x4, scoped, tag = 'scoped memory for tpu_custom_call.1']
    #allocation8 [shape = 'u8[1024]{0}', space=vmem, size = 0x400, scoped, tag = 'input window, operand 2, single buffered']
    #allocation9 [shape = 'u8[1179648]{0}', space=vmem, size = 0x120000, scoped, tag = 'input window, operand 3, single buffered']
    #allocation10 [shape = 's32[1]{0}', space=sflag, size = 0x4, scoped, tag = 'scoped memory for tpu_custom_call.1']
    #allocation11 [shape = 'u8[1024]{0}', space=vmem, size = 0x400, scoped, tag = 'input window, operand 4, single buffered']
    #allocation12 [shape = 'u8[262144]{0}', space=vmem, size = 0x40000, scoped, tag = 'output window, operand 0, single buffered']
    %10 = vsyncpa [#allocation4], 0
    %11 = vsyncpa [#allocation7], 0
    %12 = vsyncpa [#allocation10], 0
    %13 = vsyncpa [#allocation5], 0
    // Predicated region
    $region2: #{tpu_custom_call.1} parent=1 // pred_check
      _
    $region3: #{tpu_custom_call.1} parent=1 // pred_check_branch
      %15 = sbr.rel (0) target = $region5
    $region4: #{tpu_custom_call.1} parent=1 // pred_region
      %s17 = ssub.s32 8192, 8192
      %18 = vsyncadd [#allocation4], %s17
      %s19 = sshll.u32 [#allocation3], 4
      %s20 = int_to_ptr.vmem [resolvable:$true] %s19
      %25 = dma.hbm_to_vmem [thread:$0]  %s0, 8192, %s20, [#allocation4], 128, 128, 8
    $region5: #{tpu_custom_call.1} parent=1 // pred_fallthru
      _
    // Predicated region
    $region6: #{tpu_custom_call.1} parent=1 // pred_check
      _
    $region7: #{tpu_custom_call.1} parent=1 // pred_check_branch
      %27 = sbr.rel (0) target = $region9
    $region8: #{tpu_custom_call.1} parent=1 // pred_region
      %s29 = ssub.s32 32, 32
      %30 = vsyncadd [#allocation7], %s29
      %s31 = sshll.u32 [#allocation6], 4
      %s32 = int_to_ptr.vmem [resolvable:$true] %s31
      %37 = dma.hbm_to_vmem [thread:$0]  %s1, 32, %s32, [#allocation7], 16, 16, 1
    $region9: #{tpu_custom_call.1} parent=1 // pred_fallthru
      _
    // Predicated region
    $region10: #{tpu_custom_call.1} parent=1 // pred_check
      _
    $region11: #{tpu_custom_call.1} parent=1 // pred_check_branch
      %39 = sbr.rel (0) target = $region13
    $region12: #{tpu_custom_call.1} parent=1 // pred_region
      %s41 = ssub.s32 32, 32
      %42 = vsyncadd [#allocation7], %s41
      %s43 = sshll.u32 [#allocation8], 4
      %s44 = int_to_ptr.vmem [resolvable:$true] %s43
      %49 = dma.hbm_to_vmem [thread:$0]  %s2, 32, %s44, [#allocation7], 16, 16, 1
    $region13: #{tpu_custom_call.1} parent=1 // pred_fallthru
      _
    // Predicated region
    $region14: #{tpu_custom_call.1} parent=1 // pred_check
      _
    $region15: #{tpu_custom_call.1} parent=1 // pred_check_branch
      %51 = sbr.rel (0) target = $region17
    $region16: #{tpu_custom_call.1} parent=1 // pred_region
      %s53 = ssub.s32 36864, 36864
      %54 = vsyncadd [#allocation10], %s53
      %s55 = sshll.u32 [#allocation9], 4
      %s56 = int_to_ptr.vmem [resolvable:$true] %s55
      %61 = dma.hbm_to_vmem [thread:$0]  %s3, 36864, %s56, [#allocation10], 128, 128, 8
    $region17: #{tpu_custom_call.1} parent=1 // pred_fallthru
      _
    // Predicated region
    $region18: #{tpu_custom_call.1} parent=1 // pred_check
      _
    $region19: #{tpu_custom_call.1} parent=1 // pred_check_branch
      %63 = sbr.rel (0) target = $region21
    $region20: #{tpu_custom_call.1} parent=1 // pred_region
      %s65 = ssub.s32 32, 32
      %66 = vsyncadd [#allocation10], %s65
      %s67 = sshll.u32 [#allocation11], 4
      %s68 = int_to_ptr.vmem [resolvable:$true] %s67
      %73 = dma.hbm_to_vmem [thread:$0]  %s4, 32, %s68, [#allocation10], 16, 16, 1
    $region21: #{tpu_custom_call.1} parent=1 // pred_fallthru
      _
    // Predicated region
    $region22: #{tpu_custom_call.1} parent=1 // pred_check
      _
    $region23: #{tpu_custom_call.1} parent=1 // pred_check_branch
      %75 = sbr.rel (0) target = $region25
    $region24: #{tpu_custom_call.1} parent=1 // pred_region
      %76 = dma.done [#allocation4], 8192
    $region25: #{tpu_custom_call.1} parent=1 // pred_fallthru
      _
    // Predicated region
    $region26: #{tpu_custom_call.1} parent=1 // pred_check
      _
    $region27: #{tpu_custom_call.1} parent=1 // pred_check_branch
      %78 = sbr.rel (0) target = $region29
    $region28: #{tpu_custom_call.1} parent=1 // pred_region
      %79 = dma.done [#allocation7], 32
    $region29: #{tpu_custom_call.1} parent=1 // pred_fallthru
      _
    // Predicated region
    $region30: #{tpu_custom_call.1} parent=1 // pred_check
      _
    $region31: #{tpu_custom_call.1} parent=1 // pred_check_branch
      %81 = sbr.rel (0) target = $region33
    $region32: #{tpu_custom_call.1} parent=1 // pred_region
      %82 = dma.done [#allocation7], 32
    $region33: #{tpu_custom_call.1} parent=1 // pred_fallthru
      _
    // Predicated region
    $region34: #{tpu_custom_call.1} parent=1 // pred_check
      _
    $region35: #{tpu_custom_call.1} parent=1 // pred_check_branch
      %84 = sbr.rel (0) target = $region37
    $region36: #{tpu_custom_call.1} parent=1 // pred_region
      %85 = dma.done [#allocation10], 36864
    $region37: #{tpu_custom_call.1} parent=1 // pred_fallthru
      _
    // Predicated region
    $region38: #{tpu_custom_call.1} parent=1 // pred_check
      _
    $region39: #{tpu_custom_call.1} parent=1 // pred_check_branch
      %87 = sbr.rel (0) target = $region41
    $region40: #{tpu_custom_call.1} parent=1 // pred_region
      %88 = dma.done [#allocation10], 32
    $region41: #{tpu_custom_call.1} parent=1 // pred_fallthru
      _
    %v89 = vld [vmem:[#allocation3] sm:$0xff]
    %v90 = vld [vmem:[#allocation3 + $0x8] sm:$0xff]
    %v91 = vld [vmem:[#allocation3 + $0x10] sm:$0xff]
    %v92 = vld [vmem:[#allocation3 + $0x18] sm:$0xff]
    %v93 = vld [vmem:[#allocation3 + $0x20] sm:$0xff]
    %v94 = vld [vmem:[#allocation3 + $0x28] sm:$0xff]
    %v95 = vld [vmem:[#allocation3 + $0x30] sm:$0xff]
    %v96 = vld [vmem:[#allocation3 + $0x38] sm:$0xff]
    %v97 = vld [vmem:[#allocation3 + $0x40] sm:$0xff]
    %v98 = vld [vmem:[#allocation3 + $0x48] sm:$0xff]
    %v99 = vld [vmem:[#allocation3 + $0x50] sm:$0xff]
    %v100 = vld [vmem:[#allocation3 + $0x58] sm:$0xff]
    %v101 = vld [vmem:[#allocation3 + $0x60] sm:$0xff]
    %v102 = vld [vmem:[#allocation3 + $0x68] sm:$0xff]
    %v103 = vld [vmem:[#allocation3 + $0x70] sm:$0xff]
    %v104 = vld [vmem:[#allocation3 + $0x78] sm:$0xff]
    %v105 = vld [vmem:[#allocation3 + $0x80] sm:$0xff]
    %v106 = vld [vmem:[#allocation3 + $0x88] sm:$0xff]
    %v107 = vld [vmem:[#allocation3 + $0x90] sm:$0xff]
    %v108 = vld [vmem:[#allocation3 + $0x98] sm:$0xff]
    %v109 = vld [vmem:[#allocation3 + $0xa0] sm:$0xff]
    %v110 = vld [vmem:[#allocation3 + $0xa8] sm:$0xff]
    %v111 = vld [vmem:[#allocation3 + $0xb0] sm:$0xff]
    %v112 = vld [vmem:[#allocation3 + $0xb8] sm:$0xff]
    %v113 = vld [vmem:[#allocation3 + $0xc0] sm:$0xff]
    %v114 = vld [vmem:[#allocation3 + $0xc8] sm:$0xff]
    %v115 = vld [vmem:[#allocation3 + $0xd0] sm:$0xff]
    %v116 = vld [vmem:[#allocation3 + $0xd8] sm:$0xff]
    %v117 = vld [vmem:[#allocation3 + $0xe0] sm:$0xff]
    %v118 = vld [vmem:[#allocation3 + $0xe8] sm:$0xff]
    %v119 = vld [vmem:[#allocation3 + $0xf0] sm:$0xff]
    %v120 = vld [vmem:[#allocation3 + $0xf8] sm:$0xff]
    %v121 = vld [vmem:[#allocation3 + $0x100] sm:$0xff]
    %v122 = vld [vmem:[#allocation3 + $0x108] sm:$0xff]
    %v123 = vld [vmem:[#allocation3 + $0x110] sm:$0xff]
    %v124 = vld [vmem:[#allocation3 + $0x118] sm:$0xff]
    %v125 = vld [vmem:[#allocation3 + $0x120] sm:$0xff]
    %v126 = vld [vmem:[#allocation3 + $0x128] sm:$0xff]
    %v127 = vld [vmem:[#allocation3 + $0x130] sm:$0xff]
    %v128 = vld [vmem:[#allocation3 + $0x138] sm:$0xff]
    %v129 = vld [vmem:[#allocation3 + $0x140] sm:$0xff]
    %v130 = vld [vmem:[#allocation3 + $0x148] sm:$0xff]
    %v131 = vld [vmem:[#allocation3 + $0x150] sm:$0xff]
    %v132 = vld [vmem:[#allocation3 + $0x158] sm:$0xff]
    %v133 = vld [vmem:[#allocation3 + $0x160] sm:$0xff]
    %v134 = vld [vmem:[#allocation3 + $0x168] sm:$0xff]
    %v135 = vld [vmem:[#allocation3 + $0x170] sm:$0xff]
    %v136 = vld [vmem:[#allocation3 + $0x178] sm:$0xff]
    %v137 = vld [vmem:[#allocation3 + $0x180] sm:$0xff]
    %v138 = vld [vmem:[#allocation3 + $0x188] sm:$0xff]
    %v139 = vld [vmem:[#allocation3 + $0x190] sm:$0xff]
    %v140 = vld [vmem:[#allocation3 + $0x198] sm:$0xff]
    %v141 = vld [vmem:[#allocation3 + $0x1a0] sm:$0xff]
    %v142 = vld [vmem:[#allocation3 + $0x1a8] sm:$0xff]
    %v143 = vld [vmem:[#allocation3 + $0x1b0] sm:$0xff]
    %v144 = vld [vmem:[#allocation3 + $0x1b8] sm:$0xff]
    %v145 = vld [vmem:[#allocation3 + $0x1c0] sm:$0xff]
    %v146 = vld [vmem:[#allocation3 + $0x1c8] sm:$0xff]
    %v147 = vld [vmem:[#allocation3 + $0x1d0] sm:$0xff]
    %v148 = vld [vmem:[#allocation3 + $0x1d8] sm:$0xff]
    %v149 = vld [vmem:[#allocation3 + $0x1e0] sm:$0xff]
    %v150 = vld [vmem:[#allocation3 + $0x1e8] sm:$0xff]
    %v151 = vld [vmem:[#allocation3 + $0x1f0] sm:$0xff]
    %v152 = vld [vmem:[#allocation3 + $0x1f8] sm:$0xff]
    %153 = vst [vmem:[#allocation12] sm:$0xff] %v89
    %154 = vst [vmem:[#allocation12 + $0x8] sm:$0xff] %v90
    %155 = vst [vmem:[#allocation12 + $0x10] sm:$0xff] %v91
    %156 = vst [vmem:[#allocation12 + $0x18] sm:$0xff] %v92
    %157 = vst [vmem:[#allocation12 + $0x20] sm:$0xff] %v93
    %158 = vst [vmem:[#allocation12 + $0x28] sm:$0xff] %v94
    %159 = vst [vmem:[#allocation12 + $0x30] sm:$0xff] %v95
    %160 = vst [vmem:[#allocation12 + $0x38] sm:$0xff] %v96
    %161 = vst [vmem:[#allocation12 + $0x40] sm:$0xff] %v97
    %162 = vst [vmem:[#allocation12 + $0x48] sm:$0xff] %v98
    %163 = vst [vmem:[#allocation12 + $0x50] sm:$0xff] %v99
    %164 = vst [vmem:[#allocation12 + $0x58] sm:$0xff] %v100
    %165 = vst [vmem:[#allocation12 + $0x60] sm:$0xff] %v101
    %166 = vst [vmem:[#allocation12 + $0x68] sm:$0xff] %v102
    %167 = vst [vmem:[#allocation12 + $0x70] sm:$0xff] %v103
    %168 = vst [vmem:[#allocation12 + $0x78] sm:$0xff] %v104
    %169 = vst [vmem:[#allocation12 + $0x80] sm:$0xff] %v105
    %170 = vst [vmem:[#allocation12 + $0x88] sm:$0xff] %v106
    %171 = vst [vmem:[#allocation12 + $0x90] sm:$0xff] %v107
    %172 = vst [vmem:[#allocation12 + $0x98] sm:$0xff] %v108
    %173 = vst [vmem:[#allocation12 + $0xa0] sm:$0xff] %v109
    %174 = vst [vmem:[#allocation12 + $0xa8] sm:$0xff] %v110
    %175 = vst [vmem:[#allocation12 + $0xb0] sm:$0xff] %v111
    %176 = vst [vmem:[#allocation12 + $0xb8] sm:$0xff] %v112
    %177 = vst [vmem:[#allocation12 + $0xc0] sm:$0xff] %v113
    %178 = vst [vmem:[#allocation12 + $0xc8] sm:$0xff] %v114
    %179 = vst [vmem:[#allocation12 + $0xd0] sm:$0xff] %v115
    %180 = vst [vmem:[#allocation12 + $0xd8] sm:$0xff] %v116
    %181 = vst [vmem:[#allocation12 + $0xe0] sm:$0xff] %v117
    %182 = vst [vmem:[#allocation12 + $0xe8] sm:$0xff] %v118
    %183 = vst [vmem:[#allocation12 + $0xf0] sm:$0xff] %v119
    %184 = vst [vmem:[#allocation12 + $0xf8] sm:$0xff] %v120
    %185 = vst [vmem:[#allocation12 + $0x100] sm:$0xff] %v121
    %186 = vst [vmem:[#allocation12 + $0x108] sm:$0xff] %v122
    %187 = vst [vmem:[#allocation12 + $0x110] sm:$0xff] %v123
    %188 = vst [vmem:[#allocation12 + $0x118] sm:$0xff] %v124
    %189 = vst [vmem:[#allocation12 + $0x120] sm:$0xff] %v125
    %190 = vst [vmem:[#allocation12 + $0x128] sm:$0xff] %v126
    %191 = vst [vmem:[#allocation12 + $0x130] sm:$0xff] %v127
    %192 = vst [vmem:[#allocation12 + $0x138] sm:$0xff] %v128
    %193 = vst [vmem:[#allocation12 + $0x140] sm:$0xff] %v129
    %194 = vst [vmem:[#allocation12 + $0x148] sm:$0xff] %v130
    %195 = vst [vmem:[#allocation12 + $0x150] sm:$0xff] %v131
    %196 = vst [vmem:[#allocation12 + $0x158] sm:$0xff] %v132
    %197 = vst [vmem:[#allocation12 + $0x160] sm:$0xff] %v133
    %198 = vst [vmem:[#allocation12 + $0x168] sm:$0xff] %v134
    %199 = vst [vmem:[#allocation12 + $0x170] sm:$0xff] %v135
    %200 = vst [vmem:[#allocation12 + $0x178] sm:$0xff] %v136
    %201 = vst [vmem:[#allocation12 + $0x180] sm:$0xff] %v137
    %202 = vst [vmem:[#allocation12 + $0x188] sm:$0xff] %v138
    %203 = vst [vmem:[#allocation12 + $0x190] sm:$0xff] %v139
    %204 = vst [vmem:[#allocation12 + $0x198] sm:$0xff] %v140
    %205 = vst [vmem:[#allocation12 + $0x1a0] sm:$0xff] %v141
    %206 = vst [vmem:[#allocation12 + $0x1a8] sm:$0xff] %v142
    %207 = vst [vmem:[#allocation12 + $0x1b0] sm:$0xff] %v143
    %208 = vst [vmem:[#allocation12 + $0x1b8] sm:$0xff] %v144
    %209 = vst [vmem:[#allocation12 + $0x1c0] sm:$0xff] %v145
    %210 = vst [vmem:[#allocation12 + $0x1c8] sm:$0xff] %v146
    %211 = vst [vmem:[#allocation12 + $0x1d0] sm:$0xff] %v147
    %212 = vst [vmem:[#allocation12 + $0x1d8] sm:$0xff] %v148
    %213 = vst [vmem:[#allocation12 + $0x1e0] sm:$0xff] %v149
    %214 = vst [vmem:[#allocation12 + $0x1e8] sm:$0xff] %v150
    %215 = vst [vmem:[#allocation12 + $0x1f0] sm:$0xff] %v151
    %216 = vst [vmem:[#allocation12 + $0x1f8] sm:$0xff] %v152
    %217 = vst [vmem:[#allocation2] sm:$0xff] 0.0
    %218 = vst [vmem:[#allocation2 + $0x8] sm:$0xff] 0.0
    %219 = vst [vmem:[#allocation2 + $0x10] sm:$0x3] 0.0
    %220 = vst [vmem:[#allocation2 + $0x18] sm:$0xff] 0.0
    %221 = vst [vmem:[#allocation2 + $0x20] sm:$0xff] 0.0
    %222 = vst [vmem:[#allocation2 + $0x28] sm:$0x3] 0.0
    %223 = vst [vmem:[#allocation2 + $0x30] sm:$0xff] 0.0
    %224 = vst [vmem:[#allocation2 + $0x38] sm:$0xff] 0.0
    %225 = vst [vmem:[#allocation2 + $0x40] sm:$0x3] 0.0
    %226 = vst [vmem:[#allocation2 + $0x48] sm:$0xff] 0.0
    %227 = vst [vmem:[#allocation2 + $0x50] sm:$0xff] 0.0
    %228 = vst [vmem:[#allocation2 + $0x58] sm:$0x3] 0.0
    %229 = vst [vmem:[#allocation2 + $0x60] sm:$0xff] 0.0
    %230 = vst [vmem:[#allocation2 + $0x68] sm:$0xff] 0.0
    %231 = vst [vmem:[#allocation2 + $0x70] sm:$0x3] 0.0
    %232 = vst [vmem:[#allocation2 + $0x78] sm:$0xff] 0.0
    %233 = vst [vmem:[#allocation2 + $0x80] sm:$0xff] 0.0
    %234 = vst [vmem:[#allocation2 + $0x88] sm:$0x3] 0.0
    %235 = vst [vmem:[#allocation2 + $0x90] sm:$0xff] 0.0
    %236 = vst [vmem:[#allocation2 + $0x98] sm:$0xff] 0.0
    %237 = vst [vmem:[#allocation2 + $0xa0] sm:$0x3] 0.0
    %238 = vst [vmem:[#allocation2 + $0xa8] sm:$0xff] 0.0
    %239 = vst [vmem:[#allocation2 + $0xb0] sm:$0xff] 0.0
    %240 = vst [vmem:[#allocation2 + $0xb8] sm:$0x3] 0.0
    %241 = vst [vmem:[#allocation2 + $0xc0] sm:$0xff] 0.0
    %242 = vst [vmem:[#allocation2 + $0xc8] sm:$0xff] 0.0
    %243 = vst [vmem:[#allocation2 + $0xd0] sm:$0x3] 0.0
    %244 = vst [vmem:[#allocation2 + $0xd8] sm:$0xff] 0.0
    %245 = vst [vmem:[#allocation2 + $0xe0] sm:$0xff] 0.0
    %246 = vst [vmem:[#allocation2 + $0xe8] sm:$0x3] 0.0
    %247 = vst [vmem:[#allocation2 + $0xf0] sm:$0xff] 0.0
    %248 = vst [vmem:[#allocation2 + $0xf8] sm:$0xff] 0.0
    %249 = vst [vmem:[#allocation2 + $0x100] sm:$0x3] 0.0
    %250 = vst [vmem:[#allocation2 + $0x108] sm:$0xff] 0.0
    %251 = vst [vmem:[#allocation2 + $0x110] sm:$0xff] 0.0
    %252 = vst [vmem:[#allocation2 + $0x118] sm:$0x3] 0.0
    %253 = vst [vmem:[#allocation2 + $0x120] sm:$0xff] 0.0
    %254 = vst [vmem:[#allocation2 + $0x128] sm:$0xff] 0.0
    %255 = vst [vmem:[#allocation2 + $0x130] sm:$0x3] 0.0
    %256 = vst [vmem:[#allocation2 + $0x138] sm:$0xff] 0.0
    %257 = vst [vmem:[#allocation2 + $0x140] sm:$0xff] 0.0
    %258 = vst [vmem:[#allocation2 + $0x148] sm:$0x3] 0.0
    %259 = vst [vmem:[#allocation2 + $0x150] sm:$0xff] 0.0
    %260 = vst [vmem:[#allocation2 + $0x158] sm:$0xff] 0.0
    %261 = vst [vmem:[#allocation2 + $0x160] sm:$0x3] 0.0
    %262 = vst [vmem:[#allocation2 + $0x168] sm:$0xff] 0.0
    %263 = vst [vmem:[#allocation2 + $0x170] sm:$0xff] 0.0
    %264 = vst [vmem:[#allocation2 + $0x178] sm:$0x3] 0.0
    %265 = vst [vmem:[#allocation2 + $0x180] sm:$0xff] 0.0
    %266 = vst [vmem:[#allocation2 + $0x188] sm:$0xff] 0.0
    %267 = vst [vmem:[#allocation2 + $0x190] sm:$0x3] 0.0
    %268 = vst [vmem:[#allocation2 + $0x198] sm:$0xff] 0.0
    %269 = vst [vmem:[#allocation2 + $0x1a0] sm:$0xff] 0.0
    %270 = vst [vmem:[#allocation2 + $0x1a8] sm:$0x3] 0.0
    %271 = vst [vmem:[#allocation2 + $0x1b0] sm:$0xff] 0.0
    %272 = vst [vmem:[#allocation2 + $0x1b8] sm:$0xff] 0.0
    %273 = vst [vmem:[#allocation2 + $0x1c0] sm:$0x3] 0.0
    %274 = vst [vmem:[#allocation2 + $0x1c8] sm:$0xff] 0.0
    %275 = vst [vmem:[#allocation2 + $0x1d0] sm:$0xff] 0.0
    %276 = vst [vmem:[#allocation2 + $0x1d8] sm:$0x3] 0.0
    %277 = vst [vmem:[#allocation2 + $0x1e0] sm:$0xff] 0.0
    %278 = vst [vmem:[#allocation2 + $0x1e8] sm:$0xff] 0.0
    %279 = vst [vmem:[#allocation2 + $0x1f0] sm:$0x3] 0.0
    %280 = vst [vmem:[#allocation2 + $0x1f8] sm:$0xff] 0.0
    %281 = vst [vmem:[#allocation2 + $0x200] sm:$0xff] 0.0
    %282 = vst [vmem:[#allocation2 + $0x208] sm:$0x3] 0.0
    %283 = vst [vmem:[#allocation2 + $0x210] sm:$0xff] 0.0
    %284 = vst [vmem:[#allocation2 + $0x218] sm:$0xff] 0.0
    %285 = vst [vmem:[#allocation2 + $0x220] sm:$0x3] 0.0
    %286 = vst [vmem:[#allocation2 + $0x228] sm:$0xff] 0.0
    %287 = vst [vmem:[#allocation2 + $0x230] sm:$0xff] 0.0
    %288 = vst [vmem:[#allocation2 + $0x238] sm:$0x3] 0.0
    %289 = vst [vmem:[#allocation2 + $0x240] sm:$0xff] 0.0
    %290 = vst [vmem:[#allocation2 + $0x248] sm:$0xff] 0.0
    %291 = vst [vmem:[#allocation2 + $0x250] sm:$0x3] 0.0
    %292 = vst [vmem:[#allocation2 + $0x258] sm:$0xff] 0.0
    %293 = vst [vmem:[#allocation2 + $0x260] sm:$0xff] 0.0
    %294 = vst [vmem:[#allocation2 + $0x268] sm:$0x3] 0.0
    %295 = vst [vmem:[#allocation2 + $0x270] sm:$0xff] 0.0
    %296 = vst [vmem:[#allocation2 + $0x278] sm:$0xff] 0.0
    %297 = vst [vmem:[#allocation2 + $0x280] sm:$0x3] 0.0
    %298 = vst [vmem:[#allocation2 + $0x288] sm:$0xff] 0.0
    %299 = vst [vmem:[#allocation2 + $0x290] sm:$0xff] 0.0
    %300 = vst [vmem:[#allocation2 + $0x298] sm:$0x3] 0.0
    %301 = vst [vmem:[#allocation2 + $0x2a0] sm:$0xff] 0.0
    %302 = vst [vmem:[#allocation2 + $0x2a8] sm:$0xff] 0.0
    %303 = vst [vmem:[#allocation2 + $0x2b0] sm:$0x3] 0.0
    %304 = vst [vmem:[#allocation2 + $0x2b8] sm:$0xff] 0.0
    %305 = vst [vmem:[#allocation2 + $0x2c0] sm:$0xff] 0.0
    %306 = vst [vmem:[#allocation2 + $0x2c8] sm:$0x3] 0.0
    %307 = vst [vmem:[#allocation2 + $0x2d0] sm:$0xff] 0.0
    %308 = vst [vmem:[#allocation2 + $0x2d8] sm:$0xff] 0.0
    %309 = vst [vmem:[#allocation2 + $0x2e0] sm:$0x3] 0.0
    %310 = vst [vmem:[#allocation2 + $0x2e8] sm:$0xff] 0.0
    %311 = vst [vmem:[#allocation2 + $0x2f0] sm:$0xff] 0.0
    %312 = vst [vmem:[#allocation2 + $0x2f8] sm:$0x3] 0.0
    %313 = vst [vmem:[#allocation2 + $0x300] sm:$0xff] 0.0
    %314 = vst [vmem:[#allocation2 + $0x308] sm:$0xff] 0.0
    %315 = vst [vmem:[#allocation2 + $0x310] sm:$0x3] 0.0
    %316 = vst [vmem:[#allocation2 + $0x318] sm:$0xff] 0.0
    %317 = vst [vmem:[#allocation2 + $0x320] sm:$0xff] 0.0
    %318 = vst [vmem:[#allocation2 + $0x328] sm:$0x3] 0.0
    %319 = vst [vmem:[#allocation2 + $0x330] sm:$0xff] 0.0
    %320 = vst [vmem:[#allocation2 + $0x338] sm:$0xff] 0.0
    %321 = vst [vmem:[#allocation2 + $0x340] sm:$0x3] 0.0
    %322 = vst [vmem:[#allocation2 + $0x348] sm:$0xff] 0.0
    %323 = vst [vmem:[#allocation2 + $0x350] sm:$0xff] 0.0
    %324 = vst [vmem:[#allocation2 + $0x358] sm:$0x3] 0.0
    %v325 = vld [vmem:[#allocation12] sm:$0xff]
    %v326 = vld [vmem:[#allocation12 + $0x8] sm:$0xff]
    %v327 = vld [vmem:[#allocation12 + $0x10] sm:$0xff]
    %v328 = vld [vmem:[#allocation12 + $0x18] sm:$0xff]
    %v329 = vld [vmem:[#allocation12 + $0x20] sm:$0xff]
    %v330 = vld [vmem:[#allocation12 + $0x28] sm:$0xff]
    %v331 = vld [vmem:[#allocation12 + $0x30] sm:$0xff]
    %v332 = vld [vmem:[#allocation12 + $0x38] sm:$0xff]
    %v333 = vld [vmem:[#allocation12 + $0x40] sm:$0xff]
    %v334 = vld [vmem:[#allocation12 + $0x48] sm:$0xff]
    %v335 = vld [vmem:[#allocation12 + $0x50] sm:$0xff]
    %v336 = vld [vmem:[#allocation12 + $0x58] sm:$0xff]
    %v337 = vld [vmem:[#allocation12 + $0x60] sm:$0xff]
    %v338 = vld [vmem:[#allocation12 + $0x68] sm:$0xff]
    %v339 = vld [vmem:[#allocation12 + $0x70] sm:$0xff]
    %v340 = vld [vmem:[#allocation12 + $0x78] sm:$0xff]
    %v341 = vld [vmem:[#allocation12 + $0x80] sm:$0xff]
    %v342 = vld [vmem:[#allocation12 + $0x88] sm:$0xff]
    %v343 = vld [vmem:[#allocation12 + $0x90] sm:$0xff]
    %v344 = vld [vmem:[#allocation12 + $0x98] sm:$0xff]
    %v345 = vld [vmem:[#allocation12 + $0xa0] sm:$0xff]
    %v346 = vld [vmem:[#allocation12 + $0xa8] sm:$0xff]
    %v347 = vld [vmem:[#allocation12 + $0xb0] sm:$0xff]
    %v348 = vld [vmem:[#allocation12 + $0xb8] sm:$0xff]
    %v349 = vld [vmem:[#allocation12 + $0xc0] sm:$0xff]
    %v350 = vld [vmem:[#allocation12 + $0xc8] sm:$0xff]
    %v351 = vld [vmem:[#allocation12 + $0xd0] sm:$0xff]
    %v352 = vld [vmem:[#allocation12 + $0xd8] sm:$0xff]
    %v353 = vld [vmem:[#allocation12 + $0xe0] sm:$0xff]
    %v354 = vld [vmem:[#allocation12 + $0xe8] sm:$0xff]
    %v355 = vld [vmem:[#allocation12 + $0xf0] sm:$0xff]
    %v356 = vld [vmem:[#allocation12 + $0xf8] sm:$0xff]
    %v357 = vld [vmem:[#allocation12 + $0x100] sm:$0xff]
    %v358 = vld [vmem:[#allocation12 + $0x108] sm:$0xff]
    %v359 = vld [vmem:[#allocation12 + $0x110] sm:$0xff]
    %v360 = vld [vmem:[#allocation12 + $0x118] sm:$0xff]
    %v361 = vld [vmem:[#allocation12 + $0x120] sm:$0xff]
    %v362 = vld [vmem:[#allocation12 + $0x128] sm:$0xff]
    %v363 = vld [vmem:[#allocation12 + $0x130] sm:$0xff]
    %v364 = vld [vmem:[#allocation12 + $0x138] sm:$0xff]
    %v365 = vld [vmem:[#allocation12 + $0x140] sm:$0xff]
    %v366 = vld [vmem:[#allocation12 + $0x148] sm:$0xff]
    %v367 = vld [vmem:[#allocation12 + $0x150] sm:$0xff]
    %v368 = vld [vmem:[#allocation12 + $0x158] sm:$0xff]
    %v369 = vld [vmem:[#allocation12 + $0x160] sm:$0xff]
    %v370 = vld [vmem:[#allocation12 + $0x168] sm:$0xff]
    %v371 = vld [vmem:[#allocation12 + $0x170] sm:$0xff]
    %v372 = vld [vmem:[#allocation12 + $0x178] sm:$0xff]
    %v373 = vld [vmem:[#allocation12 + $0x180] sm:$0xff]
    %v374 = vld [vmem:[#allocation12 + $0x188] sm:$0xff]
    %v375 = vld [vmem:[#allocation12 + $0x190] sm:$0xff]
    %v376 = vld [vmem:[#allocation12 + $0x198] sm:$0xff]
    %v377 = vld [vmem:[#allocation12 + $0x1a0] sm:$0xff]
    %v378 = vld [vmem:[#allocation12 + $0x1a8] sm:$0xff]
    %v379 = vld [vmem:[#allocation12 + $0x1b0] sm:$0xff]
    %v380 = vld [vmem:[#allocation12 + $0x1b8] sm:$0xff]
    %v381 = vld [vmem:[#allocation12 + $0x1c0] sm:$0xff]
    %v382 = vld [vmem:[#allocation12 + $0x1c8] sm:$0xff]
    %v383 = vld [vmem:[#allocation12 + $0x1d0] sm:$0xff]
    %v384 = vld [vmem:[#allocation12 + $0x1d8] sm:$0xff]
    %v385 = vld [vmem:[#allocation12 + $0x1e0] sm:$0xff]
    %v386 = vld [vmem:[#allocation12 + $0x1e8] sm:$0xff]
    %v387 = vld [vmem:[#allocation12 + $0x1f0] sm:$0xff]
    %v388 = vld [vmem:[#allocation12 + $0x1f8] sm:$0xff]
    %v389 = vadd.f32 %v325, %v326
    %v390 = vadd.f32 %v389, %v327
    %v391 = vadd.f32 %v390, %v328
    %v392 = vadd.f32 %v391, %v329
    %v393 = vadd.f32 %v392, %v330
    %v394 = vadd.f32 %v393, %v331
    %v395 = vadd.f32 %v394, %v332
    %v396 = vadd.f32 %v395, %v333
    %v397 = vadd.f32 %v396, %v334
    %v398 = vadd.f32 %v397, %v335
    %v399 = vadd.f32 %v398, %v336
    %v400 = vadd.f32 %v399, %v337
    %v401 = vadd.f32 %v400, %v338
    %v402 = vadd.f32 %v401, %v339
    %v403 = vadd.f32 %v402, %v340
    %v404 = vadd.f32 %v403, %v341
    %v405 = vadd.f32 %v404, %v342
    %v406 = vadd.f32 %v405, %v343
    %v407 = vadd.f32 %v406, %v344
    %v408 = vadd.f32 %v407, %v345
    %v409 = vadd.f32 %v408, %v346
    %v410 = vadd.f32 %v409, %v347
    %v411 = vadd.f32 %v410, %v348
    %v412 = vadd.f32 %v411, %v349
    %v413 = vadd.f32 %v412, %v350
    %v414 = vadd.f32 %v413, %v351
    %v415 = vadd.f32 %v414, %v352
    %v416 = vadd.f32 %v415, %v353
    %v417 = vadd.f32 %v416, %v354
    %v418 = vadd.f32 %v417, %v355
    %v419 = vadd.f32 %v418, %v356
    %v420 = vadd.f32 %v419, %v357
    %v421 = vadd.f32 %v420, %v358
    %v422 = vadd.f32 %v421, %v359
    %v423 = vadd.f32 %v422, %v360
    %v424 = vadd.f32 %v423, %v361
    %v425 = vadd.f32 %v424, %v362
    %v426 = vadd.f32 %v425, %v363
    %v427 = vadd.f32 %v426, %v364
    %v428 = vadd.f32 %v427, %v365
    %v429 = vadd.f32 %v428, %v366
    %v430 = vadd.f32 %v429, %v367
    %v431 = vadd.f32 %v430, %v368
    %v432 = vadd.f32 %v431, %v369
    %v433 = vadd.f32 %v432, %v370
    %v434 = vadd.f32 %v433, %v371
    %v435 = vadd.f32 %v434, %v372
    %v436 = vadd.f32 %v435, %v373
    %v437 = vadd.f32 %v436, %v374
    %v438 = vadd.f32 %v437, %v375
    %v439 = vadd.f32 %v438, %v376
    %v440 = vadd.f32 %v439, %v377
    %v441 = vadd.f32 %v440, %v378
    %v442 = vadd.f32 %v441, %v379
    %v443 = vadd.f32 %v442, %v380
    %v444 = vadd.f32 %v443, %v381
    %v445 = vadd.f32 %v444, %v382
    %v446 = vadd.f32 %v445, %v383
    %v447 = vadd.f32 %v446, %v384
    %v448 = vadd.f32 %v447, %v385
    %v449 = vadd.f32 %v448, %v386
    %v450 = vadd.f32 %v449, %v387
    %v451 = vadd.f32 %v450, %v388
    %v452 = vrot.slane %v451, 4
    %v453 = vadd.f32 %v451, %v452
    %v454 = vrot.slane %v453, 2
    %v455 = vadd.f32 %v453, %v454
    %v456 = vrot.slane %v455, 1
    %v457 = vadd.f32 %v455, %v456
    %v458 = vmul.f32 %v325, %v325
    %v459 = vmul.f32 %v326, %v326
    %v460 = vmul.f32 %v327, %v327
    %v461 = vmul.f32 %v328, %v328
    %v462 = vmul.f32 %v329, %v329
    %v463 = vmul.f32 %v330, %v330
    %v464 = vmul.f32 %v331, %v331
    %v465 = vmul.f32 %v332, %v332
    %v466 = vmul.f32 %v333, %v333
    %v467 = vmul.f32 %v334, %v334
    %v468 = vmul.f32 %v335, %v335
    %v469 = vmul.f32 %v336, %v336
    %v470 = vmul.f32 %v337, %v337
    %v471 = vmul.f32 %v338, %v338
    %v472 = vmul.f32 %v339, %v339
    %v473 = vmul.f32 %v340, %v340
    %v474 = vmul.f32 %v341, %v341
    %v475 = vmul.f32 %v342, %v342
    %v476 = vmul.f32 %v343, %v343
    %v477 = vmul.f32 %v344, %v344
    %v478 = vmul.f32 %v345, %v345
    %v479 = vmul.f32 %v346, %v346
    %v480 = vmul.f32 %v347, %v347
    %v481 = vmul.f32 %v348, %v348
    %v482 = vmul.f32 %v349, %v349
    %v483 = vmul.f32 %v350, %v350
    %v484 = vmul.f32 %v351, %v351
    %v485 = vmul.f32 %v352, %v352
    %v486 = vmul.f32 %v353, %v353
    %v487 = vmul.f32 %v354, %v354
    %v488 = vmul.f32 %v355, %v355
    %v489 = vmul.f32 %v356, %v356
    %v490 = vmul.f32 %v357, %v357
    %v491 = vmul.f32 %v358, %v358
    %v492 = vmul.f32 %v359, %v359
    %v493 = vmul.f32 %v360, %v360
    %v494 = vmul.f32 %v361, %v361
    %v495 = vmul.f32 %v362, %v362
    %v496 = vmul.f32 %v363, %v363
    %v497 = vmul.f32 %v364, %v364
    %v498 = vmul.f32 %v365, %v365
    %v499 = vmul.f32 %v366, %v366
    %v500 = vmul.f32 %v367, %v367
    %v501 = vmul.f32 %v368, %v368
    %v502 = vmul.f32 %v369, %v369
    %v503 = vmul.f32 %v370, %v370
    %v504 = vmul.f32 %v371, %v371
    %v505 = vmul.f32 %v372, %v372
    %v506 = vmul.f32 %v373, %v373
    %v507 = vmul.f32 %v374, %v374
    %v508 = vmul.f32 %v375, %v375
    %v509 = vmul.f32 %v376, %v376
    %v510 = vmul.f32 %v377, %v377
    %v511 = vmul.f32 %v378, %v378
    %v512 = vmul.f32 %v379, %v379
    %v513 = vmul.f32 %v380, %v380
    %v514 = vmul.f32 %v381, %v381
    %v515 = vmul.f32 %v382, %v382
    %v516 = vmul.f32 %v383, %v383
    %v517 = vmul.f32 %v384, %v384
    %v518 = vmul.f32 %v385, %v385
    %v519 = vmul.f32 %v386, %v386
    %v520 = vmul.f32 %v387, %v387
    %v521 = vmul.f32 %v388, %v388
    %v522 = vadd.f32 %v458, %v459
    %v523 = vadd.f32 %v522, %v460
    %v524 = vadd.f32 %v523, %v461
    %v525 = vadd.f32 %v524, %v462
    %v526 = vadd.f32 %v525, %v463
    %v527 = vadd.f32 %v526, %v464
    %v528 = vadd.f32 %v527, %v465
    %v529 = vadd.f32 %v528, %v466
    %v530 = vadd.f32 %v529, %v467
    %v531 = vadd.f32 %v530, %v468
    %v532 = vadd.f32 %v531, %v469
    %v533 = vadd.f32 %v532, %v470
    %v534 = vadd.f32 %v533, %v471
    %v535 = vadd.f32 %v534, %v472
    %v536 = vadd.f32 %v535, %v473
    %v537 = vadd.f32 %v536, %v474
    %v538 = vadd.f32 %v537, %v475
    %v539 = vadd.f32 %v538, %v476
    %v540 = vadd.f32 %v539, %v477
    %v541 = vadd.f32 %v540, %v478
    %v542 = vadd.f32 %v541, %v479
    %v543 = vadd.f32 %v542, %v480
    %v544 = vadd.f32 %v543, %v481
    %v545 = vadd.f32 %v544, %v482
    %v546 = vadd.f32 %v545, %v483
    %v547 = vadd.f32 %v546, %v484
    %v548 = vadd.f32 %v547, %v485
    %v549 = vadd.f32 %v548, %v486
    %v550 = vadd.f32 %v549, %v487
    %v551 = vadd.f32 %v550, %v488
    %v552 = vadd.f32 %v551, %v489
    %v553 = vadd.f32 %v552, %v490
    %v554 = vadd.f32 %v553, %v491
    %v555 = vadd.f32 %v554, %v492
    %v556 = vadd.f32 %v555, %v493
    %v557 = vadd.f32 %v556, %v494
    %v558 = vadd.f32 %v557, %v495
    %v559 = vadd.f32 %v558, %v496
    %v560 = vadd.f32 %v559, %v497
    %v561 = vadd.f32 %v560, %v498
    %v562 = vadd.f32 %v561, %v499
    %v563 = vadd.f32 %v562, %v500
    %v564 = vadd.f32 %v563, %v501
    %v565 = vadd.f32 %v564, %v502
    %v566 = vadd.f32 %v565, %v503
    %v567 = vadd.f32 %v566, %v504
    %v568 = vadd.f32 %v567, %v505
    %v569 = vadd.f32 %v568, %v506
    %v570 = vadd.f32 %v569, %v507
    %v571 = vadd.f32 %v570, %v508
    %v572 = vadd.f32 %v571, %v509
    %v573 = vadd.f32 %v572, %v510
    %v574 = vadd.f32 %v573, %v511
    %v575 = vadd.f32 %v574, %v512
    %v576 = vadd.f32 %v575, %v513
    %v577 = vadd.f32 %v576, %v514
    %v578 = vadd.f32 %v577, %v515
    %v579 = vadd.f32 %v578, %v516
    %v580 = vadd.f32 %v579, %v517
    %v581 = vadd.f32 %v580, %v518
    %v582 = vadd.f32 %v581, %v519
    %v583 = vadd.f32 %v582, %v520
    %v584 = vadd.f32 %v583, %v521
    %v585 = vrot.slane %v584, 4
    %v586 = vadd.f32 %v584, %v585
    %v587 = vrot.slane %v586, 2
    %v588 = vadd.f32 %v586, %v587
    %v589 = vrot.slane %v588, 1
    %v590 = vadd.f32 %v588, %v589
    %v591 = vmul.f32 %v457, 0.001953125
    %v592 = vmul.f32 %v590, 0.001953125
    %v593 = vmul.f32 %v591, %v591
    %v594 = vsub.f32 %v592, %v593
    %v595 = vmax.f32 %v594, 0.0
    %v596 = vld [vmem:[#allocation6] sm:$0x1]
    %v597 = vadd.f32 %v595, 1e-05
    %v598 = vrsqrt.pop %v597
    %v599 = vmul.f32 %v596, %v598
    %v600 = vld [vmem:[#allocation8] sm:$0x1]
    %v601 = vmul.f32 %v591, %v599
    %v602 = vsub.f32 %v600, %v601
    %v604 = vlaneseq
    %v605 = vshrl.u32 %v604, 7
    %v606 = vsub.s32 0, %v605
    %v607 = vrot.slane %v599, %v606
    %v609 = vmul.f32 %v325, %v607
    %v610 = vmul.f32 %v326, %v607
    %v611 = vmul.f32 %v327, %v607
    %v612 = vmul.f32 %v328, %v607
    %v613 = vmul.f32 %v329, %v607
    %v614 = vmul.f32 %v330, %v607
    %v615 = vmul.f32 %v331, %v607
    %v616 = vmul.f32 %v332, %v607
    %v617 = vmul.f32 %v333, %v607
    %v618 = vmul.f32 %v334, %v607
    %v619 = vmul.f32 %v335, %v607
    %v620 = vmul.f32 %v336, %v607
    %v621 = vmul.f32 %v337, %v607
    %v622 = vmul.f32 %v338, %v607
    %v623 = vmul.f32 %v339, %v607
    %v624 = vmul.f32 %v340, %v607
    %v625 = vmul.f32 %v341, %v607
    %v626 = vmul.f32 %v342, %v607
    %v627 = vmul.f32 %v343, %v607
    %v628 = vmul.f32 %v344, %v607
    %v629 = vmul.f32 %v345, %v607
    %v630 = vmul.f32 %v346, %v607
    %v631 = vmul.f32 %v347, %v607
    %v632 = vmul.f32 %v348, %v607
    %v633 = vmul.f32 %v349, %v607
    %v634 = vmul.f32 %v350, %v607
    %v635 = vmul.f32 %v351, %v607
    %v636 = vmul.f32 %v352, %v607
    %v637 = vmul.f32 %v353, %v607
    %v638 = vmul.f32 %v354, %v607
    %v639 = vmul.f32 %v355, %v607
    %v640 = vmul.f32 %v356, %v607
    %v641 = vmul.f32 %v357, %v607
    %v642 = vmul.f32 %v358, %v607
    %v643 = vmul.f32 %v359, %v607
    %v644 = vmul.f32 %v360, %v607
    %v645 = vmul.f32 %v361, %v607
    %v646 = vmul.f32 %v362, %v607
    %v647 = vmul.f32 %v363, %v607
    %v648 = vmul.f32 %v364, %v607
    %v649 = vmul.f32 %v365, %v607
    %v650 = vmul.f32 %v366, %v607
    %v651 = vmul.f32 %v367, %v607
    %v652 = vmul.f32 %v368, %v607
    %v653 = vmul.f32 %v369, %v607
    %v654 = vmul.f32 %v370, %v607
    %v655 = vmul.f32 %v371, %v607
    %v656 = vmul.f32 %v372, %v607
    %v657 = vmul.f32 %v373, %v607
    %v658 = vmul.f32 %v374, %v607
    %v659 = vmul.f32 %v375, %v607
    %v660 = vmul.f32 %v376, %v607
    %v661 = vmul.f32 %v377, %v607
    %v662 = vmul.f32 %v378, %v607
    %v663 = vmul.f32 %v379, %v607
    %v664 = vmul.f32 %v380, %v607
    %v665 = vmul.f32 %v381, %v607
    %v666 = vmul.f32 %v382, %v607
    %v667 = vmul.f32 %v383, %v607
    %v668 = vmul.f32 %v384, %v607
    %v669 = vmul.f32 %v385, %v607
    %v670 = vmul.f32 %v386, %v607
    %v671 = vmul.f32 %v387, %v607
    %v672 = vmul.f32 %v388, %v607
    %v674 = vlaneseq
    %v675 = vshrl.u32 %v674, 7
    %v676 = vsub.s32 0, %v675
    %v677 = vrot.slane %v602, %v676
    %v679 = vadd.f32 %v609, %v677
    %v680 = vadd.f32 %v610, %v677
    %v681 = vadd.f32 %v611, %v677
    %v682 = vadd.f32 %v612, %v677
    %v683 = vadd.f32 %v613, %v677
    %v684 = vadd.f32 %v614, %v677
    %v685 = vadd.f32 %v615, %v677
    %v686 = vadd.f32 %v616, %v677
    %v687 = vadd.f32 %v617, %v677
    %v688 = vadd.f32 %v618, %v677
    %v689 = vadd.f32 %v619, %v677
    %v690 = vadd.f32 %v620, %v677
    %v691 = vadd.f32 %v621, %v677
    %v692 = vadd.f32 %v622, %v677
    %v693 = vadd.f32 %v623, %v677
    %v694 = vadd.f32 %v624, %v677
    %v695 = vadd.f32 %v625, %v677
    %v696 = vadd.f32 %v626, %v677
    %v697 = vadd.f32 %v627, %v677
    %v698 = vadd.f32 %v628, %v677
    %v699 = vadd.f32 %v629, %v677
    %v700 = vadd.f32 %v630, %v677
    %v701 = vadd.f32 %v631, %v677
    %v702 = vadd.f32 %v632, %v677
    %v703 = vadd.f32 %v633, %v677
    %v704 = vadd.f32 %v634, %v677
    %v705 = vadd.f32 %v635, %v677
    %v706 = vadd.f32 %v636, %v677
    %v707 = vadd.f32 %v637, %v677
    %v708 = vadd.f32 %v638, %v677
    %v709 = vadd.f32 %v639, %v677
    %v710 = vadd.f32 %v640, %v677
    %v711 = vadd.f32 %v641, %v677
    %v712 = vadd.f32 %v642, %v677
    %v713 = vadd.f32 %v643, %v677
    %v714 = vadd.f32 %v644, %v677
    %v715 = vadd.f32 %v645, %v677
    %v716 = vadd.f32 %v646, %v677
    %v717 = vadd.f32 %v647, %v677
    %v718 = vadd.f32 %v648, %v677
    %v719 = vadd.f32 %v649, %v677
    %v720 = vadd.f32 %v650, %v677
    %v721 = vadd.f32 %v651, %v677
    %v722 = vadd.f32 %v652, %v677
    %v723 = vadd.f32 %v653, %v677
    %v724 = vadd.f32 %v654, %v677
    %v725 = vadd.f32 %v655, %v677
    %v726 = vadd.f32 %v656, %v677
    %v727 = vadd.f32 %v657, %v677
    %v728 = vadd.f32 %v658, %v677
    %v729 = vadd.f32 %v659, %v677
    %v730 = vadd.f32 %v660, %v677
    %v731 = vadd.f32 %v661, %v677
    %v732 = vadd.f32 %v662, %v677
    %v733 = vadd.f32 %v663, %v677
    %v734 = vadd.f32 %v664, %v677
    %v735 = vadd.f32 %v665, %v677
    %v736 = vadd.f32 %v666, %v677
    %v737 = vadd.f32 %v667, %v677
    %v738 = vadd.f32 %v668, %v677
    %v739 = vadd.f32 %v669, %v677
    %v740 = vadd.f32 %v670, %v677
    %v741 = vadd.f32 %v671, %v677
    %v742 = vadd.f32 %v672, %v677
    %v743 = vmax.f32 %v679, 0.0
    %v744 = vmax.f32 %v680, 0.0
    %v745 = vmax.f32 %v681, 0.0
    %v746 = vmax.f32 %v682, 0.0
    %v747 = vmax.f32 %v683, 0.0
    %v748 = vmax.f32 %v684, 0.0
    %v749 = vmax.f32 %v685, 0.0
    %v750 = vmax.f32 %v686, 0.0
    %v751 = vmax.f32 %v687, 0.0
    %v752 = vmax.f32 %v688, 0.0
    %v753 = vmax.f32 %v689, 0.0
    %v754 = vmax.f32 %v690, 0.0
    %v755 = vmax.f32 %v691, 0.0
    %v756 = vmax.f32 %v692, 0.0
    %v757 = vmax.f32 %v693, 0.0
    %v758 = vmax.f32 %v694, 0.0
    %v759 = vmax.f32 %v695, 0.0
    %v760 = vmax.f32 %v696, 0.0
    %v761 = vmax.f32 %v697, 0.0
    %v762 = vmax.f32 %v698, 0.0
    %v763 = vmax.f32 %v699, 0.0
    %v764 = vmax.f32 %v700, 0.0
    %v765 = vmax.f32 %v701, 0.0
    %v766 = vmax.f32 %v702, 0.0
    %v767 = vmax.f32 %v703, 0.0
    %v768 = vmax.f32 %v704, 0.0
    %v769 = vmax.f32 %v705, 0.0
    %v770 = vmax.f32 %v706, 0.0
    %v771 = vmax.f32 %v707, 0.0
    %v772 = vmax.f32 %v708, 0.0
    %v773 = vmax.f32 %v709, 0.0
    %v774 = vmax.f32 %v710, 0.0
    %v775 = vmax.f32 %v711, 0.0
    %v776 = vmax.f32 %v712, 0.0
    %v777 = vmax.f32 %v713, 0.0
    %v778 = vmax.f32 %v714, 0.0
    %v779 = vmax.f32 %v715, 0.0
    %v780 = vmax.f32 %v716, 0.0
    %v781 = vmax.f32 %v717, 0.0
    %v782 = vmax.f32 %v718, 0.0
    %v783 = vmax.f32 %v719, 0.0
    %v784 = vmax.f32 %v720, 0.0
    %v785 = vmax.f32 %v721, 0.0
    %v786 = vmax.f32 %v722, 0.0
    %v787 = vmax.f32 %v723, 0.0
    %v788 = vmax.f32 %v724, 0.0
    %v789 = vmax.f32 %v725, 0.0
    %v790 = vmax.f32 %v726, 0.0
    %v791 = vmax.f32 %v727, 0.0
    %v792 = vmax.f32 %v728, 0.0
    %v793 = vmax.f32 %v729, 0.0
    %v794 = vmax.f32 %v730, 0.0
    %v795 = vmax.f32 %v731, 0.0
    %v796 = vmax.f32 %v732, 0.0
    %v797 = vmax.f32 %v733, 0.0
    %v798 = vmax.f32 %v734, 0.0
    %v799 = vmax.f32 %v735, 0.0
    %v800 = vmax.f32 %v736, 0.0
    %v801 = vmax.f32 %v737, 0.0
    %v802 = vmax.f32 %v738, 0.0
    %v803 = vmax.f32 %v739, 0.0
    %v804 = vmax.f32 %v740, 0.0
    %v805 = vmax.f32 %v741, 0.0
    %v806 = vmax.f32 %v742, 0.0
    %s807 = scalar_lea.vmem [#allocation2], 24
    %808 = vst [vmem:[%s807 + $0x1] sm:$0xff] %v743
    %809 = vst [vmem:[%s807 + $0x9] sm:$0xff] %v744
    %810 = vst [vmem:[%s807 + $0x19] sm:$0xff] %v745
    %811 = vst [vmem:[%s807 + $0x21] sm:$0xff] %v746
    %812 = vst [vmem:[%s807 + $0x31] sm:$0xff] %v747
    %813 = vst [vmem:[%s807 + $0x39] sm:$0xff] %v748
    %814 = vst [vmem:[%s807 + $0x49] sm:$0xff] %v749
    %815 = vst [vmem:[%s807 + $0x51] sm:$0xff] %v750
    %816 = vst [vmem:[%s807 + $0x61] sm:$0xff] %v751
    %817 = vst [vmem:[%s807 + $0x69] sm:$0xff] %v752
    %818 = vst [vmem:[%s807 + $0x79] sm:$0xff] %v753
    %819 = vst [vmem:[%s807 + $0x81] sm:$0xff] %v754
    %820 = vst [vmem:[%s807 + $0x91] sm:$0xff] %v755
    %821 = vst [vmem:[%s807 + $0x99] sm:$0xff] %v756
    %822 = vst [vmem:[%s807 + $0xa9] sm:$0xff] %v757
    %823 = vst [vmem:[%s807 + $0xb1] sm:$0xff] %v758
    %824 = vst [vmem:[%s807 + $0xc1] sm:$0xff] %v759
    %825 = vst [vmem:[%s807 + $0xc9] sm:$0xff] %v760
    %826 = vst [vmem:[%s807 + $0xd9] sm:$0xff] %v761
    %827 = vst [vmem:[%s807 + $0xe1] sm:$0xff] %v762
    %828 = vst [vmem:[%s807 + $0xf1] sm:$0xff] %v763
    %829 = vst [vmem:[%s807 + $0xf9] sm:$0xff] %v764
    %830 = vst [vmem:[%s807 + $0x109] sm:$0xff] %v765
    %831 = vst [vmem:[%s807 + $0x111] sm:$0xff] %v766
    %832 = vst [vmem:[%s807 + $0x121] sm:$0xff] %v767
    %833 = vst [vmem:[%s807 + $0x129] sm:$0xff] %v768
    %834 = vst [vmem:[%s807 + $0x139] sm:$0xff] %v769
    %835 = vst [vmem:[%s807 + $0x141] sm:$0xff] %v770
    %836 = vst [vmem:[%s807 + $0x151] sm:$0xff] %v771
    %837 = vst [vmem:[%s807 + $0x159] sm:$0xff] %v772
    %838 = vst [vmem:[%s807 + $0x169] sm:$0xff] %v773
    %839 = vst [vmem:[%s807 + $0x171] sm:$0xff] %v774
    %840 = vst [vmem:[%s807 + $0x1b1] sm:$0xff] %v775
    %841 = vst [vmem:[%s807 + $0x1b9] sm:$0xff] %v776
    %842 = vst [vmem:[%s807 + $0x1c9] sm:$0xff] %v777
    %843 = vst [vmem:[%s807 + $0x1d1] sm:$0xff] %v778
    %844 = vst [vmem:[%s807 + $0x1e1] sm:$0xff] %v779
    %845 = vst [vmem:[%s807 + $0x1e9] sm:$0xff] %v780
    %846 = vst [vmem:[%s807 + $0x1f9] sm:$0xff] %v781
    %847 = vst [vmem:[%s807 + $0x201] sm:$0xff] %v782
    %848 = vst [vmem:[%s807 + $0x211] sm:$0xff] %v783
    %849 = vst [vmem:[%s807 + $0x219] sm:$0xff] %v784
    %850 = vst [vmem:[%s807 + $0x229] sm:$0xff] %v785
    %851 = vst [vmem:[%s807 + $0x231] sm:$0xff] %v786
    %852 = vst [vmem:[%s807 + $0x241] sm:$0xff] %v787
    %853 = vst [vmem:[%s807 + $0x249] sm:$0xff] %v788
    %854 = vst [vmem:[%s807 + $0x259] sm:$0xff] %v789
    %855 = vst [vmem:[%s807 + $0x261] sm:$0xff] %v790
    %856 = vst [vmem:[%s807 + $0x271] sm:$0xff] %v791
    %857 = vst [vmem:[%s807 + $0x279] sm:$0xff] %v792
    %858 = vst [vmem:[%s807 + $0x289] sm:$0xff] %v793
    %859 = vst [vmem:[%s807 + $0x291] sm:$0xff] %v794
    %860 = vst [vmem:[%s807 + $0x2a1] sm:$0xff] %v795
    %861 = vst [vmem:[%s807 + $0x2a9] sm:$0xff] %v796
    %862 = vst [vmem:[%s807 + $0x2b9] sm:$0xff] %v797
    %863 = vst [vmem:[%s807 + $0x2c1] sm:$0xff] %v798
    %864 = vst [vmem:[%s807 + $0x2d1] sm:$0xff] %v799
    %865 = vst [vmem:[%s807 + $0x2d9] sm:$0xff] %v800
    %866 = vst [vmem:[%s807 + $0x2e9] sm:$0xff] %v801
    %867 = vst [vmem:[%s807 + $0x2f1] sm:$0xff] %v802
    %868 = vst [vmem:[%s807 + $0x301] sm:$0xff] %v803
    %869 = vst [vmem:[%s807 + $0x309] sm:$0xff] %v804
    %870 = vst [vmem:[%s807 + $0x319] sm:$0xff] %v805
    %871 = vst [vmem:[%s807 + $0x321] sm:$0xff] %v806
    %v872 = vld [vmem:[#allocation2] sm:$0xff]
    %v873 = vld [vmem:[#allocation2 + $0x8] sm:$0xff]
    %v874 = vld [vmem:[#allocation2 + $0x18] sm:$0xff]
    %v875 = vld [vmem:[#allocation2 + $0x20] sm:$0xff]
    %v876 = vld [vmem:[#allocation2 + $0x30] sm:$0xff]
    %v877 = vld [vmem:[#allocation2 + $0x38] sm:$0xff]
    %v878 = vld [vmem:[#allocation2 + $0x48] sm:$0xff]
    %v879 = vld [vmem:[#allocation2 + $0x50] sm:$0xff]
    %v880 = vld [vmem:[#allocation2 + $0x60] sm:$0xff]
    %v881 = vld [vmem:[#allocation2 + $0x68] sm:$0xff]
    %v882 = vld [vmem:[#allocation2 + $0x78] sm:$0xff]
    %v883 = vld [vmem:[#allocation2 + $0x80] sm:$0xff]
    %v884 = vld [vmem:[#allocation2 + $0x90] sm:$0xff]
    %v885 = vld [vmem:[#allocation2 + $0x98] sm:$0xff]
    %v886 = vld [vmem:[#allocation2 + $0xa8] sm:$0xff]
    %v887 = vld [vmem:[#allocation2 + $0xb0] sm:$0xff]
    %v888 = vld [vmem:[#allocation2 + $0xc0] sm:$0xff]
    %v889 = vld [vmem:[#allocation2 + $0xc8] sm:$0xff]
    %v890 = vld [vmem:[#allocation2 + $0xd8] sm:$0xff]
    %v891 = vld [vmem:[#allocation2 + $0xe0] sm:$0xff]
    %v892 = vld [vmem:[#allocation2 + $0xf0] sm:$0xff]
    %v893 = vld [vmem:[#allocation2 + $0xf8] sm:$0xff]
    %v894 = vld [vmem:[#allocation2 + $0x108] sm:$0xff]
    %v895 = vld [vmem:[#allocation2 + $0x110] sm:$0xff]
    %v896 = vld [vmem:[#allocation2 + $0x120] sm:$0xff]
    %v897 = vld [vmem:[#allocation2 + $0x128] sm:$0xff]
    %v898 = vld [vmem:[#allocation2 + $0x138] sm:$0xff]
    %v899 = vld [vmem:[#allocation2 + $0x140] sm:$0xff]
    %v900 = vld [vmem:[#allocation2 + $0x150] sm:$0xff]
    %v901 = vld [vmem:[#allocation2 + $0x158] sm:$0xff]
    %v902 = vld [vmem:[#allocation2 + $0x168] sm:$0xff]
    %v903 = vld [vmem:[#allocation2 + $0x170] sm:$0xff]
    %v904 = vld [vmem:[#allocation2 + $0x1b0] sm:$0xff]
    %v905 = vld [vmem:[#allocation2 + $0x1b8] sm:$0xff]
    %v906 = vld [vmem:[#allocation2 + $0x1c8] sm:$0xff]
    %v907 = vld [vmem:[#allocation2 + $0x1d0] sm:$0xff]
    %v908 = vld [vmem:[#allocation2 + $0x1e0] sm:$0xff]
    %v909 = vld [vmem:[#allocation2 + $0x1e8] sm:$0xff]
    %v910 = vld [vmem:[#allocation2 + $0x1f8] sm:$0xff]
    %v911 = vld [vmem:[#allocation2 + $0x200] sm:$0xff]
    %v912 = vld [vmem:[#allocation2 + $0x210] sm:$0xff]
    %v913 = vld [vmem:[#allocation2 + $0x218] sm:$0xff]
    %v914 = vld [vmem:[#allocation2 + $0x228] sm:$0xff]
    %v915 = vld [vmem:[#allocation2 + $0x230] sm:$0xff]
    %v916 = vld [vmem:[#allocation2 + $0x240] sm:$0xff]
    %v917 = vld [vmem:[#allocation2 + $0x248] sm:$0xff]
    %v918 = vld [vmem:[#allocation2 + $0x258] sm:$0xff]
    %v919 = vld [vmem:[#allocation2 + $0x260] sm:$0xff]
    %v920 = vld [vmem:[#allocation2 + $0x270] sm:$0xff]
    %v921 = vld [vmem:[#allocation2 + $0x278] sm:$0xff]
    %v922 = vld [vmem:[#allocation2 + $0x288] sm:$0xff]
    %v923 = vld [vmem:[#allocation2 + $0x290] sm:$0xff]
    %v924 = vld [vmem:[#allocation2 + $0x2a0] sm:$0xff]
    %v925 = vld [vmem:[#allocation2 + $0x2a8] sm:$0xff]
    %v926 = vld [vmem:[#allocation2 + $0x2b8] sm:$0xff]
    %v927 = vld [vmem:[#allocation2 + $0x2c0] sm:$0xff]
    %v928 = vld [vmem:[#allocation2 + $0x2d0] sm:$0xff]
    %v929 = vld [vmem:[#allocation2 + $0x2d8] sm:$0xff]
    %v930 = vld [vmem:[#allocation2 + $0x2e8] sm:$0xff]
    %v931 = vld [vmem:[#allocation2 + $0x2f0] sm:$0xff]
    %v932 = vld [vmem:[#allocation2 + $0x300] sm:$0xff]
    %v933 = vld [vmem:[#allocation2 + $0x308] sm:$0xff]
    %v934 = vld [vmem:[#allocation2 + $0x318] sm:$0xff]
    %v935 = vld [vmem:[#allocation2 + $0x320] sm:$0xff]
    %v936 = vld [vmem:[#allocation2 + $0x1] sm:$0xff]
    %v937 = vld [vmem:[#allocation2 + $0x9] sm:$0xff]
    %v938 = vld [vmem:[#allocation2 + $0x19] sm:$0xff]
    %v939 = vld [vmem:[#allocation2 + $0x21] sm:$0xff]
    %v940 = vld [vmem:[#allocation2 + $0x31] sm:$0xff]
    %v941 = vld [vmem:[#allocation2 + $0x39] sm:$0xff]
    %v942 = vld [vmem:[#allocation2 + $0x49] sm:$0xff]
    %v943 = vld [vmem:[#allocation2 + $0x51] sm:$0xff]
    %v944 = vld [vmem:[#allocation2 + $0x61] sm:$0xff]
    %v945 = vld [vmem:[#allocation2 + $0x69] sm:$0xff]
    %v946 = vld [vmem:[#allocation2 + $0x79] sm:$0xff]
    %v947 = vld [vmem:[#allocation2 + $0x81] sm:$0xff]
    %v948 = vld [vmem:[#allocation2 + $0x91] sm:$0xff]
    %v949 = vld [vmem:[#allocation2 + $0x99] sm:$0xff]
    %v950 = vld [vmem:[#allocation2 + $0xa9] sm:$0xff]
    %v951 = vld [vmem:[#allocation2 + $0xb1] sm:$0xff]
    %v952 = vld [vmem:[#allocation2 + $0xc1] sm:$0xff]
    %v953 = vld [vmem:[#allocation2 + $0xc9] sm:$0xff]
    %v954 = vld [vmem:[#allocation2 + $0xd9] sm:$0xff]
    %v955 = vld [vmem:[#allocation2 + $0xe1] sm:$0xff]
    %v956 = vld [vmem:[#allocation2 + $0xf1] sm:$0xff]
    %v957 = vld [vmem:[#allocation2 + $0xf9] sm:$0xff]
    %v958 = vld [vmem:[#allocation2 + $0x109] sm:$0xff]
    %v959 = vld [vmem:[#allocation2 + $0x111] sm:$0xff]
    %v960 = vld [vmem:[#allocation2 + $0x121] sm:$0xff]
    %v961 = vld [vmem:[#allocation2 + $0x129] sm:$0xff]
    %v962 = vld [vmem:[#allocation2 + $0x139] sm:$0xff]
    %v963 = vld [vmem:[#allocation2 + $0x141] sm:$0xff]
    %v964 = vld [vmem:[#allocation2 + $0x151] sm:$0xff]
    %v965 = vld [vmem:[#allocation2 + $0x159] sm:$0xff]
    %v966 = vld [vmem:[#allocation2 + $0x169] sm:$0xff]
    %v967 = vld [vmem:[#allocation2 + $0x171] sm:$0xff]
    %v968 = vld [vmem:[#allocation2 + $0x1b1] sm:$0xff]
    %v969 = vld [vmem:[#allocation2 + $0x1b9] sm:$0xff]
    %v970 = vld [vmem:[#allocation2 + $0x1c9] sm:$0xff]
    %v971 = vld [vmem:[#allocation2 + $0x1d1] sm:$0xff]
    %v972 = vld [vmem:[#allocation2 + $0x1e1] sm:$0xff]
    %v973 = vld [vmem:[#allocation2 + $0x1e9] sm:$0xff]
    %v974 = vld [vmem:[#allocation2 + $0x1f9] sm:$0xff]
    %v975 = vld [vmem:[#allocation2 + $0x201] sm:$0xff]
    %v976 = vld [vmem:[#allocation2 + $0x211] sm:$0xff]
    %v977 = vld [vmem:[#allocation2 + $0x219] sm:$0xff]
    %v978 = vld [vmem:[#allocation2 + $0x229] sm:$0xff]
    %v979 = vld [vmem:[#allocation2 + $0x231] sm:$0xff]
    %v980 = vld [vmem:[#allocation2 + $0x241] sm:$0xff]
    %v981 = vld [vmem:[#allocation2 + $0x249] sm:$0xff]
    %v982 = vld [vmem:[#allocation2 + $0x259] sm:$0xff]
    %v983 = vld [vmem:[#allocation2 + $0x261] sm:$0xff]
    %v984 = vld [vmem:[#allocation2 + $0x271] sm:$0xff]
    %v985 = vld [vmem:[#allocation2 + $0x279] sm:$0xff]
    %v986 = vld [vmem:[#allocation2 + $0x289] sm:$0xff]
    %v987 = vld [vmem:[#allocation2 + $0x291] sm:$0xff]
    %v988 = vld [vmem:[#allocation2 + $0x2a1] sm:$0xff]
    %v989 = vld [vmem:[#allocation2 + $0x2a9] sm:$0xff]
    %v990 = vld [vmem:[#allocation2 + $0x2b9] sm:$0xff]
    %v991 = vld [vmem:[#allocation2 + $0x2c1] sm:$0xff]
    %v992 = vld [vmem:[#allocation2 + $0x2d1] sm:$0xff]
    %v993 = vld [vmem:[#allocation2 + $0x2d9] sm:$0xff]
    %v994 = vld [vmem:[#allocation2 + $0x2e9] sm:$0xff]
    %v995 = vld [vmem:[#allocation2 + $0x2f1] sm:$0xff]
    %v996 = vld [vmem:[#allocation2 + $0x301] sm:$0xff]
    %v997 = vld [vmem:[#allocation2 + $0x309] sm:$0xff]
    %v998 = vld [vmem:[#allocation2 + $0x319] sm:$0xff]
    %v999 = vld [vmem:[#allocation2 + $0x321] sm:$0xff]
    %v1000 = vld [vmem:[#allocation2 + $0x2] sm:$0xff]
    %v1001 = vld [vmem:[#allocation2 + $0xa] sm:$0xff]
    %v1002 = vld [vmem:[#allocation2 + $0x1a] sm:$0xff]
    %v1003 = vld [vmem:[#allocation2 + $0x22] sm:$0xff]
    %v1004 = vld [vmem:[#allocation2 + $0x32] sm:$0xff]
    %v1005 = vld [vmem:[#allocation2 + $0x3a] sm:$0xff]
    %v1006 = vld [vmem:[#allocation2 + $0x4a] sm:$0xff]
    %v1007 = vld [vmem:[#allocation2 + $0x52] sm:$0xff]
    %v1008 = vld [vmem:[#allocation2 + $0x62] sm:$0xff]
    %v1009 = vld [vmem:[#allocation2 + $0x6a] sm:$0xff]
    %v1010 = vld [vmem:[#allocation2 + $0x7a] sm:$0xff]
    %v1011 = vld [vmem:[#allocation2 + $0x82] sm:$0xff]
    %v1012 = vld [vmem:[#allocation2 + $0x92] sm:$0xff]
    %v1013 = vld [vmem:[#allocation2 + $0x9a] sm:$0xff]
    %v1014 = vld [vmem:[#allocation2 + $0xaa] sm:$0xff]
    %v1015 = vld [vmem:[#allocation2 + $0xb2] sm:$0xff]
    %v1016 = vld [vmem:[#allocation2 + $0xc2] sm:$0xff]
    %v1017 = vld [vmem:[#allocation2 + $0xca] sm:$0xff]
    %v1018 = vld [vmem:[#allocation2 + $0xda] sm:$0xff]
    %v1019 = vld [vmem:[#allocation2 + $0xe2] sm:$0xff]
    %v1020 = vld [vmem:[#allocation2 + $0xf2] sm:$0xff]
    %v1021 = vld [vmem:[#allocation2 + $0xfa] sm:$0xff]
    %v1022 = vld [vmem:[#allocation2 + $0x10a] sm:$0xff]
    %v1023 = vld [vmem:[#allocation2 + $0x112] sm:$0xff]
    %v1024 = vld [vmem:[#allocation2 + $0x122] sm:$0xff]
    %v1025 = vld [vmem:[#allocation2 + $0x12a] sm:$0xff]
    %v1026 = vld [vmem:[#allocation2 + $0x13a] sm:$0xff]
    %v1027 = vld [vmem:[#allocation2 + $0x142] sm:$0xff]
    %v1028 = vld [vmem:[#allocation2 + $0x152] sm:$0xff]
    %v1029 = vld [vmem:[#allocation2 + $0x15a] sm:$0xff]
    %v1030 = vld [vmem:[#allocation2 + $0x16a] sm:$0xff]
    %v1031 = vld [vmem:[#allocation2 + $0x172] sm:$0xff]
    %v1032 = vld [vmem:[#allocation2 + $0x1b2] sm:$0xff]
    %v1033 = vld [vmem:[#allocation2 + $0x1ba] sm:$0xff]
    %v1034 = vld [vmem:[#allocation2 + $0x1ca] sm:$0xff]
    %v1035 = vld [vmem:[#allocation2 + $0x1d2] sm:$0xff]
    %v1036 = vld [vmem:[#allocation2 + $0x1e2] sm:$0xff]
    %v1037 = vld [vmem:[#allocation2 + $0x1ea] sm:$0xff]
    %v1038 = vld [vmem:[#allocation2 + $0x1fa] sm:$0xff]
    %v1039 = vld [vmem:[#allocation2 + $0x202] sm:$0xff]
    %v1040 = vld [vmem:[#allocation2 + $0x212] sm:$0xff]
    %v1041 = vld [vmem:[#allocation2 + $0x21a] sm:$0xff]
    %v1042 = vld [vmem:[#allocation2 + $0x22a] sm:$0xff]
    %v1043 = vld [vmem:[#allocation2 + $0x232] sm:$0xff]
    %v1044 = vld [vmem:[#allocation2 + $0x242] sm:$0xff]
    %v1045 = vld [vmem:[#allocation2 + $0x24a] sm:$0xff]
    %v1046 = vld [vmem:[#allocation2 + $0x25a] sm:$0xff]
    %v1047 = vld [vmem:[#allocation2 + $0x262] sm:$0xff]
    %v1048 = vld [vmem:[#allocation2 + $0x272] sm:$0xff]
    %v1049 = vld [vmem:[#allocation2 + $0x27a] sm:$0xff]
    %v1050 = vld [vmem:[#allocation2 + $0x28a] sm:$0xff]
    %v1051 = vld [vmem:[#allocation2 + $0x292] sm:$0xff]
    %v1052 = vld [vmem:[#allocation2 + $0x2a2] sm:$0xff]
    %v1053 = vld [vmem:[#allocation2 + $0x2aa] sm:$0xff]
    %v1054 = vld [vmem:[#allocation2 + $0x2ba] sm:$0xff]
    %v1055 = vld [vmem:[#allocation2 + $0x2c2] sm:$0xff]
    %v1056 = vld [vmem:[#allocation2 + $0x2d2] sm:$0xff]
    %v1057 = vld [vmem:[#allocation2 + $0x2da] sm:$0xff]
    %v1058 = vld [vmem:[#allocation2 + $0x2ea] sm:$0xff]
    %v1059 = vld [vmem:[#allocation2 + $0x2f2] sm:$0xff]
    %v1060 = vld [vmem:[#allocation2 + $0x302] sm:$0xff]
    %v1061 = vld [vmem:[#allocation2 + $0x30a] sm:$0xff]
    %v1062 = vld [vmem:[#allocation2 + $0x31a] sm:$0xff]
    %v1063 = vld [vmem:[#allocation2 + $0x322] sm:$0xff]
    %v1064 = vld [vmem:[%s807] sm:$0xff]
    %v1065 = vld [vmem:[%s807 + $0x8] sm:$0xff]
    %v1066 = vld [vmem:[%s807 + $0x18] sm:$0xff]
    %v1067 = vld [vmem:[%s807 + $0x20] sm:$0xff]
    %v1068 = vld [vmem:[%s807 + $0x30] sm:$0xff]
    %v1069 = vld [vmem:[%s807 + $0x38] sm:$0xff]
    %v1070 = vld [vmem:[%s807 + $0x48] sm:$0xff]
    %v1071 = vld [vmem:[%s807 + $0x50] sm:$0xff]
    %v1072 = vld [vmem:[%s807 + $0x60] sm:$0xff]
    %v1073 = vld [vmem:[%s807 + $0x68] sm:$0xff]
    %v1074 = vld [vmem:[%s807 + $0x78] sm:$0xff]
    %v1075 = vld [vmem:[%s807 + $0x80] sm:$0xff]
    %v1076 = vld [vmem:[%s807 + $0x90] sm:$0xff]
    %v1077 = vld [vmem:[%s807 + $0x98] sm:$0xff]
    %v1078 = vld [vmem:[%s807 + $0xa8] sm:$0xff]
    %v1079 = vld [vmem:[%s807 + $0xb0] sm:$0xff]
    %v1080 = vld [vmem:[%s807 + $0xc0] sm:$0xff]
    %v1081 = vld [vmem:[%s807 + $0xc8] sm:$0xff]
    %v1082 = vld [vmem:[%s807 + $0xd8] sm:$0xff]
    %v1083 = vld [vmem:[%s807 + $0xe0] sm:$0xff]
    %v1084 = vld [vmem:[%s807 + $0xf0] sm:$0xff]
    %v1085 = vld [vmem:[%s807 + $0xf8] sm:$0xff]
    %v1086 = vld [vmem:[%s807 + $0x108] sm:$0xff]
    %v1087 = vld [vmem:[%s807 + $0x110] sm:$0xff]
    %v1088 = vld [vmem:[%s807 + $0x120] sm:$0xff]
    %v1089 = vld [vmem:[%s807 + $0x128] sm:$0xff]
    %v1090 = vld [vmem:[%s807 + $0x138] sm:$0xff]
    %v1091 = vld [vmem:[%s807 + $0x140] sm:$0xff]
    %v1092 = vld [vmem:[%s807 + $0x150] sm:$0xff]
    %v1093 = vld [vmem:[%s807 + $0x158] sm:$0xff]
    %v1094 = vld [vmem:[%s807 + $0x168] sm:$0xff]
    %v1095 = vld [vmem:[%s807 + $0x170] sm:$0xff]
    %v1096 = vld [vmem:[%s807 + $0x1b0] sm:$0xff]
    %v1097 = vld [vmem:[%s807 + $0x1b8] sm:$0xff]
    %v1098 = vld [vmem:[%s807 + $0x1c8] sm:$0xff]
    %v1099 = vld [vmem:[%s807 + $0x1d0] sm:$0xff]
    %v1100 = vld [vmem:[%s807 + $0x1e0] sm:$0xff]
    %v1101 = vld [vmem:[%s807 + $0x1e8] sm:$0xff]
    %v1102 = vld [vmem:[%s807 + $0x1f8] sm:$0xff]
    %v1103 = vld [vmem:[%s807 + $0x200] sm:$0xff]
    %v1104 = vld [vmem:[%s807 + $0x210] sm:$0xff]
    %v1105 = vld [vmem:[%s807 + $0x218] sm:$0xff]
    %v1106 = vld [vmem:[%s807 + $0x228] sm:$0xff]
    %v1107 = vld [vmem:[%s807 + $0x230] sm:$0xff]
    %v1108 = vld [vmem:[%s807 + $0x240] sm:$0xff]
    %v1109 = vld [vmem:[%s807 + $0x248] sm:$0xff]
    %v1110 = vld [vmem:[%s807 + $0x258] sm:$0xff]
    %v1111 = vld [vmem:[%s807 + $0x260] sm:$0xff]
    %v1112 = vld [vmem:[%s807 + $0x270] sm:$0xff]
    %v1113 = vld [vmem:[%s807 + $0x278] sm:$0xff]
    %v1114 = vld [vmem:[%s807 + $0x288] sm:$0xff]
    %v1115 = vld [vmem:[%s807 + $0x290] sm:$0xff]
    %v1116 = vld [vmem:[%s807 + $0x2a0] sm:$0xff]
    %v1117 = vld [vmem:[%s807 + $0x2a8] sm:$0xff]
    %v1118 = vld [vmem:[%s807 + $0x2b8] sm:$0xff]
    %v1119 = vld [vmem:[%s807 + $0x2c0] sm:$0xff]
    %v1120 = vld [vmem:[%s807 + $0x2d0] sm:$0xff]
    %v1121 = vld [vmem:[%s807 + $0x2d8] sm:$0xff]
    %v1122 = vld [vmem:[%s807 + $0x2e8] sm:$0xff]
    %v1123 = vld [vmem:[%s807 + $0x2f0] sm:$0xff]
    %v1124 = vld [vmem:[%s807 + $0x300] sm:$0xff]
    %v1125 = vld [vmem:[%s807 + $0x308] sm:$0xff]
    %v1126 = vld [vmem:[%s807 + $0x318] sm:$0xff]
    %v1127 = vld [vmem:[%s807 + $0x320] sm:$0xff]
    %v1128 = vld [vmem:[%s807 + $0x1] sm:$0xff]
    %v1129 = vld [vmem:[%s807 + $0x9] sm:$0xff]
    %v1130 = vld [vmem:[%s807 + $0x19] sm:$0xff]
    %v1131 = vld [vmem:[%s807 + $0x21] sm:$0xff]
    %v1132 = vld [vmem:[%s807 + $0x31] sm:$0xff]
    %v1133 = vld [vmem:[%s807 + $0x39] sm:$0xff]
    %v1134 = vld [vmem:[%s807 + $0x49] sm:$0xff]
    %v1135 = vld [vmem:[%s807 + $0x51] sm:$0xff]
    %v1136 = vld [vmem:[%s807 + $0x61] sm:$0xff]
    %v1137 = vld [vmem:[%s807 + $0x69] sm:$0xff]
    %v1138 = vld [vmem:[%s807 + $0x79] sm:$0xff]
    %v1139 = vld [vmem:[%s807 + $0x81] sm:$0xff]
    %v1140 = vld [vmem:[%s807 + $0x91] sm:$0xff]
    %v1141 = vld [vmem:[%s807 + $0x99] sm:$0xff]
    %v1142 = vld [vmem:[%s807 + $0xa9] sm:$0xff]
    %v1143 = vld [vmem:[%s807 + $0xb1] sm:$0xff]
    %v1144 = vld [vmem:[%s807 + $0xc1] sm:$0xff]
    %v1145 = vld [vmem:[%s807 + $0xc9] sm:$0xff]
    %v1146 = vld [vmem:[%s807 + $0xd9] sm:$0xff]
    %v1147 = vld [vmem:[%s807 + $0xe1] sm:$0xff]
    %v1148 = vld [vmem:[%s807 + $0xf1] sm:$0xff]
    %v1149 = vld [vmem:[%s807 + $0xf9] sm:$0xff]
    %v1150 = vld [vmem:[%s807 + $0x109] sm:$0xff]
    %v1151 = vld [vmem:[%s807 + $0x111] sm:$0xff]
    %v1152 = vld [vmem:[%s807 + $0x121] sm:$0xff]
    %v1153 = vld [vmem:[%s807 + $0x129] sm:$0xff]
    %v1154 = vld [vmem:[%s807 + $0x139] sm:$0xff]
    %v1155 = vld [vmem:[%s807 + $0x141] sm:$0xff]
    %v1156 = vld [vmem:[%s807 + $0x151] sm:$0xff]
    %v1157 = vld [vmem:[%s807 + $0x159] sm:$0xff]
    %v1158 = vld [vmem:[%s807 + $0x169] sm:$0xff]
    %v1159 = vld [vmem:[%s807 + $0x171] sm:$0xff]
    %v1160 = vld [vmem:[%s807 + $0x1b1] sm:$0xff]
    %v1161 = vld [vmem:[%s807 + $0x1b9] sm:$0xff]
    %v1162 = vld [vmem:[%s807 + $0x1c9] sm:$0xff]
    %v1163 = vld [vmem:[%s807 + $0x1d1] sm:$0xff]
    %v1164 = vld [vmem:[%s807 + $0x1e1] sm:$0xff]
    %v1165 = vld [vmem:[%s807 + $0x1e9] sm:$0xff]
    %v1166 = vld [vmem:[%s807 + $0x1f9] sm:$0xff]
    %v1167 = vld [vmem:[%s807 + $0x201] sm:$0xff]
    %v1168 = vld [vmem:[%s807 + $0x211] sm:$0xff]
    %v1169 = vld [vmem:[%s807 + $0x219] sm:$0xff]
    %v1170 = vld [vmem:[%s807 + $0x229] sm:$0xff]
    %v1171 = vld [vmem:[%s807 + $0x231] sm:$0xff]
    %v1172 = vld [vmem:[%s807 + $0x241] sm:$0xff]
    %v1173 = vld [vmem:[%s807 + $0x249] sm:$0xff]
    %v1174 = vld [vmem:[%s807 + $0x259] sm:$0xff]
    %v1175 = vld [vmem:[%s807 + $0x261] sm:$0xff]
    %v1176 = vld [vmem:[%s807 + $0x271] sm:$0xff]
    %v1177 = vld [vmem:[%s807 + $0x279] sm:$0xff]
    %v1178 = vld [vmem:[%s807 + $0x289] sm:$0xff]
    %v1179 = vld [vmem:[%s807 + $0x291] sm:$0xff]
    %v1180 = vld [vmem:[%s807 + $0x2a1] sm:$0xff]
    %v1181 = vld [vmem:[%s807 + $0x2a9] sm:$0xff]
    %v1182 = vld [vmem:[%s807 + $0x2b9] sm:$0xff]
    %v1183 = vld [vmem:[%s807 + $0x2c1] sm:$0xff]
    %v1184 = vld [vmem:[%s807 + $0x2d1] sm:$0xff]
    %v1185 = vld [vmem:[%s807 + $0x2d9] sm:$0xff]
    %v1186 = vld [vmem:[%s807 + $0x2e9] sm:$0xff]
    %v1187 = vld [vmem:[%s807 + $0x2f1] sm:$0xff]
    %v1188 = vld [vmem:[%s807 + $0x301] sm:$0xff]
    %v1189 = vld [vmem:[%s807 + $0x309] sm:$0xff]
    %v1190 = vld [vmem:[%s807 + $0x319] sm:$0xff]
    %v1191 = vld [vmem:[%s807 + $0x321] sm:$0xff]
    %v1192 = vld [vmem:[%s807 + $0x2] sm:$0xff]
    %v1193 = vld [vmem:[%s807 + $0xa] sm:$0xff]
    %v1194 = vld [vmem:[%s807 + $0x1a] sm:$0xff]
    %v1195 = vld [vmem:[%s807 + $0x22] sm:$0xff]
    %v1196 = vld [vmem:[%s807 + $0x32] sm:$0xff]
    %v1197 = vld [vmem:[%s807 + $0x3a] sm:$0xff]
    %v1198 = vld [vmem:[%s807 + $0x4a] sm:$0xff]
    %v1199 = vld [vmem:[%s807 + $0x52] sm:$0xff]
    %v1200 = vld [vmem:[%s807 + $0x62] sm:$0xff]
    %v1201 = vld [vmem:[%s807 + $0x6a] sm:$0xff]
    %v1202 = vld [vmem:[%s807 + $0x7a] sm:$0xff]
    %v1203 = vld [vmem:[%s807 + $0x82] sm:$0xff]
    %v1204 = vld [vmem:[%s807 + $0x92] sm:$0xff]
    %v1205 = vld [vmem:[%s807 + $0x9a] sm:$0xff]
    %v1206 = vld [vmem:[%s807 + $0xaa] sm:$0xff]
    %v1207 = vld [vmem:[%s807 + $0xb2] sm:$0xff]
    %v1208 = vld [vmem:[%s807 + $0xc2] sm:$0xff]
    %v1209 = vld [vmem:[%s807 + $0xca] sm:$0xff]
    %v1210 = vld [vmem:[%s807 + $0xda] sm:$0xff]
    %v1211 = vld [vmem:[%s807 + $0xe2] sm:$0xff]
    %v1212 = vld [vmem:[%s807 + $0xf2] sm:$0xff]
    %v1213 = vld [vmem:[%s807 + $0xfa] sm:$0xff]
    %v1214 = vld [vmem:[%s807 + $0x10a] sm:$0xff]
    %v1215 = vld [vmem:[%s807 + $0x112] sm:$0xff]
    %v1216 = vld [vmem:[%s807 + $0x122] sm:$0xff]
    %v1217 = vld [vmem:[%s807 + $0x12a] sm:$0xff]
    %v1218 = vld [vmem:[%s807 + $0x13a] sm:$0xff]
    %v1219 = vld [vmem:[%s807 + $0x142] sm:$0xff]
    %v1220 = vld [vmem:[%s807 + $0x152] sm:$0xff]
    %v1221 = vld [vmem:[%s807 + $0x15a] sm:$0xff]
    %v1222 = vld [vmem:[%s807 + $0x16a] sm:$0xff]
    %v1223 = vld [vmem:[%s807 + $0x172] sm:$0xff]
    %v1224 = vld [vmem:[%s807 + $0x1b2] sm:$0xff]
    %v1225 = vld [vmem:[%s807 + $0x1ba] sm:$0xff]
    %v1226 = vld [vmem:[%s807 + $0x1ca] sm:$0xff]
    %v1227 = vld [vmem:[%s807 + $0x1d2] sm:$0xff]
    %v1228 = vld [vmem:[%s807 + $0x1e2] sm:$0xff]
    %v1229 = vld [vmem:[%s807 + $0x1ea] sm:$0xff]
    %v1230 = vld [vmem:[%s807 + $0x1fa] sm:$0xff]
    %v1231 = vld [vmem:[%s807 + $0x202] sm:$0xff]
    %v1232 = vld [vmem:[%s807 + $0x212] sm:$0xff]
    %v1233 = vld [vmem:[%s807 + $0x21a] sm:$0xff]
    %v1234 = vld [vmem:[%s807 + $0x22a] sm:$0xff]
    %v1235 = vld [vmem:[%s807 + $0x232] sm:$0xff]
    %v1236 = vld [vmem:[%s807 + $0x242] sm:$0xff]
    %v1237 = vld [vmem:[%s807 + $0x24a] sm:$0xff]
    %v1238 = vld [vmem:[%s807 + $0x25a] sm:$0xff]
    %v1239 = vld [vmem:[%s807 + $0x262] sm:$0xff]
    %v1240 = vld [vmem:[%s807 + $0x272] sm:$0xff]
    %v1241 = vld [vmem:[%s807 + $0x27a] sm:$0xff]
    %v1242 = vld [vmem:[%s807 + $0x28a] sm:$0xff]
    %v1243 = vld [vmem:[%s807 + $0x292] sm:$0xff]
    %v1244 = vld [vmem:[%s807 + $0x2a2] sm:$0xff]
    %v1245 = vld [vmem:[%s807 + $0x2aa] sm:$0xff]
    %v1246 = vld [vmem:[%s807 + $0x2ba] sm:$0xff]
    %v1247 = vld [vmem:[%s807 + $0x2c2] sm:$0xff]
    %v1248 = vld [vmem:[%s807 + $0x2d2] sm:$0xff]
    %v1249 = vld [vmem:[%s807 + $0x2da] sm:$0xff]
    %v1250 = vld [vmem:[%s807 + $0x2ea] sm:$0xff]
    %v1251 = vld [vmem:[%s807 + $0x2f2] sm:$0xff]
    %v1252 = vld [vmem:[%s807 + $0x302] sm:$0xff]
    %v1253 = vld [vmem:[%s807 + $0x30a] sm:$0xff]
    %v1254 = vld [vmem:[%s807 + $0x31a] sm:$0xff]
    %v1255 = vld [vmem:[%s807 + $0x322] sm:$0xff]
    %s1256 = scalar_lea.vmem [#allocation2], 48
    %v1257 = vld [vmem:[%s1256] sm:$0xff]
    %v1258 = vld [vmem:[%s1256 + $0x8] sm:$0xff]
    %v1259 = vld [vmem:[%s1256 + $0x18] sm:$0xff]
    %v1260 = vld [vmem:[%s1256 + $0x20] sm:$0xff]
    %v1261 = vld [vmem:[%s1256 + $0x30] sm:$0xff]
    %v1262 = vld [vmem:[%s1256 + $0x38] sm:$0xff]
    %v1263 = vld [vmem:[%s1256 + $0x48] sm:$0xff]
    %v1264 = vld [vmem:[%s1256 + $0x50] sm:$0xff]
    %v1265 = vld [vmem:[%s1256 + $0x60] sm:$0xff]
    %v1266 = vld [vmem:[%s1256 + $0x68] sm:$0xff]
    %v1267 = vld [vmem:[%s1256 + $0x78] sm:$0xff]
    %v1268 = vld [vmem:[%s1256 + $0x80] sm:$0xff]
    %v1269 = vld [vmem:[%s1256 + $0x90] sm:$0xff]
    %v1270 = vld [vmem:[%s1256 + $0x98] sm:$0xff]
    %v1271 = vld [vmem:[%s1256 + $0xa8] sm:$0xff]
    %v1272 = vld [vmem:[%s1256 + $0xb0] sm:$0xff]
    %v1273 = vld [vmem:[%s1256 + $0xc0] sm:$0xff]
    %v1274 = vld [vmem:[%s1256 + $0xc8] sm:$0xff]
    %v1275 = vld [vmem:[%s1256 + $0xd8] sm:$0xff]
    %v1276 = vld [vmem:[%s1256 + $0xe0] sm:$0xff]
    %v1277 = vld [vmem:[%s1256 + $0xf0] sm:$0xff]
    %v1278 = vld [vmem:[%s1256 + $0xf8] sm:$0xff]
    %v1279 = vld [vmem:[%s1256 + $0x108] sm:$0xff]
    %v1280 = vld [vmem:[%s1256 + $0x110] sm:$0xff]
    %v1281 = vld [vmem:[%s1256 + $0x120] sm:$0xff]
    %v1282 = vld [vmem:[%s1256 + $0x128] sm:$0xff]
    %v1283 = vld [vmem:[%s1256 + $0x138] sm:$0xff]
    %v1284 = vld [vmem:[%s1256 + $0x140] sm:$0xff]
    %v1285 = vld [vmem:[%s1256 + $0x150] sm:$0xff]
    %v1286 = vld [vmem:[%s1256 + $0x158] sm:$0xff]
    %v1287 = vld [vmem:[%s1256 + $0x168] sm:$0xff]
    %v1288 = vld [vmem:[%s1256 + $0x170] sm:$0xff]
    %v1289 = vld [vmem:[%s1256 + $0x1b0] sm:$0xff]
    %v1290 = vld [vmem:[%s1256 + $0x1b8] sm:$0xff]
    %v1291 = vld [vmem:[%s1256 + $0x1c8] sm:$0xff]
    %v1292 = vld [vmem:[%s1256 + $0x1d0] sm:$0xff]
    %v1293 = vld [vmem:[%s1256 + $0x1e0] sm:$0xff]
    %v1294 = vld [vmem:[%s1256 + $0x1e8] sm:$0xff]
    %v1295 = vld [vmem:[%s1256 + $0x1f8] sm:$0xff]
    %v1296 = vld [vmem:[%s1256 + $0x200] sm:$0xff]
    %v1297 = vld [vmem:[%s1256 + $0x210] sm:$0xff]
    %v1298 = vld [vmem:[%s1256 + $0x218] sm:$0xff]
    %v1299 = vld [vmem:[%s1256 + $0x228] sm:$0xff]
    %v1300 = vld [vmem:[%s1256 + $0x230] sm:$0xff]
    %v1301 = vld [vmem:[%s1256 + $0x240] sm:$0xff]
    %v1302 = vld [vmem:[%s1256 + $0x248] sm:$0xff]
    %v1303 = vld [vmem:[%s1256 + $0x258] sm:$0xff]
    %v1304 = vld [vmem:[%s1256 + $0x260] sm:$0xff]
    %v1305 = vld [vmem:[%s1256 + $0x270] sm:$0xff]
    %v1306 = vld [vmem:[%s1256 + $0x278] sm:$0xff]
    %v1307 = vld [vmem:[%s1256 + $0x288] sm:$0xff]
    %v1308 = vld [vmem:[%s1256 + $0x290] sm:$0xff]
    %v1309 = vld [vmem:[%s1256 + $0x2a0] sm:$0xff]
    %v1310 = vld [vmem:[%s1256 + $0x2a8] sm:$0xff]
    %v1311 = vld [vmem:[%s1256 + $0x2b8] sm:$0xff]
    %v1312 = vld [vmem:[%s1256 + $0x2c0] sm:$0xff]
    %v1313 = vld [vmem:[%s1256 + $0x2d0] sm:$0xff]
    %v1314 = vld [vmem:[%s1256 + $0x2d8] sm:$0xff]
    %v1315 = vld [vmem:[%s1256 + $0x2e8] sm:$0xff]
    %v1316 = vld [vmem:[%s1256 + $0x2f0] sm:$0xff]
    %v1317 = vld [vmem:[%s1256 + $0x300] sm:$0xff]
    %v1318 = vld [vmem:[%s1256 + $0x308] sm:$0xff]
    %v1319 = vld [vmem:[%s1256 + $0x318] sm:$0xff]
    %v1320 = vld [vmem:[%s1256 + $0x320] sm:$0xff]
    %v1321 = vld [vmem:[%s1256 + $0x1] sm:$0xff]
    %v1322 = vld [vmem:[%s1256 + $0x9] sm:$0xff]
    %v1323 = vld [vmem:[%s1256 + $0x19] sm:$0xff]
    %v1324 = vld [vmem:[%s1256 + $0x21] sm:$0xff]
    %v1325 = vld [vmem:[%s1256 + $0x31] sm:$0xff]
    %v1326 = vld [vmem:[%s1256 + $0x39] sm:$0xff]
    %v1327 = vld [vmem:[%s1256 + $0x49] sm:$0xff]
    %v1328 = vld [vmem:[%s1256 + $0x51] sm:$0xff]
    %v1329 = vld [vmem:[%s1256 + $0x61] sm:$0xff]
    %v1330 = vld [vmem:[%s1256 + $0x69] sm:$0xff]
    %v1331 = vld [vmem:[%s1256 + $0x79] sm:$0xff]
    %v1332 = vld [vmem:[%s1256 + $0x81] sm:$0xff]
    %v1333 = vld [vmem:[%s1256 + $0x91] sm:$0xff]
    %v1334 = vld [vmem:[%s1256 + $0x99] sm:$0xff]
    %v1335 = vld [vmem:[%s1256 + $0xa9] sm:$0xff]
    %v1336 = vld [vmem:[%s1256 + $0xb1] sm:$0xff]
    %v1337 = vld [vmem:[%s1256 + $0xc1] sm:$0xff]
    %v1338 = vld [vmem:[%s1256 + $0xc9] sm:$0xff]
    %v1339 = vld [vmem:[%s1256 + $0xd9] sm:$0xff]
    %v1340 = vld [vmem:[%s1256 + $0xe1] sm:$0xff]
    %v1341 = vld [vmem:[%s1256 + $0xf1] sm:$0xff]
    %v1342 = vld [vmem:[%s1256 + $0xf9] sm:$0xff]
    %v1343 = vld [vmem:[%s1256 + $0x109] sm:$0xff]
    %v1344 = vld [vmem:[%s1256 + $0x111] sm:$0xff]
    %v1345 = vld [vmem:[%s1256 + $0x121] sm:$0xff]
    %v1346 = vld [vmem:[%s1256 + $0x129] sm:$0xff]
    %v1347 = vld [vmem:[%s1256 + $0x139] sm:$0xff]
    %v1348 = vld [vmem:[%s1256 + $0x141] sm:$0xff]
    %v1349 = vld [vmem:[%s1256 + $0x151] sm:$0xff]
    %v1350 = vld [vmem:[%s1256 + $0x159] sm:$0xff]
    %v1351 = vld [vmem:[%s1256 + $0x169] sm:$0xff]
    %v1352 = vld [vmem:[%s1256 + $0x171] sm:$0xff]
    %v1353 = vld [vmem:[%s1256 + $0x1b1] sm:$0xff]
    %v1354 = vld [vmem:[%s1256 + $0x1b9] sm:$0xff]
    %v1355 = vld [vmem:[%s1256 + $0x1c9] sm:$0xff]
    %v1356 = vld [vmem:[%s1256 + $0x1d1] sm:$0xff]
    %v1357 = vld [vmem:[%s1256 + $0x1e1] sm:$0xff]
    %v1358 = vld [vmem:[%s1256 + $0x1e9] sm:$0xff]
    %v1359 = vld [vmem:[%s1256 + $0x1f9] sm:$0xff]
    %v1360 = vld [vmem:[%s1256 + $0x201] sm:$0xff]
    %v1361 = vld [vmem:[%s1256 + $0x211] sm:$0xff]
    %v1362 = vld [vmem:[%s1256 + $0x219] sm:$0xff]
    %v1363 = vld [vmem:[%s1256 + $0x229] sm:$0xff]
    %v1364 = vld [vmem:[%s1256 + $0x231] sm:$0xff]
    %v1365 = vld [vmem:[%s1256 + $0x241] sm:$0xff]
    %v1366 = vld [vmem:[%s1256 + $0x249] sm:$0xff]
    %v1367 = vld [vmem:[%s1256 + $0x259] sm:$0xff]
    %v1368 = vld [vmem:[%s1256 + $0x261] sm:$0xff]
    %v1369 = vld [vmem:[%s1256 + $0x271] sm:$0xff]
    %v1370 = vld [vmem:[%s1256 + $0x279] sm:$0xff]
    %v1371 = vld [vmem:[%s1256 + $0x289] sm:$0xff]
    %v1372 = vld [vmem:[%s1256 + $0x291] sm:$0xff]
    %v1373 = vld [vmem:[%s1256 + $0x2a1] sm:$0xff]
    %v1374 = vld [vmem:[%s1256 + $0x2a9] sm:$0xff]
    %v1375 = vld [vmem:[%s1256 + $0x2b9] sm:$0xff]
    %v1376 = vld [vmem:[%s1256 + $0x2c1] sm:$0xff]
    %v1377 = vld [vmem:[%s1256 + $0x2d1] sm:$0xff]
    %v1378 = vld [vmem:[%s1256 + $0x2d9] sm:$0xff]
    %v1379 = vld [vmem:[%s1256 + $0x2e9] sm:$0xff]
    %v1380 = vld [vmem:[%s1256 + $0x2f1] sm:$0xff]
    %v1381 = vld [vmem:[%s1256 + $0x301] sm:$0xff]
    %v1382 = vld [vmem:[%s1256 + $0x309] sm:$0xff]
    %v1383 = vld [vmem:[%s1256 + $0x319] sm:$0xff]
    %v1384 = vld [vmem:[%s1256 + $0x321] sm:$0xff]
    %v1385 = vld [vmem:[%s1256 + $0x2] sm:$0xff]
    %v1386 = vld [vmem:[%s1256 + $0xa] sm:$0xff]
    %v1387 = vld [vmem:[%s1256 + $0x1a] sm:$0xff]
    %v1388 = vld [vmem:[%s1256 + $0x22] sm:$0xff]
    %v1389 = vld [vmem:[%s1256 + $0x32] sm:$0xff]
    %v1390 = vld [vmem:[%s1256 + $0x3a] sm:$0xff]
    %v1391 = vld [vmem:[%s1256 + $0x4a] sm:$0xff]
    %v1392 = vld [vmem:[%s1256 + $0x52] sm:$0xff]
    %v1393 = vld [vmem:[%s1256 + $0x62] sm:$0xff]
    %v1394 = vld [vmem:[%s1256 + $0x6a] sm:$0xff]
    %v1395 = vld [vmem:[%s1256 + $0x7a] sm:$0xff]
    %v1396 = vld [vmem:[%s1256 + $0x82] sm:$0xff]
    %v1397 = vld [vmem:[%s1256 + $0x92] sm:$0xff]
    %v1398 = vld [vmem:[%s1256 + $0x9a] sm:$0xff]
    %v1399 = vld [vmem:[%s1256 + $0xaa] sm:$0xff]
    %v1400 = vld [vmem:[%s1256 + $0xb2] sm:$0xff]
    %v1401 = vld [vmem:[%s1256 + $0xc2] sm:$0xff]
    %v1402 = vld [vmem:[%s1256 + $0xca] sm:$0xff]
    %v1403 = vld [vmem:[%s1256 + $0xda] sm:$0xff]
    %v1404 = vld [vmem:[%s1256 + $0xe2] sm:$0xff]
    %v1405 = vld [vmem:[%s1256 + $0xf2] sm:$0xff]
    %v1406 = vld [vmem:[%s1256 + $0xfa] sm:$0xff]
    %v1407 = vld [vmem:[%s1256 + $0x10a] sm:$0xff]
    %v1408 = vld [vmem:[%s1256 + $0x112] sm:$0xff]
    %v1409 = vld [vmem:[%s1256 + $0x122] sm:$0xff]
    %v1410 = vld [vmem:[%s1256 + $0x12a] sm:$0xff]
    %v1411 = vld [vmem:[%s1256 + $0x13a] sm:$0xff]
    %v1412 = vld [vmem:[%s1256 + $0x142] sm:$0xff]
    %v1413 = vld [vmem:[%s1256 + $0x152] sm:$0xff]
    %v1414 = vld [vmem:[%s1256 + $0x15a] sm:$0xff]
    %v1415 = vld [vmem:[%s1256 + $0x16a] sm:$0xff]
    %v1416 = vld [vmem:[%s1256 + $0x172] sm:$0xff]
    %v1417 = vld [vmem:[%s1256 + $0x1b2] sm:$0xff]
    %v1418 = vld [vmem:[%s1256 + $0x1ba] sm:$0xff]
    %v1419 = vld [vmem:[%s1256 + $0x1ca] sm:$0xff]
    %v1420 = vld [vmem:[%s1256 + $0x1d2] sm:$0xff]
    %v1421 = vld [vmem:[%s1256 + $0x1e2] sm:$0xff]
    %v1422 = vld [vmem:[%s1256 + $0x1ea] sm:$0xff]
    %v1423 = vld [vmem:[%s1256 + $0x1fa] sm:$0xff]
    %v1424 = vld [vmem:[%s1256 + $0x202] sm:$0xff]
    %v1425 = vld [vmem:[%s1256 + $0x212] sm:$0xff]
    %v1426 = vld [vmem:[%s1256 + $0x21a] sm:$0xff]
    %v1427 = vld [vmem:[%s1256 + $0x22a] sm:$0xff]
    %v1428 = vld [vmem:[%s1256 + $0x232] sm:$0xff]
    %v1429 = vld [vmem:[%s1256 + $0x242] sm:$0xff]
    %v1430 = vld [vmem:[%s1256 + $0x24a] sm:$0xff]
    %v1431 = vld [vmem:[%s1256 + $0x25a] sm:$0xff]
    %v1432 = vld [vmem:[%s1256 + $0x262] sm:$0xff]
    %v1433 = vld [vmem:[%s1256 + $0x272] sm:$0xff]
    %v1434 = vld [vmem:[%s1256 + $0x27a] sm:$0xff]
    %v1435 = vld [vmem:[%s1256 + $0x28a] sm:$0xff]
    %v1436 = vld [vmem:[%s1256 + $0x292] sm:$0xff]
    %v1437 = vld [vmem:[%s1256 + $0x2a2] sm:$0xff]
    %v1438 = vld [vmem:[%s1256 + $0x2aa] sm:$0xff]
    %v1439 = vld [vmem:[%s1256 + $0x2ba] sm:$0xff]
    %v1440 = vld [vmem:[%s1256 + $0x2c2] sm:$0xff]
    %v1441 = vld [vmem:[%s1256 + $0x2d2] sm:$0xff]
    %v1442 = vld [vmem:[%s1256 + $0x2da] sm:$0xff]
    %v1443 = vld [vmem:[%s1256 + $0x2ea] sm:$0xff]
    %v1444 = vld [vmem:[%s1256 + $0x2f2] sm:$0xff]
    %v1445 = vld [vmem:[%s1256 + $0x302] sm:$0xff]
    %v1446 = vld [vmem:[%s1256 + $0x30a] sm:$0xff]
    %v1447 = vld [vmem:[%s1256 + $0x31a] sm:$0xff]
    %v1448 = vld [vmem:[%s1256 + $0x322] sm:$0xff]
    %v1449 = vld [vmem:[#allocation9] sm:$0xff]
    %v1450 = vld [vmem:[#allocation9 + $0x8] sm:$0xff]
    %v1451 = vld [vmem:[#allocation9 + $0x10] sm:$0xff]
    %v1452 = vld [vmem:[#allocation9 + $0x18] sm:$0xff]
    %v1453 = vld [vmem:[#allocation9 + $0x20] sm:$0xff]
    %v1454 = vld [vmem:[#allocation9 + $0x28] sm:$0xff]
    %v1455 = vld [vmem:[#allocation9 + $0x30] sm:$0xff]
    %v1456 = vld [vmem:[#allocation9 + $0x38] sm:$0xff]
    %v1457 = vld [vmem:[#allocation9 + $0x40] sm:$0xff]
    %v1458 = vld [vmem:[#allocation9 + $0x48] sm:$0xff]
    %v1459 = vld [vmem:[#allocation9 + $0x50] sm:$0xff]
    %v1460 = vld [vmem:[#allocation9 + $0x58] sm:$0xff]
    %v1461 = vld [vmem:[#allocation9 + $0x60] sm:$0xff]
    %v1462 = vld [vmem:[#allocation9 + $0x68] sm:$0xff]
    %v1463 = vld [vmem:[#allocation9 + $0x70] sm:$0xff]
    %v1464 = vld [vmem:[#allocation9 + $0x78] sm:$0xff]
    %v1465 = vld [vmem:[#allocation9 + $0x80] sm:$0xff]
    %v1466 = vld [vmem:[#allocation9 + $0x88] sm:$0xff]
    %v1467 = vld [vmem:[#allocation9 + $0x90] sm:$0xff]
    %v1468 = vld [vmem:[#allocation9 + $0x98] sm:$0xff]
    %v1469 = vld [vmem:[#allocation9 + $0xa0] sm:$0xff]
    %v1470 = vld [vmem:[#allocation9 + $0xa8] sm:$0xff]
    %v1471 = vld [vmem:[#allocation9 + $0xb0] sm:$0xff]
    %v1472 = vld [vmem:[#allocation9 + $0xb8] sm:$0xff]
    %v1473 = vld [vmem:[#allocation9 + $0xc0] sm:$0xff]
    %v1474 = vld [vmem:[#allocation9 + $0xc8] sm:$0xff]
    %v1475 = vld [vmem:[#allocation9 + $0xd0] sm:$0xff]
    %v1476 = vld [vmem:[#allocation9 + $0xd8] sm:$0xff]
    %v1477 = vld [vmem:[#allocation9 + $0xe0] sm:$0xff]
    %v1478 = vld [vmem:[#allocation9 + $0xe8] sm:$0xff]
    %v1479 = vld [vmem:[#allocation9 + $0xf0] sm:$0xff]
    %v1480 = vld [vmem:[#allocation9 + $0xf8] sm:$0xff]
    %v1481 = vld [vmem:[#allocation9 + $0x100] sm:$0xff]
    %v1482 = vld [vmem:[#allocation9 + $0x108] sm:$0xff]
    %v1483 = vld [vmem:[#allocation9 + $0x110] sm:$0xff]
    %v1484 = vld [vmem:[#allocation9 + $0x118] sm:$0xff]
    %v1485 = vld [vmem:[#allocation9 + $0x120] sm:$0xff]
    %v1486 = vld [vmem:[#allocation9 + $0x128] sm:$0xff]
    %v1487 = vld [vmem:[#allocation9 + $0x130] sm:$0xff]
    %v1488 = vld [vmem:[#allocation9 + $0x138] sm:$0xff]
    %v1489 = vld [vmem:[#allocation9 + $0x140] sm:$0xff]
    %v1490 = vld [vmem:[#allocation9 + $0x148] sm:$0xff]
    %v1491 = vld [vmem:[#allocation9 + $0x150] sm:$0xff]
    %v1492 = vld [vmem:[#allocation9 + $0x158] sm:$0xff]
    %v1493 = vld [vmem:[#allocation9 + $0x160] sm:$0xff]
    %v1494 = vld [vmem:[#allocation9 + $0x168] sm:$0xff]
    %v1495 = vld [vmem:[#allocation9 + $0x170] sm:$0xff]
    %v1496 = vld [vmem:[#allocation9 + $0x178] sm:$0xff]
    %v1497 = vld [vmem:[#allocation9 + $0x180] sm:$0xff]
    %v1498 = vld [vmem:[#allocation9 + $0x188] sm:$0xff]
    %v1499 = vld [vmem:[#allocation9 + $0x190] sm:$0xff]
    %v1500 = vld [vmem:[#allocation9 + $0x198] sm:$0xff]
    %v1501 = vld [vmem:[#allocation9 + $0x1a0] sm:$0xff]
    %v1502 = vld [vmem:[#allocation9 + $0x1a8] sm:$0xff]
    %v1503 = vld [vmem:[#allocation9 + $0x1b0] sm:$0xff]
    %v1504 = vld [vmem:[#allocation9 + $0x1b8] sm:$0xff]
    %v1505 = vld [vmem:[#allocation9 + $0x1c0] sm:$0xff]
    %v1506 = vld [vmem:[#allocation9 + $0x1c8] sm:$0xff]
    %v1507 = vld [vmem:[#allocation9 + $0x1d0] sm:$0xff]
    %v1508 = vld [vmem:[#allocation9 + $0x1d8] sm:$0xff]
    %v1509 = vld [vmem:[#allocation9 + $0x1e0] sm:$0xff]
    %v1510 = vld [vmem:[#allocation9 + $0x1e8] sm:$0xff]
    %v1511 = vld [vmem:[#allocation9 + $0x1f0] sm:$0xff]
    %v1512 = vld [vmem:[#allocation9 + $0x1f8] sm:$0xff]
    %v1513 = vld [vmem:[#allocation9 + $0x200] sm:$0xff]
    %v1514 = vld [vmem:[#allocation9 + $0x208] sm:$0xff]
    %v1515 = vld [vmem:[#allocation9 + $0x210] sm:$0xff]
    %v1516 = vld [vmem:[#allocation9 + $0x218] sm:$0xff]
    %v1517 = vld [vmem:[#allocation9 + $0x220] sm:$0xff]
    %v1518 = vld [vmem:[#allocation9 + $0x228] sm:$0xff]
    %v1519 = vld [vmem:[#allocation9 + $0x230] sm:$0xff]
    %v1520 = vld [vmem:[#allocation9 + $0x238] sm:$0xff]
    %v1521 = vld [vmem:[#allocation9 + $0x240] sm:$0xff]
    %v1522 = vld [vmem:[#allocation9 + $0x248] sm:$0xff]
    %v1523 = vld [vmem:[#allocation9 + $0x250] sm:$0xff]
    %v1524 = vld [vmem:[#allocation9 + $0x258] sm:$0xff]
    %v1525 = vld [vmem:[#allocation9 + $0x260] sm:$0xff]
    %v1526 = vld [vmem:[#allocation9 + $0x268] sm:$0xff]
    %v1527 = vld [vmem:[#allocation9 + $0x270] sm:$0xff]
    %v1528 = vld [vmem:[#allocation9 + $0x278] sm:$0xff]
    %v1529 = vld [vmem:[#allocation9 + $0x280] sm:$0xff]
    %v1530 = vld [vmem:[#allocation9 + $0x288] sm:$0xff]
    %v1531 = vld [vmem:[#allocation9 + $0x290] sm:$0xff]
    %v1532 = vld [vmem:[#allocation9 + $0x298] sm:$0xff]
    %v1533 = vld [vmem:[#allocation9 + $0x2a0] sm:$0xff]
    %v1534 = vld [vmem:[#allocation9 + $0x2a8] sm:$0xff]
    %v1535 = vld [vmem:[#allocation9 + $0x2b0] sm:$0xff]
    %v1536 = vld [vmem:[#allocation9 + $0x2b8] sm:$0xff]
    %v1537 = vld [vmem:[#allocation9 + $0x2c0] sm:$0xff]
    %v1538 = vld [vmem:[#allocation9 + $0x2c8] sm:$0xff]
    %v1539 = vld [vmem:[#allocation9 + $0x2d0] sm:$0xff]
    %v1540 = vld [vmem:[#allocation9 + $0x2d8] sm:$0xff]
    %v1541 = vld [vmem:[#allocation9 + $0x2e0] sm:$0xff]
    %v1542 = vld [vmem:[#allocation9 + $0x2e8] sm:$0xff]
    %v1543 = vld [vmem:[#allocation9 + $0x2f0] sm:$0xff]
    %v1544 = vld [vmem:[#allocation9 + $0x2f8] sm:$0xff]
    %v1545 = vld [vmem:[#allocation9 + $0x300] sm:$0xff]
    %v1546 = vld [vmem:[#allocation9 + $0x308] sm:$0xff]
    %v1547 = vld [vmem:[#allocation9 + $0x310] sm:$0xff]
    %v1548 = vld [vmem:[#allocation9 + $0x318] sm:$0xff]
    %v1549 = vld [vmem:[#allocation9 + $0x320] sm:$0xff]
    %v1550 = vld [vmem:[#allocation9 + $0x328] sm:$0xff]
    %v1551 = vld [vmem:[#allocation9 + $0x330] sm:$0xff]
    %v1552 = vld [vmem:[#allocation9 + $0x338] sm:$0xff]
    %v1553 = vld [vmem:[#allocation9 + $0x340] sm:$0xff]
    %v1554 = vld [vmem:[#allocation9 + $0x348] sm:$0xff]
    %v1555 = vld [vmem:[#allocation9 + $0x350] sm:$0xff]
    %v1556 = vld [vmem:[#allocation9 + $0x358] sm:$0xff]
    %v1557 = vld [vmem:[#allocation9 + $0x360] sm:$0xff]
    %v1558 = vld [vmem:[#allocation9 + $0x368] sm:$0xff]
    %v1559 = vld [vmem:[#allocation9 + $0x370] sm:$0xff]
    %v1560 = vld [vmem:[#allocation9 + $0x378] sm:$0xff]
    %v1561 = vld [vmem:[#allocation9 + $0x380] sm:$0xff]
    %v1562 = vld [vmem:[#allocation9 + $0x388] sm:$0xff]
    %v1563 = vld [vmem:[#allocation9 + $0x390] sm:$0xff]
    %v1564 = vld [vmem:[#allocation9 + $0x398] sm:$0xff]
    %v1565 = vld [vmem:[#allocation9 + $0x3a0] sm:$0xff]
    %v1566 = vld [vmem:[#allocation9 + $0x3a8] sm:$0xff]
    %v1567 = vld [vmem:[#allocation9 + $0x3b0] sm:$0xff]
    %v1568 = vld [vmem:[#allocation9 + $0x3b8] sm:$0xff]
    %v1569 = vld [vmem:[#allocation9 + $0x3c0] sm:$0xff]
    %v1570 = vld [vmem:[#allocation9 + $0x3c8] sm:$0xff]
    %v1571 = vld [vmem:[#allocation9 + $0x3d0] sm:$0xff]
    %v1572 = vld [vmem:[#allocation9 + $0x3d8] sm:$0xff]
    %v1573 = vld [vmem:[#allocation9 + $0x3e0] sm:$0xff]
    %v1574 = vld [vmem:[#allocation9 + $0x3e8] sm:$0xff]
    %v1575 = vld [vmem:[#allocation9 + $0x3f0] sm:$0xff]
    %v1576 = vld [vmem:[#allocation9 + $0x3f8] sm:$0xff]
    %v1577 = vld [vmem:[#allocation9 + $0x400] sm:$0xff]
    %v1578 = vld [vmem:[#allocation9 + $0x408] sm:$0xff]
    %v1579 = vld [vmem:[#allocation9 + $0x410] sm:$0xff]
    %v1580 = vld [vmem:[#allocation9 + $0x418] sm:$0xff]
    %v1581 = vld [vmem:[#allocation9 + $0x420] sm:$0xff]
    %v1582 = vld [vmem:[#allocation9 + $0x428] sm:$0xff]
    %v1583 = vld [vmem:[#allocation9 + $0x430] sm:$0xff]
    %v1584 = vld [vmem:[#allocation9 + $0x438] sm:$0xff]
    %v1585 = vld [vmem:[#allocation9 + $0x440] sm:$0xff]
    %v1586 = vld [vmem:[#allocation9 + $0x448] sm:$0xff]
    %v1587 = vld [vmem:[#allocation9 + $0x450] sm:$0xff]
    %v1588 = vld [vmem:[#allocation9 + $0x458] sm:$0xff]
    %v1589 = vld [vmem:[#allocation9 + $0x460] sm:$0xff]
    %v1590 = vld [vmem:[#allocation9 + $0x468] sm:$0xff]
    %v1591 = vld [vmem:[#allocation9 + $0x470] sm:$0xff]
    %v1592 = vld [vmem:[#allocation9 + $0x478] sm:$0xff]
    %v1593 = vld [vmem:[#allocation11] sm:$0x1]
    %v1595 = vlaneseq
    %v1596 = vshrl.u32 %v1595, 7
    %v1597 = vsub.s32 0, %v1596
    %v1598 = vrot.slane %v1593, %v1597
    %1600 = vmatprep.subr.mxu0 0.0
    %1601 = vmatpush1.msra.mxu0 %v1464
    %1602 = vmatprep.subr.mxu0 0.0
    %1603 = vmatpush1.msra.mxu0 %v1463
    %1604 = vmatprep.subr.mxu0 0.0
    %1605 = vmatpush1.msra.mxu0 %v1462
    %1606 = vmatprep.subr.mxu0 0.0
    %1607 = vmatpush1.msra.mxu0 %v1461
    %1608 = vmatprep.subr.mxu0 0.0
    %1609 = vmatpush1.msra.mxu0 %v1460
    %1610 = vmatprep.subr.mxu0 0.0
    %1611 = vmatpush1.msra.mxu0 %v1459
    %1612 = vmatprep.subr.mxu0 0.0
    %1613 = vmatpush1.msra.mxu0 %v1458
    %1614 = vmatprep.subr.mxu0 0.0
    %1615 = vmatpush1.msra.mxu0 %v1457
    %1616 = vmatprep.subr.mxu0 0.0
    %1617 = vmatpush1.msra.mxu0 %v1456
    %1618 = vmatprep.subr.mxu0 0.0
    %1619 = vmatpush1.msra.mxu0 %v1455
    %1620 = vmatprep.subr.mxu0 0.0
    %1621 = vmatpush1.msra.mxu0 %v1454
    %1622 = vmatprep.subr.mxu0 0.0
    %1623 = vmatpush1.msra.mxu0 %v1453
    %1624 = vmatprep.subr.mxu0 0.0
    %1625 = vmatpush1.msra.mxu0 %v1452
    %1626 = vmatprep.subr.mxu0 0.0
    %1627 = vmatpush1.msra.mxu0 %v1451
    %1628 = vmatprep.subr.mxu0 0.0
    %1629 = vmatpush1.msra.mxu0 %v1450
    %1630 = vmatprep.subr.mxu0 0.0
    %1631 = vmatpush1.msra.mxu0 %v1449
    %1632 = vmatprep.subr.mxu0 0.0
    %1633 = vmatpush2.msra.mxu0 %v1480
    %1634 = vmatprep.subr.mxu0 0.0
    %1635 = vmatpush2.msra.mxu0 %v1479
    %1636 = vmatprep.subr.mxu0 0.0
    %1637 = vmatpush2.msra.mxu0 %v1478
    %1638 = vmatprep.subr.mxu0 0.0
    %1639 = vmatpush2.msra.mxu0 %v1477
    %1640 = vmatprep.subr.mxu0 0.0
    %1641 = vmatpush2.msra.mxu0 %v1476
    %1642 = vmatprep.subr.mxu0 0.0
    %1643 = vmatpush2.msra.mxu0 %v1475
    %1644 = vmatprep.subr.mxu0 0.0
    %1645 = vmatpush2.msra.mxu0 %v1474
    %1646 = vmatprep.subr.mxu0 0.0
    %1647 = vmatpush2.msra.mxu0 %v1473
    %1648 = vmatprep.subr.mxu0 0.0
    %1649 = vmatpush2.msra.mxu0 %v1472
    %1650 = vmatprep.subr.mxu0 0.0
    %1651 = vmatpush2.msra.mxu0 %v1471
    %1652 = vmatprep.subr.mxu0 0.0
    %1653 = vmatpush2.msra.mxu0 %v1470
    %1654 = vmatprep.subr.mxu0 0.0
    %1655 = vmatpush2.msra.mxu0 %v1469
    %1656 = vmatprep.subr.mxu0 0.0
    %1657 = vmatpush2.msra.mxu0 %v1468
    %1658 = vmatprep.subr.mxu0 0.0
    %1659 = vmatpush2.msra.mxu0 %v1467
    %1660 = vmatprep.subr.mxu0 0.0
    %1661 = vmatpush2.msra.mxu0 %v1466
    %1662 = vmatprep.subr.mxu0 0.0
    %1663 = vmatpush2.msra.mxu0 %v1465
    %1664 = vmatprep.mubr.f32.mxu0 %v936
    %1665 = vmatmul.mubr.f32.gmra.mxu0 %v872
    %v1666 = vpop.f32.mrf.mxu0
    %v1667 = vadd.f32 %v1598, %v1666
    %v1668 = vpop.f32.mrf.mxu0
    %1669 = vmatprep.mubr.f32.mxu0 %v937
    %1670 = vmatmul.mubr.f32.gmra.mxu0 %v873
    %v1671 = vpop.f32.mrf.mxu0
    %v1672 = vadd.f32 %v1598, %v1671
    %v1673 = vpop.f32.mrf.mxu0
    %1674 = vmatprep.mubr.f32.mxu0 %v938
    %1675 = vmatmul.mubr.f32.gmra.mxu0 %v874
    %v1676 = vpop.f32.mrf.mxu0
    %v1677 = vadd.f32 %v1598, %v1676
    %v1678 = vpop.f32.mrf.mxu0
    %1679 = vmatprep.mubr.f32.mxu0 %v939
    %1680 = vmatmul.mubr.f32.gmra.mxu0 %v875
    %v1681 = vpop.f32.mrf.mxu0
    %v1682 = vadd.f32 %v1598, %v1681
    %v1683 = vpop.f32.mrf.mxu0
    %1684 = vmatprep.mubr.f32.mxu0 %v940
    %1685 = vmatmul.mubr.f32.gmra.mxu0 %v876
    %v1686 = vpop.f32.mrf.mxu0
    %v1687 = vadd.f32 %v1598, %v1686
    %v1688 = vpop.f32.mrf.mxu0
    %1689 = vmatprep.mubr.f32.mxu0 %v941
    %1690 = vmatmul.mubr.f32.gmra.mxu0 %v877
    %v1691 = vpop.f32.mrf.mxu0
    %v1692 = vadd.f32 %v1598, %v1691
    %v1693 = vpop.f32.mrf.mxu0
    %1694 = vmatprep.mubr.f32.mxu0 %v942
    %1695 = vmatmul.mubr.f32.gmra.mxu0 %v878
    %v1696 = vpop.f32.mrf.mxu0
    %v1697 = vadd.f32 %v1598, %v1696
    %v1698 = vpop.f32.mrf.mxu0
    %1699 = vmatprep.mubr.f32.mxu0 %v943
    %1700 = vmatmul.mubr.f32.gmra.mxu0 %v879
    %v1701 = vpop.f32.mrf.mxu0
    %v1702 = vadd.f32 %v1598, %v1701
    %v1703 = vpop.f32.mrf.mxu0
    %1704 = vmatprep.mubr.f32.mxu0 %v944
    %1705 = vmatmul.mubr.f32.gmra.mxu0 %v880
    %v1706 = vpop.f32.mrf.mxu0
    %v1707 = vadd.f32 %v1598, %v1706
    %v1708 = vpop.f32.mrf.mxu0
    %1709 = vmatprep.mubr.f32.mxu0 %v945
    %1710 = vmatmul.mubr.f32.gmra.mxu0 %v881
    %v1711 = vpop.f32.mrf.mxu0
    %v1712 = vadd.f32 %v1598, %v1711
    %v1713 = vpop.f32.mrf.mxu0
    %1714 = vmatprep.mubr.f32.mxu0 %v946
    %1715 = vmatmul.mubr.f32.gmra.mxu0 %v882
    %v1716 = vpop.f32.mrf.mxu0
    %v1717 = vadd.f32 %v1598, %v1716
    %v1718 = vpop.f32.mrf.mxu0
    %1719 = vmatprep.mubr.f32.mxu0 %v947
    %1720 = vmatmul.mubr.f32.gmra.mxu0 %v883
    %v1721 = vpop.f32.mrf.mxu0
    %v1722 = vadd.f32 %v1598, %v1721
    %v1723 = vpop.f32.mrf.mxu0
    %1724 = vmatprep.mubr.f32.mxu0 %v948
    %1725 = vmatmul.mubr.f32.gmra.mxu0 %v884
    %v1726 = vpop.f32.mrf.mxu0
    %v1727 = vadd.f32 %v1598, %v1726
    %v1728 = vpop.f32.mrf.mxu0
    %1729 = vmatprep.mubr.f32.mxu0 %v949
    %1730 = vmatmul.mubr.f32.gmra.mxu0 %v885
    %v1731 = vpop.f32.mrf.mxu0
    %v1732 = vadd.f32 %v1598, %v1731
    %v1733 = vpop.f32.mrf.mxu0
    %1734 = vmatprep.mubr.f32.mxu0 %v950
    %1735 = vmatmul.mubr.f32.gmra.mxu0 %v886
    %v1736 = vpop.f32.mrf.mxu0
    %v1737 = vadd.f32 %v1598, %v1736
    %v1738 = vpop.f32.mrf.mxu0
    %1739 = vmatprep.mubr.f32.mxu0 %v951
    %1740 = vmatmul.mubr.f32.gmra.mxu0 %v887
    %v1741 = vpop.f32.mrf.mxu0
    %v1742 = vadd.f32 %v1598, %v1741
    %v1743 = vpop.f32.mrf.mxu0
    %1744 = vmatprep.mubr.f32.mxu0 %v952
    %1745 = vmatmul.mubr.f32.gmra.mxu0 %v888
    %v1746 = vpop.f32.mrf.mxu0
    %v1747 = vadd.f32 %v1598, %v1746
    %v1748 = vpop.f32.mrf.mxu0
    %1749 = vmatprep.mubr.f32.mxu0 %v953
    %1750 = vmatmul.mubr.f32.gmra.mxu0 %v889
    %v1751 = vpop.f32.mrf.mxu0
    %v1752 = vadd.f32 %v1598, %v1751
    %v1753 = vpop.f32.mrf.mxu0
    %1754 = vmatprep.mubr.f32.mxu0 %v954
    %1755 = vmatmul.mubr.f32.gmra.mxu0 %v890
    %v1756 = vpop.f32.mrf.mxu0
    %v1757 = vadd.f32 %v1598, %v1756
    %v1758 = vpop.f32.mrf.mxu0
    %1759 = vmatprep.mubr.f32.mxu0 %v955
    %1760 = vmatmul.mubr.f32.gmra.mxu0 %v891
    %v1761 = vpop.f32.mrf.mxu0
    %v1762 = vadd.f32 %v1598, %v1761
    %v1763 = vpop.f32.mrf.mxu0
    %1764 = vmatprep.mubr.f32.mxu0 %v956
    %1765 = vmatmul.mubr.f32.gmra.mxu0 %v892
    %v1766 = vpop.f32.mrf.mxu0
    %v1767 = vadd.f32 %v1598, %v1766
    %v1768 = vpop.f32.mrf.mxu0
    %1769 = vmatprep.mubr.f32.mxu0 %v957
    %1770 = vmatmul.mubr.f32.gmra.mxu0 %v893
    %v1771 = vpop.f32.mrf.mxu0
    %v1772 = vadd.f32 %v1598, %v1771
    %v1773 = vpop.f32.mrf.mxu0
    %1774 = vmatprep.mubr.f32.mxu0 %v958
    %1775 = vmatmul.mubr.f32.gmra.mxu0 %v894
    %v1776 = vpop.f32.mrf.mxu0
    %v1777 = vadd.f32 %v1598, %v1776
    %v1778 = vpop.f32.mrf.mxu0
    %1779 = vmatprep.mubr.f32.mxu0 %v959
    %1780 = vmatmul.mubr.f32.gmra.mxu0 %v895
    %v1781 = vpop.f32.mrf.mxu0
    %v1782 = vadd.f32 %v1598, %v1781
    %v1783 = vpop.f32.mrf.mxu0
    %1784 = vmatprep.mubr.f32.mxu0 %v960
    %1785 = vmatmul.mubr.f32.gmra.mxu0 %v896
    %v1786 = vpop.f32.mrf.mxu0
    %v1787 = vadd.f32 %v1598, %v1786
    %v1788 = vpop.f32.mrf.mxu0
    %1789 = vmatprep.mubr.f32.mxu0 %v961
    %1790 = vmatmul.mubr.f32.gmra.mxu0 %v897
    %v1791 = vpop.f32.mrf.mxu0
    %v1792 = vadd.f32 %v1598, %v1791
    %v1793 = vpop.f32.mrf.mxu0
    %1794 = vmatprep.mubr.f32.mxu0 %v962
    %1795 = vmatmul.mubr.f32.gmra.mxu0 %v898
    %v1796 = vpop.f32.mrf.mxu0
    %v1797 = vadd.f32 %v1598, %v1796
    %v1798 = vpop.f32.mrf.mxu0
    %1799 = vmatprep.mubr.f32.mxu0 %v963
    %1800 = vmatmul.mubr.f32.gmra.mxu0 %v899
    %v1801 = vpop.f32.mrf.mxu0
    %v1802 = vadd.f32 %v1598, %v1801
    %v1803 = vpop.f32.mrf.mxu0
    %1804 = vmatprep.mubr.f32.mxu0 %v964
    %1805 = vmatmul.mubr.f32.gmra.mxu0 %v900
    %v1806 = vpop.f32.mrf.mxu0
    %v1807 = vadd.f32 %v1598, %v1806
    %v1808 = vpop.f32.mrf.mxu0
    %1809 = vmatprep.mubr.f32.mxu0 %v965
    %1810 = vmatmul.mubr.f32.gmra.mxu0 %v901
    %v1811 = vpop.f32.mrf.mxu0
    %v1812 = vadd.f32 %v1598, %v1811
    %v1813 = vpop.f32.mrf.mxu0
    %1814 = vmatprep.mubr.f32.mxu0 %v966
    %1815 = vmatmul.mubr.f32.gmra.mxu0 %v902
    %v1816 = vpop.f32.mrf.mxu0
    %v1817 = vadd.f32 %v1598, %v1816
    %v1818 = vpop.f32.mrf.mxu0
    %1819 = vmatprep.mubr.f32.mxu0 %v967
    %1820 = vmatmul.mubr.f32.gmra.mxu0 %v903
    %v1821 = vpop.f32.mrf.mxu0
    %v1822 = vadd.f32 %v1598, %v1821
    %v1823 = vpop.f32.mrf.mxu0
    %1824 = vmatprep.mubr.f32.mxu0 %v968
    %1825 = vmatmul.mubr.f32.gmra.mxu0 %v904
    %v1826 = vpop.f32.mrf.mxu0
    %v1827 = vadd.f32 %v1598, %v1826
    %v1828 = vpop.f32.mrf.mxu0
    %1829 = vmatprep.mubr.f32.mxu0 %v969
    %1830 = vmatmul.mubr.f32.gmra.mxu0 %v905
    %v1831 = vpop.f32.mrf.mxu0
    %v1832 = vadd.f32 %v1598, %v1831
    %v1833 = vpop.f32.mrf.mxu0
    %1834 = vmatprep.mubr.f32.mxu0 %v970
    %1835 = vmatmul.mubr.f32.gmra.mxu0 %v906
    %v1836 = vpop.f32.mrf.mxu0
    %v1837 = vadd.f32 %v1598, %v1836
    %v1838 = vpop.f32.mrf.mxu0
    %1839 = vmatprep.mubr.f32.mxu0 %v971
    %1840 = vmatmul.mubr.f32.gmra.mxu0 %v907
    %v1841 = vpop.f32.mrf.mxu0
    %v1842 = vadd.f32 %v1598, %v1841
    %v1843 = vpop.f32.mrf.mxu0
    %1844 = vmatprep.mubr.f32.mxu0 %v972
    %1845 = vmatmul.mubr.f32.gmra.mxu0 %v908
    %v1846 = vpop.f32.mrf.mxu0
    %v1847 = vadd.f32 %v1598, %v1846
    %v1848 = vpop.f32.mrf.mxu0
    %1849 = vmatprep.mubr.f32.mxu0 %v973
    %1850 = vmatmul.mubr.f32.gmra.mxu0 %v909
    %v1851 = vpop.f32.mrf.mxu0
    %v1852 = vadd.f32 %v1598, %v1851
    %v1853 = vpop.f32.mrf.mxu0
    %1854 = vmatprep.mubr.f32.mxu0 %v974
    %1855 = vmatmul.mubr.f32.gmra.mxu0 %v910
    %v1856 = vpop.f32.mrf.mxu0
    %v1857 = vadd.f32 %v1598, %v1856
    %v1858 = vpop.f32.mrf.mxu0
    %1859 = vmatprep.mubr.f32.mxu0 %v975
    %1860 = vmatmul.mubr.f32.gmra.mxu0 %v911
    %v1861 = vpop.f32.mrf.mxu0
    %v1862 = vadd.f32 %v1598, %v1861
    %v1863 = vpop.f32.mrf.mxu0
    %1864 = vmatprep.mubr.f32.mxu0 %v976
    %1865 = vmatmul.mubr.f32.gmra.mxu0 %v912
    %v1866 = vpop.f32.mrf.mxu0
    %v1867 = vadd.f32 %v1598, %v1866
    %v1868 = vpop.f32.mrf.mxu0
    %1869 = vmatprep.mubr.f32.mxu0 %v977
    %1870 = vmatmul.mubr.f32.gmra.mxu0 %v913
    %v1871 = vpop.f32.mrf.mxu0
    %v1872 = vadd.f32 %v1598, %v1871
    %v1873 = vpop.f32.mrf.mxu0
    %1874 = vmatprep.mubr.f32.mxu0 %v978
    %1875 = vmatmul.mubr.f32.gmra.mxu0 %v914
    %v1876 = vpop.f32.mrf.mxu0
    %v1877 = vadd.f32 %v1598, %v1876
    %v1878 = vpop.f32.mrf.mxu0
    %1879 = vmatprep.mubr.f32.mxu0 %v979
    %1880 = vmatmul.mubr.f32.gmra.mxu0 %v915
    %v1881 = vpop.f32.mrf.mxu0
    %v1882 = vadd.f32 %v1598, %v1881
    %v1883 = vpop.f32.mrf.mxu0
    %1884 = vmatprep.mubr.f32.mxu0 %v980
    %1885 = vmatmul.mubr.f32.gmra.mxu0 %v916
    %v1886 = vpop.f32.mrf.mxu0
    %v1887 = vadd.f32 %v1598, %v1886
    %v1888 = vpop.f32.mrf.mxu0
    %1889 = vmatprep.mubr.f32.mxu0 %v981
    %1890 = vmatmul.mubr.f32.gmra.mxu0 %v917
    %v1891 = vpop.f32.mrf.mxu0
    %v1892 = vadd.f32 %v1598, %v1891
    %v1893 = vpop.f32.mrf.mxu0
    %1894 = vmatprep.mubr.f32.mxu0 %v982
    %1895 = vmatmul.mubr.f32.gmra.mxu0 %v918
    %v1896 = vpop.f32.mrf.mxu0
    %v1897 = vadd.f32 %v1598, %v1896
    %v1898 = vpop.f32.mrf.mxu0
    %1899 = vmatprep.mubr.f32.mxu0 %v983
    %1900 = vmatmul.mubr.f32.gmra.mxu0 %v919
    %v1901 = vpop.f32.mrf.mxu0
    %v1902 = vadd.f32 %v1598, %v1901
    %v1903 = vpop.f32.mrf.mxu0
    %1904 = vmatprep.mubr.f32.mxu0 %v984
    %1905 = vmatmul.mubr.f32.gmra.mxu0 %v920
    %v1906 = vpop.f32.mrf.mxu0
    %v1907 = vadd.f32 %v1598, %v1906
    %v1908 = vpop.f32.mrf.mxu0
    %1909 = vmatprep.mubr.f32.mxu0 %v985
    %1910 = vmatmul.mubr.f32.gmra.mxu0 %v921
    %v1911 = vpop.f32.mrf.mxu0
    %v1912 = vadd.f32 %v1598, %v1911
    %v1913 = vpop.f32.mrf.mxu0
    %1914 = vmatprep.mubr.f32.mxu0 %v986
    %1915 = vmatmul.mubr.f32.gmra.mxu0 %v922
    %v1916 = vpop.f32.mrf.mxu0
    %v1917 = vadd.f32 %v1598, %v1916
    %v1918 = vpop.f32.mrf.mxu0
    %1919 = vmatprep.mubr.f32.mxu0 %v987
    %1920 = vmatmul.mubr.f32.gmra.mxu0 %v923
    %v1921 = vpop.f32.mrf.mxu0
    %v1922 = vadd.f32 %v1598, %v1921
    %v1923 = vpop.f32.mrf.mxu0
    %1924 = vmatprep.mubr.f32.mxu0 %v988
    %1925 = vmatmul.mubr.f32.gmra.mxu0 %v924
    %v1926 = vpop.f32.mrf.mxu0
    %v1927 = vadd.f32 %v1598, %v1926
    %v1928 = vpop.f32.mrf.mxu0
    %1929 = vmatprep.mubr.f32.mxu0 %v989
    %1930 = vmatmul.mubr.f32.gmra.mxu0 %v925
    %v1931 = vpop.f32.mrf.mxu0
    %v1932 = vadd.f32 %v1598, %v1931
    %v1933 = vpop.f32.mrf.mxu0
    %1934 = vmatprep.mubr.f32.mxu0 %v990
    %1935 = vmatmul.mubr.f32.gmra.mxu0 %v926
    %v1936 = vpop.f32.mrf.mxu0
    %v1937 = vadd.f32 %v1598, %v1936
    %v1938 = vpop.f32.mrf.mxu0
    %1939 = vmatprep.mubr.f32.mxu0 %v991
    %1940 = vmatmul.mubr.f32.gmra.mxu0 %v927
    %v1941 = vpop.f32.mrf.mxu0
    %v1942 = vadd.f32 %v1598, %v1941
    %v1943 = vpop.f32.mrf.mxu0
    %1944 = vmatprep.mubr.f32.mxu0 %v992
    %1945 = vmatmul.mubr.f32.gmra.mxu0 %v928
    %v1946 = vpop.f32.mrf.mxu0
    %v1947 = vadd.f32 %v1598, %v1946
    %v1948 = vpop.f32.mrf.mxu0
    %1949 = vmatprep.mubr.f32.mxu0 %v993
    %1950 = vmatmul.mubr.f32.gmra.mxu0 %v929
    %v1951 = vpop.f32.mrf.mxu0
    %v1952 = vadd.f32 %v1598, %v1951
    %v1953 = vpop.f32.mrf.mxu0
    %1954 = vmatprep.mubr.f32.mxu0 %v994
    %1955 = vmatmul.mubr.f32.gmra.mxu0 %v930
    %v1956 = vpop.f32.mrf.mxu0
    %v1957 = vadd.f32 %v1598, %v1956
    %v1958 = vpop.f32.mrf.mxu0
    %1959 = vmatprep.mubr.f32.mxu0 %v995
    %1960 = vmatmul.mubr.f32.gmra.mxu0 %v931
    %v1961 = vpop.f32.mrf.mxu0
    %v1962 = vadd.f32 %v1598, %v1961
    %v1963 = vpop.f32.mrf.mxu0
    %1964 = vmatprep.mubr.f32.mxu0 %v996
    %1965 = vmatmul.mubr.f32.gmra.mxu0 %v932
    %v1966 = vpop.f32.mrf.mxu0
    %v1967 = vadd.f32 %v1598, %v1966
    %v1968 = vpop.f32.mrf.mxu0
    %1969 = vmatprep.mubr.f32.mxu0 %v997
    %1970 = vmatmul.mubr.f32.gmra.mxu0 %v933
    %v1971 = vpop.f32.mrf.mxu0
    %v1972 = vadd.f32 %v1598, %v1971
    %v1973 = vpop.f32.mrf.mxu0
    %1974 = vmatprep.mubr.f32.mxu0 %v998
    %1975 = vmatmul.mubr.f32.gmra.mxu0 %v934
    %v1976 = vpop.f32.mrf.mxu0
    %v1977 = vadd.f32 %v1598, %v1976
    %v1978 = vpop.f32.mrf.mxu0
    %1979 = vmatprep.mubr.f32.mxu0 %v999
    %1980 = vmatmul.mubr.f32.gmra.mxu0 %v935
    %v1981 = vpop.f32.mrf.mxu0
    %v1982 = vadd.f32 %v1598, %v1981
    %v1983 = vpop.f32.mrf.mxu0
    %1984 = vdwg.mxu0
    %1985 = vmatprep.subr.mxu0 0.0
    %1986 = vmatpush1.msra.mxu0 %v1496
    %1987 = vmatprep.subr.mxu0 0.0
    %1988 = vmatpush1.msra.mxu0 %v1495
    %1989 = vmatprep.subr.mxu0 0.0
    %1990 = vmatpush1.msra.mxu0 %v1494
    %1991 = vmatprep.subr.mxu0 0.0
    %1992 = vmatpush1.msra.mxu0 %v1493
    %1993 = vmatprep.subr.mxu0 0.0
    %1994 = vmatpush1.msra.mxu0 %v1492
    %1995 = vmatprep.subr.mxu0 0.0
    %1996 = vmatpush1.msra.mxu0 %v1491
    %1997 = vmatprep.subr.mxu0 0.0
    %1998 = vmatpush1.msra.mxu0 %v1490
    %1999 = vmatprep.subr.mxu0 0.0
    %2000 = vmatpush1.msra.mxu0 %v1489
    %2001 = vmatprep.subr.mxu0 0.0
    %2002 = vmatpush1.msra.mxu0 %v1488
    %2003 = vmatprep.subr.mxu0 0.0
    %2004 = vmatpush1.msra.mxu0 %v1487
    %2005 = vmatprep.subr.mxu0 0.0
    %2006 = vmatpush1.msra.mxu0 %v1486
    %2007 = vmatprep.subr.mxu0 0.0
    %2008 = vmatpush1.msra.mxu0 %v1485
    %2009 = vmatprep.subr.mxu0 0.0
    %2010 = vmatpush1.msra.mxu0 %v1484
    %2011 = vmatprep.subr.mxu0 0.0
    %2012 = vmatpush1.msra.mxu0 %v1483
    %2013 = vmatprep.subr.mxu0 0.0
    %2014 = vmatpush1.msra.mxu0 %v1482
    %2015 = vmatprep.subr.mxu0 0.0
    %2016 = vmatpush1.msra.mxu0 %v1481
    %2017 = vmatprep.subr.mxu0 0.0
    %2018 = vmatpush2.msra.mxu0 %v1512
    %2019 = vmatprep.subr.mxu0 0.0
    %2020 = vmatpush2.msra.mxu0 %v1511
    %2021 = vmatprep.subr.mxu0 0.0
    %2022 = vmatpush2.msra.mxu0 %v1510
    %2023 = vmatprep.subr.mxu0 0.0
    %2024 = vmatpush2.msra.mxu0 %v1509
    %2025 = vmatprep.subr.mxu0 0.0
    %2026 = vmatpush2.msra.mxu0 %v1508
    %2027 = vmatprep.subr.mxu0 0.0
    %2028 = vmatpush2.msra.mxu0 %v1507
    %2029 = vmatprep.subr.mxu0 0.0
    %2030 = vmatpush2.msra.mxu0 %v1506
    %2031 = vmatprep.subr.mxu0 0.0
    %2032 = vmatpush2.msra.mxu0 %v1505
    %2033 = vmatprep.subr.mxu0 0.0
    %2034 = vmatpush2.msra.mxu0 %v1504
    %2035 = vmatprep.subr.mxu0 0.0
    %2036 = vmatpush2.msra.mxu0 %v1503
    %2037 = vmatprep.subr.mxu0 0.0
    %2038 = vmatpush2.msra.mxu0 %v1502
    %2039 = vmatprep.subr.mxu0 0.0
    %2040 = vmatpush2.msra.mxu0 %v1501
    %2041 = vmatprep.subr.mxu0 0.0
    %2042 = vmatpush2.msra.mxu0 %v1500
    %2043 = vmatprep.subr.mxu0 0.0
    %2044 = vmatpush2.msra.mxu0 %v1499
    %2045 = vmatprep.subr.mxu0 0.0
    %2046 = vmatpush2.msra.mxu0 %v1498
    %2047 = vmatprep.subr.mxu0 0.0
    %2048 = vmatpush2.msra.mxu0 %v1497
    %2049 = vmatprep.mubr.f32.mxu0 %v1064
    %2050 = vmatmul.mubr.f32.gmra.mxu0 %v1000
    %v2051 = vpop.f32.mrf.mxu0
    %v2052 = vadd.f32 %v1667, %v2051
    %v2053 = vpop.f32.mrf.mxu0
    %2054 = vmatprep.mubr.f32.mxu0 %v1065
    %2055 = vmatmul.mubr.f32.gmra.mxu0 %v1001
    %v2056 = vpop.f32.mrf.mxu0
    %v2057 = vadd.f32 %v1672, %v2056
    %v2058 = vpop.f32.mrf.mxu0
    %2059 = vmatprep.mubr.f32.mxu0 %v1066
    %2060 = vmatmul.mubr.f32.gmra.mxu0 %v1002
    %v2061 = vpop.f32.mrf.mxu0
    %v2062 = vadd.f32 %v1677, %v2061
    %v2063 = vpop.f32.mrf.mxu0
    %2064 = vmatprep.mubr.f32.mxu0 %v1067
    %2065 = vmatmul.mubr.f32.gmra.mxu0 %v1003
    %v2066 = vpop.f32.mrf.mxu0
    %v2067 = vadd.f32 %v1682, %v2066
    %v2068 = vpop.f32.mrf.mxu0
    %2069 = vmatprep.mubr.f32.mxu0 %v1068
    %2070 = vmatmul.mubr.f32.gmra.mxu0 %v1004
    %v2071 = vpop.f32.mrf.mxu0
    %v2072 = vadd.f32 %v1687, %v2071
    %v2073 = vpop.f32.mrf.mxu0
    %2074 = vmatprep.mubr.f32.mxu0 %v1069
    %2075 = vmatmul.mubr.f32.gmra.mxu0 %v1005
    %v2076 = vpop.f32.mrf.mxu0
    %v2077 = vadd.f32 %v1692, %v2076
    %v2078 = vpop.f32.mrf.mxu0
    %2079 = vmatprep.mubr.f32.mxu0 %v1070
    %2080 = vmatmul.mubr.f32.gmra.mxu0 %v1006
    %v2081 = vpop.f32.mrf.mxu0
    %v2082 = vadd.f32 %v1697, %v2081
    %v2083 = vpop.f32.mrf.mxu0
    %2084 = vmatprep.mubr.f32.mxu0 %v1071
    %2085 = vmatmul.mubr.f32.gmra.mxu0 %v1007
    %v2086 = vpop.f32.mrf.mxu0
    %v2087 = vadd.f32 %v1702, %v2086
    %v2088 = vpop.f32.mrf.mxu0
    %2089 = vmatprep.mubr.f32.mxu0 %v1072
    %2090 = vmatmul.mubr.f32.gmra.mxu0 %v1008
    %v2091 = vpop.f32.mrf.mxu0
    %v2092 = vadd.f32 %v1707, %v2091
    %v2093 = vpop.f32.mrf.mxu0
    %2094 = vmatprep.mubr.f32.mxu0 %v1073
    %2095 = vmatmul.mubr.f32.gmra.mxu0 %v1009
    %v2096 = vpop.f32.mrf.mxu0
    %v2097 = vadd.f32 %v1712, %v2096
    %v2098 = vpop.f32.mrf.mxu0
    %2099 = vmatprep.mubr.f32.mxu0 %v1074
    %2100 = vmatmul.mubr.f32.gmra.mxu0 %v1010
    %v2101 = vpop.f32.mrf.mxu0
    %v2102 = vadd.f32 %v1717, %v2101
    %v2103 = vpop.f32.mrf.mxu0
    %2104 = vmatprep.mubr.f32.mxu0 %v1075
    %2105 = vmatmul.mubr.f32.gmra.mxu0 %v1011
    %v2106 = vpop.f32.mrf.mxu0
    %v2107 = vadd.f32 %v1722, %v2106
    %v2108 = vpop.f32.mrf.mxu0
    %2109 = vmatprep.mubr.f32.mxu0 %v1076
    %2110 = vmatmul.mubr.f32.gmra.mxu0 %v1012
    %v2111 = vpop.f32.mrf.mxu0
    %v2112 = vadd.f32 %v1727, %v2111
    %v2113 = vpop.f32.mrf.mxu0
    %2114 = vmatprep.mubr.f32.mxu0 %v1077
    %2115 = vmatmul.mubr.f32.gmra.mxu0 %v1013
    %v2116 = vpop.f32.mrf.mxu0
    %v2117 = vadd.f32 %v1732, %v2116
    %v2118 = vpop.f32.mrf.mxu0
    %2119 = vmatprep.mubr.f32.mxu0 %v1078
    %2120 = vmatmul.mubr.f32.gmra.mxu0 %v1014
    %v2121 = vpop.f32.mrf.mxu0
    %v2122 = vadd.f32 %v1737, %v2121
    %v2123 = vpop.f32.mrf.mxu0
    %2124 = vmatprep.mubr.f32.mxu0 %v1079
    %2125 = vmatmul.mubr.f32.gmra.mxu0 %v1015
    %v2126 = vpop.f32.mrf.mxu0
    %v2127 = vadd.f32 %v1742, %v2126
    %v2128 = vpop.f32.mrf.mxu0
    %2129 = vmatprep.mubr.f32.mxu0 %v1080
    %2130 = vmatmul.mubr.f32.gmra.mxu0 %v1016
    %v2131 = vpop.f32.mrf.mxu0
    %v2132 = vadd.f32 %v1747, %v2131
    %v2133 = vpop.f32.mrf.mxu0
    %2134 = vmatprep.mubr.f32.mxu0 %v1081
    %2135 = vmatmul.mubr.f32.gmra.mxu0 %v1017
    %v2136 = vpop.f32.mrf.mxu0
    %v2137 = vadd.f32 %v1752, %v2136
    %v2138 = vpop.f32.mrf.mxu0
    %2139 = vmatprep.mubr.f32.mxu0 %v1082
    %2140 = vmatmul.mubr.f32.gmra.mxu0 %v1018
    %v2141 = vpop.f32.mrf.mxu0
    %v2142 = vadd.f32 %v1757, %v2141
    %v2143 = vpop.f32.mrf.mxu0
    %2144 = vmatprep.mubr.f32.mxu0 %v1083
    %2145 = vmatmul.mubr.f32.gmra.mxu0 %v1019
    %v2146 = vpop.f32.mrf.mxu0
    %v2147 = vadd.f32 %v1762, %v2146
    %v2148 = vpop.f32.mrf.mxu0
    %2149 = vmatprep.mubr.f32.mxu0 %v1084
    %2150 = vmatmul.mubr.f32.gmra.mxu0 %v1020
    %v2151 = vpop.f32.mrf.mxu0
    %v2152 = vadd.f32 %v1767, %v2151
    %v2153 = vpop.f32.mrf.mxu0
    %2154 = vmatprep.mubr.f32.mxu0 %v1085
    %2155 = vmatmul.mubr.f32.gmra.mxu0 %v1021
    %v2156 = vpop.f32.mrf.mxu0
    %v2157 = vadd.f32 %v1772, %v2156
    %v2158 = vpop.f32.mrf.mxu0
    %2159 = vmatprep.mubr.f32.mxu0 %v1086
    %2160 = vmatmul.mubr.f32.gmra.mxu0 %v1022
    %v2161 = vpop.f32.mrf.mxu0
    %v2162 = vadd.f32 %v1777, %v2161
    %v2163 = vpop.f32.mrf.mxu0
    %2164 = vmatprep.mubr.f32.mxu0 %v1087
    %2165 = vmatmul.mubr.f32.gmra.mxu0 %v1023
    %v2166 = vpop.f32.mrf.mxu0
    %v2167 = vadd.f32 %v1782, %v2166
    %v2168 = vpop.f32.mrf.mxu0
    %2169 = vmatprep.mubr.f32.mxu0 %v1088
    %2170 = vmatmul.mubr.f32.gmra.mxu0 %v1024
    %v2171 = vpop.f32.mrf.mxu0
    %v2172 = vadd.f32 %v1787, %v2171
    %v2173 = vpop.f32.mrf.mxu0
    %2174 = vmatprep.mubr.f32.mxu0 %v1089
    %2175 = vmatmul.mubr.f32.gmra.mxu0 %v1025
    %v2176 = vpop.f32.mrf.mxu0
    %v2177 = vadd.f32 %v1792, %v2176
    %v2178 = vpop.f32.mrf.mxu0
    %2179 = vmatprep.mubr.f32.mxu0 %v1090
    %2180 = vmatmul.mubr.f32.gmra.mxu0 %v1026
    %v2181 = vpop.f32.mrf.mxu0
    %v2182 = vadd.f32 %v1797, %v2181
    %v2183 = vpop.f32.mrf.mxu0
    %2184 = vmatprep.mubr.f32.mxu0 %v1091
    %2185 = vmatmul.mubr.f32.gmra.mxu0 %v1027
    %v2186 = vpop.f32.mrf.mxu0
    %v2187 = vadd.f32 %v1802, %v2186
    %v2188 = vpop.f32.mrf.mxu0
    %2189 = vmatprep.mubr.f32.mxu0 %v1092
    %2190 = vmatmul.mubr.f32.gmra.mxu0 %v1028
    %v2191 = vpop.f32.mrf.mxu0
    %v2192 = vadd.f32 %v1807, %v2191
    %v2193 = vpop.f32.mrf.mxu0
    %2194 = vmatprep.mubr.f32.mxu0 %v1093
    %2195 = vmatmul.mubr.f32.gmra.mxu0 %v1029
    %v2196 = vpop.f32.mrf.mxu0
    %v2197 = vadd.f32 %v1812, %v2196
    %v2198 = vpop.f32.mrf.mxu0
    %2199 = vmatprep.mubr.f32.mxu0 %v1094
    %2200 = vmatmul.mubr.f32.gmra.mxu0 %v1030
    %v2201 = vpop.f32.mrf.mxu0
    %v2202 = vadd.f32 %v1817, %v2201
    %v2203 = vpop.f32.mrf.mxu0
    %2204 = vmatprep.mubr.f32.mxu0 %v1095
    %2205 = vmatmul.mubr.f32.gmra.mxu0 %v1031
    %v2206 = vpop.f32.mrf.mxu0
    %v2207 = vadd.f32 %v1822, %v2206
    %v2208 = vpop.f32.mrf.mxu0
    %2209 = vmatprep.mubr.f32.mxu0 %v1096
    %2210 = vmatmul.mubr.f32.gmra.mxu0 %v1032
    %v2211 = vpop.f32.mrf.mxu0
    %v2212 = vadd.f32 %v1827, %v2211
    %v2213 = vpop.f32.mrf.mxu0
    %2214 = vmatprep.mubr.f32.mxu0 %v1097
    %2215 = vmatmul.mubr.f32.gmra.mxu0 %v1033
    %v2216 = vpop.f32.mrf.mxu0
    %v2217 = vadd.f32 %v1832, %v2216
    %v2218 = vpop.f32.mrf.mxu0
    %2219 = vmatprep.mubr.f32.mxu0 %v1098
    %2220 = vmatmul.mubr.f32.gmra.mxu0 %v1034
    %v2221 = vpop.f32.mrf.mxu0
    %v2222 = vadd.f32 %v1837, %v2221
    %v2223 = vpop.f32.mrf.mxu0
    %2224 = vmatprep.mubr.f32.mxu0 %v1099
    %2225 = vmatmul.mubr.f32.gmra.mxu0 %v1035
    %v2226 = vpop.f32.mrf.mxu0
    %v2227 = vadd.f32 %v1842, %v2226
    %v2228 = vpop.f32.mrf.mxu0
    %2229 = vmatprep.mubr.f32.mxu0 %v1100
    %2230 = vmatmul.mubr.f32.gmra.mxu0 %v1036
    %v2231 = vpop.f32.mrf.mxu0
    %v2232 = vadd.f32 %v1847, %v2231
    %v2233 = vpop.f32.mrf.mxu0
    %2234 = vmatprep.mubr.f32.mxu0 %v1101
    %2235 = vmatmul.mubr.f32.gmra.mxu0 %v1037
    %v2236 = vpop.f32.mrf.mxu0
    %v2237 = vadd.f32 %v1852, %v2236
    %v2238 = vpop.f32.mrf.mxu0
    %2239 = vmatprep.mubr.f32.mxu0 %v1102
    %2240 = vmatmul.mubr.f32.gmra.mxu0 %v1038
    %v2241 = vpop.f32.mrf.mxu0
    %v2242 = vadd.f32 %v1857, %v2241
    %v2243 = vpop.f32.mrf.mxu0
    %2244 = vmatprep.mubr.f32.mxu0 %v1103
    %2245 = vmatmul.mubr.f32.gmra.mxu0 %v1039
    %v2246 = vpop.f32.mrf.mxu0
    %v2247 = vadd.f32 %v1862, %v2246
    %v2248 = vpop.f32.mrf.mxu0
    %2249 = vmatprep.mubr.f32.mxu0 %v1104
    %2250 = vmatmul.mubr.f32.gmra.mxu0 %v1040
    %v2251 = vpop.f32.mrf.mxu0
    %v2252 = vadd.f32 %v1867, %v2251
    %v2253 = vpop.f32.mrf.mxu0
    %2254 = vmatprep.mubr.f32.mxu0 %v1105
    %2255 = vmatmul.mubr.f32.gmra.mxu0 %v1041
    %v2256 = vpop.f32.mrf.mxu0
    %v2257 = vadd.f32 %v1872, %v2256
    %v2258 = vpop.f32.mrf.mxu0
    %2259 = vmatprep.mubr.f32.mxu0 %v1106
    %2260 = vmatmul.mubr.f32.gmra.mxu0 %v1042
    %v2261 = vpop.f32.mrf.mxu0
    %v2262 = vadd.f32 %v1877, %v2261
    %v2263 = vpop.f32.mrf.mxu0
    %2264 = vmatprep.mubr.f32.mxu0 %v1107
    %2265 = vmatmul.mubr.f32.gmra.mxu0 %v1043
    %v2266 = vpop.f32.mrf.mxu0
    %v2267 = vadd.f32 %v1882, %v2266
    %v2268 = vpop.f32.mrf.mxu0
    %2269 = vmatprep.mubr.f32.mxu0 %v1108
    %2270 = vmatmul.mubr.f32.gmra.mxu0 %v1044
    %v2271 = vpop.f32.mrf.mxu0
    %v2272 = vadd.f32 %v1887, %v2271
    %v2273 = vpop.f32.mrf.mxu0
    %2274 = vmatprep.mubr.f32.mxu0 %v1109
    %2275 = vmatmul.mubr.f32.gmra.mxu0 %v1045
    %v2276 = vpop.f32.mrf.mxu0
    %v2277 = vadd.f32 %v1892, %v2276
    %v2278 = vpop.f32.mrf.mxu0
    %2279 = vmatprep.mubr.f32.mxu0 %v1110
    %2280 = vmatmul.mubr.f32.gmra.mxu0 %v1046
    %v2281 = vpop.f32.mrf.mxu0
    %v2282 = vadd.f32 %v1897, %v2281
    %v2283 = vpop.f32.mrf.mxu0
    %2284 = vmatprep.mubr.f32.mxu0 %v1111
    %2285 = vmatmul.mubr.f32.gmra.mxu0 %v1047
    %v2286 = vpop.f32.mrf.mxu0
    %v2287 = vadd.f32 %v1902, %v2286
    %v2288 = vpop.f32.mrf.mxu0
    %2289 = vmatprep.mubr.f32.mxu0 %v1112
    %2290 = vmatmul.mubr.f32.gmra.mxu0 %v1048
    %v2291 = vpop.f32.mrf.mxu0
    %v2292 = vadd.f32 %v1907, %v2291
    %v2293 = vpop.f32.mrf.mxu0
    %2294 = vmatprep.mubr.f32.mxu0 %v1113
    %2295 = vmatmul.mubr.f32.gmra.mxu0 %v1049
    %v2296 = vpop.f32.mrf.mxu0
    %v2297 = vadd.f32 %v1912, %v2296
    %v2298 = vpop.f32.mrf.mxu0
    %2299 = vmatprep.mubr.f32.mxu0 %v1114
    %2300 = vmatmul.mubr.f32.gmra.mxu0 %v1050
    %v2301 = vpop.f32.mrf.mxu0
    %v2302 = vadd.f32 %v1917, %v2301
    %v2303 = vpop.f32.mrf.mxu0
    %2304 = vmatprep.mubr.f32.mxu0 %v1115
    %2305 = vmatmul.mubr.f32.gmra.mxu0 %v1051
    %v2306 = vpop.f32.mrf.mxu0
    %v2307 = vadd.f32 %v1922, %v2306
    %v2308 = vpop.f32.mrf.mxu0
    %2309 = vmatprep.mubr.f32.mxu0 %v1116
    %2310 = vmatmul.mubr.f32.gmra.mxu0 %v1052
    %v2311 = vpop.f32.mrf.mxu0
    %v2312 = vadd.f32 %v1927, %v2311
    %v2313 = vpop.f32.mrf.mxu0
    %2314 = vmatprep.mubr.f32.mxu0 %v1117
    %2315 = vmatmul.mubr.f32.gmra.mxu0 %v1053
    %v2316 = vpop.f32.mrf.mxu0
    %v2317 = vadd.f32 %v1932, %v2316
    %v2318 = vpop.f32.mrf.mxu0
    %2319 = vmatprep.mubr.f32.mxu0 %v1118
    %2320 = vmatmul.mubr.f32.gmra.mxu0 %v1054
    %v2321 = vpop.f32.mrf.mxu0
    %v2322 = vadd.f32 %v1937, %v2321
    %v2323 = vpop.f32.mrf.mxu0
    %2324 = vmatprep.mubr.f32.mxu0 %v1119
    %2325 = vmatmul.mubr.f32.gmra.mxu0 %v1055
    %v2326 = vpop.f32.mrf.mxu0
    %v2327 = vadd.f32 %v1942, %v2326
    %v2328 = vpop.f32.mrf.mxu0
    %2329 = vmatprep.mubr.f32.mxu0 %v1120
    %2330 = vmatmul.mubr.f32.gmra.mxu0 %v1056
    %v2331 = vpop.f32.mrf.mxu0
    %v2332 = vadd.f32 %v1947, %v2331
    %v2333 = vpop.f32.mrf.mxu0
    %2334 = vmatprep.mubr.f32.mxu0 %v1121
    %2335 = vmatmul.mubr.f32.gmra.mxu0 %v1057
    %v2336 = vpop.f32.mrf.mxu0
    %v2337 = vadd.f32 %v1952, %v2336
    %v2338 = vpop.f32.mrf.mxu0
    %2339 = vmatprep.mubr.f32.mxu0 %v1122
    %2340 = vmatmul.mubr.f32.gmra.mxu0 %v1058
    %v2341 = vpop.f32.mrf.mxu0
    %v2342 = vadd.f32 %v1957, %v2341
    %v2343 = vpop.f32.mrf.mxu0
    %2344 = vmatprep.mubr.f32.mxu0 %v1123
    %2345 = vmatmul.mubr.f32.gmra.mxu0 %v1059
    %v2346 = vpop.f32.mrf.mxu0
    %v2347 = vadd.f32 %v1962, %v2346
    %v2348 = vpop.f32.mrf.mxu0
    %2349 = vmatprep.mubr.f32.mxu0 %v1124
    %2350 = vmatmul.mubr.f32.gmra.mxu0 %v1060
    %v2351 = vpop.f32.mrf.mxu0
    %v2352 = vadd.f32 %v1967, %v2351
    %v2353 = vpop.f32.mrf.mxu0
    %2354 = vmatprep.mubr.f32.mxu0 %v1125
    %2355 = vmatmul.mubr.f32.gmra.mxu0 %v1061
    %v2356 = vpop.f32.mrf.mxu0
    %v2357 = vadd.f32 %v1972, %v2356
    %v2358 = vpop.f32.mrf.mxu0
    %2359 = vmatprep.mubr.f32.mxu0 %v1126
    %2360 = vmatmul.mubr.f32.gmra.mxu0 %v1062
    %v2361 = vpop.f32.mrf.mxu0
    %v2362 = vadd.f32 %v1977, %v2361
    %v2363 = vpop.f32.mrf.mxu0
    %2364 = vmatprep.mubr.f32.mxu0 %v1127
    %2365 = vmatmul.mubr.f32.gmra.mxu0 %v1063
    %v2366 = vpop.f32.mrf.mxu0
    %v2367 = vadd.f32 %v1982, %v2366
    %v2368 = vpop.f32.mrf.mxu0
    %2369 = vdwg.mxu0
    %2370 = vmatprep.subr.mxu0 0.0
    %2371 = vmatpush1.msra.mxu0 %v1528
    %2372 = vmatprep.subr.mxu0 0.0
    %2373 = vmatpush1.msra.mxu0 %v1527
    %2374 = vmatprep.subr.mxu0 0.0
    %2375 = vmatpush1.msra.mxu0 %v1526
    %2376 = vmatprep.subr.mxu0 0.0
    %2377 = vmatpush1.msra.mxu0 %v1525
    %2378 = vmatprep.subr.mxu0 0.0
    %2379 = vmatpush1.msra.mxu0 %v1524
    %2380 = vmatprep.subr.mxu0 0.0
    %2381 = vmatpush1.msra.mxu0 %v1523
    %2382 = vmatprep.subr.mxu0 0.0
    %2383 = vmatpush1.msra.mxu0 %v1522
    %2384 = vmatprep.subr.mxu0 0.0
    %2385 = vmatpush1.msra.mxu0 %v1521
    %2386 = vmatprep.subr.mxu0 0.0
    %2387 = vmatpush1.msra.mxu0 %v1520
    %2388 = vmatprep.subr.mxu0 0.0
    %2389 = vmatpush1.msra.mxu0 %v1519
    %2390 = vmatprep.subr.mxu0 0.0
    %2391 = vmatpush1.msra.mxu0 %v1518
    %2392 = vmatprep.subr.mxu0 0.0
    %2393 = vmatpush1.msra.mxu0 %v1517
    %2394 = vmatprep.subr.mxu0 0.0
    %2395 = vmatpush1.msra.mxu0 %v1516
    %2396 = vmatprep.subr.mxu0 0.0
    %2397 = vmatpush1.msra.mxu0 %v1515
    %2398 = vmatprep.subr.mxu0 0.0
    %2399 = vmatpush1.msra.mxu0 %v1514
    %2400 = vmatprep.subr.mxu0 0.0
    %2401 = vmatpush1.msra.mxu0 %v1513
    %2402 = vmatprep.subr.mxu0 0.0
    %2403 = vmatpush2.msra.mxu0 %v1544
    %2404 = vmatprep.subr.mxu0 0.0
    %2405 = vmatpush2.msra.mxu0 %v1543
    %2406 = vmatprep.subr.mxu0 0.0
    %2407 = vmatpush2.msra.mxu0 %v1542
    %2408 = vmatprep.subr.mxu0 0.0
    %2409 = vmatpush2.msra.mxu0 %v1541
    %2410 = vmatprep.subr.mxu0 0.0
    %2411 = vmatpush2.msra.mxu0 %v1540
    %2412 = vmatprep.subr.mxu0 0.0
    %2413 = vmatpush2.msra.mxu0 %v1539
    %2414 = vmatprep.subr.mxu0 0.0
    %2415 = vmatpush2.msra.mxu0 %v1538
    %2416 = vmatprep.subr.mxu0 0.0
    %2417 = vmatpush2.msra.mxu0 %v1537
    %2418 = vmatprep.subr.mxu0 0.0
    %2419 = vmatpush2.msra.mxu0 %v1536
    %2420 = vmatprep.subr.mxu0 0.0
    %2421 = vmatpush2.msra.mxu0 %v1535
    %2422 = vmatprep.subr.mxu0 0.0
    %2423 = vmatpush2.msra.mxu0 %v1534
    %2424 = vmatprep.subr.mxu0 0.0
    %2425 = vmatpush2.msra.mxu0 %v1533
    %2426 = vmatprep.subr.mxu0 0.0
    %2427 = vmatpush2.msra.mxu0 %v1532
    %2428 = vmatprep.subr.mxu0 0.0
    %2429 = vmatpush2.msra.mxu0 %v1531
    %2430 = vmatprep.subr.mxu0 0.0
    %2431 = vmatpush2.msra.mxu0 %v1530
    %2432 = vmatprep.subr.mxu0 0.0
    %2433 = vmatpush2.msra.mxu0 %v1529
    %2434 = vmatprep.mubr.f32.mxu0 %v1192
    %2435 = vmatmul.mubr.f32.gmra.mxu0 %v1128
    %v2436 = vpop.f32.mrf.mxu0
    %v2437 = vadd.f32 %v2052, %v2436
    %v2438 = vpop.f32.mrf.mxu0
    %2439 = vmatprep.mubr.f32.mxu0 %v1193
    %2440 = vmatmul.mubr.f32.gmra.mxu0 %v1129
    %v2441 = vpop.f32.mrf.mxu0
    %v2442 = vadd.f32 %v2057, %v2441
    %v2443 = vpop.f32.mrf.mxu0
    %2444 = vmatprep.mubr.f32.mxu0 %v1194
    %2445 = vmatmul.mubr.f32.gmra.mxu0 %v1130
    %v2446 = vpop.f32.mrf.mxu0
    %v2447 = vadd.f32 %v2062, %v2446
    %v2448 = vpop.f32.mrf.mxu0
    %2449 = vmatprep.mubr.f32.mxu0 %v1195
    %2450 = vmatmul.mubr.f32.gmra.mxu0 %v1131
    %v2451 = vpop.f32.mrf.mxu0
    %v2452 = vadd.f32 %v2067, %v2451
    %v2453 = vpop.f32.mrf.mxu0
    %2454 = vmatprep.mubr.f32.mxu0 %v1196
    %2455 = vmatmul.mubr.f32.gmra.mxu0 %v1132
    %v2456 = vpop.f32.mrf.mxu0
    %v2457 = vadd.f32 %v2072, %v2456
    %v2458 = vpop.f32.mrf.mxu0
    %2459 = vmatprep.mubr.f32.mxu0 %v1197
    %2460 = vmatmul.mubr.f32.gmra.mxu0 %v1133
    %v2461 = vpop.f32.mrf.mxu0
    %v2462 = vadd.f32 %v2077, %v2461
    %v2463 = vpop.f32.mrf.mxu0
    %2464 = vmatprep.mubr.f32.mxu0 %v1198
    %2465 = vmatmul.mubr.f32.gmra.mxu0 %v1134
    %v2466 = vpop.f32.mrf.mxu0
    %v2467 = vadd.f32 %v2082, %v2466
    %v2468 = vpop.f32.mrf.mxu0
    %2469 = vmatprep.mubr.f32.mxu0 %v1199
    %2470 = vmatmul.mubr.f32.gmra.mxu0 %v1135
    %v2471 = vpop.f32.mrf.mxu0
    %v2472 = vadd.f32 %v2087, %v2471
    %v2473 = vpop.f32.mrf.mxu0
    %2474 = vmatprep.mubr.f32.mxu0 %v1200
    %2475 = vmatmul.mubr.f32.gmra.mxu0 %v1136
    %v2476 = vpop.f32.mrf.mxu0
    %v2477 = vadd.f32 %v2092, %v2476
    %v2478 = vpop.f32.mrf.mxu0
    %2479 = vmatprep.mubr.f32.mxu0 %v1201
    %2480 = vmatmul.mubr.f32.gmra.mxu0 %v1137
    %v2481 = vpop.f32.mrf.mxu0
    %v2482 = vadd.f32 %v2097, %v2481
    %v2483 = vpop.f32.mrf.mxu0
    %2484 = vmatprep.mubr.f32.mxu0 %v1202
    %2485 = vmatmul.mubr.f32.gmra.mxu0 %v1138
    %v2486 = vpop.f32.mrf.mxu0
    %v2487 = vadd.f32 %v2102, %v2486
    %v2488 = vpop.f32.mrf.mxu0
    %2489 = vmatprep.mubr.f32.mxu0 %v1203
    %2490 = vmatmul.mubr.f32.gmra.mxu0 %v1139
    %v2491 = vpop.f32.mrf.mxu0
    %v2492 = vadd.f32 %v2107, %v2491
    %v2493 = vpop.f32.mrf.mxu0
    %2494 = vmatprep.mubr.f32.mxu0 %v1204
    %2495 = vmatmul.mubr.f32.gmra.mxu0 %v1140
    %v2496 = vpop.f32.mrf.mxu0
    %v2497 = vadd.f32 %v2112, %v2496
    %v2498 = vpop.f32.mrf.mxu0
    %2499 = vmatprep.mubr.f32.mxu0 %v1205
    %2500 = vmatmul.mubr.f32.gmra.mxu0 %v1141
    %v2501 = vpop.f32.mrf.mxu0
    %v2502 = vadd.f32 %v2117, %v2501
    %v2503 = vpop.f32.mrf.mxu0
    %2504 = vmatprep.mubr.f32.mxu0 %v1206
    %2505 = vmatmul.mubr.f32.gmra.mxu0 %v1142
    %v2506 = vpop.f32.mrf.mxu0
    %v2507 = vadd.f32 %v2122, %v2506
    %v2508 = vpop.f32.mrf.mxu0
    %2509 = vmatprep.mubr.f32.mxu0 %v1207
    %2510 = vmatmul.mubr.f32.gmra.mxu0 %v1143
    %v2511 = vpop.f32.mrf.mxu0
    %v2512 = vadd.f32 %v2127, %v2511
    %v2513 = vpop.f32.mrf.mxu0
    %2514 = vmatprep.mubr.f32.mxu0 %v1208
    %2515 = vmatmul.mubr.f32.gmra.mxu0 %v1144
    %v2516 = vpop.f32.mrf.mxu0
    %v2517 = vadd.f32 %v2132, %v2516
    %v2518 = vpop.f32.mrf.mxu0
    %2519 = vmatprep.mubr.f32.mxu0 %v1209
    %2520 = vmatmul.mubr.f32.gmra.mxu0 %v1145
    %v2521 = vpop.f32.mrf.mxu0
    %v2522 = vadd.f32 %v2137, %v2521
    %v2523 = vpop.f32.mrf.mxu0
    %2524 = vmatprep.mubr.f32.mxu0 %v1210
    %2525 = vmatmul.mubr.f32.gmra.mxu0 %v1146
    %v2526 = vpop.f32.mrf.mxu0
    %v2527 = vadd.f32 %v2142, %v2526
    %v2528 = vpop.f32.mrf.mxu0
    %2529 = vmatprep.mubr.f32.mxu0 %v1211
    %2530 = vmatmul.mubr.f32.gmra.mxu0 %v1147
    %v2531 = vpop.f32.mrf.mxu0
    %v2532 = vadd.f32 %v2147, %v2531
    %v2533 = vpop.f32.mrf.mxu0
    %2534 = vmatprep.mubr.f32.mxu0 %v1212
    %2535 = vmatmul.mubr.f32.gmra.mxu0 %v1148
    %v2536 = vpop.f32.mrf.mxu0
    %v2537 = vadd.f32 %v2152, %v2536
    %v2538 = vpop.f32.mrf.mxu0
    %2539 = vmatprep.mubr.f32.mxu0 %v1213
    %2540 = vmatmul.mubr.f32.gmra.mxu0 %v1149
    %v2541 = vpop.f32.mrf.mxu0
    %v2542 = vadd.f32 %v2157, %v2541
    %v2543 = vpop.f32.mrf.mxu0
    %2544 = vmatprep.mubr.f32.mxu0 %v1214
    %2545 = vmatmul.mubr.f32.gmra.mxu0 %v1150
    %v2546 = vpop.f32.mrf.mxu0
    %v2547 = vadd.f32 %v2162, %v2546
    %v2548 = vpop.f32.mrf.mxu0
    %2549 = vmatprep.mubr.f32.mxu0 %v1215
    %2550 = vmatmul.mubr.f32.gmra.mxu0 %v1151
    %v2551 = vpop.f32.mrf.mxu0
    %v2552 = vadd.f32 %v2167, %v2551
    %v2553 = vpop.f32.mrf.mxu0
    %2554 = vmatprep.mubr.f32.mxu0 %v1216
    %2555 = vmatmul.mubr.f32.gmra.mxu0 %v1152
    %v2556 = vpop.f32.mrf.mxu0
    %v2557 = vadd.f32 %v2172, %v2556
    %v2558 = vpop.f32.mrf.mxu0
    %2559 = vmatprep.mubr.f32.mxu0 %v1217
    %2560 = vmatmul.mubr.f32.gmra.mxu0 %v1153
    %v2561 = vpop.f32.mrf.mxu0
    %v2562 = vadd.f32 %v2177, %v2561
    %v2563 = vpop.f32.mrf.mxu0
    %2564 = vmatprep.mubr.f32.mxu0 %v1218
    %2565 = vmatmul.mubr.f32.gmra.mxu0 %v1154
    %v2566 = vpop.f32.mrf.mxu0
    %v2567 = vadd.f32 %v2182, %v2566
    %v2568 = vpop.f32.mrf.mxu0
    %2569 = vmatprep.mubr.f32.mxu0 %v1219
    %2570 = vmatmul.mubr.f32.gmra.mxu0 %v1155
    %v2571 = vpop.f32.mrf.mxu0
    %v2572 = vadd.f32 %v2187, %v2571
    %v2573 = vpop.f32.mrf.mxu0
    %2574 = vmatprep.mubr.f32.mxu0 %v1220
    %2575 = vmatmul.mubr.f32.gmra.mxu0 %v1156
    %v2576 = vpop.f32.mrf.mxu0
    %v2577 = vadd.f32 %v2192, %v2576
    %v2578 = vpop.f32.mrf.mxu0
    %2579 = vmatprep.mubr.f32.mxu0 %v1221
    %2580 = vmatmul.mubr.f32.gmra.mxu0 %v1157
    %v2581 = vpop.f32.mrf.mxu0
    %v2582 = vadd.f32 %v2197, %v2581
    %v2583 = vpop.f32.mrf.mxu0
    %2584 = vmatprep.mubr.f32.mxu0 %v1222
    %2585 = vmatmul.mubr.f32.gmra.mxu0 %v1158
    %v2586 = vpop.f32.mrf.mxu0
    %v2587 = vadd.f32 %v2202, %v2586
    %v2588 = vpop.f32.mrf.mxu0
    %2589 = vmatprep.mubr.f32.mxu0 %v1223
    %2590 = vmatmul.mubr.f32.gmra.mxu0 %v1159
    %v2591 = vpop.f32.mrf.mxu0
    %v2592 = vadd.f32 %v2207, %v2591
    %v2593 = vpop.f32.mrf.mxu0
    %2594 = vmatprep.mubr.f32.mxu0 %v1224
    %2595 = vmatmul.mubr.f32.gmra.mxu0 %v1160
    %v2596 = vpop.f32.mrf.mxu0
    %v2597 = vadd.f32 %v2212, %v2596
    %v2598 = vpop.f32.mrf.mxu0
    %2599 = vmatprep.mubr.f32.mxu0 %v1225
    %2600 = vmatmul.mubr.f32.gmra.mxu0 %v1161
    %v2601 = vpop.f32.mrf.mxu0
    %v2602 = vadd.f32 %v2217, %v2601
    %v2603 = vpop.f32.mrf.mxu0
    %2604 = vmatprep.mubr.f32.mxu0 %v1226
    %2605 = vmatmul.mubr.f32.gmra.mxu0 %v1162
    %v2606 = vpop.f32.mrf.mxu0
    %v2607 = vadd.f32 %v2222, %v2606
    %v2608 = vpop.f32.mrf.mxu0
    %2609 = vmatprep.mubr.f32.mxu0 %v1227
    %2610 = vmatmul.mubr.f32.gmra.mxu0 %v1163
    %v2611 = vpop.f32.mrf.mxu0
    %v2612 = vadd.f32 %v2227, %v2611
    %v2613 = vpop.f32.mrf.mxu0
    %2614 = vmatprep.mubr.f32.mxu0 %v1228
    %2615 = vmatmul.mubr.f32.gmra.mxu0 %v1164
    %v2616 = vpop.f32.mrf.mxu0
    %v2617 = vadd.f32 %v2232, %v2616
    %v2618 = vpop.f32.mrf.mxu0
    %2619 = vmatprep.mubr.f32.mxu0 %v1229
    %2620 = vmatmul.mubr.f32.gmra.mxu0 %v1165
    %v2621 = vpop.f32.mrf.mxu0
    %v2622 = vadd.f32 %v2237, %v2621
    %v2623 = vpop.f32.mrf.mxu0
    %2624 = vmatprep.mubr.f32.mxu0 %v1230
    %2625 = vmatmul.mubr.f32.gmra.mxu0 %v1166
    %v2626 = vpop.f32.mrf.mxu0
    %v2627 = vadd.f32 %v2242, %v2626
    %v2628 = vpop.f32.mrf.mxu0
    %2629 = vmatprep.mubr.f32.mxu0 %v1231
    %2630 = vmatmul.mubr.f32.gmra.mxu0 %v1167
    %v2631 = vpop.f32.mrf.mxu0
    %v2632 = vadd.f32 %v2247, %v2631
    %v2633 = vpop.f32.mrf.mxu0
    %2634 = vmatprep.mubr.f32.mxu0 %v1232
    %2635 = vmatmul.mubr.f32.gmra.mxu0 %v1168
    %v2636 = vpop.f32.mrf.mxu0
    %v2637 = vadd.f32 %v2252, %v2636
    %v2638 = vpop.f32.mrf.mxu0
    %2639 = vmatprep.mubr.f32.mxu0 %v1233
    %2640 = vmatmul.mubr.f32.gmra.mxu0 %v1169
    %v2641 = vpop.f32.mrf.mxu0
    %v2642 = vadd.f32 %v2257, %v2641
    %v2643 = vpop.f32.mrf.mxu0
    %2644 = vmatprep.mubr.f32.mxu0 %v1234
    %2645 = vmatmul.mubr.f32.gmra.mxu0 %v1170
    %v2646 = vpop.f32.mrf.mxu0
    %v2647 = vadd.f32 %v2262, %v2646
    %v2648 = vpop.f32.mrf.mxu0
    %2649 = vmatprep.mubr.f32.mxu0 %v1235
    %2650 = vmatmul.mubr.f32.gmra.mxu0 %v1171
    %v2651 = vpop.f32.mrf.mxu0
    %v2652 = vadd.f32 %v2267, %v2651
    %v2653 = vpop.f32.mrf.mxu0
    %2654 = vmatprep.mubr.f32.mxu0 %v1236
    %2655 = vmatmul.mubr.f32.gmra.mxu0 %v1172
    %v2656 = vpop.f32.mrf.mxu0
    %v2657 = vadd.f32 %v2272, %v2656
    %v2658 = vpop.f32.mrf.mxu0
    %2659 = vmatprep.mubr.f32.mxu0 %v1237
    %2660 = vmatmul.mubr.f32.gmra.mxu0 %v1173
    %v2661 = vpop.f32.mrf.mxu0
    %v2662 = vadd.f32 %v2277, %v2661
    %v2663 = vpop.f32.mrf.mxu0
    %2664 = vmatprep.mubr.f32.mxu0 %v1238
    %2665 = vmatmul.mubr.f32.gmra.mxu0 %v1174
    %v2666 = vpop.f32.mrf.mxu0
    %v2667 = vadd.f32 %v2282, %v2666
    %v2668 = vpop.f32.mrf.mxu0
    %2669 = vmatprep.mubr.f32.mxu0 %v1239
    %2670 = vmatmul.mubr.f32.gmra.mxu0 %v1175
    %v2671 = vpop.f32.mrf.mxu0
    %v2672 = vadd.f32 %v2287, %v2671
    %v2673 = vpop.f32.mrf.mxu0
    %2674 = vmatprep.mubr.f32.mxu0 %v1240
    %2675 = vmatmul.mubr.f32.gmra.mxu0 %v1176
    %v2676 = vpop.f32.mrf.mxu0
    %v2677 = vadd.f32 %v2292, %v2676
    %v2678 = vpop.f32.mrf.mxu0
    %2679 = vmatprep.mubr.f32.mxu0 %v1241
    %2680 = vmatmul.mubr.f32.gmra.mxu0 %v1177
    %v2681 = vpop.f32.mrf.mxu0
    %v2682 = vadd.f32 %v2297, %v2681
    %v2683 = vpop.f32.mrf.mxu0
    %2684 = vmatprep.mubr.f32.mxu0 %v1242
    %2685 = vmatmul.mubr.f32.gmra.mxu0 %v1178
    %v2686 = vpop.f32.mrf.mxu0
    %v2687 = vadd.f32 %v2302, %v2686
    %v2688 = vpop.f32.mrf.mxu0
    %2689 = vmatprep.mubr.f32.mxu0 %v1243
    %2690 = vmatmul.mubr.f32.gmra.mxu0 %v1179
    %v2691 = vpop.f32.mrf.mxu0
    %v2692 = vadd.f32 %v2307, %v2691
    %v2693 = vpop.f32.mrf.mxu0
    %2694 = vmatprep.mubr.f32.mxu0 %v1244
    %2695 = vmatmul.mubr.f32.gmra.mxu0 %v1180
    %v2696 = vpop.f32.mrf.mxu0
    %v2697 = vadd.f32 %v2312, %v2696
    %v2698 = vpop.f32.mrf.mxu0
    %2699 = vmatprep.mubr.f32.mxu0 %v1245
    %2700 = vmatmul.mubr.f32.gmra.mxu0 %v1181
    %v2701 = vpop.f32.mrf.mxu0
    %v2702 = vadd.f32 %v2317, %v2701
    %v2703 = vpop.f32.mrf.mxu0
    %2704 = vmatprep.mubr.f32.mxu0 %v1246
    %2705 = vmatmul.mubr.f32.gmra.mxu0 %v1182
    %v2706 = vpop.f32.mrf.mxu0
    %v2707 = vadd.f32 %v2322, %v2706
    %v2708 = vpop.f32.mrf.mxu0
    %2709 = vmatprep.mubr.f32.mxu0 %v1247
    %2710 = vmatmul.mubr.f32.gmra.mxu0 %v1183
    %v2711 = vpop.f32.mrf.mxu0
    %v2712 = vadd.f32 %v2327, %v2711
    %v2713 = vpop.f32.mrf.mxu0
    %2714 = vmatprep.mubr.f32.mxu0 %v1248
    %2715 = vmatmul.mubr.f32.gmra.mxu0 %v1184
    %v2716 = vpop.f32.mrf.mxu0
    %v2717 = vadd.f32 %v2332, %v2716
    %v2718 = vpop.f32.mrf.mxu0
    %2719 = vmatprep.mubr.f32.mxu0 %v1249
    %2720 = vmatmul.mubr.f32.gmra.mxu0 %v1185
    %v2721 = vpop.f32.mrf.mxu0
    %v2722 = vadd.f32 %v2337, %v2721
    %v2723 = vpop.f32.mrf.mxu0
    %2724 = vmatprep.mubr.f32.mxu0 %v1250
    %2725 = vmatmul.mubr.f32.gmra.mxu0 %v1186
    %v2726 = vpop.f32.mrf.mxu0
    %v2727 = vadd.f32 %v2342, %v2726
    %v2728 = vpop.f32.mrf.mxu0
    %2729 = vmatprep.mubr.f32.mxu0 %v1251
    %2730 = vmatmul.mubr.f32.gmra.mxu0 %v1187
    %v2731 = vpop.f32.mrf.mxu0
    %v2732 = vadd.f32 %v2347, %v2731
    %v2733 = vpop.f32.mrf.mxu0
    %2734 = vmatprep.mubr.f32.mxu0 %v1252
    %2735 = vmatmul.mubr.f32.gmra.mxu0 %v1188
    %v2736 = vpop.f32.mrf.mxu0
    %v2737 = vadd.f32 %v2352, %v2736
    %v2738 = vpop.f32.mrf.mxu0
    %2739 = vmatprep.mubr.f32.mxu0 %v1253
    %2740 = vmatmul.mubr.f32.gmra.mxu0 %v1189
    %v2741 = vpop.f32.mrf.mxu0
    %v2742 = vadd.f32 %v2357, %v2741
    %v2743 = vpop.f32.mrf.mxu0
    %2744 = vmatprep.mubr.f32.mxu0 %v1254
    %2745 = vmatmul.mubr.f32.gmra.mxu0 %v1190
    %v2746 = vpop.f32.mrf.mxu0
    %v2747 = vadd.f32 %v2362, %v2746
    %v2748 = vpop.f32.mrf.mxu0
    %2749 = vmatprep.mubr.f32.mxu0 %v1255
    %2750 = vmatmul.mubr.f32.gmra.mxu0 %v1191
    %v2751 = vpop.f32.mrf.mxu0
    %v2752 = vadd.f32 %v2367, %v2751
    %v2753 = vpop.f32.mrf.mxu0
    %2754 = vdwg.mxu0
    %2755 = vmatprep.subr.mxu0 0.0
    %2756 = vmatpush1.msra.mxu0 %v1560
    %2757 = vmatprep.subr.mxu0 0.0
    %2758 = vmatpush1.msra.mxu0 %v1559
    %2759 = vmatprep.subr.mxu0 0.0
    %2760 = vmatpush1.msra.mxu0 %v1558
    %2761 = vmatprep.subr.mxu0 0.0
    %2762 = vmatpush1.msra.mxu0 %v1557
    %2763 = vmatprep.subr.mxu0 0.0
    %2764 = vmatpush1.msra.mxu0 %v1556
    %2765 = vmatprep.subr.mxu0 0.0
    %2766 = vmatpush1.msra.mxu0 %v1555
    %2767 = vmatprep.subr.mxu0 0.0
    %2768 = vmatpush1.msra.mxu0 %v1554
    %2769 = vmatprep.subr.mxu0 0.0
    %2770 = vmatpush1.msra.mxu0 %v1553
    %2771 = vmatprep.subr.mxu0 0.0
    %2772 = vmatpush1.msra.mxu0 %v1552
    %2773 = vmatprep.subr.mxu0 0.0
    %2774 = vmatpush1.msra.mxu0 %v1551
    %2775 = vmatprep.subr.mxu0 0.0
    %2776 = vmatpush1.msra.mxu0 %v1550
    %2777 = vmatprep.subr.mxu0 0.0
    %2778 = vmatpush1.msra.mxu0 %v1549
    %2779 = vmatprep.subr.mxu0 0.0
    %2780 = vmatpush1.msra.mxu0 %v1548
    %2781 = vmatprep.subr.mxu0 0.0
    %2782 = vmatpush1.msra.mxu0 %v1547
    %2783 = vmatprep.subr.mxu0 0.0
    %2784 = vmatpush1.msra.mxu0 %v1546
    %2785 = vmatprep.subr.mxu0 0.0
    %2786 = vmatpush1.msra.mxu0 %v1545
    %2787 = vmatprep.subr.mxu0 0.0
    %2788 = vmatpush2.msra.mxu0 %v1576
    %2789 = vmatprep.subr.mxu0 0.0
    %2790 = vmatpush2.msra.mxu0 %v1575
    %2791 = vmatprep.subr.mxu0 0.0
    %2792 = vmatpush2.msra.mxu0 %v1574
    %2793 = vmatprep.subr.mxu0 0.0
    %2794 = vmatpush2.msra.mxu0 %v1573
    %2795 = vmatprep.subr.mxu0 0.0
    %2796 = vmatpush2.msra.mxu0 %v1572
    %2797 = vmatprep.subr.mxu0 0.0
    %2798 = vmatpush2.msra.mxu0 %v1571
    %2799 = vmatprep.subr.mxu0 0.0
    %2800 = vmatpush2.msra.mxu0 %v1570
    %2801 = vmatprep.subr.mxu0 0.0
    %2802 = vmatpush2.msra.mxu0 %v1569
    %2803 = vmatprep.subr.mxu0 0.0
    %2804 = vmatpush2.msra.mxu0 %v1568
    %2805 = vmatprep.subr.mxu0 0.0
    %2806 = vmatpush2.msra.mxu0 %v1567
    %2807 = vmatprep.subr.mxu0 0.0
    %2808 = vmatpush2.msra.mxu0 %v1566
    %2809 = vmatprep.subr.mxu0 0.0
    %2810 = vmatpush2.msra.mxu0 %v1565
    %2811 = vmatprep.subr.mxu0 0.0
    %2812 = vmatpush2.msra.mxu0 %v1564
    %2813 = vmatprep.subr.mxu0 0.0
    %2814 = vmatpush2.msra.mxu0 %v1563
    %2815 = vmatprep.subr.mxu0 0.0
    %2816 = vmatpush2.msra.mxu0 %v1562
    %2817 = vmatprep.subr.mxu0 0.0
    %2818 = vmatpush2.msra.mxu0 %v1561
    %2819 = vmatprep.mubr.f32.mxu0 %v1321
    %2820 = vmatmul.mubr.f32.gmra.mxu0 %v1257
    %v2821 = vpop.f32.mrf.mxu0
    %v2822 = vadd.f32 %v2437, %v2821
    %v2823 = vpop.f32.mrf.mxu0
    %2824 = vmatprep.mubr.f32.mxu0 %v1322
    %2825 = vmatmul.mubr.f32.gmra.mxu0 %v1258
    %v2826 = vpop.f32.mrf.mxu0
    %v2827 = vadd.f32 %v2442, %v2826
    %v2828 = vpop.f32.mrf.mxu0
    %2829 = vmatprep.mubr.f32.mxu0 %v1323
    %2830 = vmatmul.mubr.f32.gmra.mxu0 %v1259
    %v2831 = vpop.f32.mrf.mxu0
    %v2832 = vadd.f32 %v2447, %v2831
    %v2833 = vpop.f32.mrf.mxu0
    %2834 = vmatprep.mubr.f32.mxu0 %v1324
    %2835 = vmatmul.mubr.f32.gmra.mxu0 %v1260
    %v2836 = vpop.f32.mrf.mxu0
    %v2837 = vadd.f32 %v2452, %v2836
    %v2838 = vpop.f32.mrf.mxu0
    %2839 = vmatprep.mubr.f32.mxu0 %v1325
    %2840 = vmatmul.mubr.f32.gmra.mxu0 %v1261
    %v2841 = vpop.f32.mrf.mxu0
    %v2842 = vadd.f32 %v2457, %v2841
    %v2843 = vpop.f32.mrf.mxu0
    %2844 = vmatprep.mubr.f32.mxu0 %v1326
    %2845 = vmatmul.mubr.f32.gmra.mxu0 %v1262
    %v2846 = vpop.f32.mrf.mxu0
    %v2847 = vadd.f32 %v2462, %v2846
    %v2848 = vpop.f32.mrf.mxu0
    %2849 = vmatprep.mubr.f32.mxu0 %v1327
    %2850 = vmatmul.mubr.f32.gmra.mxu0 %v1263
    %v2851 = vpop.f32.mrf.mxu0
    %v2852 = vadd.f32 %v2467, %v2851
    %v2853 = vpop.f32.mrf.mxu0
    %2854 = vmatprep.mubr.f32.mxu0 %v1328
    %2855 = vmatmul.mubr.f32.gmra.mxu0 %v1264
    %v2856 = vpop.f32.mrf.mxu0
    %v2857 = vadd.f32 %v2472, %v2856
    %v2858 = vpop.f32.mrf.mxu0
    %2859 = vmatprep.mubr.f32.mxu0 %v1329
    %2860 = vmatmul.mubr.f32.gmra.mxu0 %v1265
    %v2861 = vpop.f32.mrf.mxu0
    %v2862 = vadd.f32 %v2477, %v2861
    %v2863 = vpop.f32.mrf.mxu0
    %2864 = vmatprep.mubr.f32.mxu0 %v1330
    %2865 = vmatmul.mubr.f32.gmra.mxu0 %v1266
    %v2866 = vpop.f32.mrf.mxu0
    %v2867 = vadd.f32 %v2482, %v2866
    %v2868 = vpop.f32.mrf.mxu0
    %2869 = vmatprep.mubr.f32.mxu0 %v1331
    %2870 = vmatmul.mubr.f32.gmra.mxu0 %v1267
    %v2871 = vpop.f32.mrf.mxu0
    %v2872 = vadd.f32 %v2487, %v2871
    %v2873 = vpop.f32.mrf.mxu0
    %2874 = vmatprep.mubr.f32.mxu0 %v1332
    %2875 = vmatmul.mubr.f32.gmra.mxu0 %v1268
    %v2876 = vpop.f32.mrf.mxu0
    %v2877 = vadd.f32 %v2492, %v2876
    %v2878 = vpop.f32.mrf.mxu0
    %2879 = vmatprep.mubr.f32.mxu0 %v1333
    %2880 = vmatmul.mubr.f32.gmra.mxu0 %v1269
    %v2881 = vpop.f32.mrf.mxu0
    %v2882 = vadd.f32 %v2497, %v2881
    %v2883 = vpop.f32.mrf.mxu0
    %2884 = vmatprep.mubr.f32.mxu0 %v1334
    %2885 = vmatmul.mubr.f32.gmra.mxu0 %v1270
    %v2886 = vpop.f32.mrf.mxu0
    %v2887 = vadd.f32 %v2502, %v2886
    %v2888 = vpop.f32.mrf.mxu0
    %2889 = vmatprep.mubr.f32.mxu0 %v1335
    %2890 = vmatmul.mubr.f32.gmra.mxu0 %v1271
    %v2891 = vpop.f32.mrf.mxu0
    %v2892 = vadd.f32 %v2507, %v2891
    %v2893 = vpop.f32.mrf.mxu0
    %2894 = vmatprep.mubr.f32.mxu0 %v1336
    %2895 = vmatmul.mubr.f32.gmra.mxu0 %v1272
    %v2896 = vpop.f32.mrf.mxu0
    %v2897 = vadd.f32 %v2512, %v2896
    %v2898 = vpop.f32.mrf.mxu0
    %2899 = vmatprep.mubr.f32.mxu0 %v1337
    %2900 = vmatmul.mubr.f32.gmra.mxu0 %v1273
    %v2901 = vpop.f32.mrf.mxu0
    %v2902 = vadd.f32 %v2517, %v2901
    %v2903 = vpop.f32.mrf.mxu0
    %2904 = vmatprep.mubr.f32.mxu0 %v1338
    %2905 = vmatmul.mubr.f32.gmra.mxu0 %v1274
    %v2906 = vpop.f32.mrf.mxu0
    %v2907 = vadd.f32 %v2522, %v2906
    %v2908 = vpop.f32.mrf.mxu0
    %2909 = vmatprep.mubr.f32.mxu0 %v1339
    %2910 = vmatmul.mubr.f32.gmra.mxu0 %v1275
    %v2911 = vpop.f32.mrf.mxu0
    %v2912 = vadd.f32 %v2527, %v2911
    %v2913 = vpop.f32.mrf.mxu0
    %2914 = vmatprep.mubr.f32.mxu0 %v1340
    %2915 = vmatmul.mubr.f32.gmra.mxu0 %v1276
    %v2916 = vpop.f32.mrf.mxu0
    %v2917 = vadd.f32 %v2532, %v2916
    %v2918 = vpop.f32.mrf.mxu0
    %2919 = vmatprep.mubr.f32.mxu0 %v1341
    %2920 = vmatmul.mubr.f32.gmra.mxu0 %v1277
    %v2921 = vpop.f32.mrf.mxu0
    %v2922 = vadd.f32 %v2537, %v2921
    %v2923 = vpop.f32.mrf.mxu0
    %2924 = vmatprep.mubr.f32.mxu0 %v1342
    %2925 = vmatmul.mubr.f32.gmra.mxu0 %v1278
    %v2926 = vpop.f32.mrf.mxu0
    %v2927 = vadd.f32 %v2542, %v2926
    %v2928 = vpop.f32.mrf.mxu0
    %2929 = vmatprep.mubr.f32.mxu0 %v1343
    %2930 = vmatmul.mubr.f32.gmra.mxu0 %v1279
    %v2931 = vpop.f32.mrf.mxu0
    %v2932 = vadd.f32 %v2547, %v2931
    %v2933 = vpop.f32.mrf.mxu0
    %2934 = vmatprep.mubr.f32.mxu0 %v1344
    %2935 = vmatmul.mubr.f32.gmra.mxu0 %v1280
    %v2936 = vpop.f32.mrf.mxu0
    %v2937 = vadd.f32 %v2552, %v2936
    %v2938 = vpop.f32.mrf.mxu0
    %2939 = vmatprep.mubr.f32.mxu0 %v1345
    %2940 = vmatmul.mubr.f32.gmra.mxu0 %v1281
    %v2941 = vpop.f32.mrf.mxu0
    %v2942 = vadd.f32 %v2557, %v2941
    %v2943 = vpop.f32.mrf.mxu0
    %2944 = vmatprep.mubr.f32.mxu0 %v1346
    %2945 = vmatmul.mubr.f32.gmra.mxu0 %v1282
    %v2946 = vpop.f32.mrf.mxu0
    %v2947 = vadd.f32 %v2562, %v2946
    %v2948 = vpop.f32.mrf.mxu0
    %2949 = vmatprep.mubr.f32.mxu0 %v1347
    %2950 = vmatmul.mubr.f32.gmra.mxu0 %v1283
    %v2951 = vpop.f32.mrf.mxu0
    %v2952 = vadd.f32 %v2567, %v2951
    %v2953 = vpop.f32.mrf.mxu0
    %2954 = vmatprep.mubr.f32.mxu0 %v1348
    %2955 = vmatmul.mubr.f32.gmra.mxu0 %v1284
    %v2956 = vpop.f32.mrf.mxu0
    %v2957 = vadd.f32 %v2572, %v2956
    %v2958 = vpop.f32.mrf.mxu0
    %2959 = vmatprep.mubr.f32.mxu0 %v1349
    %2960 = vmatmul.mubr.f32.gmra.mxu0 %v1285
    %v2961 = vpop.f32.mrf.mxu0
    %v2962 = vadd.f32 %v2577, %v2961
    %v2963 = vpop.f32.mrf.mxu0
    %2964 = vmatprep.mubr.f32.mxu0 %v1350
    %2965 = vmatmul.mubr.f32.gmra.mxu0 %v1286
    %v2966 = vpop.f32.mrf.mxu0
    %v2967 = vadd.f32 %v2582, %v2966
    %v2968 = vpop.f32.mrf.mxu0
    %2969 = vmatprep.mubr.f32.mxu0 %v1351
    %2970 = vmatmul.mubr.f32.gmra.mxu0 %v1287
    %v2971 = vpop.f32.mrf.mxu0
    %v2972 = vadd.f32 %v2587, %v2971
    %v2973 = vpop.f32.mrf.mxu0
    %2974 = vmatprep.mubr.f32.mxu0 %v1352
    %2975 = vmatmul.mubr.f32.gmra.mxu0 %v1288
    %v2976 = vpop.f32.mrf.mxu0
    %v2977 = vadd.f32 %v2592, %v2976
    %v2978 = vpop.f32.mrf.mxu0
    %2979 = vmatprep.mubr.f32.mxu0 %v1353
    %2980 = vmatmul.mubr.f32.gmra.mxu0 %v1289
    %v2981 = vpop.f32.mrf.mxu0
    %v2982 = vadd.f32 %v2597, %v2981
    %v2983 = vpop.f32.mrf.mxu0
    %2984 = vmatprep.mubr.f32.mxu0 %v1354
    %2985 = vmatmul.mubr.f32.gmra.mxu0 %v1290
    %v2986 = vpop.f32.mrf.mxu0
    %v2987 = vadd.f32 %v2602, %v2986
    %v2988 = vpop.f32.mrf.mxu0
    %2989 = vmatprep.mubr.f32.mxu0 %v1355
    %2990 = vmatmul.mubr.f32.gmra.mxu0 %v1291
    %v2991 = vpop.f32.mrf.mxu0
    %v2992 = vadd.f32 %v2607, %v2991
    %v2993 = vpop.f32.mrf.mxu0
    %2994 = vmatprep.mubr.f32.mxu0 %v1356
    %2995 = vmatmul.mubr.f32.gmra.mxu0 %v1292
    %v2996 = vpop.f32.mrf.mxu0
    %v2997 = vadd.f32 %v2612, %v2996
    %v2998 = vpop.f32.mrf.mxu0
    %2999 = vmatprep.mubr.f32.mxu0 %v1357
    %3000 = vmatmul.mubr.f32.gmra.mxu0 %v1293
    %v3001 = vpop.f32.mrf.mxu0
    %v3002 = vadd.f32 %v2617, %v3001
    %v3003 = vpop.f32.mrf.mxu0
    %3004 = vmatprep.mubr.f32.mxu0 %v1358
    %3005 = vmatmul.mubr.f32.gmra.mxu0 %v1294
    %v3006 = vpop.f32.mrf.mxu0
    %v3007 = vadd.f32 %v2622, %v3006
    %v3008 = vpop.f32.mrf.mxu0
    %3009 = vmatprep.mubr.f32.mxu0 %v1359
    %3010 = vmatmul.mubr.f32.gmra.mxu0 %v1295
    %v3011 = vpop.f32.mrf.mxu0
    %v3012 = vadd.f32 %v2627, %v3011
    %v3013 = vpop.f32.mrf.mxu0
    %3014 = vmatprep.mubr.f32.mxu0 %v1360
    %3015 = vmatmul.mubr.f32.gmra.mxu0 %v1296
    %v3016 = vpop.f32.mrf.mxu0
    %v3017 = vadd.f32 %v2632, %v3016
    %v3018 = vpop.f32.mrf.mxu0
    %3019 = vmatprep.mubr.f32.mxu0 %v1361
    %3020 = vmatmul.mubr.f32.gmra.mxu0 %v1297
    %v3021 = vpop.f32.mrf.mxu0
    %v3022 = vadd.f32 %v2637, %v3021
    %v3023 = vpop.f32.mrf.mxu0
    %3024 = vmatprep.mubr.f32.mxu0 %v1362
    %3025 = vmatmul.mubr.f32.gmra.mxu0 %v1298
    %v3026 = vpop.f32.mrf.mxu0
    %v3027 = vadd.f32 %v2642, %v3026
    %v3028 = vpop.f32.mrf.mxu0
    %3029 = vmatprep.mubr.f32.mxu0 %v1363
    %3030 = vmatmul.mubr.f32.gmra.mxu0 %v1299
    %v3031 = vpop.f32.mrf.mxu0
    %v3032 = vadd.f32 %v2647, %v3031
    %v3033 = vpop.f32.mrf.mxu0
    %3034 = vmatprep.mubr.f32.mxu0 %v1364
    %3035 = vmatmul.mubr.f32.gmra.mxu0 %v1300
    %v3036 = vpop.f32.mrf.mxu0
    %v3037 = vadd.f32 %v2652, %v3036
    %v3038 = vpop.f32.mrf.mxu0
    %3039 = vmatprep.mubr.f32.mxu0 %v1365
    %3040 = vmatmul.mubr.f32.gmra.mxu0 %v1301
    %v3041 = vpop.f32.mrf.mxu0
    %v3042 = vadd.f32 %v2657, %v3041
    %v3043 = vpop.f32.mrf.mxu0
    %3044 = vmatprep.mubr.f32.mxu0 %v1366
    %3045 = vmatmul.mubr.f32.gmra.mxu0 %v1302
    %v3046 = vpop.f32.mrf.mxu0
    %v3047 = vadd.f32 %v2662, %v3046
    %v3048 = vpop.f32.mrf.mxu0
    %3049 = vmatprep.mubr.f32.mxu0 %v1367
    %3050 = vmatmul.mubr.f32.gmra.mxu0 %v1303
    %v3051 = vpop.f32.mrf.mxu0
    %v3052 = vadd.f32 %v2667, %v3051
    %v3053 = vpop.f32.mrf.mxu0
    %3054 = vmatprep.mubr.f32.mxu0 %v1368
    %3055 = vmatmul.mubr.f32.gmra.mxu0 %v1304
    %v3056 = vpop.f32.mrf.mxu0
    %v3057 = vadd.f32 %v2672, %v3056
    %v3058 = vpop.f32.mrf.mxu0
    %3059 = vmatprep.mubr.f32.mxu0 %v1369
    %3060 = vmatmul.mubr.f32.gmra.mxu0 %v1305
    %v3061 = vpop.f32.mrf.mxu0
    %v3062 = vadd.f32 %v2677, %v3061
    %v3063 = vpop.f32.mrf.mxu0
    %3064 = vmatprep.mubr.f32.mxu0 %v1370
    %3065 = vmatmul.mubr.f32.gmra.mxu0 %v1306
    %v3066 = vpop.f32.mrf.mxu0
    %v3067 = vadd.f32 %v2682, %v3066
    %v3068 = vpop.f32.mrf.mxu0
    %3069 = vmatprep.mubr.f32.mxu0 %v1371
    %3070 = vmatmul.mubr.f32.gmra.mxu0 %v1307
    %v3071 = vpop.f32.mrf.mxu0
    %v3072 = vadd.f32 %v2687, %v3071
    %v3073 = vpop.f32.mrf.mxu0
    %3074 = vmatprep.mubr.f32.mxu0 %v1372
    %3075 = vmatmul.mubr.f32.gmra.mxu0 %v1308
    %v3076 = vpop.f32.mrf.mxu0
    %v3077 = vadd.f32 %v2692, %v3076
    %v3078 = vpop.f32.mrf.mxu0
    %3079 = vmatprep.mubr.f32.mxu0 %v1373
    %3080 = vmatmul.mubr.f32.gmra.mxu0 %v1309
    %v3081 = vpop.f32.mrf.mxu0
    %v3082 = vadd.f32 %v2697, %v3081
    %v3083 = vpop.f32.mrf.mxu0
    %3084 = vmatprep.mubr.f32.mxu0 %v1374
    %3085 = vmatmul.mubr.f32.gmra.mxu0 %v1310
    %v3086 = vpop.f32.mrf.mxu0
    %v3087 = vadd.f32 %v2702, %v3086
    %v3088 = vpop.f32.mrf.mxu0
    %3089 = vmatprep.mubr.f32.mxu0 %v1375
    %3090 = vmatmul.mubr.f32.gmra.mxu0 %v1311
    %v3091 = vpop.f32.mrf.mxu0
    %v3092 = vadd.f32 %v2707, %v3091
    %v3093 = vpop.f32.mrf.mxu0
    %3094 = vmatprep.mubr.f32.mxu0 %v1376
    %3095 = vmatmul.mubr.f32.gmra.mxu0 %v1312
    %v3096 = vpop.f32.mrf.mxu0
    %v3097 = vadd.f32 %v2712, %v3096
    %v3098 = vpop.f32.mrf.mxu0
    %3099 = vmatprep.mubr.f32.mxu0 %v1377
    %3100 = vmatmul.mubr.f32.gmra.mxu0 %v1313
    %v3101 = vpop.f32.mrf.mxu0
    %v3102 = vadd.f32 %v2717, %v3101
    %v3103 = vpop.f32.mrf.mxu0
    %3104 = vmatprep.mubr.f32.mxu0 %v1378
    %3105 = vmatmul.mubr.f32.gmra.mxu0 %v1314
    %v3106 = vpop.f32.mrf.mxu0
    %v3107 = vadd.f32 %v2722, %v3106
    %v3108 = vpop.f32.mrf.mxu0
    %3109 = vmatprep.mubr.f32.mxu0 %v1379
    %3110 = vmatmul.mubr.f32.gmra.mxu0 %v1315
    %v3111 = vpop.f32.mrf.mxu0
    %v3112 = vadd.f32 %v2727, %v3111
    %v3113 = vpop.f32.mrf.mxu0
    %3114 = vmatprep.mubr.f32.mxu0 %v1380
    %3115 = vmatmul.mubr.f32.gmra.mxu0 %v1316
    %v3116 = vpop.f32.mrf.mxu0
    %v3117 = vadd.f32 %v2732, %v3116
    %v3118 = vpop.f32.mrf.mxu0
    %3119 = vmatprep.mubr.f32.mxu0 %v1381
    %3120 = vmatmul.mubr.f32.gmra.mxu0 %v1317
    %v3121 = vpop.f32.mrf.mxu0
    %v3122 = vadd.f32 %v2737, %v3121
    %v3123 = vpop.f32.mrf.mxu0
    %3124 = vmatprep.mubr.f32.mxu0 %v1382
    %3125 = vmatmul.mubr.f32.gmra.mxu0 %v1318
    %v3126 = vpop.f32.mrf.mxu0
    %v3127 = vadd.f32 %v2742, %v3126
    %v3128 = vpop.f32.mrf.mxu0
    %3129 = vmatprep.mubr.f32.mxu0 %v1383
    %3130 = vmatmul.mubr.f32.gmra.mxu0 %v1319
    %v3131 = vpop.f32.mrf.mxu0
    %v3132 = vadd.f32 %v2747, %v3131
    %v3133 = vpop.f32.mrf.mxu0
    %3134 = vmatprep.mubr.f32.mxu0 %v1384
    %3135 = vmatmul.mubr.f32.gmra.mxu0 %v1320
    %v3136 = vpop.f32.mrf.mxu0
    %v3137 = vadd.f32 %v2752, %v3136
    %v3138 = vpop.f32.mrf.mxu0
    %3139 = vdwg.mxu0
    %3140 = vmatprep.subr.mxu0 0.0
    %3141 = vmatpush1.msra.mxu0 %v1592
    %3142 = vmatprep.subr.mxu0 0.0
    %3143 = vmatpush1.msra.mxu0 %v1591
    %3144 = vmatprep.subr.mxu0 0.0
    %3145 = vmatpush1.msra.mxu0 %v1590
    %3146 = vmatprep.subr.mxu0 0.0
    %3147 = vmatpush1.msra.mxu0 %v1589
    %3148 = vmatprep.subr.mxu0 0.0
    %3149 = vmatpush1.msra.mxu0 %v1588
    %3150 = vmatprep.subr.mxu0 0.0
    %3151 = vmatpush1.msra.mxu0 %v1587
    %3152 = vmatprep.subr.mxu0 0.0
    %3153 = vmatpush1.msra.mxu0 %v1586
    %3154 = vmatprep.subr.mxu0 0.0
    %3155 = vmatpush1.msra.mxu0 %v1585
    %3156 = vmatprep.subr.mxu0 0.0
    %3157 = vmatpush1.msra.mxu0 %v1584
    %3158 = vmatprep.subr.mxu0 0.0
    %3159 = vmatpush1.msra.mxu0 %v1583
    %3160 = vmatprep.subr.mxu0 0.0
    %3161 = vmatpush1.msra.mxu0 %v1582
    %3162 = vmatprep.subr.mxu0 0.0
    %3163 = vmatpush1.msra.mxu0 %v1581
    %3164 = vmatprep.subr.mxu0 0.0
    %3165 = vmatpush1.msra.mxu0 %v1580
    %3166 = vmatprep.subr.mxu0 0.0
    %3167 = vmatpush1.msra.mxu0 %v1579
    %3168 = vmatprep.subr.mxu0 0.0
    %3169 = vmatpush1.msra.mxu0 %v1578
    %3170 = vmatprep.subr.mxu0 0.0
    %3171 = vmatpush1.msra.mxu0 %v1577
    %3172 = vmatprep.subr.mxu0 0.0
    %3173 = vmatpush2.msra.mxu0 0.0
    %3174 = vmatprep.subr.mxu0 0.0
    %3175 = vmatpush2.msra.mxu0 0.0
    %3176 = vmatprep.subr.mxu0 0.0
    %3177 = vmatpush2.msra.mxu0 0.0
    %3178 = vmatprep.subr.mxu0 0.0
    %3179 = vmatpush2.msra.mxu0 0.0
    %3180 = vmatprep.subr.mxu0 0.0
    %3181 = vmatpush2.msra.mxu0 0.0
    %3182 = vmatprep.subr.mxu0 0.0
    %3183 = vmatpush2.msra.mxu0 0.0
    %3184 = vmatprep.subr.mxu0 0.0
    %3185 = vmatpush2.msra.mxu0 0.0
    %3186 = vmatprep.subr.mxu0 0.0
    %3187 = vmatpush2.msra.mxu0 0.0
    %3188 = vmatprep.subr.mxu0 0.0
    %3189 = vmatpush2.msra.mxu0 0.0
    %3190 = vmatprep.subr.mxu0 0.0
    %3191 = vmatpush2.msra.mxu0 0.0
    %3192 = vmatprep.subr.mxu0 0.0
    %3193 = vmatpush2.msra.mxu0 0.0
    %3194 = vmatprep.subr.mxu0 0.0
    %3195 = vmatpush2.msra.mxu0 0.0
    %3196 = vmatprep.subr.mxu0 0.0
    %3197 = vmatpush2.msra.mxu0 0.0
    %3198 = vmatprep.subr.mxu0 0.0
    %3199 = vmatpush2.msra.mxu0 0.0
    %3200 = vmatprep.subr.mxu0 0.0
    %3201 = vmatpush2.msra.mxu0 0.0
    %3202 = vmatprep.subr.mxu0 0.0
    %3203 = vmatpush2.msra.mxu0 0.0
    %3204 = vmatprep.mubr.f32.mxu0 0.0
    %3205 = vmatmul.mubr.f32.gmra.mxu0 %v1385
    %v3206 = vpop.f32.mrf.mxu0
    %v3207 = vadd.f32 %v2822, %v3206
    %v3208 = vpop.f32.mrf.mxu0
    %3209 = vmatprep.mubr.f32.mxu0 0.0
    %3210 = vmatmul.mubr.f32.gmra.mxu0 %v1386
    %v3211 = vpop.f32.mrf.mxu0
    %v3212 = vadd.f32 %v2827, %v3211
    %v3213 = vpop.f32.mrf.mxu0
    %3214 = vmatprep.mubr.f32.mxu0 0.0
    %3215 = vmatmul.mubr.f32.gmra.mxu0 %v1387
    %v3216 = vpop.f32.mrf.mxu0
    %v3217 = vadd.f32 %v2832, %v3216
    %v3218 = vpop.f32.mrf.mxu0
    %3219 = vmatprep.mubr.f32.mxu0 0.0
    %3220 = vmatmul.mubr.f32.gmra.mxu0 %v1388
    %v3221 = vpop.f32.mrf.mxu0
    %v3222 = vadd.f32 %v2837, %v3221
    %v3223 = vpop.f32.mrf.mxu0
    %3224 = vmatprep.mubr.f32.mxu0 0.0
    %3225 = vmatmul.mubr.f32.gmra.mxu0 %v1389
    %v3226 = vpop.f32.mrf.mxu0
    %v3227 = vadd.f32 %v2842, %v3226
    %v3228 = vpop.f32.mrf.mxu0
    %3229 = vmatprep.mubr.f32.mxu0 0.0
    %3230 = vmatmul.mubr.f32.gmra.mxu0 %v1390
    %v3231 = vpop.f32.mrf.mxu0
    %v3232 = vadd.f32 %v2847, %v3231
    %v3233 = vpop.f32.mrf.mxu0
    %3234 = vmatprep.mubr.f32.mxu0 0.0
    %3235 = vmatmul.mubr.f32.gmra.mxu0 %v1391
    %v3236 = vpop.f32.mrf.mxu0
    %v3237 = vadd.f32 %v2852, %v3236
    %v3238 = vpop.f32.mrf.mxu0
    %3239 = vmatprep.mubr.f32.mxu0 0.0
    %3240 = vmatmul.mubr.f32.gmra.mxu0 %v1392
    %v3241 = vpop.f32.mrf.mxu0
    %v3242 = vadd.f32 %v2857, %v3241
    %v3243 = vpop.f32.mrf.mxu0
    %3244 = vmatprep.mubr.f32.mxu0 0.0
    %3245 = vmatmul.mubr.f32.gmra.mxu0 %v1393
    %v3246 = vpop.f32.mrf.mxu0
    %v3247 = vadd.f32 %v2862, %v3246
    %v3248 = vpop.f32.mrf.mxu0
    %3249 = vmatprep.mubr.f32.mxu0 0.0
    %3250 = vmatmul.mubr.f32.gmra.mxu0 %v1394
    %v3251 = vpop.f32.mrf.mxu0
    %v3252 = vadd.f32 %v2867, %v3251
    %v3253 = vpop.f32.mrf.mxu0
    %3254 = vmatprep.mubr.f32.mxu0 0.0
    %3255 = vmatmul.mubr.f32.gmra.mxu0 %v1395
    %v3256 = vpop.f32.mrf.mxu0
    %v3257 = vadd.f32 %v2872, %v3256
    %v3258 = vpop.f32.mrf.mxu0
    %3259 = vmatprep.mubr.f32.mxu0 0.0
    %3260 = vmatmul.mubr.f32.gmra.mxu0 %v1396
    %v3261 = vpop.f32.mrf.mxu0
    %v3262 = vadd.f32 %v2877, %v3261
    %v3263 = vpop.f32.mrf.mxu0
    %3264 = vmatprep.mubr.f32.mxu0 0.0
    %3265 = vmatmul.mubr.f32.gmra.mxu0 %v1397
    %v3266 = vpop.f32.mrf.mxu0
    %v3267 = vadd.f32 %v2882, %v3266
    %v3268 = vpop.f32.mrf.mxu0
    %3269 = vmatprep.mubr.f32.mxu0 0.0
    %3270 = vmatmul.mubr.f32.gmra.mxu0 %v1398
    %v3271 = vpop.f32.mrf.mxu0
    %v3272 = vadd.f32 %v2887, %v3271
    %v3273 = vpop.f32.mrf.mxu0
    %3274 = vmatprep.mubr.f32.mxu0 0.0
    %3275 = vmatmul.mubr.f32.gmra.mxu0 %v1399
    %v3276 = vpop.f32.mrf.mxu0
    %v3277 = vadd.f32 %v2892, %v3276
    %v3278 = vpop.f32.mrf.mxu0
    %3279 = vmatprep.mubr.f32.mxu0 0.0
    %3280 = vmatmul.mubr.f32.gmra.mxu0 %v1400
    %v3281 = vpop.f32.mrf.mxu0
    %v3282 = vadd.f32 %v2897, %v3281
    %v3283 = vpop.f32.mrf.mxu0
    %3284 = vmatprep.mubr.f32.mxu0 0.0
    %3285 = vmatmul.mubr.f32.gmra.mxu0 %v1401
    %v3286 = vpop.f32.mrf.mxu0
    %v3287 = vadd.f32 %v2902, %v3286
    %v3288 = vpop.f32.mrf.mxu0
    %3289 = vmatprep.mubr.f32.mxu0 0.0
    %3290 = vmatmul.mubr.f32.gmra.mxu0 %v1402
    %v3291 = vpop.f32.mrf.mxu0
    %v3292 = vadd.f32 %v2907, %v3291
    %v3293 = vpop.f32.mrf.mxu0
    %3294 = vmatprep.mubr.f32.mxu0 0.0
    %3295 = vmatmul.mubr.f32.gmra.mxu0 %v1403
    %v3296 = vpop.f32.mrf.mxu0
    %v3297 = vadd.f32 %v2912, %v3296
    %v3298 = vpop.f32.mrf.mxu0
    %3299 = vmatprep.mubr.f32.mxu0 0.0
    %3300 = vmatmul.mubr.f32.gmra.mxu0 %v1404
    %v3301 = vpop.f32.mrf.mxu0
    %v3302 = vadd.f32 %v2917, %v3301
    %v3303 = vpop.f32.mrf.mxu0
    %3304 = vmatprep.mubr.f32.mxu0 0.0
    %3305 = vmatmul.mubr.f32.gmra.mxu0 %v1405
    %v3306 = vpop.f32.mrf.mxu0
    %v3307 = vadd.f32 %v2922, %v3306
    %v3308 = vpop.f32.mrf.mxu0
    %3309 = vmatprep.mubr.f32.mxu0 0.0
    %3310 = vmatmul.mubr.f32.gmra.mxu0 %v1406
    %v3311 = vpop.f32.mrf.mxu0
    %v3312 = vadd.f32 %v2927, %v3311
    %v3313 = vpop.f32.mrf.mxu0
    %3314 = vmatprep.mubr.f32.mxu0 0.0
    %3315 = vmatmul.mubr.f32.gmra.mxu0 %v1407
    %v3316 = vpop.f32.mrf.mxu0
    %v3317 = vadd.f32 %v2932, %v3316
    %v3318 = vpop.f32.mrf.mxu0
    %3319 = vmatprep.mubr.f32.mxu0 0.0
    %3320 = vmatmul.mubr.f32.gmra.mxu0 %v1408
    %v3321 = vpop.f32.mrf.mxu0
    %v3322 = vadd.f32 %v2937, %v3321
    %v3323 = vpop.f32.mrf.mxu0
    %3324 = vmatprep.mubr.f32.mxu0 0.0
    %3325 = vmatmul.mubr.f32.gmra.mxu0 %v1409
    %v3326 = vpop.f32.mrf.mxu0
    %v3327 = vadd.f32 %v2942, %v3326
    %v3328 = vpop.f32.mrf.mxu0
    %3329 = vmatprep.mubr.f32.mxu0 0.0
    %3330 = vmatmul.mubr.f32.gmra.mxu0 %v1410
    %v3331 = vpop.f32.mrf.mxu0
    %v3332 = vadd.f32 %v2947, %v3331
    %v3333 = vpop.f32.mrf.mxu0
    %3334 = vmatprep.mubr.f32.mxu0 0.0
    %3335 = vmatmul.mubr.f32.gmra.mxu0 %v1411
    %v3336 = vpop.f32.mrf.mxu0
    %v3337 = vadd.f32 %v2952, %v3336
    %v3338 = vpop.f32.mrf.mxu0
    %3339 = vmatprep.mubr.f32.mxu0 0.0
    %3340 = vmatmul.mubr.f32.gmra.mxu0 %v1412
    %v3341 = vpop.f32.mrf.mxu0
    %v3342 = vadd.f32 %v2957, %v3341
    %v3343 = vpop.f32.mrf.mxu0
    %3344 = vmatprep.mubr.f32.mxu0 0.0
    %3345 = vmatmul.mubr.f32.gmra.mxu0 %v1413
    %v3346 = vpop.f32.mrf.mxu0
    %v3347 = vadd.f32 %v2962, %v3346
    %v3348 = vpop.f32.mrf.mxu0
    %3349 = vmatprep.mubr.f32.mxu0 0.0
    %3350 = vmatmul.mubr.f32.gmra.mxu0 %v1414
    %v3351 = vpop.f32.mrf.mxu0
    %v3352 = vadd.f32 %v2967, %v3351
    %v3353 = vpop.f32.mrf.mxu0
    %3354 = vmatprep.mubr.f32.mxu0 0.0
    %3355 = vmatmul.mubr.f32.gmra.mxu0 %v1415
    %v3356 = vpop.f32.mrf.mxu0
    %v3357 = vadd.f32 %v2972, %v3356
    %v3358 = vpop.f32.mrf.mxu0
    %3359 = vmatprep.mubr.f32.mxu0 0.0
    %3360 = vmatmul.mubr.f32.gmra.mxu0 %v1416
    %v3361 = vpop.f32.mrf.mxu0
    %v3362 = vadd.f32 %v2977, %v3361
    %v3363 = vpop.f32.mrf.mxu0
    %3364 = vmatprep.mubr.f32.mxu0 0.0
    %3365 = vmatmul.mubr.f32.gmra.mxu0 %v1417
    %v3366 = vpop.f32.mrf.mxu0
    %v3367 = vadd.f32 %v2982, %v3366
    %v3368 = vpop.f32.mrf.mxu0
    %3369 = vmatprep.mubr.f32.mxu0 0.0
    %3370 = vmatmul.mubr.f32.gmra.mxu0 %v1418
    %v3371 = vpop.f32.mrf.mxu0
    %v3372 = vadd.f32 %v2987, %v3371
    %v3373 = vpop.f32.mrf.mxu0
    %3374 = vmatprep.mubr.f32.mxu0 0.0
    %3375 = vmatmul.mubr.f32.gmra.mxu0 %v1419
    %v3376 = vpop.f32.mrf.mxu0
    %v3377 = vadd.f32 %v2992, %v3376
    %v3378 = vpop.f32.mrf.mxu0
    %3379 = vmatprep.mubr.f32.mxu0 0.0
    %3380 = vmatmul.mubr.f32.gmra.mxu0 %v1420
    %v3381 = vpop.f32.mrf.mxu0
    %v3382 = vadd.f32 %v2997, %v3381
    %v3383 = vpop.f32.mrf.mxu0
    %3384 = vmatprep.mubr.f32.mxu0 0.0
    %3385 = vmatmul.mubr.f32.gmra.mxu0 %v1421
    %v3386 = vpop.f32.mrf.mxu0
    %v3387 = vadd.f32 %v3002, %v3386
    %v3388 = vpop.f32.mrf.mxu0
    %3389 = vmatprep.mubr.f32.mxu0 0.0
    %3390 = vmatmul.mubr.f32.gmra.mxu0 %v1422
    %v3391 = vpop.f32.mrf.mxu0
    %v3392 = vadd.f32 %v3007, %v3391
    %v3393 = vpop.f32.mrf.mxu0
    %3394 = vmatprep.mubr.f32.mxu0 0.0
    %3395 = vmatmul.mubr.f32.gmra.mxu0 %v1423
    %v3396 = vpop.f32.mrf.mxu0
    %v3397 = vadd.f32 %v3012, %v3396
    %v3398 = vpop.f32.mrf.mxu0
    %3399 = vmatprep.mubr.f32.mxu0 0.0
    %3400 = vmatmul.mubr.f32.gmra.mxu0 %v1424
    %v3401 = vpop.f32.mrf.mxu0
    %v3402 = vadd.f32 %v3017, %v3401
    %v3403 = vpop.f32.mrf.mxu0
    %3404 = vmatprep.mubr.f32.mxu0 0.0
    %3405 = vmatmul.mubr.f32.gmra.mxu0 %v1425
    %v3406 = vpop.f32.mrf.mxu0
    %v3407 = vadd.f32 %v3022, %v3406
    %v3408 = vpop.f32.mrf.mxu0
    %3409 = vmatprep.mubr.f32.mxu0 0.0
    %3410 = vmatmul.mubr.f32.gmra.mxu0 %v1426
    %v3411 = vpop.f32.mrf.mxu0
    %v3412 = vadd.f32 %v3027, %v3411
    %v3413 = vpop.f32.mrf.mxu0
    %3414 = vmatprep.mubr.f32.mxu0 0.0
    %3415 = vmatmul.mubr.f32.gmra.mxu0 %v1427
    %v3416 = vpop.f32.mrf.mxu0
    %v3417 = vadd.f32 %v3032, %v3416
    %v3418 = vpop.f32.mrf.mxu0
    %3419 = vmatprep.mubr.f32.mxu0 0.0
    %3420 = vmatmul.mubr.f32.gmra.mxu0 %v1428
    %v3421 = vpop.f32.mrf.mxu0
    %v3422 = vadd.f32 %v3037, %v3421
    %v3423 = vpop.f32.mrf.mxu0
    %3424 = vmatprep.mubr.f32.mxu0 0.0
    %3425 = vmatmul.mubr.f32.gmra.mxu0 %v1429
    %v3426 = vpop.f32.mrf.mxu0
    %v3427 = vadd.f32 %v3042, %v3426
    %v3428 = vpop.f32.mrf.mxu0
    %3429 = vmatprep.mubr.f32.mxu0 0.0
    %3430 = vmatmul.mubr.f32.gmra.mxu0 %v1430
    %v3431 = vpop.f32.mrf.mxu0
    %v3432 = vadd.f32 %v3047, %v3431
    %v3433 = vpop.f32.mrf.mxu0
    %3434 = vmatprep.mubr.f32.mxu0 0.0
    %3435 = vmatmul.mubr.f32.gmra.mxu0 %v1431
    %v3436 = vpop.f32.mrf.mxu0
    %v3437 = vadd.f32 %v3052, %v3436
    %v3438 = vpop.f32.mrf.mxu0
    %3439 = vmatprep.mubr.f32.mxu0 0.0
    %3440 = vmatmul.mubr.f32.gmra.mxu0 %v1432
    %v3441 = vpop.f32.mrf.mxu0
    %v3442 = vadd.f32 %v3057, %v3441
    %v3443 = vpop.f32.mrf.mxu0
    %3444 = vmatprep.mubr.f32.mxu0 0.0
    %3445 = vmatmul.mubr.f32.gmra.mxu0 %v1433
    %v3446 = vpop.f32.mrf.mxu0
    %v3447 = vadd.f32 %v3062, %v3446
    %v3448 = vpop.f32.mrf.mxu0
    %3449 = vmatprep.mubr.f32.mxu0 0.0
    %3450 = vmatmul.mubr.f32.gmra.mxu0 %v1434
    %v3451 = vpop.f32.mrf.mxu0
    %v3452 = vadd.f32 %v3067, %v3451
    %v3453 = vpop.f32.mrf.mxu0
    %3454 = vmatprep.mubr.f32.mxu0 0.0
    %3455 = vmatmul.mubr.f32.gmra.mxu0 %v1435
    %v3456 = vpop.f32.mrf.mxu0
    %v3457 = vadd.f32 %v3072, %v3456
    %v3458 = vpop.f32.mrf.mxu0
    %3459 = vmatprep.mubr.f32.mxu0 0.0
    %3460 = vmatmul.mubr.f32.gmra.mxu0 %v1436
    %v3461 = vpop.f32.mrf.mxu0
    %v3462 = vadd.f32 %v3077, %v3461
    %v3463 = vpop.f32.mrf.mxu0
    %3464 = vmatprep.mubr.f32.mxu0 0.0
    %3465 = vmatmul.mubr.f32.gmra.mxu0 %v1437
    %v3466 = vpop.f32.mrf.mxu0
    %v3467 = vadd.f32 %v3082, %v3466
    %v3468 = vpop.f32.mrf.mxu0
    %3469 = vmatprep.mubr.f32.mxu0 0.0
    %3470 = vmatmul.mubr.f32.gmra.mxu0 %v1438
    %v3471 = vpop.f32.mrf.mxu0
    %v3472 = vadd.f32 %v3087, %v3471
    %v3473 = vpop.f32.mrf.mxu0
    %3474 = vmatprep.mubr.f32.mxu0 0.0
    %3475 = vmatmul.mubr.f32.gmra.mxu0 %v1439
    %v3476 = vpop.f32.mrf.mxu0
    %v3477 = vadd.f32 %v3092, %v3476
    %v3478 = vpop.f32.mrf.mxu0
    %3479 = vmatprep.mubr.f32.mxu0 0.0
    %3480 = vmatmul.mubr.f32.gmra.mxu0 %v1440
    %v3481 = vpop.f32.mrf.mxu0
    %v3482 = vadd.f32 %v3097, %v3481
    %v3483 = vpop.f32.mrf.mxu0
    %3484 = vmatprep.mubr.f32.mxu0 0.0
    %3485 = vmatmul.mubr.f32.gmra.mxu0 %v1441
    %v3486 = vpop.f32.mrf.mxu0
    %v3487 = vadd.f32 %v3102, %v3486
    %v3488 = vpop.f32.mrf.mxu0
    %3489 = vmatprep.mubr.f32.mxu0 0.0
    %3490 = vmatmul.mubr.f32.gmra.mxu0 %v1442
    %v3491 = vpop.f32.mrf.mxu0
    %v3492 = vadd.f32 %v3107, %v3491
    %v3493 = vpop.f32.mrf.mxu0
    %3494 = vmatprep.mubr.f32.mxu0 0.0
    %3495 = vmatmul.mubr.f32.gmra.mxu0 %v1443
    %v3496 = vpop.f32.mrf.mxu0
    %v3497 = vadd.f32 %v3112, %v3496
    %v3498 = vpop.f32.mrf.mxu0
    %3499 = vmatprep.mubr.f32.mxu0 0.0
    %3500 = vmatmul.mubr.f32.gmra.mxu0 %v1444
    %v3501 = vpop.f32.mrf.mxu0
    %v3502 = vadd.f32 %v3117, %v3501
    %v3503 = vpop.f32.mrf.mxu0
    %3504 = vmatprep.mubr.f32.mxu0 0.0
    %3505 = vmatmul.mubr.f32.gmra.mxu0 %v1445
    %v3506 = vpop.f32.mrf.mxu0
    %v3507 = vadd.f32 %v3122, %v3506
    %v3508 = vpop.f32.mrf.mxu0
    %3509 = vmatprep.mubr.f32.mxu0 0.0
    %3510 = vmatmul.mubr.f32.gmra.mxu0 %v1446
    %v3511 = vpop.f32.mrf.mxu0
    %v3512 = vadd.f32 %v3127, %v3511
    %v3513 = vpop.f32.mrf.mxu0
    %3514 = vmatprep.mubr.f32.mxu0 0.0
    %3515 = vmatmul.mubr.f32.gmra.mxu0 %v1447
    %v3516 = vpop.f32.mrf.mxu0
    %v3517 = vadd.f32 %v3132, %v3516
    %v3518 = vpop.f32.mrf.mxu0
    %3519 = vmatprep.mubr.f32.mxu0 0.0
    %3520 = vmatmul.mubr.f32.gmra.mxu0 %v1448
    %v3521 = vpop.f32.mrf.mxu0
    %v3522 = vadd.f32 %v3137, %v3521
    %v3523 = vpop.f32.mrf.mxu0
    %3524 = vdwg.mxu0
    %v3525 = vadd.f32 %v325, %v3207
    %v3526 = vadd.f32 %v326, %v3212
    %v3527 = vadd.f32 %v327, %v3217
    %v3528 = vadd.f32 %v328, %v3222
    %v3529 = vadd.f32 %v329, %v3227
    %v3530 = vadd.f32 %v330, %v3232
    %v3531 = vadd.f32 %v331, %v3237
    %v3532 = vadd.f32 %v332, %v3242
    %v3533 = vadd.f32 %v333, %v3247
    %v3534 = vadd.f32 %v334, %v3252
    %v3535 = vadd.f32 %v335, %v3257
    %v3536 = vadd.f32 %v336, %v3262
    %v3537 = vadd.f32 %v337, %v3267
    %v3538 = vadd.f32 %v338, %v3272
    %v3539 = vadd.f32 %v339, %v3277
    %v3540 = vadd.f32 %v340, %v3282
    %v3541 = vadd.f32 %v341, %v3287
    %v3542 = vadd.f32 %v342, %v3292
    %v3543 = vadd.f32 %v343, %v3297
    %v3544 = vadd.f32 %v344, %v3302
    %v3545 = vadd.f32 %v345, %v3307
    %v3546 = vadd.f32 %v346, %v3312
    %v3547 = vadd.f32 %v347, %v3317
    %v3548 = vadd.f32 %v348, %v3322
    %v3549 = vadd.f32 %v349, %v3327
    %v3550 = vadd.f32 %v350, %v3332
    %v3551 = vadd.f32 %v351, %v3337
    %v3552 = vadd.f32 %v352, %v3342
    %v3553 = vadd.f32 %v353, %v3347
    %v3554 = vadd.f32 %v354, %v3352
    %v3555 = vadd.f32 %v355, %v3357
    %v3556 = vadd.f32 %v356, %v3362
    %v3557 = vadd.f32 %v357, %v3367
    %v3558 = vadd.f32 %v358, %v3372
    %v3559 = vadd.f32 %v359, %v3377
    %v3560 = vadd.f32 %v360, %v3382
    %v3561 = vadd.f32 %v361, %v3387
    %v3562 = vadd.f32 %v362, %v3392
    %v3563 = vadd.f32 %v363, %v3397
    %v3564 = vadd.f32 %v364, %v3402
    %v3565 = vadd.f32 %v365, %v3407
    %v3566 = vadd.f32 %v366, %v3412
    %v3567 = vadd.f32 %v367, %v3417
    %v3568 = vadd.f32 %v368, %v3422
    %v3569 = vadd.f32 %v369, %v3427
    %v3570 = vadd.f32 %v370, %v3432
    %v3571 = vadd.f32 %v371, %v3437
    %v3572 = vadd.f32 %v372, %v3442
    %v3573 = vadd.f32 %v373, %v3447
    %v3574 = vadd.f32 %v374, %v3452
    %v3575 = vadd.f32 %v375, %v3457
    %v3576 = vadd.f32 %v376, %v3462
    %v3577 = vadd.f32 %v377, %v3467
    %v3578 = vadd.f32 %v378, %v3472
    %v3579 = vadd.f32 %v379, %v3477
    %v3580 = vadd.f32 %v380, %v3482
    %v3581 = vadd.f32 %v381, %v3487
    %v3582 = vadd.f32 %v382, %v3492
    %v3583 = vadd.f32 %v383, %v3497
    %v3584 = vadd.f32 %v384, %v3502
    %v3585 = vadd.f32 %v385, %v3507
    %v3586 = vadd.f32 %v386, %v3512
    %v3587 = vadd.f32 %v387, %v3517
    %v3588 = vadd.f32 %v388, %v3522
    %3589 = vst [vmem:[#allocation12] sm:$0xff] %v3525
    %3590 = vst [vmem:[#allocation12 + $0x8] sm:$0xff] %v3526
    %3591 = vst [vmem:[#allocation12 + $0x10] sm:$0xff] %v3527
    %3592 = vst [vmem:[#allocation12 + $0x18] sm:$0xff] %v3528
    %3593 = vst [vmem:[#allocation12 + $0x20] sm:$0xff] %v3529
    %3594 = vst [vmem:[#allocation12 + $0x28] sm:$0xff] %v3530
    %3595 = vst [vmem:[#allocation12 + $0x30] sm:$0xff] %v3531
    %3596 = vst [vmem:[#allocation12 + $0x38] sm:$0xff] %v3532
    %3597 = vst [vmem:[#allocation12 + $0x40] sm:$0xff] %v3533
    %3598 = vst [vmem:[#allocation12 + $0x48] sm:$0xff] %v3534
    %3599 = vst [vmem:[#allocation12 + $0x50] sm:$0xff] %v3535
    %3600 = vst [vmem:[#allocation12 + $0x58] sm:$0xff] %v3536
    %3601 = vst [vmem:[#allocation12 + $0x60] sm:$0xff] %v3537
    %3602 = vst [vmem:[#allocation12 + $0x68] sm:$0xff] %v3538
    %3603 = vst [vmem:[#allocation12 + $0x70] sm:$0xff] %v3539
    %3604 = vst [vmem:[#allocation12 + $0x78] sm:$0xff] %v3540
    %3605 = vst [vmem:[#allocation12 + $0x80] sm:$0xff] %v3541
    %3606 = vst [vmem:[#allocation12 + $0x88] sm:$0xff] %v3542
    %3607 = vst [vmem:[#allocation12 + $0x90] sm:$0xff] %v3543
    %3608 = vst [vmem:[#allocation12 + $0x98] sm:$0xff] %v3544
    %3609 = vst [vmem:[#allocation12 + $0xa0] sm:$0xff] %v3545
    %3610 = vst [vmem:[#allocation12 + $0xa8] sm:$0xff] %v3546
    %3611 = vst [vmem:[#allocation12 + $0xb0] sm:$0xff] %v3547
    %3612 = vst [vmem:[#allocation12 + $0xb8] sm:$0xff] %v3548
    %3613 = vst [vmem:[#allocation12 + $0xc0] sm:$0xff] %v3549
    %3614 = vst [vmem:[#allocation12 + $0xc8] sm:$0xff] %v3550
    %3615 = vst [vmem:[#allocation12 + $0xd0] sm:$0xff] %v3551
    %3616 = vst [vmem:[#allocation12 + $0xd8] sm:$0xff] %v3552
    %3617 = vst [vmem:[#allocation12 + $0xe0] sm:$0xff] %v3553
    %3618 = vst [vmem:[#allocation12 + $0xe8] sm:$0xff] %v3554
    %3619 = vst [vmem:[#allocation12 + $0xf0] sm:$0xff] %v3555
    %3620 = vst [vmem:[#allocation12 + $0xf8] sm:$0xff] %v3556
    %3621 = vst [vmem:[#allocation12 + $0x100] sm:$0xff] %v3557
    %3622 = vst [vmem:[#allocation12 + $0x108] sm:$0xff] %v3558
    %3623 = vst [vmem:[#allocation12 + $0x110] sm:$0xff] %v3559
    %3624 = vst [vmem:[#allocation12 + $0x118] sm:$0xff] %v3560
    %3625 = vst [vmem:[#allocation12 + $0x120] sm:$0xff] %v3561
    %3626 = vst [vmem:[#allocation12 + $0x128] sm:$0xff] %v3562
    %3627 = vst [vmem:[#allocation12 + $0x130] sm:$0xff] %v3563
    %3628 = vst [vmem:[#allocation12 + $0x138] sm:$0xff] %v3564
    %3629 = vst [vmem:[#allocation12 + $0x140] sm:$0xff] %v3565
    %3630 = vst [vmem:[#allocation12 + $0x148] sm:$0xff] %v3566
    %3631 = vst [vmem:[#allocation12 + $0x150] sm:$0xff] %v3567
    %3632 = vst [vmem:[#allocation12 + $0x158] sm:$0xff] %v3568
    %3633 = vst [vmem:[#allocation12 + $0x160] sm:$0xff] %v3569
    %3634 = vst [vmem:[#allocation12 + $0x168] sm:$0xff] %v3570
    %3635 = vst [vmem:[#allocation12 + $0x170] sm:$0xff] %v3571
    %3636 = vst [vmem:[#allocation12 + $0x178] sm:$0xff] %v3572
    %3637 = vst [vmem:[#allocation12 + $0x180] sm:$0xff] %v3573
    %3638 = vst [vmem:[#allocation12 + $0x188] sm:$0xff] %v3574
    %3639 = vst [vmem:[#allocation12 + $0x190] sm:$0xff] %v3575
    %3640 = vst [vmem:[#allocation12 + $0x198] sm:$0xff] %v3576
    %3641 = vst [vmem:[#allocation12 + $0x1a0] sm:$0xff] %v3577
    %3642 = vst [vmem:[#allocation12 + $0x1a8] sm:$0xff] %v3578
    %3643 = vst [vmem:[#allocation12 + $0x1b0] sm:$0xff] %v3579
    %3644 = vst [vmem:[#allocation12 + $0x1b8] sm:$0xff] %v3580
    %3645 = vst [vmem:[#allocation12 + $0x1c0] sm:$0xff] %v3581
    %3646 = vst [vmem:[#allocation12 + $0x1c8] sm:$0xff] %v3582
    %3647 = vst [vmem:[#allocation12 + $0x1d0] sm:$0xff] %v3583
    %3648 = vst [vmem:[#allocation12 + $0x1d8] sm:$0xff] %v3584
    %3649 = vst [vmem:[#allocation12 + $0x1e0] sm:$0xff] %v3585
    %3650 = vst [vmem:[#allocation12 + $0x1e8] sm:$0xff] %v3586
    %3651 = vst [vmem:[#allocation12 + $0x1f0] sm:$0xff] %v3587
    %3652 = vst [vmem:[#allocation12 + $0x1f8] sm:$0xff] %v3588
    %v3653 = vld [vmem:[#allocation12] sm:$0xff]
    %v3654 = vld [vmem:[#allocation12 + $0x8] sm:$0xff]
    %v3655 = vld [vmem:[#allocation12 + $0x10] sm:$0xff]
    %v3656 = vld [vmem:[#allocation12 + $0x18] sm:$0xff]
    %v3657 = vld [vmem:[#allocation12 + $0x20] sm:$0xff]
    %v3658 = vld [vmem:[#allocation12 + $0x28] sm:$0xff]
    %v3659 = vld [vmem:[#allocation12 + $0x30] sm:$0xff]
    %v3660 = vld [vmem:[#allocation12 + $0x38] sm:$0xff]
    %v3661 = vld [vmem:[#allocation12 + $0x40] sm:$0xff]
    %v3662 = vld [vmem:[#allocation12 + $0x48] sm:$0xff]
    %v3663 = vld [vmem:[#allocation12 + $0x50] sm:$0xff]
    %v3664 = vld [vmem:[#allocation12 + $0x58] sm:$0xff]
    %v3665 = vld [vmem:[#allocation12 + $0x60] sm:$0xff]
    %v3666 = vld [vmem:[#allocation12 + $0x68] sm:$0xff]
    %v3667 = vld [vmem:[#allocation12 + $0x70] sm:$0xff]
    %v3668 = vld [vmem:[#allocation12 + $0x78] sm:$0xff]
    %v3669 = vld [vmem:[#allocation12 + $0x80] sm:$0xff]
    %v3670 = vld [vmem:[#allocation12 + $0x88] sm:$0xff]
    %v3671 = vld [vmem:[#allocation12 + $0x90] sm:$0xff]
    %v3672 = vld [vmem:[#allocation12 + $0x98] sm:$0xff]
    %v3673 = vld [vmem:[#allocation12 + $0xa0] sm:$0xff]
    %v3674 = vld [vmem:[#allocation12 + $0xa8] sm:$0xff]
    %v3675 = vld [vmem:[#allocation12 + $0xb0] sm:$0xff]
    %v3676 = vld [vmem:[#allocation12 + $0xb8] sm:$0xff]
    %v3677 = vld [vmem:[#allocation12 + $0xc0] sm:$0xff]
    %v3678 = vld [vmem:[#allocation12 + $0xc8] sm:$0xff]
    %v3679 = vld [vmem:[#allocation12 + $0xd0] sm:$0xff]
    %v3680 = vld [vmem:[#allocation12 + $0xd8] sm:$0xff]
    %v3681 = vld [vmem:[#allocation12 + $0xe0] sm:$0xff]
    %v3682 = vld [vmem:[#allocation12 + $0xe8] sm:$0xff]
    %v3683 = vld [vmem:[#allocation12 + $0xf0] sm:$0xff]
    %v3684 = vld [vmem:[#allocation12 + $0xf8] sm:$0xff]
    %v3685 = vld [vmem:[#allocation12 + $0x100] sm:$0xff]
    %v3686 = vld [vmem:[#allocation12 + $0x108] sm:$0xff]
    %v3687 = vld [vmem:[#allocation12 + $0x110] sm:$0xff]
    %v3688 = vld [vmem:[#allocation12 + $0x118] sm:$0xff]
    %v3689 = vld [vmem:[#allocation12 + $0x120] sm:$0xff]
    %v3690 = vld [vmem:[#allocation12 + $0x128] sm:$0xff]
    %v3691 = vld [vmem:[#allocation12 + $0x130] sm:$0xff]
    %v3692 = vld [vmem:[#allocation12 + $0x138] sm:$0xff]
    %v3693 = vld [vmem:[#allocation12 + $0x140] sm:$0xff]
    %v3694 = vld [vmem:[#allocation12 + $0x148] sm:$0xff]
    %v3695 = vld [vmem:[#allocation12 + $0x150] sm:$0xff]
    %v3696 = vld [vmem:[#allocation12 + $0x158] sm:$0xff]
    %v3697 = vld [vmem:[#allocation12 + $0x160] sm:$0xff]
    %v3698 = vld [vmem:[#allocation12 + $0x168] sm:$0xff]
    %v3699 = vld [vmem:[#allocation12 + $0x170] sm:$0xff]
    %v3700 = vld [vmem:[#allocation12 + $0x178] sm:$0xff]
    %v3701 = vld [vmem:[#allocation12 + $0x180] sm:$0xff]
    %v3702 = vld [vmem:[#allocation12 + $0x188] sm:$0xff]
    %v3703 = vld [vmem:[#allocation12 + $0x190] sm:$0xff]
    %v3704 = vld [vmem:[#allocation12 + $0x198] sm:$0xff]
    %v3705 = vld [vmem:[#allocation12 + $0x1a0] sm:$0xff]
    %v3706 = vld [vmem:[#allocation12 + $0x1a8] sm:$0xff]
    %v3707 = vld [vmem:[#allocation12 + $0x1b0] sm:$0xff]
    %v3708 = vld [vmem:[#allocation12 + $0x1b8] sm:$0xff]
    %v3709 = vld [vmem:[#allocation12 + $0x1c0] sm:$0xff]
    %v3710 = vld [vmem:[#allocation12 + $0x1c8] sm:$0xff]
    %v3711 = vld [vmem:[#allocation12 + $0x1d0] sm:$0xff]
    %v3712 = vld [vmem:[#allocation12 + $0x1d8] sm:$0xff]
    %v3713 = vld [vmem:[#allocation12 + $0x1e0] sm:$0xff]
    %v3714 = vld [vmem:[#allocation12 + $0x1e8] sm:$0xff]
    %v3715 = vld [vmem:[#allocation12 + $0x1f0] sm:$0xff]
    %v3716 = vld [vmem:[#allocation12 + $0x1f8] sm:$0xff]
    %v3717 = vadd.f32 %v3653, %v3654
    %v3718 = vadd.f32 %v3717, %v3655
    %v3719 = vadd.f32 %v3718, %v3656
    %v3720 = vadd.f32 %v3719, %v3657
    %v3721 = vadd.f32 %v3720, %v3658
    %v3722 = vadd.f32 %v3721, %v3659
    %v3723 = vadd.f32 %v3722, %v3660
    %v3724 = vadd.f32 %v3723, %v3661
    %v3725 = vadd.f32 %v3724, %v3662
    %v3726 = vadd.f32 %v3725, %v3663
    %v3727 = vadd.f32 %v3726, %v3664
    %v3728 = vadd.f32 %v3727, %v3665
    %v3729 = vadd.f32 %v3728, %v3666
    %v3730 = vadd.f32 %v3729, %v3667
    %v3731 = vadd.f32 %v3730, %v3668
    %v3732 = vadd.f32 %v3731, %v3669
    %v3733 = vadd.f32 %v3732, %v3670
    %v3734 = vadd.f32 %v3733, %v3671
    %v3735 = vadd.f32 %v3734, %v3672
    %v3736 = vadd.f32 %v3735, %v3673
    %v3737 = vadd.f32 %v3736, %v3674
    %v3738 = vadd.f32 %v3737, %v3675
    %v3739 = vadd.f32 %v3738, %v3676
    %v3740 = vadd.f32 %v3739, %v3677
    %v3741 = vadd.f32 %v3740, %v3678
    %v3742 = vadd.f32 %v3741, %v3679
    %v3743 = vadd.f32 %v3742, %v3680
    %v3744 = vadd.f32 %v3743, %v3681
    %v3745 = vadd.f32 %v3744, %v3682
    %v3746 = vadd.f32 %v3745, %v3683
    %v3747 = vadd.f32 %v3746, %v3684
    %v3748 = vadd.f32 %v3747, %v3685
    %v3749 = vadd.f32 %v3748, %v3686
    %v3750 = vadd.f32 %v3749, %v3687
    %v3751 = vadd.f32 %v3750, %v3688
    %v3752 = vadd.f32 %v3751, %v3689
    %v3753 = vadd.f32 %v3752, %v3690
    %v3754 = vadd.f32 %v3753, %v3691
    %v3755 = vadd.f32 %v3754, %v3692
    %v3756 = vadd.f32 %v3755, %v3693
    %v3757 = vadd.f32 %v3756, %v3694
    %v3758 = vadd.f32 %v3757, %v3695
    %v3759 = vadd.f32 %v3758, %v3696
    %v3760 = vadd.f32 %v3759, %v3697
    %v3761 = vadd.f32 %v3760, %v3698
    %v3762 = vadd.f32 %v3761, %v3699
    %v3763 = vadd.f32 %v3762, %v3700
    %v3764 = vadd.f32 %v3763, %v3701
    %v3765 = vadd.f32 %v3764, %v3702
    %v3766 = vadd.f32 %v3765, %v3703
    %v3767 = vadd.f32 %v3766, %v3704
    %v3768 = vadd.f32 %v3767, %v3705
    %v3769 = vadd.f32 %v3768, %v3706
    %v3770 = vadd.f32 %v3769, %v3707
    %v3771 = vadd.f32 %v3770, %v3708
    %v3772 = vadd.f32 %v3771, %v3709
    %v3773 = vadd.f32 %v3772, %v3710
    %v3774 = vadd.f32 %v3773, %v3711
    %v3775 = vadd.f32 %v3774, %v3712
    %v3776 = vadd.f32 %v3775, %v3713
    %v3777 = vadd.f32 %v3776, %v3714
    %v3778 = vadd.f32 %v3777, %v3715
    %v3779 = vadd.f32 %v3778, %v3716
    %v3780 = vrot.slane %v3779, 4
    %v3781 = vadd.f32 %v3779, %v3780
    %v3782 = vrot.slane %v3781, 2
    %v3783 = vadd.f32 %v3781, %v3782
    %v3784 = vrot.slane %v3783, 1
    %v3785 = vadd.f32 %v3783, %v3784
    %v3786 = vmul.f32 %v3653, %v3653
    %v3787 = vmul.f32 %v3654, %v3654
    %v3788 = vmul.f32 %v3655, %v3655
    %v3789 = vmul.f32 %v3656, %v3656
    %v3790 = vmul.f32 %v3657, %v3657
    %v3791 = vmul.f32 %v3658, %v3658
    %v3792 = vmul.f32 %v3659, %v3659
    %v3793 = vmul.f32 %v3660, %v3660
    %v3794 = vmul.f32 %v3661, %v3661
    %v3795 = vmul.f32 %v3662, %v3662
    %v3796 = vmul.f32 %v3663, %v3663
    %v3797 = vmul.f32 %v3664, %v3664
    %v3798 = vmul.f32 %v3665, %v3665
    %v3799 = vmul.f32 %v3666, %v3666
    %v3800 = vmul.f32 %v3667, %v3667
    %v3801 = vmul.f32 %v3668, %v3668
    %v3802 = vmul.f32 %v3669, %v3669
    %v3803 = vmul.f32 %v3670, %v3670
    %v3804 = vmul.f32 %v3671, %v3671
    %v3805 = vmul.f32 %v3672, %v3672
    %v3806 = vmul.f32 %v3673, %v3673
    %v3807 = vmul.f32 %v3674, %v3674
    %v3808 = vmul.f32 %v3675, %v3675
    %v3809 = vmul.f32 %v3676, %v3676
    %v3810 = vmul.f32 %v3677, %v3677
    %v3811 = vmul.f32 %v3678, %v3678
    %v3812 = vmul.f32 %v3679, %v3679
    %v3813 = vmul.f32 %v3680, %v3680
    %v3814 = vmul.f32 %v3681, %v3681
    %v3815 = vmul.f32 %v3682, %v3682
    %v3816 = vmul.f32 %v3683, %v3683
    %v3817 = vmul.f32 %v3684, %v3684
    %v3818 = vmul.f32 %v3685, %v3685
    %v3819 = vmul.f32 %v3686, %v3686
    %v3820 = vmul.f32 %v3687, %v3687
    %v3821 = vmul.f32 %v3688, %v3688
    %v3822 = vmul.f32 %v3689, %v3689
    %v3823 = vmul.f32 %v3690, %v3690
    %v3824 = vmul.f32 %v3691, %v3691
    %v3825 = vmul.f32 %v3692, %v3692
    %v3826 = vmul.f32 %v3693, %v3693
    %v3827 = vmul.f32 %v3694, %v3694
    %v3828 = vmul.f32 %v3695, %v3695
    %v3829 = vmul.f32 %v3696, %v3696
    %v3830 = vmul.f32 %v3697, %v3697
    %v3831 = vmul.f32 %v3698, %v3698
    %v3832 = vmul.f32 %v3699, %v3699
    %v3833 = vmul.f32 %v3700, %v3700
    %v3834 = vmul.f32 %v3701, %v3701
    %v3835 = vmul.f32 %v3702, %v3702
    %v3836 = vmul.f32 %v3703, %v3703
    %v3837 = vmul.f32 %v3704, %v3704
    %v3838 = vmul.f32 %v3705, %v3705
    %v3839 = vmul.f32 %v3706, %v3706
    %v3840 = vmul.f32 %v3707, %v3707
    %v3841 = vmul.f32 %v3708, %v3708
    %v3842 = vmul.f32 %v3709, %v3709
    %v3843 = vmul.f32 %v3710, %v3710
    %v3844 = vmul.f32 %v3711, %v3711
    %v3845 = vmul.f32 %v3712, %v3712
    %v3846 = vmul.f32 %v3713, %v3713
    %v3847 = vmul.f32 %v3714, %v3714
    %v3848 = vmul.f32 %v3715, %v3715
    %v3849 = vmul.f32 %v3716, %v3716
    %v3850 = vadd.f32 %v3786, %v3787
    %v3851 = vadd.f32 %v3850, %v3788
    %v3852 = vadd.f32 %v3851, %v3789
    %v3853 = vadd.f32 %v3852, %v3790
    %v3854 = vadd.f32 %v3853, %v3791
    %v3855 = vadd.f32 %v3854, %v3792
    %v3856 = vadd.f32 %v3855, %v3793
    %v3857 = vadd.f32 %v3856, %v3794
    %v3858 = vadd.f32 %v3857, %v3795
    %v3859 = vadd.f32 %v3858, %v3796
    %v3860 = vadd.f32 %v3859, %v3797
    %v3861 = vadd.f32 %v3860, %v3798
    %v3862 = vadd.f32 %v3861, %v3799
    %v3863 = vadd.f32 %v3862, %v3800
    %v3864 = vadd.f32 %v3863, %v3801
    %v3865 = vadd.f32 %v3864, %v3802
    %v3866 = vadd.f32 %v3865, %v3803
    %v3867 = vadd.f32 %v3866, %v3804
    %v3868 = vadd.f32 %v3867, %v3805
    %v3869 = vadd.f32 %v3868, %v3806
    %v3870 = vadd.f32 %v3869, %v3807
    %v3871 = vadd.f32 %v3870, %v3808
    %v3872 = vadd.f32 %v3871, %v3809
    %v3873 = vadd.f32 %v3872, %v3810
    %v3874 = vadd.f32 %v3873, %v3811
    %v3875 = vadd.f32 %v3874, %v3812
    %v3876 = vadd.f32 %v3875, %v3813
    %v3877 = vadd.f32 %v3876, %v3814
    %v3878 = vadd.f32 %v3877, %v3815
    %v3879 = vadd.f32 %v3878, %v3816
    %v3880 = vadd.f32 %v3879, %v3817
    %v3881 = vadd.f32 %v3880, %v3818
    %v3882 = vadd.f32 %v3881, %v3819
    %v3883 = vadd.f32 %v3882, %v3820
    %v3884 = vadd.f32 %v3883, %v3821
    %v3885 = vadd.f32 %v3884, %v3822
    %v3886 = vadd.f32 %v3885, %v3823
    %v3887 = vadd.f32 %v3886, %v3824
    %v3888 = vadd.f32 %v3887, %v3825
    %v3889 = vadd.f32 %v3888, %v3826
    %v3890 = vadd.f32 %v3889, %v3827
    %v3891 = vadd.f32 %v3890, %v3828
    %v3892 = vadd.f32 %v3891, %v3829
    %v3893 = vadd.f32 %v3892, %v3830
    %v3894 = vadd.f32 %v3893, %v3831
    %v3895 = vadd.f32 %v3894, %v3832
    %v3896 = vadd.f32 %v3895, %v3833
    %v3897 = vadd.f32 %v3896, %v3834
    %v3898 = vadd.f32 %v3897, %v3835
    %v3899 = vadd.f32 %v3898, %v3836
    %v3900 = vadd.f32 %v3899, %v3837
    %v3901 = vadd.f32 %v3900, %v3838
    %v3902 = vadd.f32 %v3901, %v3839
    %v3903 = vadd.f32 %v3902, %v3840
    %v3904 = vadd.f32 %v3903, %v3841
    %v3905 = vadd.f32 %v3904, %v3842
    %v3906 = vadd.f32 %v3905, %v3843
    %v3907 = vadd.f32 %v3906, %v3844
    %v3908 = vadd.f32 %v3907, %v3845
    %v3909 = vadd.f32 %v3908, %v3846
    %v3910 = vadd.f32 %v3909, %v3847
    %v3911 = vadd.f32 %v3910, %v3848
    %v3912 = vadd.f32 %v3911, %v3849
    %v3913 = vrot.slane %v3912, 4
    %v3914 = vadd.f32 %v3912, %v3913
    %v3915 = vrot.slane %v3914, 2
    %v3916 = vadd.f32 %v3914, %v3915
    %v3917 = vrot.slane %v3916, 1
    %v3918 = vadd.f32 %v3916, %v3917
    %v3919 = vmul.f32 %v3785, 0.001953125
    %v3920 = vmul.f32 %v3918, 0.001953125
    %v3921 = vmul.f32 %v3919, %v3919
    %v3922 = vsub.f32 %v3920, %v3921
    %v3923 = vmax.f32 %v3922, 0.0
    %s3924 = scalar_lea.vmem [#allocation6], 1
    %v3925 = vld [vmem:[%s3924] sm:$0x1]
    %v3926 = vadd.f32 %v3923, 1e-05
    %v3927 = vrsqrt.pop %v3926
    %v3928 = vmul.f32 %v3925, %v3927
    %s3929 = scalar_lea.vmem [#allocation8], 1
    %v3930 = vld [vmem:[%s3929] sm:$0x1]
    %v3931 = vmul.f32 %v3919, %v3928
    %v3932 = vsub.f32 %v3930, %v3931
    %v3934 = vlaneseq
    %v3935 = vshrl.u32 %v3934, 7
    %v3936 = vsub.s32 0, %v3935
    %v3937 = vrot.slane %v3928, %v3936
    %v3939 = vmul.f32 %v3653, %v3937
    %v3940 = vmul.f32 %v3654, %v3937
    %v3941 = vmul.f32 %v3655, %v3937
    %v3942 = vmul.f32 %v3656, %v3937
    %v3943 = vmul.f32 %v3657, %v3937
    %v3944 = vmul.f32 %v3658, %v3937
    %v3945 = vmul.f32 %v3659, %v3937
    %v3946 = vmul.f32 %v3660, %v3937
    %v3947 = vmul.f32 %v3661, %v3937
    %v3948 = vmul.f32 %v3662, %v3937
    %v3949 = vmul.f32 %v3663, %v3937
    %v3950 = vmul.f32 %v3664, %v3937
    %v3951 = vmul.f32 %v3665, %v3937
    %v3952 = vmul.f32 %v3666, %v3937
    %v3953 = vmul.f32 %v3667, %v3937
    %v3954 = vmul.f32 %v3668, %v3937
    %v3955 = vmul.f32 %v3669, %v3937
    %v3956 = vmul.f32 %v3670, %v3937
    %v3957 = vmul.f32 %v3671, %v3937
    %v3958 = vmul.f32 %v3672, %v3937
    %v3959 = vmul.f32 %v3673, %v3937
    %v3960 = vmul.f32 %v3674, %v3937
    %v3961 = vmul.f32 %v3675, %v3937
    %v3962 = vmul.f32 %v3676, %v3937
    %v3963 = vmul.f32 %v3677, %v3937
    %v3964 = vmul.f32 %v3678, %v3937
    %v3965 = vmul.f32 %v3679, %v3937
    %v3966 = vmul.f32 %v3680, %v3937
    %v3967 = vmul.f32 %v3681, %v3937
    %v3968 = vmul.f32 %v3682, %v3937
    %v3969 = vmul.f32 %v3683, %v3937
    %v3970 = vmul.f32 %v3684, %v3937
    %v3971 = vmul.f32 %v3685, %v3937
    %v3972 = vmul.f32 %v3686, %v3937
    %v3973 = vmul.f32 %v3687, %v3937
    %v3974 = vmul.f32 %v3688, %v3937
    %v3975 = vmul.f32 %v3689, %v3937
    %v3976 = vmul.f32 %v3690, %v3937
    %v3977 = vmul.f32 %v3691, %v3937
    %v3978 = vmul.f32 %v3692, %v3937
    %v3979 = vmul.f32 %v3693, %v3937
    %v3980 = vmul.f32 %v3694, %v3937
    %v3981 = vmul.f32 %v3695, %v3937
    %v3982 = vmul.f32 %v3696, %v3937
    %v3983 = vmul.f32 %v3697, %v3937
    %v3984 = vmul.f32 %v3698, %v3937
    %v3985 = vmul.f32 %v3699, %v3937
    %v3986 = vmul.f32 %v3700, %v3937
    %v3987 = vmul.f32 %v3701, %v3937
    %v3988 = vmul.f32 %v3702, %v3937
    %v3989 = vmul.f32 %v3703, %v3937
    %v3990 = vmul.f32 %v3704, %v3937
    %v3991 = vmul.f32 %v3705, %v3937
    %v3992 = vmul.f32 %v3706, %v3937
    %v3993 = vmul.f32 %v3707, %v3937
    %v3994 = vmul.f32 %v3708, %v3937
    %v3995 = vmul.f32 %v3709, %v3937
    %v3996 = vmul.f32 %v3710, %v3937
    %v3997 = vmul.f32 %v3711, %v3937
    %v3998 = vmul.f32 %v3712, %v3937
    %v3999 = vmul.f32 %v3713, %v3937
    %v4000 = vmul.f32 %v3714, %v3937
    %v4001 = vmul.f32 %v3715, %v3937
    %v4002 = vmul.f32 %v3716, %v3937
    %v4004 = vlaneseq
    %v4005 = vshrl.u32 %v4004, 7
    %v4006 = vsub.s32 0, %v4005
    %v4007 = vrot.slane %v3932, %v4006
    %v4009 = vadd.f32 %v3939, %v4007
    %v4010 = vadd.f32 %v3940, %v4007
    %v4011 = vadd.f32 %v3941, %v4007
    %v4012 = vadd.f32 %v3942, %v4007
    %v4013 = vadd.f32 %v3943, %v4007
    %v4014 = vadd.f32 %v3944, %v4007
    %v4015 = vadd.f32 %v3945, %v4007
    %v4016 = vadd.f32 %v3946, %v4007
    %v4017 = vadd.f32 %v3947, %v4007
    %v4018 = vadd.f32 %v3948, %v4007
    %v4019 = vadd.f32 %v3949, %v4007
    %v4020 = vadd.f32 %v3950, %v4007
    %v4021 = vadd.f32 %v3951, %v4007
    %v4022 = vadd.f32 %v3952, %v4007
    %v4023 = vadd.f32 %v3953, %v4007
    %v4024 = vadd.f32 %v3954, %v4007
    %v4025 = vadd.f32 %v3955, %v4007
    %v4026 = vadd.f32 %v3956, %v4007
    %v4027 = vadd.f32 %v3957, %v4007
    %v4028 = vadd.f32 %v3958, %v4007
    %v4029 = vadd.f32 %v3959, %v4007
    %v4030 = vadd.f32 %v3960, %v4007
    %v4031 = vadd.f32 %v3961, %v4007
    %v4032 = vadd.f32 %v3962, %v4007
    %v4033 = vadd.f32 %v3963, %v4007
    %v4034 = vadd.f32 %v3964, %v4007
    %v4035 = vadd.f32 %v3965, %v4007
    %v4036 = vadd.f32 %v3966, %v4007
    %v4037 = vadd.f32 %v3967, %v4007
    %v4038 = vadd.f32 %v3968, %v4007
    %v4039 = vadd.f32 %v3969, %v4007
    %v4040 = vadd.f32 %v3970, %v4007
    %v4041 = vadd.f32 %v3971, %v4007
    %v4042 = vadd.f32 %v3972, %v4007
    %v4043 = vadd.f32 %v3973, %v4007
    %v4044 = vadd.f32 %v3974, %v4007
    %v4045 = vadd.f32 %v3975, %v4007
    %v4046 = vadd.f32 %v3976, %v4007
    %v4047 = vadd.f32 %v3977, %v4007
    %v4048 = vadd.f32 %v3978, %v4007
    %v4049 = vadd.f32 %v3979, %v4007
    %v4050 = vadd.f32 %v3980, %v4007
    %v4051 = vadd.f32 %v3981, %v4007
    %v4052 = vadd.f32 %v3982, %v4007
    %v4053 = vadd.f32 %v3983, %v4007
    %v4054 = vadd.f32 %v3984, %v4007
    %v4055 = vadd.f32 %v3985, %v4007
    %v4056 = vadd.f32 %v3986, %v4007
    %v4057 = vadd.f32 %v3987, %v4007
    %v4058 = vadd.f32 %v3988, %v4007
    %v4059 = vadd.f32 %v3989, %v4007
    %v4060 = vadd.f32 %v3990, %v4007
    %v4061 = vadd.f32 %v3991, %v4007
    %v4062 = vadd.f32 %v3992, %v4007
    %v4063 = vadd.f32 %v3993, %v4007
    %v4064 = vadd.f32 %v3994, %v4007
    %v4065 = vadd.f32 %v3995, %v4007
    %v4066 = vadd.f32 %v3996, %v4007
    %v4067 = vadd.f32 %v3997, %v4007
    %v4068 = vadd.f32 %v3998, %v4007
    %v4069 = vadd.f32 %v3999, %v4007
    %v4070 = vadd.f32 %v4000, %v4007
    %v4071 = vadd.f32 %v4001, %v4007
    %v4072 = vadd.f32 %v4002, %v4007
    %v4073 = vmax.f32 %v4009, 0.0
    %v4074 = vmax.f32 %v4010, 0.0
    %v4075 = vmax.f32 %v4011, 0.0
    %v4076 = vmax.f32 %v4012, 0.0
    %v4077 = vmax.f32 %v4013, 0.0
    %v4078 = vmax.f32 %v4014, 0.0
    %v4079 = vmax.f32 %v4015, 0.0
    %v4080 = vmax.f32 %v4016, 0.0
    %v4081 = vmax.f32 %v4017, 0.0
    %v4082 = vmax.f32 %v4018, 0.0
    %v4083 = vmax.f32 %v4019, 0.0
    %v4084 = vmax.f32 %v4020, 0.0
    %v4085 = vmax.f32 %v4021, 0.0
    %v4086 = vmax.f32 %v4022, 0.0
    %v4087 = vmax.f32 %v4023, 0.0
    %v4088 = vmax.f32 %v4024, 0.0
    %v4089 = vmax.f32 %v4025, 0.0
    %v4090 = vmax.f32 %v4026, 0.0
    %v4091 = vmax.f32 %v4027, 0.0
    %v4092 = vmax.f32 %v4028, 0.0
    %v4093 = vmax.f32 %v4029, 0.0
    %v4094 = vmax.f32 %v4030, 0.0
    %v4095 = vmax.f32 %v4031, 0.0
    %v4096 = vmax.f32 %v4032, 0.0
    %v4097 = vmax.f32 %v4033, 0.0
    %v4098 = vmax.f32 %v4034, 0.0
    %v4099 = vmax.f32 %v4035, 0.0
    %v4100 = vmax.f32 %v4036, 0.0
    %v4101 = vmax.f32 %v4037, 0.0
    %v4102 = vmax.f32 %v4038, 0.0
    %v4103 = vmax.f32 %v4039, 0.0
    %v4104 = vmax.f32 %v4040, 0.0
    %v4105 = vmax.f32 %v4041, 0.0
    %v4106 = vmax.f32 %v4042, 0.0
    %v4107 = vmax.f32 %v4043, 0.0
    %v4108 = vmax.f32 %v4044, 0.0
    %v4109 = vmax.f32 %v4045, 0.0
    %v4110 = vmax.f32 %v4046, 0.0
    %v4111 = vmax.f32 %v4047, 0.0
    %v4112 = vmax.f32 %v4048, 0.0
    %v4113 = vmax.f32 %v4049, 0.0
    %v4114 = vmax.f32 %v4050, 0.0
    %v4115 = vmax.f32 %v4051, 0.0
    %v4116 = vmax.f32 %v4052, 0.0
    %v4117 = vmax.f32 %v4053, 0.0
    %v4118 = vmax.f32 %v4054, 0.0
    %v4119 = vmax.f32 %v4055, 0.0
    %v4120 = vmax.f32 %v4056, 0.0
    %v4121 = vmax.f32 %v4057, 0.0
    %v4122 = vmax.f32 %v4058, 0.0
    %v4123 = vmax.f32 %v4059, 0.0
    %v4124 = vmax.f32 %v4060, 0.0
    %v4125 = vmax.f32 %v4061, 0.0
    %v4126 = vmax.f32 %v4062, 0.0
    %v4127 = vmax.f32 %v4063, 0.0
    %v4128 = vmax.f32 %v4064, 0.0
    %v4129 = vmax.f32 %v4065, 0.0
    %v4130 = vmax.f32 %v4066, 0.0
    %v4131 = vmax.f32 %v4067, 0.0
    %v4132 = vmax.f32 %v4068, 0.0
    %v4133 = vmax.f32 %v4069, 0.0
    %v4134 = vmax.f32 %v4070, 0.0
    %v4135 = vmax.f32 %v4071, 0.0
    %v4136 = vmax.f32 %v4072, 0.0
    %4137 = vst [vmem:[%s807 + $0x1] sm:$0xff] %v4073
    %4138 = vst [vmem:[%s807 + $0x9] sm:$0xff] %v4074
    %4139 = vst [vmem:[%s807 + $0x19] sm:$0xff] %v4075
    %4140 = vst [vmem:[%s807 + $0x21] sm:$0xff] %v4076
    %4141 = vst [vmem:[%s807 + $0x31] sm:$0xff] %v4077
    %4142 = vst [vmem:[%s807 + $0x39] sm:$0xff] %v4078
    %4143 = vst [vmem:[%s807 + $0x49] sm:$0xff] %v4079
    %4144 = vst [vmem:[%s807 + $0x51] sm:$0xff] %v4080
    %4145 = vst [vmem:[%s807 + $0x61] sm:$0xff] %v4081
    %4146 = vst [vmem:[%s807 + $0x69] sm:$0xff] %v4082
    %4147 = vst [vmem:[%s807 + $0x79] sm:$0xff] %v4083
    %4148 = vst [vmem:[%s807 + $0x81] sm:$0xff] %v4084
    %4149 = vst [vmem:[%s807 + $0x91] sm:$0xff] %v4085
    %4150 = vst [vmem:[%s807 + $0x99] sm:$0xff] %v4086
    %4151 = vst [vmem:[%s807 + $0xa9] sm:$0xff] %v4087
    %4152 = vst [vmem:[%s807 + $0xb1] sm:$0xff] %v4088
    %4153 = vst [vmem:[%s807 + $0xc1] sm:$0xff] %v4089
    %4154 = vst [vmem:[%s807 + $0xc9] sm:$0xff] %v4090
    %4155 = vst [vmem:[%s807 + $0xd9] sm:$0xff] %v4091
    %4156 = vst [vmem:[%s807 + $0xe1] sm:$0xff] %v4092
    %4157 = vst [vmem:[%s807 + $0xf1] sm:$0xff] %v4093
    %4158 = vst [vmem:[%s807 + $0xf9] sm:$0xff] %v4094
    %4159 = vst [vmem:[%s807 + $0x109] sm:$0xff] %v4095
    %4160 = vst [vmem:[%s807 + $0x111] sm:$0xff] %v4096
    %4161 = vst [vmem:[%s807 + $0x121] sm:$0xff] %v4097
    %4162 = vst [vmem:[%s807 + $0x129] sm:$0xff] %v4098
    %4163 = vst [vmem:[%s807 + $0x139] sm:$0xff] %v4099
    %4164 = vst [vmem:[%s807 + $0x141] sm:$0xff] %v4100
    %4165 = vst [vmem:[%s807 + $0x151] sm:$0xff] %v4101
    %4166 = vst [vmem:[%s807 + $0x159] sm:$0xff] %v4102
    %4167 = vst [vmem:[%s807 + $0x169] sm:$0xff] %v4103
    %4168 = vst [vmem:[%s807 + $0x171] sm:$0xff] %v4104
    %4169 = vst [vmem:[%s807 + $0x1b1] sm:$0xff] %v4105
    %4170 = vst [vmem:[%s807 + $0x1b9] sm:$0xff] %v4106
    %4171 = vst [vmem:[%s807 + $0x1c9] sm:$0xff] %v4107
    %4172 = vst [vmem:[%s807 + $0x1d1] sm:$0xff] %v4108
    %4173 = vst [vmem:[%s807 + $0x1e1] sm:$0xff] %v4109
    %4174 = vst [vmem:[%s807 + $0x1e9] sm:$0xff] %v4110
    %4175 = vst [vmem:[%s807 + $0x1f9] sm:$0xff] %v4111
    %4176 = vst [vmem:[%s807 + $0x201] sm:$0xff] %v4112
    %4177 = vst [vmem:[%s807 + $0x211] sm:$0xff] %v4113
    %4178 = vst [vmem:[%s807 + $0x219] sm:$0xff] %v4114
    %4179 = vst [vmem:[%s807 + $0x229] sm:$0xff] %v4115
    %4180 = vst [vmem:[%s807 + $0x231] sm:$0xff] %v4116
    %4181 = vst [vmem:[%s807 + $0x241] sm:$0xff] %v4117
    %4182 = vst [vmem:[%s807 + $0x249] sm:$0xff] %v4118
    %4183 = vst [vmem:[%s807 + $0x259] sm:$0xff] %v4119
    %4184 = vst [vmem:[%s807 + $0x261] sm:$0xff] %v4120
    %4185 = vst [vmem:[%s807 + $0x271] sm:$0xff] %v4121
    %4186 = vst [vmem:[%s807 + $0x279] sm:$0xff] %v4122
    %4187 = vst [vmem:[%s807 + $0x289] sm:$0xff] %v4123
    %4188 = vst [vmem:[%s807 + $0x291] sm:$0xff] %v4124
    %4189 = vst [vmem:[%s807 + $0x2a1] sm:$0xff] %v4125
    %4190 = vst [vmem:[%s807 + $0x2a9] sm:$0xff] %v4126
    %4191 = vst [vmem:[%s807 + $0x2b9] sm:$0xff] %v4127
    %4192 = vst [vmem:[%s807 + $0x2c1] sm:$0xff] %v4128
    %4193 = vst [vmem:[%s807 + $0x2d1] sm:$0xff] %v4129
    %4194 = vst [vmem:[%s807 + $0x2d9] sm:$0xff] %v4130
    %4195 = vst [vmem:[%s807 + $0x2e9] sm:$0xff] %v4131
    %4196 = vst [vmem:[%s807 + $0x2f1] sm:$0xff] %v4132
    %4197 = vst [vmem:[%s807 + $0x301] sm:$0xff] %v4133
    %4198 = vst [vmem:[%s807 + $0x309] sm:$0xff] %v4134
    %4199 = vst [vmem:[%s807 + $0x319] sm:$0xff] %v4135
    %4200 = vst [vmem:[%s807 + $0x321] sm:$0xff] %v4136
    %v4201 = vld [vmem:[#allocation2] sm:$0xff]
    %v4202 = vld [vmem:[#allocation2 + $0x8] sm:$0xff]
    %v4203 = vld [vmem:[#allocation2 + $0x18] sm:$0xff]
    %v4204 = vld [vmem:[#allocation2 + $0x20] sm:$0xff]
    %v4205 = vld [vmem:[#allocation2 + $0x30] sm:$0xff]
    %v4206 = vld [vmem:[#allocation2 + $0x38] sm:$0xff]
    %v4207 = vld [vmem:[#allocation2 + $0x48] sm:$0xff]
    %v4208 = vld [vmem:[#allocation2 + $0x50] sm:$0xff]
    %v4209 = vld [vmem:[#allocation2 + $0x60] sm:$0xff]
    %v4210 = vld [vmem:[#allocation2 + $0x68] sm:$0xff]
    %v4211 = vld [vmem:[#allocation2 + $0x78] sm:$0xff]
    %v4212 = vld [vmem:[#allocation2 + $0x80] sm:$0xff]
    %v4213 = vld [vmem:[#allocation2 + $0x90] sm:$0xff]
    %v4214 = vld [vmem:[#allocation2 + $0x98] sm:$0xff]
    %v4215 = vld [vmem:[#allocation2 + $0xa8] sm:$0xff]
    %v4216 = vld [vmem:[#allocation2 + $0xb0] sm:$0xff]
    %v4217 = vld [vmem:[#allocation2 + $0xc0] sm:$0xff]
    %v4218 = vld [vmem:[#allocation2 + $0xc8] sm:$0xff]
    %v4219 = vld [vmem:[#allocation2 + $0xd8] sm:$0xff]
    %v4220 = vld [vmem:[#allocation2 + $0xe0] sm:$0xff]
    %v4221 = vld [vmem:[#allocation2 + $0xf0] sm:$0xff]
    %v4222 = vld [vmem:[#allocation2 + $0xf8] sm:$0xff]
    %v4223 = vld [vmem:[#allocation2 + $0x108] sm:$0xff]
    %v4224 = vld [vmem:[#allocation2 + $0x110] sm:$0xff]
    %v4225 = vld [vmem:[#allocation2 + $0x120] sm:$0xff]
    %v4226 = vld [vmem:[#allocation2 + $0x128] sm:$0xff]
    %v4227 = vld [vmem:[#allocation2 + $0x138] sm:$0xff]
    %v4228 = vld [vmem:[#allocation2 + $0x140] sm:$0xff]
    %v4229 = vld [vmem:[#allocation2 + $0x150] sm:$0xff]
    %v4230 = vld [vmem:[#allocation2 + $0x158] sm:$0xff]
    %v4231 = vld [vmem:[#allocation2 + $0x168] sm:$0xff]
    %v4232 = vld [vmem:[#allocation2 + $0x170] sm:$0xff]
    %v4233 = vld [vmem:[#allocation2 + $0x1b0] sm:$0xff]
    %v4234 = vld [vmem:[#allocation2 + $0x1b8] sm:$0xff]
    %v4235 = vld [vmem:[#allocation2 + $0x1c8] sm:$0xff]
    %v4236 = vld [vmem:[#allocation2 + $0x1d0] sm:$0xff]
    %v4237 = vld [vmem:[#allocation2 + $0x1e0] sm:$0xff]
    %v4238 = vld [vmem:[#allocation2 + $0x1e8] sm:$0xff]
    %v4239 = vld [vmem:[#allocation2 + $0x1f8] sm:$0xff]
    %v4240 = vld [vmem:[#allocation2 + $0x200] sm:$0xff]
    %v4241 = vld [vmem:[#allocation2 + $0x210] sm:$0xff]
    %v4242 = vld [vmem:[#allocation2 + $0x218] sm:$0xff]
    %v4243 = vld [vmem:[#allocation2 + $0x228] sm:$0xff]
    %v4244 = vld [vmem:[#allocation2 + $0x230] sm:$0xff]
    %v4245 = vld [vmem:[#allocation2 + $0x240] sm:$0xff]
    %v4246 = vld [vmem:[#allocation2 + $0x248] sm:$0xff]
    %v4247 = vld [vmem:[#allocation2 + $0x258] sm:$0xff]
    %v4248 = vld [vmem:[#allocation2 + $0x260] sm:$0xff]
    %v4249 = vld [vmem:[#allocation2 + $0x270] sm:$0xff]
    %v4250 = vld [vmem:[#allocation2 + $0x278] sm:$0xff]
    %v4251 = vld [vmem:[#allocation2 + $0x288] sm:$0xff]
    %v4252 = vld [vmem:[#allocation2 + $0x290] sm:$0xff]
    %v4253 = vld [vmem:[#allocation2 + $0x2a0] sm:$0xff]
    %v4254 = vld [vmem:[#allocation2 + $0x2a8] sm:$0xff]
    %v4255 = vld [vmem:[#allocation2 + $0x2b8] sm:$0xff]
    %v4256 = vld [vmem:[#allocation2 + $0x2c0] sm:$0xff]
    %v4257 = vld [vmem:[#allocation2 + $0x2d0] sm:$0xff]
    %v4258 = vld [vmem:[#allocation2 + $0x2d8] sm:$0xff]
    %v4259 = vld [vmem:[#allocation2 + $0x2e8] sm:$0xff]
    %v4260 = vld [vmem:[#allocation2 + $0x2f0] sm:$0xff]
    %v4261 = vld [vmem:[#allocation2 + $0x300] sm:$0xff]
    %v4262 = vld [vmem:[#allocation2 + $0x308] sm:$0xff]
    %v4263 = vld [vmem:[#allocation2 + $0x318] sm:$0xff]
    %v4264 = vld [vmem:[#allocation2 + $0x320] sm:$0xff]
    %v4265 = vld [vmem:[#allocation2 + $0x1] sm:$0xff]
    %v4266 = vld [vmem:[#allocation2 + $0x9] sm:$0xff]
    %v4267 = vld [vmem:[#allocation2 + $0x19] sm:$0xff]
    %v4268 = vld [vmem:[#allocation2 + $0x21] sm:$0xff]
    %v4269 = vld [vmem:[#allocation2 + $0x31] sm:$0xff]
    %v4270 = vld [vmem:[#allocation2 + $0x39] sm:$0xff]
    %v4271 = vld [vmem:[#allocation2 + $0x49] sm:$0xff]
    %v4272 = vld [vmem:[#allocation2 + $0x51] sm:$0xff]
    %v4273 = vld [vmem:[#allocation2 + $0x61] sm:$0xff]
    %v4274 = vld [vmem:[#allocation2 + $0x69] sm:$0xff]
    %v4275 = vld [vmem:[#allocation2 + $0x79] sm:$0xff]
    %v4276 = vld [vmem:[#allocation2 + $0x81] sm:$0xff]
    %v4277 = vld [vmem:[#allocation2 + $0x91] sm:$0xff]
    %v4278 = vld [vmem:[#allocation2 + $0x99] sm:$0xff]
    %v4279 = vld [vmem:[#allocation2 + $0xa9] sm:$0xff]
    %v4280 = vld [vmem:[#allocation2 + $0xb1] sm:$0xff]
    %v4281 = vld [vmem:[#allocation2 + $0xc1] sm:$0xff]
    %v4282 = vld [vmem:[#allocation2 + $0xc9] sm:$0xff]
    %v4283 = vld [vmem:[#allocation2 + $0xd9] sm:$0xff]
    %v4284 = vld [vmem:[#allocation2 + $0xe1] sm:$0xff]
    %v4285 = vld [vmem:[#allocation2 + $0xf1] sm:$0xff]
    %v4286 = vld [vmem:[#allocation2 + $0xf9] sm:$0xff]
    %v4287 = vld [vmem:[#allocation2 + $0x109] sm:$0xff]
    %v4288 = vld [vmem:[#allocation2 + $0x111] sm:$0xff]
    %v4289 = vld [vmem:[#allocation2 + $0x121] sm:$0xff]
    %v4290 = vld [vmem:[#allocation2 + $0x129] sm:$0xff]
    %v4291 = vld [vmem:[#allocation2 + $0x139] sm:$0xff]
    %v4292 = vld [vmem:[#allocation2 + $0x141] sm:$0xff]
    %v4293 = vld [vmem:[#allocation2 + $0x151] sm:$0xff]
    %v4294 = vld [vmem:[#allocation2 + $0x159] sm:$0xff]
    %v4295 = vld [vmem:[#allocation2 + $0x169] sm:$0xff]
    %v4296 = vld [vmem:[#allocation2 + $0x171] sm:$0xff]
    %v4297 = vld [vmem:[#allocation2 + $0x1b1] sm:$0xff]
    %v4298 = vld [vmem:[#allocation2 + $0x1b9] sm:$0xff]
    %v4299 = vld [vmem:[#allocation2 + $0x1c9] sm:$0xff]
    %v4300 = vld [vmem:[#allocation2 + $0x1d1] sm:$0xff]
    %v4301 = vld [vmem:[#allocation2 + $0x1e1] sm:$0xff]
    %v4302 = vld [vmem:[#allocation2 + $0x1e9] sm:$0xff]
    %v4303 = vld [vmem:[#allocation2 + $0x1f9] sm:$0xff]
    %v4304 = vld [vmem:[#allocation2 + $0x201] sm:$0xff]
    %v4305 = vld [vmem:[#allocation2 + $0x211] sm:$0xff]
    %v4306 = vld [vmem:[#allocation2 + $0x219] sm:$0xff]
    %v4307 = vld [vmem:[#allocation2 + $0x229] sm:$0xff]
    %v4308 = vld [vmem:[#allocation2 + $0x231] sm:$0xff]
    %v4309 = vld [vmem:[#allocation2 + $0x241] sm:$0xff]
    %v4310 = vld [vmem:[#allocation2 + $0x249] sm:$0xff]
    %v4311 = vld [vmem:[#allocation2 + $0x259] sm:$0xff]
    %v4312 = vld [vmem:[#allocation2 + $0x261] sm:$0xff]
    %v4313 = vld [vmem:[#allocation2 + $0x271] sm:$0xff]
    %v4314 = vld [vmem:[#allocation2 + $0x279] sm:$0xff]
    %v4315 = vld [vmem:[#allocation2 + $0x289] sm:$0xff]
    %v4316 = vld [vmem:[#allocation2 + $0x291] sm:$0xff]
    %v4317 = vld [vmem:[#allocation2 + $0x2a1] sm:$0xff]
    %v4318 = vld [vmem:[#allocation2 + $0x2a9] sm:$0xff]
    %v4319 = vld [vmem:[#allocation2 + $0x2b9] sm:$0xff]
    %v4320 = vld [vmem:[#allocation2 + $0x2c1] sm:$0xff]
    %v4321 = vld [vmem:[#allocation2 + $0x2d1] sm:$0xff]
    %v4322 = vld [vmem:[#allocation2 + $0x2d9] sm:$0xff]
    %v4323 = vld [vmem:[#allocation2 + $0x2e9] sm:$0xff]
    %v4324 = vld [vmem:[#allocation2 + $0x2f1] sm:$0xff]
    %v4325 = vld [vmem:[#allocation2 + $0x301] sm:$0xff]
    %v4326 = vld [vmem:[#allocation2 + $0x309] sm:$0xff]
    %v4327 = vld [vmem:[#allocation2 + $0x319] sm:$0xff]
    %v4328 = vld [vmem:[#allocation2 + $0x321] sm:$0xff]
    %v4329 = vld [vmem:[#allocation2 + $0x2] sm:$0xff]
    %v4330 = vld [vmem:[#allocation2 + $0xa] sm:$0xff]
    %v4331 = vld [vmem:[#allocation2 + $0x1a] sm:$0xff]
    %v4332 = vld [vmem:[#allocation2 + $0x22] sm:$0xff]
    %v4333 = vld [vmem:[#allocation2 + $0x32] sm:$0xff]
    %v4334 = vld [vmem:[#allocation2 + $0x3a] sm:$0xff]
    %v4335 = vld [vmem:[#allocation2 + $0x4a] sm:$0xff]
    %v4336 = vld [vmem:[#allocation2 + $0x52] sm:$0xff]
    %v4337 = vld [vmem:[#allocation2 + $0x62] sm:$0xff]
    %v4338 = vld [vmem:[#allocation2 + $0x6a] sm:$0xff]
    %v4339 = vld [vmem:[#allocation2 + $0x7a] sm:$0xff]
    %v4340 = vld [vmem:[#allocation2 + $0x82] sm:$0xff]
    %v4341 = vld [vmem:[#allocation2 + $0x92] sm:$0xff]
    %v4342 = vld [vmem:[#allocation2 + $0x9a] sm:$0xff]
    %v4343 = vld [vmem:[#allocation2 + $0xaa] sm:$0xff]
    %v4344 = vld [vmem:[#allocation2 + $0xb2] sm:$0xff]
    %v4345 = vld [vmem:[#allocation2 + $0xc2] sm:$0xff]
    %v4346 = vld [vmem:[#allocation2 + $0xca] sm:$0xff]
    %v4347 = vld [vmem:[#allocation2 + $0xda] sm:$0xff]
    %v4348 = vld [vmem:[#allocation2 + $0xe2] sm:$0xff]
    %v4349 = vld [vmem:[#allocation2 + $0xf2] sm:$0xff]
    %v4350 = vld [vmem:[#allocation2 + $0xfa] sm:$0xff]
    %v4351 = vld [vmem:[#allocation2 + $0x10a] sm:$0xff]
    %v4352 = vld [vmem:[#allocation2 + $0x112] sm:$0xff]
    %v4353 = vld [vmem:[#allocation2 + $0x122] sm:$0xff]
    %v4354 = vld [vmem:[#allocation2 + $0x12a] sm:$0xff]
    %v4355 = vld [vmem:[#allocation2 + $0x13a] sm:$0xff]
    %v4356 = vld [vmem:[#allocation2 + $0x142] sm:$0xff]
    %v4357 = vld [vmem:[#allocation2 + $0x152] sm:$0xff]
    %v4358 = vld [vmem:[#allocation2 + $0x15a] sm:$0xff]
    %v4359 = vld [vmem:[#allocation2 + $0x16a] sm:$0xff]
    %v4360 = vld [vmem:[#allocation2 + $0x172] sm:$0xff]
    %v4361 = vld [vmem:[#allocation2 + $0x1b2] sm:$0xff]
    %v4362 = vld [vmem:[#allocation2 + $0x1ba] sm:$0xff]
    %v4363 = vld [vmem:[#allocation2 + $0x1ca] sm:$0xff]
    %v4364 = vld [vmem:[#allocation2 + $0x1d2] sm:$0xff]
    %v4365 = vld [vmem:[#allocation2 + $0x1e2] sm:$0xff]
    %v4366 = vld [vmem:[#allocation2 + $0x1ea] sm:$0xff]
    %v4367 = vld [vmem:[#allocation2 + $0x1fa] sm:$0xff]
    %v4368 = vld [vmem:[#allocation2 + $0x202] sm:$0xff]
    %v4369 = vld [vmem:[#allocation2 + $0x212] sm:$0xff]
    %v4370 = vld [vmem:[#allocation2 + $0x21a] sm:$0xff]
    %v4371 = vld [vmem:[#allocation2 + $0x22a] sm:$0xff]
    %v4372 = vld [vmem:[#allocation2 + $0x232] sm:$0xff]
    %v4373 = vld [vmem:[#allocation2 + $0x242] sm:$0xff]
    %v4374 = vld [vmem:[#allocation2 + $0x24a] sm:$0xff]
    %v4375 = vld [vmem:[#allocation2 + $0x25a] sm:$0xff]
    %v4376 = vld [vmem:[#allocation2 + $0x262] sm:$0xff]
    %v4377 = vld [vmem:[#allocation2 + $0x272] sm:$0xff]
    %v4378 = vld [vmem:[#allocation2 + $0x27a] sm:$0xff]
    %v4379 = vld [vmem:[#allocation2 + $0x28a] sm:$0xff]
    %v4380 = vld [vmem:[#allocation2 + $0x292] sm:$0xff]
    %v4381 = vld [vmem:[#allocation2 + $0x2a2] sm:$0xff]
    %v4382 = vld [vmem:[#allocation2 + $0x2aa] sm:$0xff]
    %v4383 = vld [vmem:[#allocation2 + $0x2ba] sm:$0xff]
    %v4384 = vld [vmem:[#allocation2 + $0x2c2] sm:$0xff]
    %v4385 = vld [vmem:[#allocation2 + $0x2d2] sm:$0xff]
    %v4386 = vld [vmem:[#allocation2 + $0x2da] sm:$0xff]
    %v4387 = vld [vmem:[#allocation2 + $0x2ea] sm:$0xff]
    %v4388 = vld [vmem:[#allocation2 + $0x2f2] sm:$0xff]
    %v4389 = vld [vmem:[#allocation2 + $0x302] sm:$0xff]
    %v4390 = vld [vmem:[#allocation2 + $0x30a] sm:$0xff]
    %v4391 = vld [vmem:[#allocation2 + $0x31a] sm:$0xff]
    %v4392 = vld [vmem:[#allocation2 + $0x322] sm:$0xff]
    %v4393 = vld [vmem:[%s807] sm:$0xff]
    %v4394 = vld [vmem:[%s807 + $0x8] sm:$0xff]
    %v4395 = vld [vmem:[%s807 + $0x18] sm:$0xff]
    %v4396 = vld [vmem:[%s807 + $0x20] sm:$0xff]
    %v4397 = vld [vmem:[%s807 + $0x30] sm:$0xff]
    %v4398 = vld [vmem:[%s807 + $0x38] sm:$0xff]
    %v4399 = vld [vmem:[%s807 + $0x48] sm:$0xff]
    %v4400 = vld [vmem:[%s807 + $0x50] sm:$0xff]
    %v4401 = vld [vmem:[%s807 + $0x60] sm:$0xff]
    %v4402 = vld [vmem:[%s807 + $0x68] sm:$0xff]
    %v4403 = vld [vmem:[%s807 + $0x78] sm:$0xff]
    %v4404 = vld [vmem:[%s807 + $0x80] sm:$0xff]
    %v4405 = vld [vmem:[%s807 + $0x90] sm:$0xff]
    %v4406 = vld [vmem:[%s807 + $0x98] sm:$0xff]
    %v4407 = vld [vmem:[%s807 + $0xa8] sm:$0xff]
    %v4408 = vld [vmem:[%s807 + $0xb0] sm:$0xff]
    %v4409 = vld [vmem:[%s807 + $0xc0] sm:$0xff]
    %v4410 = vld [vmem:[%s807 + $0xc8] sm:$0xff]
    %v4411 = vld [vmem:[%s807 + $0xd8] sm:$0xff]
    %v4412 = vld [vmem:[%s807 + $0xe0] sm:$0xff]
    %v4413 = vld [vmem:[%s807 + $0xf0] sm:$0xff]
    %v4414 = vld [vmem:[%s807 + $0xf8] sm:$0xff]
    %v4415 = vld [vmem:[%s807 + $0x108] sm:$0xff]
    %v4416 = vld [vmem:[%s807 + $0x110] sm:$0xff]
    %v4417 = vld [vmem:[%s807 + $0x120] sm:$0xff]
    %v4418 = vld [vmem:[%s807 + $0x128] sm:$0xff]
    %v4419 = vld [vmem:[%s807 + $0x138] sm:$0xff]
    %v4420 = vld [vmem:[%s807 + $0x140] sm:$0xff]
    %v4421 = vld [vmem:[%s807 + $0x150] sm:$0xff]
    %v4422 = vld [vmem:[%s807 + $0x158] sm:$0xff]
    %v4423 = vld [vmem:[%s807 + $0x168] sm:$0xff]
    %v4424 = vld [vmem:[%s807 + $0x170] sm:$0xff]
    %v4425 = vld [vmem:[%s807 + $0x1b0] sm:$0xff]
    %v4426 = vld [vmem:[%s807 + $0x1b8] sm:$0xff]
    %v4427 = vld [vmem:[%s807 + $0x1c8] sm:$0xff]
    %v4428 = vld [vmem:[%s807 + $0x1d0] sm:$0xff]
    %v4429 = vld [vmem:[%s807 + $0x1e0] sm:$0xff]
    %v4430 = vld [vmem:[%s807 + $0x1e8] sm:$0xff]
    %v4431 = vld [vmem:[%s807 + $0x1f8] sm:$0xff]
    %v4432 = vld [vmem:[%s807 + $0x200] sm:$0xff]
    %v4433 = vld [vmem:[%s807 + $0x210] sm:$0xff]
    %v4434 = vld [vmem:[%s807 + $0x218] sm:$0xff]
    %v4435 = vld [vmem:[%s807 + $0x228] sm:$0xff]
    %v4436 = vld [vmem:[%s807 + $0x230] sm:$0xff]
    %v4437 = vld [vmem:[%s807 + $0x240] sm:$0xff]
    %v4438 = vld [vmem:[%s807 + $0x248] sm:$0xff]
    %v4439 = vld [vmem:[%s807 + $0x258] sm:$0xff]
    %v4440 = vld [vmem:[%s807 + $0x260] sm:$0xff]
    %v4441 = vld [vmem:[%s807 + $0x270] sm:$0xff]
    %v4442 = vld [vmem:[%s807 + $0x278] sm:$0xff]
    %v4443 = vld [vmem:[%s807 + $0x288] sm:$0xff]
    %v4444 = vld [vmem:[%s807 + $0x290] sm:$0xff]
    %v4445 = vld [vmem:[%s807 + $0x2a0] sm:$0xff]
    %v4446 = vld [vmem:[%s807 + $0x2a8] sm:$0xff]
    %v4447 = vld [vmem:[%s807 + $0x2b8] sm:$0xff]
    %v4448 = vld [vmem:[%s807 + $0x2c0] sm:$0xff]
    %v4449 = vld [vmem:[%s807 + $0x2d0] sm:$0xff]
    %v4450 = vld [vmem:[%s807 + $0x2d8] sm:$0xff]
    %v4451 = vld [vmem:[%s807 + $0x2e8] sm:$0xff]
    %v4452 = vld [vmem:[%s807 + $0x2f0] sm:$0xff]
    %v4453 = vld [vmem:[%s807 + $0x300] sm:$0xff]
    %v4454 = vld [vmem:[%s807 + $0x308] sm:$0xff]
    %v4455 = vld [vmem:[%s807 + $0x318] sm:$0xff]
    %v4456 = vld [vmem:[%s807 + $0x320] sm:$0xff]
    %v4457 = vld [vmem:[%s807 + $0x1] sm:$0xff]
    %v4458 = vld [vmem:[%s807 + $0x9] sm:$0xff]
    %v4459 = vld [vmem:[%s807 + $0x19] sm:$0xff]
    %v4460 = vld [vmem:[%s807 + $0x21] sm:$0xff]
    %v4461 = vld [vmem:[%s807 + $0x31] sm:$0xff]
    %v4462 = vld [vmem:[%s807 + $0x39] sm:$0xff]
    %v4463 = vld [vmem:[%s807 + $0x49] sm:$0xff]
    %v4464 = vld [vmem:[%s807 + $0x51] sm:$0xff]
    %v4465 = vld [vmem:[%s807 + $0x61] sm:$0xff]
    %v4466 = vld [vmem:[%s807 + $0x69] sm:$0xff]
    %v4467 = vld [vmem:[%s807 + $0x79] sm:$0xff]
    %v4468 = vld [vmem:[%s807 + $0x81] sm:$0xff]
    %v4469 = vld [vmem:[%s807 + $0x91] sm:$0xff]
    %v4470 = vld [vmem:[%s807 + $0x99] sm:$0xff]
    %v4471 = vld [vmem:[%s807 + $0xa9] sm:$0xff]
    %v4472 = vld [vmem:[%s807 + $0xb1] sm:$0xff]
    %v4473 = vld [vmem:[%s807 + $0xc1] sm:$0xff]
    %v4474 = vld [vmem:[%s807 + $0xc9] sm:$0xff]
    %v4475 = vld [vmem:[%s807 + $0xd9] sm:$0xff]
    %v4476 = vld [vmem:[%s807 + $0xe1] sm:$0xff]
    %v4477 = vld [vmem:[%s807 + $0xf1] sm:$0xff]
    %v4478 = vld [vmem:[%s807 + $0xf9] sm:$0xff]
    %v4479 = vld [vmem:[%s807 + $0x109] sm:$0xff]
    %v4480 = vld [vmem:[%s807 + $0x111] sm:$0xff]
    %v4481 = vld [vmem:[%s807 + $0x121] sm:$0xff]
    %v4482 = vld [vmem:[%s807 + $0x129] sm:$0xff]
    %v4483 = vld [vmem:[%s807 + $0x139] sm:$0xff]
    %v4484 = vld [vmem:[%s807 + $0x141] sm:$0xff]
    %v4485 = vld [vmem:[%s807 + $0x151] sm:$0xff]
    %v4486 = vld [vmem:[%s807 + $0x159] sm:$0xff]
    %v4487 = vld [vmem:[%s807 + $0x169] sm:$0xff]
    %v4488 = vld [vmem:[%s807 + $0x171] sm:$0xff]
    %v4489 = vld [vmem:[%s807 + $0x1b1] sm:$0xff]
    %v4490 = vld [vmem:[%s807 + $0x1b9] sm:$0xff]
    %v4491 = vld [vmem:[%s807 + $0x1c9] sm:$0xff]
    %v4492 = vld [vmem:[%s807 + $0x1d1] sm:$0xff]
    %v4493 = vld [vmem:[%s807 + $0x1e1] sm:$0xff]
    %v4494 = vld [vmem:[%s807 + $0x1e9] sm:$0xff]
    %v4495 = vld [vmem:[%s807 + $0x1f9] sm:$0xff]
    %v4496 = vld [vmem:[%s807 + $0x201] sm:$0xff]
    %v4497 = vld [vmem:[%s807 + $0x211] sm:$0xff]
    %v4498 = vld [vmem:[%s807 + $0x219] sm:$0xff]
    %v4499 = vld [vmem:[%s807 + $0x229] sm:$0xff]
    %v4500 = vld [vmem:[%s807 + $0x231] sm:$0xff]
    %v4501 = vld [vmem:[%s807 + $0x241] sm:$0xff]
    %v4502 = vld [vmem:[%s807 + $0x249] sm:$0xff]
    %v4503 = vld [vmem:[%s807 + $0x259] sm:$0xff]
    %v4504 = vld [vmem:[%s807 + $0x261] sm:$0xff]
    %v4505 = vld [vmem:[%s807 + $0x271] sm:$0xff]
    %v4506 = vld [vmem:[%s807 + $0x279] sm:$0xff]
    %v4507 = vld [vmem:[%s807 + $0x289] sm:$0xff]
    %v4508 = vld [vmem:[%s807 + $0x291] sm:$0xff]
    %v4509 = vld [vmem:[%s807 + $0x2a1] sm:$0xff]
    %v4510 = vld [vmem:[%s807 + $0x2a9] sm:$0xff]
    %v4511 = vld [vmem:[%s807 + $0x2b9] sm:$0xff]
    %v4512 = vld [vmem:[%s807 + $0x2c1] sm:$0xff]
    %v4513 = vld [vmem:[%s807 + $0x2d1] sm:$0xff]
    %v4514 = vld [vmem:[%s807 + $0x2d9] sm:$0xff]
    %v4515 = vld [vmem:[%s807 + $0x2e9] sm:$0xff]
    %v4516 = vld [vmem:[%s807 + $0x2f1] sm:$0xff]
    %v4517 = vld [vmem:[%s807 + $0x301] sm:$0xff]
    %v4518 = vld [vmem:[%s807 + $0x309] sm:$0xff]
    %v4519 = vld [vmem:[%s807 + $0x319] sm:$0xff]
    %v4520 = vld [vmem:[%s807 + $0x321] sm:$0xff]
    %v4521 = vld [vmem:[%s807 + $0x2] sm:$0xff]
    %v4522 = vld [vmem:[%s807 + $0xa] sm:$0xff]
    %v4523 = vld [vmem:[%s807 + $0x1a] sm:$0xff]
    %v4524 = vld [vmem:[%s807 + $0x22] sm:$0xff]
    %v4525 = vld [vmem:[%s807 + $0x32] sm:$0xff]
    %v4526 = vld [vmem:[%s807 + $0x3a] sm:$0xff]
    %v4527 = vld [vmem:[%s807 + $0x4a] sm:$0xff]
    %v4528 = vld [vmem:[%s807 + $0x52] sm:$0xff]
    %v4529 = vld [vmem:[%s807 + $0x62] sm:$0xff]
    %v4530 = vld [vmem:[%s807 + $0x6a] sm:$0xff]
    %v4531 = vld [vmem:[%s807 + $0x7a] sm:$0xff]
    %v4532 = vld [vmem:[%s807 + $0x82] sm:$0xff]
    %v4533 = vld [vmem:[%s807 + $0x92] sm:$0xff]
    %v4534 = vld [vmem:[%s807 + $0x9a] sm:$0xff]
    %v4535 = vld [vmem:[%s807 + $0xaa] sm:$0xff]
    %v4536 = vld [vmem:[%s807 + $0xb2] sm:$0xff]
    %v4537 = vld [vmem:[%s807 + $0xc2] sm:$0xff]
    %v4538 = vld [vmem:[%s807 + $0xca] sm:$0xff]
    %v4539 = vld [vmem:[%s807 + $0xda] sm:$0xff]
    %v4540 = vld [vmem:[%s807 + $0xe2] sm:$0xff]
    %v4541 = vld [vmem:[%s807 + $0xf2] sm:$0xff]
    %v4542 = vld [vmem:[%s807 + $0xfa] sm:$0xff]
    %v4543 = vld [vmem:[%s807 + $0x10a] sm:$0xff]
    %v4544 = vld [vmem:[%s807 + $0x112] sm:$0xff]
    %v4545 = vld [vmem:[%s807 + $0x122] sm:$0xff]
    %v4546 = vld [vmem:[%s807 + $0x12a] sm:$0xff]
    %v4547 = vld [vmem:[%s807 + $0x13a] sm:$0xff]
    %v4548 = vld [vmem:[%s807 + $0x142] sm:$0xff]
    %v4549 = vld [vmem:[%s807 + $0x152] sm:$0xff]
    %v4550 = vld [vmem:[%s807 + $0x15a] sm:$0xff]
    %v4551 = vld [vmem:[%s807 + $0x16a] sm:$0xff]
    %v4552 = vld [vmem:[%s807 + $0x172] sm:$0xff]
    %v4553 = vld [vmem:[%s807 + $0x1b2] sm:$0xff]
    %v4554 = vld [vmem:[%s807 + $0x1ba] sm:$0xff]
    %v4555 = vld [vmem:[%s807 + $0x1ca] sm:$0xff]
    %v4556 = vld [vmem:[%s807 + $0x1d2] sm:$0xff]
    %v4557 = vld [vmem:[%s807 + $0x1e2] sm:$0xff]
    %v4558 = vld [vmem:[%s807 + $0x1ea] sm:$0xff]
    %v4559 = vld [vmem:[%s807 + $0x1fa] sm:$0xff]
    %v4560 = vld [vmem:[%s807 + $0x202] sm:$0xff]
    %v4561 = vld [vmem:[%s807 + $0x212] sm:$0xff]
    %v4562 = vld [vmem:[%s807 + $0x21a] sm:$0xff]
    %v4563 = vld [vmem:[%s807 + $0x22a] sm:$0xff]
    %v4564 = vld [vmem:[%s807 + $0x232] sm:$0xff]
    %v4565 = vld [vmem:[%s807 + $0x242] sm:$0xff]
    %v4566 = vld [vmem:[%s807 + $0x24a] sm:$0xff]
    %v4567 = vld [vmem:[%s807 + $0x25a] sm:$0xff]
    %v4568 = vld [vmem:[%s807 + $0x262] sm:$0xff]
    %v4569 = vld [vmem:[%s807 + $0x272] sm:$0xff]
    %v4570 = vld [vmem:[%s807 + $0x27a] sm:$0xff]
    %v4571 = vld [vmem:[%s807 + $0x28a] sm:$0xff]
    %v4572 = vld [vmem:[%s807 + $0x292] sm:$0xff]
    %v4573 = vld [vmem:[%s807 + $0x2a2] sm:$0xff]
    %v4574 = vld [vmem:[%s807 + $0x2aa] sm:$0xff]
    %v4575 = vld [vmem:[%s807 + $0x2ba] sm:$0xff]
    %v4576 = vld [vmem:[%s807 + $0x2c2] sm:$0xff]
    %v4577 = vld [vmem:[%s807 + $0x2d2] sm:$0xff]
    %v4578 = vld [vmem:[%s807 + $0x2da] sm:$0xff]
    %v4579 = vld [vmem:[%s807 + $0x2ea] sm:$0xff]
    %v4580 = vld [vmem:[%s807 + $0x2f2] sm:$0xff]
    %v4581 = vld [vmem:[%s807 + $0x302] sm:$0xff]
    %v4582 = vld [vmem:[%s807 + $0x30a] sm:$0xff]
    %v4583 = vld [vmem:[%s807 + $0x31a] sm:$0xff]
    %v4584 = vld [vmem:[%s807 + $0x322] sm:$0xff]
    %v4585 = vld [vmem:[%s1256] sm:$0xff]
    %v4586 = vld [vmem:[%s1256 + $0x8] sm:$0xff]
    %v4587 = vld [vmem:[%s1256 + $0x18] sm:$0xff]
    %v4588 = vld [vmem:[%s1256 + $0x20] sm:$0xff]
    %v4589 = vld [vmem:[%s1256 + $0x30] sm:$0xff]
    %v4590 = vld [vmem:[%s1256 + $0x38] sm:$0xff]
    %v4591 = vld [vmem:[%s1256 + $0x48] sm:$0xff]
    %v4592 = vld [vmem:[%s1256 + $0x50] sm:$0xff]
    %v4593 = vld [vmem:[%s1256 + $0x60] sm:$0xff]
    %v4594 = vld [vmem:[%s1256 + $0x68] sm:$0xff]
    %v4595 = vld [vmem:[%s1256 + $0x78] sm:$0xff]
    %v4596 = vld [vmem:[%s1256 + $0x80] sm:$0xff]
    %v4597 = vld [vmem:[%s1256 + $0x90] sm:$0xff]
    %v4598 = vld [vmem:[%s1256 + $0x98] sm:$0xff]
    %v4599 = vld [vmem:[%s1256 + $0xa8] sm:$0xff]
    %v4600 = vld [vmem:[%s1256 + $0xb0] sm:$0xff]
    %v4601 = vld [vmem:[%s1256 + $0xc0] sm:$0xff]
    %v4602 = vld [vmem:[%s1256 + $0xc8] sm:$0xff]
    %v4603 = vld [vmem:[%s1256 + $0xd8] sm:$0xff]
    %v4604 = vld [vmem:[%s1256 + $0xe0] sm:$0xff]
    %v4605 = vld [vmem:[%s1256 + $0xf0] sm:$0xff]
    %v4606 = vld [vmem:[%s1256 + $0xf8] sm:$0xff]
    %v4607 = vld [vmem:[%s1256 + $0x108] sm:$0xff]
    %v4608 = vld [vmem:[%s1256 + $0x110] sm:$0xff]
    %v4609 = vld [vmem:[%s1256 + $0x120] sm:$0xff]
    %v4610 = vld [vmem:[%s1256 + $0x128] sm:$0xff]
    %v4611 = vld [vmem:[%s1256 + $0x138] sm:$0xff]
    %v4612 = vld [vmem:[%s1256 + $0x140] sm:$0xff]
    %v4613 = vld [vmem:[%s1256 + $0x150] sm:$0xff]
    %v4614 = vld [vmem:[%s1256 + $0x158] sm:$0xff]
    %v4615 = vld [vmem:[%s1256 + $0x168] sm:$0xff]
    %v4616 = vld [vmem:[%s1256 + $0x170] sm:$0xff]
    %v4617 = vld [vmem:[%s1256 + $0x1b0] sm:$0xff]
    %v4618 = vld [vmem:[%s1256 + $0x1b8] sm:$0xff]
    %v4619 = vld [vmem:[%s1256 + $0x1c8] sm:$0xff]
    %v4620 = vld [vmem:[%s1256 + $0x1d0] sm:$0xff]
    %v4621 = vld [vmem:[%s1256 + $0x1e0] sm:$0xff]
    %v4622 = vld [vmem:[%s1256 + $0x1e8] sm:$0xff]
    %v4623 = vld [vmem:[%s1256 + $0x1f8] sm:$0xff]
    %v4624 = vld [vmem:[%s1256 + $0x200] sm:$0xff]
    %v4625 = vld [vmem:[%s1256 + $0x210] sm:$0xff]
    %v4626 = vld [vmem:[%s1256 + $0x218] sm:$0xff]
    %v4627 = vld [vmem:[%s1256 + $0x228] sm:$0xff]
    %v4628 = vld [vmem:[%s1256 + $0x230] sm:$0xff]
    %v4629 = vld [vmem:[%s1256 + $0x240] sm:$0xff]
    %v4630 = vld [vmem:[%s1256 + $0x248] sm:$0xff]
    %v4631 = vld [vmem:[%s1256 + $0x258] sm:$0xff]
    %v4632 = vld [vmem:[%s1256 + $0x260] sm:$0xff]
    %v4633 = vld [vmem:[%s1256 + $0x270] sm:$0xff]
    %v4634 = vld [vmem:[%s1256 + $0x278] sm:$0xff]
    %v4635 = vld [vmem:[%s1256 + $0x288] sm:$0xff]
    %v4636 = vld [vmem:[%s1256 + $0x290] sm:$0xff]
    %v4637 = vld [vmem:[%s1256 + $0x2a0] sm:$0xff]
    %v4638 = vld [vmem:[%s1256 + $0x2a8] sm:$0xff]
    %v4639 = vld [vmem:[%s1256 + $0x2b8] sm:$0xff]
    %v4640 = vld [vmem:[%s1256 + $0x2c0] sm:$0xff]
    %v4641 = vld [vmem:[%s1256 + $0x2d0] sm:$0xff]
    %v4642 = vld [vmem:[%s1256 + $0x2d8] sm:$0xff]
    %v4643 = vld [vmem:[%s1256 + $0x2e8] sm:$0xff]
    %v4644 = vld [vmem:[%s1256 + $0x2f0] sm:$0xff]
    %v4645 = vld [vmem:[%s1256 + $0x300] sm:$0xff]
    %v4646 = vld [vmem:[%s1256 + $0x308] sm:$0xff]
    %v4647 = vld [vmem:[%s1256 + $0x318] sm:$0xff]
    %v4648 = vld [vmem:[%s1256 + $0x320] sm:$0xff]
    %v4649 = vld [vmem:[%s1256 + $0x1] sm:$0xff]
    %v4650 = vld [vmem:[%s1256 + $0x9] sm:$0xff]
    %v4651 = vld [vmem:[%s1256 + $0x19] sm:$0xff]
    %v4652 = vld [vmem:[%s1256 + $0x21] sm:$0xff]
    %v4653 = vld [vmem:[%s1256 + $0x31] sm:$0xff]
    %v4654 = vld [vmem:[%s1256 + $0x39] sm:$0xff]
    %v4655 = vld [vmem:[%s1256 + $0x49] sm:$0xff]
    %v4656 = vld [vmem:[%s1256 + $0x51] sm:$0xff]
    %v4657 = vld [vmem:[%s1256 + $0x61] sm:$0xff]
    %v4658 = vld [vmem:[%s1256 + $0x69] sm:$0xff]
    %v4659 = vld [vmem:[%s1256 + $0x79] sm:$0xff]
    %v4660 = vld [vmem:[%s1256 + $0x81] sm:$0xff]
    %v4661 = vld [vmem:[%s1256 + $0x91] sm:$0xff]
    %v4662 = vld [vmem:[%s1256 + $0x99] sm:$0xff]
    %v4663 = vld [vmem:[%s1256 + $0xa9] sm:$0xff]
    %v4664 = vld [vmem:[%s1256 + $0xb1] sm:$0xff]
    %v4665 = vld [vmem:[%s1256 + $0xc1] sm:$0xff]
    %v4666 = vld [vmem:[%s1256 + $0xc9] sm:$0xff]
    %v4667 = vld [vmem:[%s1256 + $0xd9] sm:$0xff]
    %v4668 = vld [vmem:[%s1256 + $0xe1] sm:$0xff]
    %v4669 = vld [vmem:[%s1256 + $0xf1] sm:$0xff]
    %v4670 = vld [vmem:[%s1256 + $0xf9] sm:$0xff]
    %v4671 = vld [vmem:[%s1256 + $0x109] sm:$0xff]
    %v4672 = vld [vmem:[%s1256 + $0x111] sm:$0xff]
    %v4673 = vld [vmem:[%s1256 + $0x121] sm:$0xff]
    %v4674 = vld [vmem:[%s1256 + $0x129] sm:$0xff]
    %v4675 = vld [vmem:[%s1256 + $0x139] sm:$0xff]
    %v4676 = vld [vmem:[%s1256 + $0x141] sm:$0xff]
    %v4677 = vld [vmem:[%s1256 + $0x151] sm:$0xff]
    %v4678 = vld [vmem:[%s1256 + $0x159] sm:$0xff]
    %v4679 = vld [vmem:[%s1256 + $0x169] sm:$0xff]
    %v4680 = vld [vmem:[%s1256 + $0x171] sm:$0xff]
    %v4681 = vld [vmem:[%s1256 + $0x1b1] sm:$0xff]
    %v4682 = vld [vmem:[%s1256 + $0x1b9] sm:$0xff]
    %v4683 = vld [vmem:[%s1256 + $0x1c9] sm:$0xff]
    %v4684 = vld [vmem:[%s1256 + $0x1d1] sm:$0xff]
    %v4685 = vld [vmem:[%s1256 + $0x1e1] sm:$0xff]
    %v4686 = vld [vmem:[%s1256 + $0x1e9] sm:$0xff]
    %v4687 = vld [vmem:[%s1256 + $0x1f9] sm:$0xff]
    %v4688 = vld [vmem:[%s1256 + $0x201] sm:$0xff]
    %v4689 = vld [vmem:[%s1256 + $0x211] sm:$0xff]
    %v4690 = vld [vmem:[%s1256 + $0x219] sm:$0xff]
    %v4691 = vld [vmem:[%s1256 + $0x229] sm:$0xff]
    %v4692 = vld [vmem:[%s1256 + $0x231] sm:$0xff]
    %v4693 = vld [vmem:[%s1256 + $0x241] sm:$0xff]
    %v4694 = vld [vmem:[%s1256 + $0x249] sm:$0xff]
    %v4695 = vld [vmem:[%s1256 + $0x259] sm:$0xff]
    %v4696 = vld [vmem:[%s1256 + $0x261] sm:$0xff]
    %v4697 = vld [vmem:[%s1256 + $0x271] sm:$0xff]
    %v4698 = vld [vmem:[%s1256 + $0x279] sm:$0xff]
    %v4699 = vld [vmem:[%s1256 + $0x289] sm:$0xff]
    %v4700 = vld [vmem:[%s1256 + $0x291] sm:$0xff]
    %v4701 = vld [vmem:[%s1256 + $0x2a1] sm:$0xff]
    %v4702 = vld [vmem:[%s1256 + $0x2a9] sm:$0xff]
    %v4703 = vld [vmem:[%s1256 + $0x2b9] sm:$0xff]
    %v4704 = vld [vmem:[%s1256 + $0x2c1] sm:$0xff]
    %v4705 = vld [vmem:[%s1256 + $0x2d1] sm:$0xff]
    %v4706 = vld [vmem:[%s1256 + $0x2d9] sm:$0xff]
    %v4707 = vld [vmem:[%s1256 + $0x2e9] sm:$0xff]
    %v4708 = vld [vmem:[%s1256 + $0x2f1] sm:$0xff]
    %v4709 = vld [vmem:[%s1256 + $0x301] sm:$0xff]
    %v4710 = vld [vmem:[%s1256 + $0x309] sm:$0xff]
    %v4711 = vld [vmem:[%s1256 + $0x319] sm:$0xff]
    %v4712 = vld [vmem:[%s1256 + $0x321] sm:$0xff]
    %v4713 = vld [vmem:[%s1256 + $0x2] sm:$0xff]
    %v4714 = vld [vmem:[%s1256 + $0xa] sm:$0xff]
    %v4715 = vld [vmem:[%s1256 + $0x1a] sm:$0xff]
    %v4716 = vld [vmem:[%s1256 + $0x22] sm:$0xff]
    %v4717 = vld [vmem:[%s1256 + $0x32] sm:$0xff]
    %v4718 = vld [vmem:[%s1256 + $0x3a] sm:$0xff]
    %v4719 = vld [vmem:[%s1256 + $0x4a] sm:$0xff]
    %v4720 = vld [vmem:[%s1256 + $0x52] sm:$0xff]
    %v4721 = vld [vmem:[%s1256 + $0x62] sm:$0xff]
    %v4722 = vld [vmem:[%s1256 + $0x6a] sm:$0xff]
    %v4723 = vld [vmem:[%s1256 + $0x7a] sm:$0xff]
    %v4724 = vld [vmem:[%s1256 + $0x82] sm:$0xff]
    %v4725 = vld [vmem:[%s1256 + $0x92] sm:$0xff]
    %v4726 = vld [vmem:[%s1256 + $0x9a] sm:$0xff]
    %v4727 = vld [vmem:[%s1256 + $0xaa] sm:$0xff]
    %v4728 = vld [vmem:[%s1256 + $0xb2] sm:$0xff]
    %v4729 = vld [vmem:[%s1256 + $0xc2] sm:$0xff]
    %v4730 = vld [vmem:[%s1256 + $0xca] sm:$0xff]
    %v4731 = vld [vmem:[%s1256 + $0xda] sm:$0xff]
    %v4732 = vld [vmem:[%s1256 + $0xe2] sm:$0xff]
    %v4733 = vld [vmem:[%s1256 + $0xf2] sm:$0xff]
    %v4734 = vld [vmem:[%s1256 + $0xfa] sm:$0xff]
    %v4735 = vld [vmem:[%s1256 + $0x10a] sm:$0xff]
    %v4736 = vld [vmem:[%s1256 + $0x112] sm:$0xff]
    %v4737 = vld [vmem:[%s1256 + $0x122] sm:$0xff]
    %v4738 = vld [vmem:[%s1256 + $0x12a] sm:$0xff]
    %v4739 = vld [vmem:[%s1256 + $0x13a] sm:$0xff]
    %v4740 = vld [vmem:[%s1256 + $0x142] sm:$0xff]
    %v4741 = vld [vmem:[%s1256 + $0x152] sm:$0xff]
    %v4742 = vld [vmem:[%s1256 + $0x15a] sm:$0xff]
    %v4743 = vld [vmem:[%s1256 + $0x16a] sm:$0xff]
    %v4744 = vld [vmem:[%s1256 + $0x172] sm:$0xff]
    %v4745 = vld [vmem:[%s1256 + $0x1b2] sm:$0xff]
    %v4746 = vld [vmem:[%s1256 + $0x1ba] sm:$0xff]
    %v4747 = vld [vmem:[%s1256 + $0x1ca] sm:$0xff]
    %v4748 = vld [vmem:[%s1256 + $0x1d2] sm:$0xff]
    %v4749 = vld [vmem:[%s1256 + $0x1e2] sm:$0xff]
    %v4750 = vld [vmem:[%s1256 + $0x1ea] sm:$0xff]
    %v4751 = vld [vmem:[%s1256 + $0x1fa] sm:$0xff]
    %v4752 = vld [vmem:[%s1256 + $0x202] sm:$0xff]
    %v4753 = vld [vmem:[%s1256 + $0x212] sm:$0xff]
    %v4754 = vld [vmem:[%s1256 + $0x21a] sm:$0xff]
    %v4755 = vld [vmem:[%s1256 + $0x22a] sm:$0xff]
    %v4756 = vld [vmem:[%s1256 + $0x232] sm:$0xff]
    %v4757 = vld [vmem:[%s1256 + $0x242] sm:$0xff]
    %v4758 = vld [vmem:[%s1256 + $0x24a] sm:$0xff]
    %v4759 = vld [vmem:[%s1256 + $0x25a] sm:$0xff]
    %v4760 = vld [vmem:[%s1256 + $0x262] sm:$0xff]
    %v4761 = vld [vmem:[%s1256 + $0x272] sm:$0xff]
    %v4762 = vld [vmem:[%s1256 + $0x27a] sm:$0xff]
    %v4763 = vld [vmem:[%s1256 + $0x28a] sm:$0xff]
    %v4764 = vld [vmem:[%s1256 + $0x292] sm:$0xff]
    %v4765 = vld [vmem:[%s1256 + $0x2a2] sm:$0xff]
    %v4766 = vld [vmem:[%s1256 + $0x2aa] sm:$0xff]
    %v4767 = vld [vmem:[%s1256 + $0x2ba] sm:$0xff]
    %v4768 = vld [vmem:[%s1256 + $0x2c2] sm:$0xff]
    %v4769 = vld [vmem:[%s1256 + $0x2d2] sm:$0xff]
    %v4770 = vld [vmem:[%s1256 + $0x2da] sm:$0xff]
    %v4771 = vld [vmem:[%s1256 + $0x2ea] sm:$0xff]
    %v4772 = vld [vmem:[%s1256 + $0x2f2] sm:$0xff]
    %v4773 = vld [vmem:[%s1256 + $0x302] sm:$0xff]
    %v4774 = vld [vmem:[%s1256 + $0x30a] sm:$0xff]
    %v4775 = vld [vmem:[%s1256 + $0x31a] sm:$0xff]
    %v4776 = vld [vmem:[%s1256 + $0x322] sm:$0xff]
    %s4777 = scalar_lea.vmem [#allocation9], 1152
    %v4778 = vld [vmem:[%s4777] sm:$0xff]
    %v4779 = vld [vmem:[%s4777 + $0x8] sm:$0xff]
    %v4780 = vld [vmem:[%s4777 + $0x10] sm:$0xff]
    %v4781 = vld [vmem:[%s4777 + $0x18] sm:$0xff]
    %v4782 = vld [vmem:[%s4777 + $0x20] sm:$0xff]
    %v4783 = vld [vmem:[%s4777 + $0x28] sm:$0xff]
    %v4784 = vld [vmem:[%s4777 + $0x30] sm:$0xff]
    %v4785 = vld [vmem:[%s4777 + $0x38] sm:$0xff]
    %v4786 = vld [vmem:[%s4777 + $0x40] sm:$0xff]
    %v4787 = vld [vmem:[%s4777 + $0x48] sm:$0xff]
    %v4788 = vld [vmem:[%s4777 + $0x50] sm:$0xff]
    %v4789 = vld [vmem:[%s4777 + $0x58] sm:$0xff]
    %v4790 = vld [vmem:[%s4777 + $0x60] sm:$0xff]
    %v4791 = vld [vmem:[%s4777 + $0x68] sm:$0xff]
    %v4792 = vld [vmem:[%s4777 + $0x70] sm:$0xff]
    %v4793 = vld [vmem:[%s4777 + $0x78] sm:$0xff]
    %v4794 = vld [vmem:[%s4777 + $0x80] sm:$0xff]
    %v4795 = vld [vmem:[%s4777 + $0x88] sm:$0xff]
    %v4796 = vld [vmem:[%s4777 + $0x90] sm:$0xff]
    %v4797 = vld [vmem:[%s4777 + $0x98] sm:$0xff]
    %v4798 = vld [vmem:[%s4777 + $0xa0] sm:$0xff]
    %v4799 = vld [vmem:[%s4777 + $0xa8] sm:$0xff]
    %v4800 = vld [vmem:[%s4777 + $0xb0] sm:$0xff]
    %v4801 = vld [vmem:[%s4777 + $0xb8] sm:$0xff]
    %v4802 = vld [vmem:[%s4777 + $0xc0] sm:$0xff]
    %v4803 = vld [vmem:[%s4777 + $0xc8] sm:$0xff]
    %v4804 = vld [vmem:[%s4777 + $0xd0] sm:$0xff]
    %v4805 = vld [vmem:[%s4777 + $0xd8] sm:$0xff]
    %v4806 = vld [vmem:[%s4777 + $0xe0] sm:$0xff]
    %v4807 = vld [vmem:[%s4777 + $0xe8] sm:$0xff]
    %v4808 = vld [vmem:[%s4777 + $0xf0] sm:$0xff]
    %v4809 = vld [vmem:[%s4777 + $0xf8] sm:$0xff]
    %v4810 = vld [vmem:[%s4777 + $0x100] sm:$0xff]
    %v4811 = vld [vmem:[%s4777 + $0x108] sm:$0xff]
    %v4812 = vld [vmem:[%s4777 + $0x110] sm:$0xff]
    %v4813 = vld [vmem:[%s4777 + $0x118] sm:$0xff]
    %v4814 = vld [vmem:[%s4777 + $0x120] sm:$0xff]
    %v4815 = vld [vmem:[%s4777 + $0x128] sm:$0xff]
    %v4816 = vld [vmem:[%s4777 + $0x130] sm:$0xff]
    %v4817 = vld [vmem:[%s4777 + $0x138] sm:$0xff]
    %v4818 = vld [vmem:[%s4777 + $0x140] sm:$0xff]
    %v4819 = vld [vmem:[%s4777 + $0x148] sm:$0xff]
    %v4820 = vld [vmem:[%s4777 + $0x150] sm:$0xff]
    %v4821 = vld [vmem:[%s4777 + $0x158] sm:$0xff]
    %v4822 = vld [vmem:[%s4777 + $0x160] sm:$0xff]
    %v4823 = vld [vmem:[%s4777 + $0x168] sm:$0xff]
    %v4824 = vld [vmem:[%s4777 + $0x170] sm:$0xff]
    %v4825 = vld [vmem:[%s4777 + $0x178] sm:$0xff]
    %v4826 = vld [vmem:[%s4777 + $0x180] sm:$0xff]
    %v4827 = vld [vmem:[%s4777 + $0x188] sm:$0xff]
    %v4828 = vld [vmem:[%s4777 + $0x190] sm:$0xff]
    %v4829 = vld [vmem:[%s4777 + $0x198] sm:$0xff]
    %v4830 = vld [vmem:[%s4777 + $0x1a0] sm:$0xff]
    %v4831 = vld [vmem:[%s4777 + $0x1a8] sm:$0xff]
    %v4832 = vld [vmem:[%s4777 + $0x1b0] sm:$0xff]
    %v4833 = vld [vmem:[%s4777 + $0x1b8] sm:$0xff]
    %v4834 = vld [vmem:[%s4777 + $0x1c0] sm:$0xff]
    %v4835 = vld [vmem:[%s4777 + $0x1c8] sm:$0xff]
    %v4836 = vld [vmem:[%s4777 + $0x1d0] sm:$0xff]
    %v4837 = vld [vmem:[%s4777 + $0x1d8] sm:$0xff]
    %v4838 = vld [vmem:[%s4777 + $0x1e0] sm:$0xff]
    %v4839 = vld [vmem:[%s4777 + $0x1e8] sm:$0xff]
    %v4840 = vld [vmem:[%s4777 + $0x1f0] sm:$0xff]
    %v4841 = vld [vmem:[%s4777 + $0x1f8] sm:$0xff]
    %v4842 = vld [vmem:[%s4777 + $0x200] sm:$0xff]
    %v4843 = vld [vmem:[%s4777 + $0x208] sm:$0xff]
    %v4844 = vld [vmem:[%s4777 + $0x210] sm:$0xff]
    %v4845 = vld [vmem:[%s4777 + $0x218] sm:$0xff]
    %v4846 = vld [vmem:[%s4777 + $0x220] sm:$0xff]
    %v4847 = vld [vmem:[%s4777 + $0x228] sm:$0xff]
    %v4848 = vld [vmem:[%s4777 + $0x230] sm:$0xff]
    %v4849 = vld [vmem:[%s4777 + $0x238] sm:$0xff]
    %v4850 = vld [vmem:[%s4777 + $0x240] sm:$0xff]
    %v4851 = vld [vmem:[%s4777 + $0x248] sm:$0xff]
    %v4852 = vld [vmem:[%s4777 + $0x250] sm:$0xff]
    %v4853 = vld [vmem:[%s4777 + $0x258] sm:$0xff]
    %v4854 = vld [vmem:[%s4777 + $0x260] sm:$0xff]
    %v4855 = vld [vmem:[%s4777 + $0x268] sm:$0xff]
    %v4856 = vld [vmem:[%s4777 + $0x270] sm:$0xff]
    %v4857 = vld [vmem:[%s4777 + $0x278] sm:$0xff]
    %v4858 = vld [vmem:[%s4777 + $0x280] sm:$0xff]
    %v4859 = vld [vmem:[%s4777 + $0x288] sm:$0xff]
    %v4860 = vld [vmem:[%s4777 + $0x290] sm:$0xff]
    %v4861 = vld [vmem:[%s4777 + $0x298] sm:$0xff]
    %v4862 = vld [vmem:[%s4777 + $0x2a0] sm:$0xff]
    %v4863 = vld [vmem:[%s4777 + $0x2a8] sm:$0xff]
    %v4864 = vld [vmem:[%s4777 + $0x2b0] sm:$0xff]
    %v4865 = vld [vmem:[%s4777 + $0x2b8] sm:$0xff]
    %v4866 = vld [vmem:[%s4777 + $0x2c0] sm:$0xff]
    %v4867 = vld [vmem:[%s4777 + $0x2c8] sm:$0xff]
    %v4868 = vld [vmem:[%s4777 + $0x2d0] sm:$0xff]
    %v4869 = vld [vmem:[%s4777 + $0x2d8] sm:$0xff]
    %v4870 = vld [vmem:[%s4777 + $0x2e0] sm:$0xff]
    %v4871 = vld [vmem:[%s4777 + $0x2e8] sm:$0xff]
    %v4872 = vld [vmem:[%s4777 + $0x2f0] sm:$0xff]
    %v4873 = vld [vmem:[%s4777 + $0x2f8] sm:$0xff]
    %v4874 = vld [vmem:[%s4777 + $0x300] sm:$0xff]
    %v4875 = vld [vmem:[%s4777 + $0x308] sm:$0xff]
    %v4876 = vld [vmem:[%s4777 + $0x310] sm:$0xff]
    %v4877 = vld [vmem:[%s4777 + $0x318] sm:$0xff]
    %v4878 = vld [vmem:[%s4777 + $0x320] sm:$0xff]
    %v4879 = vld [vmem:[%s4777 + $0x328] sm:$0xff]
    %v4880 = vld [vmem:[%s4777 + $0x330] sm:$0xff]
    %v4881 = vld [vmem:[%s4777 + $0x338] sm:$0xff]
    %v4882 = vld [vmem:[%s4777 + $0x340] sm:$0xff]
    %v4883 = vld [vmem:[%s4777 + $0x348] sm:$0xff]
    %v4884 = vld [vmem:[%s4777 + $0x350] sm:$0xff]
    %v4885 = vld [vmem:[%s4777 + $0x358] sm:$0xff]
    %v4886 = vld [vmem:[%s4777 + $0x360] sm:$0xff]
    %v4887 = vld [vmem:[%s4777 + $0x368] sm:$0xff]
    %v4888 = vld [vmem:[%s4777 + $0x370] sm:$0xff]
    %v4889 = vld [vmem:[%s4777 + $0x378] sm:$0xff]
    %v4890 = vld [vmem:[%s4777 + $0x380] sm:$0xff]
    %v4891 = vld [vmem:[%s4777 + $0x388] sm:$0xff]
    %v4892 = vld [vmem:[%s4777 + $0x390] sm:$0xff]
    %v4893 = vld [vmem:[%s4777 + $0x398] sm:$0xff]
    %v4894 = vld [vmem:[%s4777 + $0x3a0] sm:$0xff]
    %v4895 = vld [vmem:[%s4777 + $0x3a8] sm:$0xff]
    %v4896 = vld [vmem:[%s4777 + $0x3b0] sm:$0xff]
    %v4897 = vld [vmem:[%s4777 + $0x3b8] sm:$0xff]
    %v4898 = vld [vmem:[%s4777 + $0x3c0] sm:$0xff]
    %v4899 = vld [vmem:[%s4777 + $0x3c8] sm:$0xff]
    %v4900 = vld [vmem:[%s4777 + $0x3d0] sm:$0xff]
    %v4901 = vld [vmem:[%s4777 + $0x3d8] sm:$0xff]
    %v4902 = vld [vmem:[%s4777 + $0x3e0] sm:$0xff]
    %v4903 = vld [vmem:[%s4777 + $0x3e8] sm:$0xff]
    %v4904 = vld [vmem:[%s4777 + $0x3f0] sm:$0xff]
    %v4905 = vld [vmem:[%s4777 + $0x3f8] sm:$0xff]
    %v4906 = vld [vmem:[%s4777 + $0x400] sm:$0xff]
    %v4907 = vld [vmem:[%s4777 + $0x408] sm:$0xff]
    %v4908 = vld [vmem:[%s4777 + $0x410] sm:$0xff]
    %v4909 = vld [vmem:[%s4777 + $0x418] sm:$0xff]
    %v4910 = vld [vmem:[%s4777 + $0x420] sm:$0xff]
    %v4911 = vld [vmem:[%s4777 + $0x428] sm:$0xff]
    %v4912 = vld [vmem:[%s4777 + $0x430] sm:$0xff]
    %v4913 = vld [vmem:[%s4777 + $0x438] sm:$0xff]
    %v4914 = vld [vmem:[%s4777 + $0x440] sm:$0xff]
    %v4915 = vld [vmem:[%s4777 + $0x448] sm:$0xff]
    %v4916 = vld [vmem:[%s4777 + $0x450] sm:$0xff]
    %v4917 = vld [vmem:[%s4777 + $0x458] sm:$0xff]
    %v4918 = vld [vmem:[%s4777 + $0x460] sm:$0xff]
    %v4919 = vld [vmem:[%s4777 + $0x468] sm:$0xff]
    %v4920 = vld [vmem:[%s4777 + $0x470] sm:$0xff]
    %v4921 = vld [vmem:[%s4777 + $0x478] sm:$0xff]
    %s4922 = scalar_lea.vmem [#allocation11], 1
    %v4923 = vld [vmem:[%s4922] sm:$0x1]
    %v4925 = vlaneseq
    %v4926 = vshrl.u32 %v4925, 7
    %v4927 = vsub.s32 0, %v4926
    %v4928 = vrot.slane %v4923, %v4927
    %4930 = vmatprep.subr.mxu0 0.0
    %4931 = vmatpush1.msra.mxu0 %v4793
    %4932 = vmatprep.subr.mxu0 0.0
    %4933 = vmatpush1.msra.mxu0 %v4792
    %4934 = vmatprep.subr.mxu0 0.0
    %4935 = vmatpush1.msra.mxu0 %v4791
    %4936 = vmatprep.subr.mxu0 0.0
    %4937 = vmatpush1.msra.mxu0 %v4790
    %4938 = vmatprep.subr.mxu0 0.0
    %4939 = vmatpush1.msra.mxu0 %v4789
    %4940 = vmatprep.subr.mxu0 0.0
    %4941 = vmatpush1.msra.mxu0 %v4788
    %4942 = vmatprep.subr.mxu0 0.0
    %4943 = vmatpush1.msra.mxu0 %v4787
    %4944 = vmatprep.subr.mxu0 0.0
    %4945 = vmatpush1.msra.mxu0 %v4786
    %4946 = vmatprep.subr.mxu0 0.0
    %4947 = vmatpush1.msra.mxu0 %v4785
    %4948 = vmatprep.subr.mxu0 0.0
    %4949 = vmatpush1.msra.mxu0 %v4784
    %4950 = vmatprep.subr.mxu0 0.0
    %4951 = vmatpush1.msra.mxu0 %v4783
    %4952 = vmatprep.subr.mxu0 0.0
    %4953 = vmatpush1.msra.mxu0 %v4782
    %4954 = vmatprep.subr.mxu0 0.0
    %4955 = vmatpush1.msra.mxu0 %v4781
    %4956 = vmatprep.subr.mxu0 0.0
    %4957 = vmatpush1.msra.mxu0 %v4780
    %4958 = vmatprep.subr.mxu0 0.0
    %4959 = vmatpush1.msra.mxu0 %v4779
    %4960 = vmatprep.subr.mxu0 0.0
    %4961 = vmatpush1.msra.mxu0 %v4778
    %4962 = vmatprep.subr.mxu0 0.0
    %4963 = vmatpush2.msra.mxu0 %v4809
    %4964 = vmatprep.subr.mxu0 0.0
    %4965 = vmatpush2.msra.mxu0 %v4808
    %4966 = vmatprep.subr.mxu0 0.0
    %4967 = vmatpush2.msra.mxu0 %v4807
    %4968 = vmatprep.subr.mxu0 0.0
    %4969 = vmatpush2.msra.mxu0 %v4806
    %4970 = vmatprep.subr.mxu0 0.0
    %4971 = vmatpush2.msra.mxu0 %v4805
    %4972 = vmatprep.subr.mxu0 0.0
    %4973 = vmatpush2.msra.mxu0 %v4804
    %4974 = vmatprep.subr.mxu0 0.0
    %4975 = vmatpush2.msra.mxu0 %v4803
    %4976 = vmatprep.subr.mxu0 0.0
    %4977 = vmatpush2.msra.mxu0 %v4802
    %4978 = vmatprep.subr.mxu0 0.0
    %4979 = vmatpush2.msra.mxu0 %v4801
    %4980 = vmatprep.subr.mxu0 0.0
    %4981 = vmatpush2.msra.mxu0 %v4800
    %4982 = vmatprep.subr.mxu0 0.0
    %4983 = vmatpush2.msra.mxu0 %v4799
    %4984 = vmatprep.subr.mxu0 0.0
    %4985 = vmatpush2.msra.mxu0 %v4798
    %4986 = vmatprep.subr.mxu0 0.0
    %4987 = vmatpush2.msra.mxu0 %v4797
    %4988 = vmatprep.subr.mxu0 0.0
    %4989 = vmatpush2.msra.mxu0 %v4796
    %4990 = vmatprep.subr.mxu0 0.0
    %4991 = vmatpush2.msra.mxu0 %v4795
    %4992 = vmatprep.subr.mxu0 0.0
    %4993 = vmatpush2.msra.mxu0 %v4794
    %4994 = vmatprep.mubr.f32.mxu0 %v4265
    %4995 = vmatmul.mubr.f32.gmra.mxu0 %v4201
    %v4996 = vpop.f32.mrf.mxu0
    %v4997 = vadd.f32 %v4928, %v4996
    %v4998 = vpop.f32.mrf.mxu0
    %4999 = vmatprep.mubr.f32.mxu0 %v4266
    %5000 = vmatmul.mubr.f32.gmra.mxu0 %v4202
    %v5001 = vpop.f32.mrf.mxu0
    %v5002 = vadd.f32 %v4928, %v5001
    %v5003 = vpop.f32.mrf.mxu0
    %5004 = vmatprep.mubr.f32.mxu0 %v4267
    %5005 = vmatmul.mubr.f32.gmra.mxu0 %v4203
    %v5006 = vpop.f32.mrf.mxu0
    %v5007 = vadd.f32 %v4928, %v5006
    %v5008 = vpop.f32.mrf.mxu0
    %5009 = vmatprep.mubr.f32.mxu0 %v4268
    %5010 = vmatmul.mubr.f32.gmra.mxu0 %v4204
    %v5011 = vpop.f32.mrf.mxu0
    %v5012 = vadd.f32 %v4928, %v5011
    %v5013 = vpop.f32.mrf.mxu0
    %5014 = vmatprep.mubr.f32.mxu0 %v4269
    %5015 = vmatmul.mubr.f32.gmra.mxu0 %v4205
    %v5016 = vpop.f32.mrf.mxu0
    %v5017 = vadd.f32 %v4928, %v5016
    %v5018 = vpop.f32.mrf.mxu0
    %5019 = vmatprep.mubr.f32.mxu0 %v4270
    %5020 = vmatmul.mubr.f32.gmra.mxu0 %v4206
    %v5021 = vpop.f32.mrf.mxu0
    %v5022 = vadd.f32 %v4928, %v5021
    %v5023 = vpop.f32.mrf.mxu0
    %5024 = vmatprep.mubr.f32.mxu0 %v4271
    %5025 = vmatmul.mubr.f32.gmra.mxu0 %v4207
    %v5026 = vpop.f32.mrf.mxu0
    %v5027 = vadd.f32 %v4928, %v5026
    %v5028 = vpop.f32.mrf.mxu0
    %5029 = vmatprep.mubr.f32.mxu0 %v4272
    %5030 = vmatmul.mubr.f32.gmra.mxu0 %v4208
    %v5031 = vpop.f32.mrf.mxu0
    %v5032 = vadd.f32 %v4928, %v5031
    %v5033 = vpop.f32.mrf.mxu0
    %5034 = vmatprep.mubr.f32.mxu0 %v4273
    %5035 = vmatmul.mubr.f32.gmra.mxu0 %v4209
    %v5036 = vpop.f32.mrf.mxu0
    %v5037 = vadd.f32 %v4928, %v5036
    %v5038 = vpop.f32.mrf.mxu0
    %5039 = vmatprep.mubr.f32.mxu0 %v4274
    %5040 = vmatmul.mubr.f32.gmra.mxu0 %v4210
    %v5041 = vpop.f32.mrf.mxu0
    %v5042 = vadd.f32 %v4928, %v5041
    %v5043 = vpop.f32.mrf.mxu0
    %5044 = vmatprep.mubr.f32.mxu0 %v4275
    %5045 = vmatmul.mubr.f32.gmra.mxu0 %v4211
    %v5046 = vpop.f32.mrf.mxu0
    %v5047 = vadd.f32 %v4928, %v5046
    %v5048 = vpop.f32.mrf.mxu0
    %5049 = vmatprep.mubr.f32.mxu0 %v4276
    %5050 = vmatmul.mubr.f32.gmra.mxu0 %v4212
    %v5051 = vpop.f32.mrf.mxu0
    %v5052 = vadd.f32 %v4928, %v5051
    %v5053 = vpop.f32.mrf.mxu0
    %5054 = vmatprep.mubr.f32.mxu0 %v4277
    %5055 = vmatmul.mubr.f32.gmra.mxu0 %v4213
    %v5056 = vpop.f32.mrf.mxu0
    %v5057 = vadd.f32 %v4928, %v5056
    %v5058 = vpop.f32.mrf.mxu0
    %5059 = vmatprep.mubr.f32.mxu0 %v4278
    %5060 = vmatmul.mubr.f32.gmra.mxu0 %v4214
    %v5061 = vpop.f32.mrf.mxu0
    %v5062 = vadd.f32 %v4928, %v5061
    %v5063 = vpop.f32.mrf.mxu0
    %5064 = vmatprep.mubr.f32.mxu0 %v4279
    %5065 = vmatmul.mubr.f32.gmra.mxu0 %v4215
    %v5066 = vpop.f32.mrf.mxu0
    %v5067 = vadd.f32 %v4928, %v5066
    %v5068 = vpop.f32.mrf.mxu0
    %5069 = vmatprep.mubr.f32.mxu0 %v4280
    %5070 = vmatmul.mubr.f32.gmra.mxu0 %v4216
    %v5071 = vpop.f32.mrf.mxu0
    %v5072 = vadd.f32 %v4928, %v5071
    %v5073 = vpop.f32.mrf.mxu0
    %5074 = vmatprep.mubr.f32.mxu0 %v4281
    %5075 = vmatmul.mubr.f32.gmra.mxu0 %v4217
    %v5076 = vpop.f32.mrf.mxu0
    %v5077 = vadd.f32 %v4928, %v5076
    %v5078 = vpop.f32.mrf.mxu0
    %5079 = vmatprep.mubr.f32.mxu0 %v4282
    %5080 = vmatmul.mubr.f32.gmra.mxu0 %v4218
    %v5081 = vpop.f32.mrf.mxu0
    %v5082 = vadd.f32 %v4928, %v5081
    %v5083 = vpop.f32.mrf.mxu0
    %5084 = vmatprep.mubr.f32.mxu0 %v4283
    %5085 = vmatmul.mubr.f32.gmra.mxu0 %v4219
    %v5086 = vpop.f32.mrf.mxu0
    %v5087 = vadd.f32 %v4928, %v5086
    %v5088 = vpop.f32.mrf.mxu0
    %5089 = vmatprep.mubr.f32.mxu0 %v4284
    %5090 = vmatmul.mubr.f32.gmra.mxu0 %v4220
    %v5091 = vpop.f32.mrf.mxu0
    %v5092 = vadd.f32 %v4928, %v5091
    %v5093 = vpop.f32.mrf.mxu0
    %5094 = vmatprep.mubr.f32.mxu0 %v4285
    %5095 = vmatmul.mubr.f32.gmra.mxu0 %v4221
    %v5096 = vpop.f32.mrf.mxu0
    %v5097 = vadd.f32 %v4928, %v5096
    %v5098 = vpop.f32.mrf.mxu0
    %5099 = vmatprep.mubr.f32.mxu0 %v4286
    %5100 = vmatmul.mubr.f32.gmra.mxu0 %v4222
    %v5101 = vpop.f32.mrf.mxu0
    %v5102 = vadd.f32 %v4928, %v5101
    %v5103 = vpop.f32.mrf.mxu0
    %5104 = vmatprep.mubr.f32.mxu0 %v4287
    %5105 = vmatmul.mubr.f32.gmra.mxu0 %v4223
    %v5106 = vpop.f32.mrf.mxu0
    %v5107 = vadd.f32 %v4928, %v5106
    %v5108 = vpop.f32.mrf.mxu0
    %5109 = vmatprep.mubr.f32.mxu0 %v4288
    %5110 = vmatmul.mubr.f32.gmra.mxu0 %v4224
    %v5111 = vpop.f32.mrf.mxu0
    %v5112 = vadd.f32 %v4928, %v5111
    %v5113 = vpop.f32.mrf.mxu0
    %5114 = vmatprep.mubr.f32.mxu0 %v4289
    %5115 = vmatmul.mubr.f32.gmra.mxu0 %v4225
    %v5116 = vpop.f32.mrf.mxu0
    %v5117 = vadd.f32 %v4928, %v5116
    %v5118 = vpop.f32.mrf.mxu0
    %5119 = vmatprep.mubr.f32.mxu0 %v4290
    %5120 = vmatmul.mubr.f32.gmra.mxu0 %v4226
    %v5121 = vpop.f32.mrf.mxu0
    %v5122 = vadd.f32 %v4928, %v5121
    %v5123 = vpop.f32.mrf.mxu0
    %5124 = vmatprep.mubr.f32.mxu0 %v4291
    %5125 = vmatmul.mubr.f32.gmra.mxu0 %v4227
    %v5126 = vpop.f32.mrf.mxu0
    %v5127 = vadd.f32 %v4928, %v5126
    %v5128 = vpop.f32.mrf.mxu0
    %5129 = vmatprep.mubr.f32.mxu0 %v4292
    %5130 = vmatmul.mubr.f32.gmra.mxu0 %v4228
    %v5131 = vpop.f32.mrf.mxu0
    %v5132 = vadd.f32 %v4928, %v5131
    %v5133 = vpop.f32.mrf.mxu0
    %5134 = vmatprep.mubr.f32.mxu0 %v4293
    %5135 = vmatmul.mubr.f32.gmra.mxu0 %v4229
    %v5136 = vpop.f32.mrf.mxu0
    %v5137 = vadd.f32 %v4928, %v5136
    %v5138 = vpop.f32.mrf.mxu0
    %5139 = vmatprep.mubr.f32.mxu0 %v4294
    %5140 = vmatmul.mubr.f32.gmra.mxu0 %v4230
    %v5141 = vpop.f32.mrf.mxu0
    %v5142 = vadd.f32 %v4928, %v5141
    %v5143 = vpop.f32.mrf.mxu0
    %5144 = vmatprep.mubr.f32.mxu0 %v4295
    %5145 = vmatmul.mubr.f32.gmra.mxu0 %v4231
    %v5146 = vpop.f32.mrf.mxu0
    %v5147 = vadd.f32 %v4928, %v5146
    %v5148 = vpop.f32.mrf.mxu0
    %5149 = vmatprep.mubr.f32.mxu0 %v4296
    %5150 = vmatmul.mubr.f32.gmra.mxu0 %v4232
    %v5151 = vpop.f32.mrf.mxu0
    %v5152 = vadd.f32 %v4928, %v5151
    %v5153 = vpop.f32.mrf.mxu0
    %5154 = vmatprep.mubr.f32.mxu0 %v4297
    %5155 = vmatmul.mubr.f32.gmra.mxu0 %v4233
    %v5156 = vpop.f32.mrf.mxu0
    %v5157 = vadd.f32 %v4928, %v5156
    %v5158 = vpop.f32.mrf.mxu0
    %5159 = vmatprep.mubr.f32.mxu0 %v4298
    %5160 = vmatmul.mubr.f32.gmra.mxu0 %v4234
    %v5161 = vpop.f32.mrf.mxu0
    %v5162 = vadd.f32 %v4928, %v5161
    %v5163 = vpop.f32.mrf.mxu0
    %5164 = vmatprep.mubr.f32.mxu0 %v4299
    %5165 = vmatmul.mubr.f32.gmra.mxu0 %v4235
    %v5166 = vpop.f32.mrf.mxu0
    %v5167 = vadd.f32 %v4928, %v5166
    %v5168 = vpop.f32.mrf.mxu0
    %5169 = vmatprep.mubr.f32.mxu0 %v4300
    %5170 = vmatmul.mubr.f32.gmra.mxu0 %v4236
    %v5171 = vpop.f32.mrf.mxu0
    %v5172 = vadd.f32 %v4928, %v5171
    %v5173 = vpop.f32.mrf.mxu0
    %5174 = vmatprep.mubr.f32.mxu0 %v4301
    %5175 = vmatmul.mubr.f32.gmra.mxu0 %v4237
    %v5176 = vpop.f32.mrf.mxu0
    %v5177 = vadd.f32 %v4928, %v5176
    %v5178 = vpop.f32.mrf.mxu0
    %5179 = vmatprep.mubr.f32.mxu0 %v4302
    %5180 = vmatmul.mubr.f32.gmra.mxu0 %v4238
    %v5181 = vpop.f32.mrf.mxu0
    %v5182 = vadd.f32 %v4928, %v5181
    %v5183 = vpop.f32.mrf.mxu0
    %5184 = vmatprep.mubr.f32.mxu0 %v4303
    %5185 = vmatmul.mubr.f32.gmra.mxu0 %v4239
    %v5186 = vpop.f32.mrf.mxu0
    %v5187 = vadd.f32 %v4928, %v5186
    %v5188 = vpop.f32.mrf.mxu0
    %5189 = vmatprep.mubr.f32.mxu0 %v4304
    %5190 = vmatmul.mubr.f32.gmra.mxu0 %v4240
    %v5191 = vpop.f32.mrf.mxu0
    %v5192 = vadd.f32 %v4928, %v5191
    %v5193 = vpop.f32.mrf.mxu0
    %5194 = vmatprep.mubr.f32.mxu0 %v4305
    %5195 = vmatmul.mubr.f32.gmra.mxu0 %v4241
    %v5196 = vpop.f32.mrf.mxu0
    %v5197 = vadd.f32 %v4928, %v5196
    %v5198 = vpop.f32.mrf.mxu0
    %5199 = vmatprep.mubr.f32.mxu0 %v4306
    %5200 = vmatmul.mubr.f32.gmra.mxu0 %v4242
    %v5201 = vpop.f32.mrf.mxu0
    %v5202 = vadd.f32 %v4928, %v5201
    %v5203 = vpop.f32.mrf.mxu0
    %5204 = vmatprep.mubr.f32.mxu0 %v4307
    %5205 = vmatmul.mubr.f32.gmra.mxu0 %v4243
    %v5206 = vpop.f32.mrf.mxu0
    %v5207 = vadd.f32 %v4928, %v5206
    %v5208 = vpop.f32.mrf.mxu0
    %5209 = vmatprep.mubr.f32.mxu0 %v4308
    %5210 = vmatmul.mubr.f32.gmra.mxu0 %v4244
    %v5211 = vpop.f32.mrf.mxu0
    %v5212 = vadd.f32 %v4928, %v5211
    %v5213 = vpop.f32.mrf.mxu0
    %5214 = vmatprep.mubr.f32.mxu0 %v4309
    %5215 = vmatmul.mubr.f32.gmra.mxu0 %v4245
    %v5216 = vpop.f32.mrf.mxu0
    %v5217 = vadd.f32 %v4928, %v5216
    %v5218 = vpop.f32.mrf.mxu0
    %5219 = vmatprep.mubr.f32.mxu0 %v4310
    %5220 = vmatmul.mubr.f32.gmra.mxu0 %v4246
    %v5221 = vpop.f32.mrf.mxu0
    %v5222 = vadd.f32 %v4928, %v5221
    %v5223 = vpop.f32.mrf.mxu0
    %5224 = vmatprep.mubr.f32.mxu0 %v4311
    %5225 = vmatmul.mubr.f32.gmra.mxu0 %v4247
    %v5226 = vpop.f32.mrf.mxu0
    %v5227 = vadd.f32 %v4928, %v5226
    %v5228 = vpop.f32.mrf.mxu0
    %5229 = vmatprep.mubr.f32.mxu0 %v4312
    %5230 = vmatmul.mubr.f32.gmra.mxu0 %v4248
    %v5231 = vpop.f32.mrf.mxu0
    %v5232 = vadd.f32 %v4928, %v5231
    %v5233 = vpop.f32.mrf.mxu0
    %5234 = vmatprep.mubr.f32.mxu0 %v4313
    %5235 = vmatmul.mubr.f32.gmra.mxu0 %v4249
    %v5236 = vpop.f32.mrf.mxu0
    %v5237 = vadd.f32 %v4928, %v5236
    %v5238 = vpop.f32.mrf.mxu0
    %5239 = vmatprep.mubr.f32.mxu0 %v4314
    %5240 = vmatmul.mubr.f32.gmra.mxu0 %v4250
    %v5241 = vpop.f32.mrf.mxu0
    %v5242 = vadd.f32 %v4928, %v5241
    %v5243 = vpop.f32.mrf.mxu0
    %5244 = vmatprep.mubr.f32.mxu0 %v4315
    %5245 = vmatmul.mubr.f32.gmra.mxu0 %v4251
    %v5246 = vpop.f32.mrf.mxu0
    %v5247 = vadd.f32 %v4928, %v5246
    %v5248 = vpop.f32.mrf.mxu0
    %5249 = vmatprep.mubr.f32.mxu0 %v4316
    %5250 = vmatmul.mubr.f32.gmra.mxu0 %v4252
    %v5251 = vpop.f32.mrf.mxu0
    %v5252 = vadd.f32 %v4928, %v5251
    %v5253 = vpop.f32.mrf.mxu0
    %5254 = vmatprep.mubr.f32.mxu0 %v4317
    %5255 = vmatmul.mubr.f32.gmra.mxu0 %v4253
    %v5256 = vpop.f32.mrf.mxu0
    %v5257 = vadd.f32 %v4928, %v5256
    %v5258 = vpop.f32.mrf.mxu0
    %5259 = vmatprep.mubr.f32.mxu0 %v4318
    %5260 = vmatmul.mubr.f32.gmra.mxu0 %v4254
    %v5261 = vpop.f32.mrf.mxu0
    %v5262 = vadd.f32 %v4928, %v5261
    %v5263 = vpop.f32.mrf.mxu0
    %5264 = vmatprep.mubr.f32.mxu0 %v4319
    %5265 = vmatmul.mubr.f32.gmra.mxu0 %v4255
    %v5266 = vpop.f32.mrf.mxu0
    %v5267 = vadd.f32 %v4928, %v5266
    %v5268 = vpop.f32.mrf.mxu0
    %5269 = vmatprep.mubr.f32.mxu0 %v4320
    %5270 = vmatmul.mubr.f32.gmra.mxu0 %v4256
    %v5271 = vpop.f32.mrf.mxu0
    %v5272 = vadd.f32 %v4928, %v5271
    %v5273 = vpop.f32.mrf.mxu0
    %5274 = vmatprep.mubr.f32.mxu0 %v4321
    %5275 = vmatmul.mubr.f32.gmra.mxu0 %v4257
    %v5276 = vpop.f32.mrf.mxu0
    %v5277 = vadd.f32 %v4928, %v5276
    %v5278 = vpop.f32.mrf.mxu0
    %5279 = vmatprep.mubr.f32.mxu0 %v4322
    %5280 = vmatmul.mubr.f32.gmra.mxu0 %v4258
    %v5281 = vpop.f32.mrf.mxu0
    %v5282 = vadd.f32 %v4928, %v5281
    %v5283 = vpop.f32.mrf.mxu0
    %5284 = vmatprep.mubr.f32.mxu0 %v4323
    %5285 = vmatmul.mubr.f32.gmra.mxu0 %v4259
    %v5286 = vpop.f32.mrf.mxu0
    %v5287 = vadd.f32 %v4928, %v5286
    %v5288 = vpop.f32.mrf.mxu0
    %5289 = vmatprep.mubr.f32.mxu0 %v4324
    %5290 = vmatmul.mubr.f32.gmra.mxu0 %v4260
    %v5291 = vpop.f32.mrf.mxu0
    %v5292 = vadd.f32 %v4928, %v5291
    %v5293 = vpop.f32.mrf.mxu0
    %5294 = vmatprep.mubr.f32.mxu0 %v4325
    %5295 = vmatmul.mubr.f32.gmra.mxu0 %v4261
    %v5296 = vpop.f32.mrf.mxu0
    %v5297 = vadd.f32 %v4928, %v5296
    %v5298 = vpop.f32.mrf.mxu0
    %5299 = vmatprep.mubr.f32.mxu0 %v4326
    %5300 = vmatmul.mubr.f32.gmra.mxu0 %v4262
    %v5301 = vpop.f32.mrf.mxu0
    %v5302 = vadd.f32 %v4928, %v5301
    %v5303 = vpop.f32.mrf.mxu0
    %5304 = vmatprep.mubr.f32.mxu0 %v4327
    %5305 = vmatmul.mubr.f32.gmra.mxu0 %v4263
    %v5306 = vpop.f32.mrf.mxu0
    %v5307 = vadd.f32 %v4928, %v5306
    %v5308 = vpop.f32.mrf.mxu0
    %5309 = vmatprep.mubr.f32.mxu0 %v4328
    %5310 = vmatmul.mubr.f32.gmra.mxu0 %v4264
    %v5311 = vpop.f32.mrf.mxu0
    %v5312 = vadd.f32 %v4928, %v5311
    %v5313 = vpop.f32.mrf.mxu0
    %5314 = vdwg.mxu0
    %5315 = vmatprep.subr.mxu0 0.0
    %5316 = vmatpush1.msra.mxu0 %v4825
    %5317 = vmatprep.subr.mxu0 0.0
    %5318 = vmatpush1.msra.mxu0 %v4824
    %5319 = vmatprep.subr.mxu0 0.0
    %5320 = vmatpush1.msra.mxu0 %v4823
    %5321 = vmatprep.subr.mxu0 0.0
    %5322 = vmatpush1.msra.mxu0 %v4822
    %5323 = vmatprep.subr.mxu0 0.0
    %5324 = vmatpush1.msra.mxu0 %v4821
    %5325 = vmatprep.subr.mxu0 0.0
    %5326 = vmatpush1.msra.mxu0 %v4820
    %5327 = vmatprep.subr.mxu0 0.0
    %5328 = vmatpush1.msra.mxu0 %v4819
    %5329 = vmatprep.subr.mxu0 0.0
    %5330 = vmatpush1.msra.mxu0 %v4818
    %5331 = vmatprep.subr.mxu0 0.0
    %5332 = vmatpush1.msra.mxu0 %v4817
    %5333 = vmatprep.subr.mxu0 0.0
    %5334 = vmatpush1.msra.mxu0 %v4816
    %5335 = vmatprep.subr.mxu0 0.0
    %5336 = vmatpush1.msra.mxu0 %v4815
    %5337 = vmatprep.subr.mxu0 0.0
    %5338 = vmatpush1.msra.mxu0 %v4814
    %5339 = vmatprep.subr.mxu0 0.0
    %5340 = vmatpush1.msra.mxu0 %v4813
    %5341 = vmatprep.subr.mxu0 0.0
    %5342 = vmatpush1.msra.mxu0 %v4812
    %5343 = vmatprep.subr.mxu0 0.0
    %5344 = vmatpush1.msra.mxu0 %v4811
    %5345 = vmatprep.subr.mxu0 0.0
    %5346 = vmatpush1.msra.mxu0 %v4810
    %5347 = vmatprep.subr.mxu0 0.0
    %5348 = vmatpush2.msra.mxu0 %v4841
    %5349 = vmatprep.subr.mxu0 0.0
    %5350 = vmatpush2.msra.mxu0 %v4840
    %5351 = vmatprep.subr.mxu0 0.0
    %5352 = vmatpush2.msra.mxu0 %v4839
    %5353 = vmatprep.subr.mxu0 0.0
    %5354 = vmatpush2.msra.mxu0 %v4838
    %5355 = vmatprep.subr.mxu0 0.0
    %5356 = vmatpush2.msra.mxu0 %v4837
    %5357 = vmatprep.subr.mxu0 0.0
    %5358 = vmatpush2.msra.mxu0 %v4836
    %5359 = vmatprep.subr.mxu0 0.0
    %5360 = vmatpush2.msra.mxu0 %v4835
    %5361 = vmatprep.subr.mxu0 0.0
    %5362 = vmatpush2.msra.mxu0 %v4834
    %5363 = vmatprep.subr.mxu0 0.0
    %5364 = vmatpush2.msra.mxu0 %v4833
    %5365 = vmatprep.subr.mxu0 0.0
    %5366 = vmatpush2.msra.mxu0 %v4832
    %5367 = vmatprep.subr.mxu0 0.0
    %5368 = vmatpush2.msra.mxu0 %v4831
    %5369 = vmatprep.subr.mxu0 0.0
    %5370 = vmatpush2.msra.mxu0 %v4830
    %5371 = vmatprep.subr.mxu0 0.0
    %5372 = vmatpush2.msra.mxu0 %v4829
    %5373 = vmatprep.subr.mxu0 0.0
    %5374 = vmatpush2.msra.mxu0 %v4828
    %5375 = vmatprep.subr.mxu0 0.0
    %5376 = vmatpush2.msra.mxu0 %v4827
    %5377 = vmatprep.subr.mxu0 0.0
    %5378 = vmatpush2.msra.mxu0 %v4826
    %5379 = vmatprep.mubr.f32.mxu0 %v4393
    %5380 = vmatmul.mubr.f32.gmra.mxu0 %v4329
    %v5381 = vpop.f32.mrf.mxu0
    %v5382 = vadd.f32 %v4997, %v5381
    %v5383 = vpop.f32.mrf.mxu0
    %5384 = vmatprep.mubr.f32.mxu0 %v4394
    %5385 = vmatmul.mubr.f32.gmra.mxu0 %v4330
    %v5386 = vpop.f32.mrf.mxu0
    %v5387 = vadd.f32 %v5002, %v5386
    %v5388 = vpop.f32.mrf.mxu0
    %5389 = vmatprep.mubr.f32.mxu0 %v4395
    %5390 = vmatmul.mubr.f32.gmra.mxu0 %v4331
    %v5391 = vpop.f32.mrf.mxu0
    %v5392 = vadd.f32 %v5007, %v5391
    %v5393 = vpop.f32.mrf.mxu0
    %5394 = vmatprep.mubr.f32.mxu0 %v4396
    %5395 = vmatmul.mubr.f32.gmra.mxu0 %v4332
    %v5396 = vpop.f32.mrf.mxu0
    %v5397 = vadd.f32 %v5012, %v5396
    %v5398 = vpop.f32.mrf.mxu0
    %5399 = vmatprep.mubr.f32.mxu0 %v4397
    %5400 = vmatmul.mubr.f32.gmra.mxu0 %v4333
    %v5401 = vpop.f32.mrf.mxu0
    %v5402 = vadd.f32 %v5017, %v5401
    %v5403 = vpop.f32.mrf.mxu0
    %5404 = vmatprep.mubr.f32.mxu0 %v4398
    %5405 = vmatmul.mubr.f32.gmra.mxu0 %v4334
    %v5406 = vpop.f32.mrf.mxu0
    %v5407 = vadd.f32 %v5022, %v5406
    %v5408 = vpop.f32.mrf.mxu0
    %5409 = vmatprep.mubr.f32.mxu0 %v4399
    %5410 = vmatmul.mubr.f32.gmra.mxu0 %v4335
    %v5411 = vpop.f32.mrf.mxu0
    %v5412 = vadd.f32 %v5027, %v5411
    %v5413 = vpop.f32.mrf.mxu0
    %5414 = vmatprep.mubr.f32.mxu0 %v4400
    %5415 = vmatmul.mubr.f32.gmra.mxu0 %v4336
    %v5416 = vpop.f32.mrf.mxu0
    %v5417 = vadd.f32 %v5032, %v5416
    %v5418 = vpop.f32.mrf.mxu0
    %5419 = vmatprep.mubr.f32.mxu0 %v4401
    %5420 = vmatmul.mubr.f32.gmra.mxu0 %v4337
    %v5421 = vpop.f32.mrf.mxu0
    %v5422 = vadd.f32 %v5037, %v5421
    %v5423 = vpop.f32.mrf.mxu0
    %5424 = vmatprep.mubr.f32.mxu0 %v4402
    %5425 = vmatmul.mubr.f32.gmra.mxu0 %v4338
    %v5426 = vpop.f32.mrf.mxu0
    %v5427 = vadd.f32 %v5042, %v5426
    %v5428 = vpop.f32.mrf.mxu0
    %5429 = vmatprep.mubr.f32.mxu0 %v4403
    %5430 = vmatmul.mubr.f32.gmra.mxu0 %v4339
    %v5431 = vpop.f32.mrf.mxu0
    %v5432 = vadd.f32 %v5047, %v5431
    %v5433 = vpop.f32.mrf.mxu0
    %5434 = vmatprep.mubr.f32.mxu0 %v4404
    %5435 = vmatmul.mubr.f32.gmra.mxu0 %v4340
    %v5436 = vpop.f32.mrf.mxu0
    %v5437 = vadd.f32 %v5052, %v5436
    %v5438 = vpop.f32.mrf.mxu0
    %5439 = vmatprep.mubr.f32.mxu0 %v4405
    %5440 = vmatmul.mubr.f32.gmra.mxu0 %v4341
    %v5441 = vpop.f32.mrf.mxu0
    %v5442 = vadd.f32 %v5057, %v5441
    %v5443 = vpop.f32.mrf.mxu0
    %5444 = vmatprep.mubr.f32.mxu0 %v4406
    %5445 = vmatmul.mubr.f32.gmra.mxu0 %v4342
    %v5446 = vpop.f32.mrf.mxu0
    %v5447 = vadd.f32 %v5062, %v5446
    %v5448 = vpop.f32.mrf.mxu0
    %5449 = vmatprep.mubr.f32.mxu0 %v4407
    %5450 = vmatmul.mubr.f32.gmra.mxu0 %v4343
    %v5451 = vpop.f32.mrf.mxu0
    %v5452 = vadd.f32 %v5067, %v5451
    %v5453 = vpop.f32.mrf.mxu0
    %5454 = vmatprep.mubr.f32.mxu0 %v4408
    %5455 = vmatmul.mubr.f32.gmra.mxu0 %v4344
    %v5456 = vpop.f32.mrf.mxu0
    %v5457 = vadd.f32 %v5072, %v5456
    %v5458 = vpop.f32.mrf.mxu0
    %5459 = vmatprep.mubr.f32.mxu0 %v4409
    %5460 = vmatmul.mubr.f32.gmra.mxu0 %v4345
    %v5461 = vpop.f32.mrf.mxu0
    %v5462 = vadd.f32 %v5077, %v5461
    %v5463 = vpop.f32.mrf.mxu0
    %5464 = vmatprep.mubr.f32.mxu0 %v4410
    %5465 = vmatmul.mubr.f32.gmra.mxu0 %v4346
    %v5466 = vpop.f32.mrf.mxu0
    %v5467 = vadd.f32 %v5082, %v5466
    %v5468 = vpop.f32.mrf.mxu0
    %5469 = vmatprep.mubr.f32.mxu0 %v4411
    %5470 = vmatmul.mubr.f32.gmra.mxu0 %v4347
    %v5471 = vpop.f32.mrf.mxu0
    %v5472 = vadd.f32 %v5087, %v5471
    %v5473 = vpop.f32.mrf.mxu0
    %5474 = vmatprep.mubr.f32.mxu0 %v4412
    %5475 = vmatmul.mubr.f32.gmra.mxu0 %v4348
    %v5476 = vpop.f32.mrf.mxu0
    %v5477 = vadd.f32 %v5092, %v5476
    %v5478 = vpop.f32.mrf.mxu0
    %5479 = vmatprep.mubr.f32.mxu0 %v4413
    %5480 = vmatmul.mubr.f32.gmra.mxu0 %v4349
    %v5481 = vpop.f32.mrf.mxu0
    %v5482 = vadd.f32 %v5097, %v5481
    %v5483 = vpop.f32.mrf.mxu0
    %5484 = vmatprep.mubr.f32.mxu0 %v4414
    %5485 = vmatmul.mubr.f32.gmra.mxu0 %v4350
    %v5486 = vpop.f32.mrf.mxu0
    %v5487 = vadd.f32 %v5102, %v5486
    %v5488 = vpop.f32.mrf.mxu0
    %5489 = vmatprep.mubr.f32.mxu0 %v4415
    %5490 = vmatmul.mubr.f32.gmra.mxu0 %v4351
    %v5491 = vpop.f32.mrf.mxu0
    %v5492 = vadd.f32 %v5107, %v5491
    %v5493 = vpop.f32.mrf.mxu0
    %5494 = vmatprep.mubr.f32.mxu0 %v4416
    %5495 = vmatmul.mubr.f32.gmra.mxu0 %v4352
    %v5496 = vpop.f32.mrf.mxu0
    %v5497 = vadd.f32 %v5112, %v5496
    %v5498 = vpop.f32.mrf.mxu0
    %5499 = vmatprep.mubr.f32.mxu0 %v4417
    %5500 = vmatmul.mubr.f32.gmra.mxu0 %v4353
    %v5501 = vpop.f32.mrf.mxu0
    %v5502 = vadd.f32 %v5117, %v5501
    %v5503 = vpop.f32.mrf.mxu0
    %5504 = vmatprep.mubr.f32.mxu0 %v4418
    %5505 = vmatmul.mubr.f32.gmra.mxu0 %v4354
    %v5506 = vpop.f32.mrf.mxu0
    %v5507 = vadd.f32 %v5122, %v5506
    %v5508 = vpop.f32.mrf.mxu0
    %5509 = vmatprep.mubr.f32.mxu0 %v4419
    %5510 = vmatmul.mubr.f32.gmra.mxu0 %v4355
    %v5511 = vpop.f32.mrf.mxu0
    %v5512 = vadd.f32 %v5127, %v5511
    %v5513 = vpop.f32.mrf.mxu0
    %5514 = vmatprep.mubr.f32.mxu0 %v4420
    %5515 = vmatmul.mubr.f32.gmra.mxu0 %v4356
    %v5516 = vpop.f32.mrf.mxu0
    %v5517 = vadd.f32 %v5132, %v5516
    %v5518 = vpop.f32.mrf.mxu0
    %5519 = vmatprep.mubr.f32.mxu0 %v4421
    %5520 = vmatmul.mubr.f32.gmra.mxu0 %v4357
    %v5521 = vpop.f32.mrf.mxu0
    %v5522 = vadd.f32 %v5137, %v5521
    %v5523 = vpop.f32.mrf.mxu0
    %5524 = vmatprep.mubr.f32.mxu0 %v4422
    %5525 = vmatmul.mubr.f32.gmra.mxu0 %v4358
    %v5526 = vpop.f32.mrf.mxu0
    %v5527 = vadd.f32 %v5142, %v5526
    %v5528 = vpop.f32.mrf.mxu0
    %5529 = vmatprep.mubr.f32.mxu0 %v4423
    %5530 = vmatmul.mubr.f32.gmra.mxu0 %v4359
    %v5531 = vpop.f32.mrf.mxu0
    %v5532 = vadd.f32 %v5147, %v5531
    %v5533 = vpop.f32.mrf.mxu0
    %5534 = vmatprep.mubr.f32.mxu0 %v4424
    %5535 = vmatmul.mubr.f32.gmra.mxu0 %v4360
    %v5536 = vpop.f32.mrf.mxu0
    %v5537 = vadd.f32 %v5152, %v5536
    %v5538 = vpop.f32.mrf.mxu0
    %5539 = vmatprep.mubr.f32.mxu0 %v4425
    %5540 = vmatmul.mubr.f32.gmra.mxu0 %v4361
    %v5541 = vpop.f32.mrf.mxu0
    %v5542 = vadd.f32 %v5157, %v5541
    %v5543 = vpop.f32.mrf.mxu0
    %5544 = vmatprep.mubr.f32.mxu0 %v4426
    %5545 = vmatmul.mubr.f32.gmra.mxu0 %v4362
    %v5546 = vpop.f32.mrf.mxu0
    %v5547 = vadd.f32 %v5162, %v5546
    %v5548 = vpop.f32.mrf.mxu0
    %5549 = vmatprep.mubr.f32.mxu0 %v4427
    %5550 = vmatmul.mubr.f32.gmra.mxu0 %v4363
    %v5551 = vpop.f32.mrf.mxu0
    %v5552 = vadd.f32 %v5167, %v5551
    %v5553 = vpop.f32.mrf.mxu0
    %5554 = vmatprep.mubr.f32.mxu0 %v4428
    %5555 = vmatmul.mubr.f32.gmra.mxu0 %v4364
    %v5556 = vpop.f32.mrf.mxu0
    %v5557 = vadd.f32 %v5172, %v5556
    %v5558 = vpop.f32.mrf.mxu0
    %5559 = vmatprep.mubr.f32.mxu0 %v4429
    %5560 = vmatmul.mubr.f32.gmra.mxu0 %v4365
    %v5561 = vpop.f32.mrf.mxu0
    %v5562 = vadd.f32 %v5177, %v5561
    %v5563 = vpop.f32.mrf.mxu0
    %5564 = vmatprep.mubr.f32.mxu0 %v4430
    %5565 = vmatmul.mubr.f32.gmra.mxu0 %v4366
    %v5566 = vpop.f32.mrf.mxu0
    %v5567 = vadd.f32 %v5182, %v5566
    %v5568 = vpop.f32.mrf.mxu0
    %5569 = vmatprep.mubr.f32.mxu0 %v4431
    %5570 = vmatmul.mubr.f32.gmra.mxu0 %v4367
    %v5571 = vpop.f32.mrf.mxu0
    %v5572 = vadd.f32 %v5187, %v5571
    %v5573 = vpop.f32.mrf.mxu0
    %5574 = vmatprep.mubr.f32.mxu0 %v4432
    %5575 = vmatmul.mubr.f32.gmra.mxu0 %v4368
    %v5576 = vpop.f32.mrf.mxu0
    %v5577 = vadd.f32 %v5192, %v5576
    %v5578 = vpop.f32.mrf.mxu0
    %5579 = vmatprep.mubr.f32.mxu0 %v4433
    %5580 = vmatmul.mubr.f32.gmra.mxu0 %v4369
    %v5581 = vpop.f32.mrf.mxu0
    %v5582 = vadd.f32 %v5197, %v5581
    %v5583 = vpop.f32.mrf.mxu0
    %5584 = vmatprep.mubr.f32.mxu0 %v4434
    %5585 = vmatmul.mubr.f32.gmra.mxu0 %v4370
    %v5586 = vpop.f32.mrf.mxu0
    %v5587 = vadd.f32 %v5202, %v5586
    %v5588 = vpop.f32.mrf.mxu0
    %5589 = vmatprep.mubr.f32.mxu0 %v4435
    %5590 = vmatmul.mubr.f32.gmra.mxu0 %v4371
    %v5591 = vpop.f32.mrf.mxu0
    %v5592 = vadd.f32 %v5207, %v5591
    %v5593 = vpop.f32.mrf.mxu0
    %5594 = vmatprep.mubr.f32.mxu0 %v4436
    %5595 = vmatmul.mubr.f32.gmra.mxu0 %v4372
    %v5596 = vpop.f32.mrf.mxu0
    %v5597 = vadd.f32 %v5212, %v5596
    %v5598 = vpop.f32.mrf.mxu0
    %5599 = vmatprep.mubr.f32.mxu0 %v4437
    %5600 = vmatmul.mubr.f32.gmra.mxu0 %v4373
    %v5601 = vpop.f32.mrf.mxu0
    %v5602 = vadd.f32 %v5217, %v5601
    %v5603 = vpop.f32.mrf.mxu0
    %5604 = vmatprep.mubr.f32.mxu0 %v4438
    %5605 = vmatmul.mubr.f32.gmra.mxu0 %v4374
    %v5606 = vpop.f32.mrf.mxu0
    %v5607 = vadd.f32 %v5222, %v5606
    %v5608 = vpop.f32.mrf.mxu0
    %5609 = vmatprep.mubr.f32.mxu0 %v4439
    %5610 = vmatmul.mubr.f32.gmra.mxu0 %v4375
    %v5611 = vpop.f32.mrf.mxu0
    %v5612 = vadd.f32 %v5227, %v5611
    %v5613 = vpop.f32.mrf.mxu0
    %5614 = vmatprep.mubr.f32.mxu0 %v4440
    %5615 = vmatmul.mubr.f32.gmra.mxu0 %v4376
    %v5616 = vpop.f32.mrf.mxu0
    %v5617 = vadd.f32 %v5232, %v5616
    %v5618 = vpop.f32.mrf.mxu0
    %5619 = vmatprep.mubr.f32.mxu0 %v4441
    %5620 = vmatmul.mubr.f32.gmra.mxu0 %v4377
    %v5621 = vpop.f32.mrf.mxu0
    %v5622 = vadd.f32 %v5237, %v5621
    %v5623 = vpop.f32.mrf.mxu0
    %5624 = vmatprep.mubr.f32.mxu0 %v4442
    %5625 = vmatmul.mubr.f32.gmra.mxu0 %v4378
    %v5626 = vpop.f32.mrf.mxu0
    %v5627 = vadd.f32 %v5242, %v5626
    %v5628 = vpop.f32.mrf.mxu0
    %5629 = vmatprep.mubr.f32.mxu0 %v4443
    %5630 = vmatmul.mubr.f32.gmra.mxu0 %v4379
    %v5631 = vpop.f32.mrf.mxu0
    %v5632 = vadd.f32 %v5247, %v5631
    %v5633 = vpop.f32.mrf.mxu0
    %5634 = vmatprep.mubr.f32.mxu0 %v4444
    %5635 = vmatmul.mubr.f32.gmra.mxu0 %v4380
    %v5636 = vpop.f32.mrf.mxu0
    %v5637 = vadd.f32 %v5252, %v5636
    %v5638 = vpop.f32.mrf.mxu0
    %5639 = vmatprep.mubr.f32.mxu0 %v4445
    %5640 = vmatmul.mubr.f32.gmra.mxu0 %v4381
    %v5641 = vpop.f32.mrf.mxu0
    %v5642 = vadd.f32 %v5257, %v5641
    %v5643 = vpop.f32.mrf.mxu0
    %5644 = vmatprep.mubr.f32.mxu0 %v4446
    %5645 = vmatmul.mubr.f32.gmra.mxu0 %v4382
    %v5646 = vpop.f32.mrf.mxu0
    %v5647 = vadd.f32 %v5262, %v5646
    %v5648 = vpop.f32.mrf.mxu0
    %5649 = vmatprep.mubr.f32.mxu0 %v4447
    %5650 = vmatmul.mubr.f32.gmra.mxu0 %v4383
    %v5651 = vpop.f32.mrf.mxu0
    %v5652 = vadd.f32 %v5267, %v5651
    %v5653 = vpop.f32.mrf.mxu0
    %5654 = vmatprep.mubr.f32.mxu0 %v4448
    %5655 = vmatmul.mubr.f32.gmra.mxu0 %v4384
    %v5656 = vpop.f32.mrf.mxu0
    %v5657 = vadd.f32 %v5272, %v5656
    %v5658 = vpop.f32.mrf.mxu0
    %5659 = vmatprep.mubr.f32.mxu0 %v4449
    %5660 = vmatmul.mubr.f32.gmra.mxu0 %v4385
    %v5661 = vpop.f32.mrf.mxu0
    %v5662 = vadd.f32 %v5277, %v5661
    %v5663 = vpop.f32.mrf.mxu0
    %5664 = vmatprep.mubr.f32.mxu0 %v4450
    %5665 = vmatmul.mubr.f32.gmra.mxu0 %v4386
    %v5666 = vpop.f32.mrf.mxu0
    %v5667 = vadd.f32 %v5282, %v5666
    %v5668 = vpop.f32.mrf.mxu0
    %5669 = vmatprep.mubr.f32.mxu0 %v4451
    %5670 = vmatmul.mubr.f32.gmra.mxu0 %v4387
    %v5671 = vpop.f32.mrf.mxu0
    %v5672 = vadd.f32 %v5287, %v5671
    %v5673 = vpop.f32.mrf.mxu0
    %5674 = vmatprep.mubr.f32.mxu0 %v4452
    %5675 = vmatmul.mubr.f32.gmra.mxu0 %v4388
    %v5676 = vpop.f32.mrf.mxu0
    %v5677 = vadd.f32 %v5292, %v5676
    %v5678 = vpop.f32.mrf.mxu0
    %5679 = vmatprep.mubr.f32.mxu0 %v4453
    %5680 = vmatmul.mubr.f32.gmra.mxu0 %v4389
    %v5681 = vpop.f32.mrf.mxu0
    %v5682 = vadd.f32 %v5297, %v5681
    %v5683 = vpop.f32.mrf.mxu0
    %5684 = vmatprep.mubr.f32.mxu0 %v4454
    %5685 = vmatmul.mubr.f32.gmra.mxu0 %v4390
    %v5686 = vpop.f32.mrf.mxu0
    %v5687 = vadd.f32 %v5302, %v5686
    %v5688 = vpop.f32.mrf.mxu0
    %5689 = vmatprep.mubr.f32.mxu0 %v4455
    %5690 = vmatmul.mubr.f32.gmra.mxu0 %v4391
    %v5691 = vpop.f32.mrf.mxu0
    %v5692 = vadd.f32 %v5307, %v5691
    %v5693 = vpop.f32.mrf.mxu0
    %5694 = vmatprep.mubr.f32.mxu0 %v4456
    %5695 = vmatmul.mubr.f32.gmra.mxu0 %v4392
    %v5696 = vpop.f32.mrf.mxu0
    %v5697 = vadd.f32 %v5312, %v5696
    %v5698 = vpop.f32.mrf.mxu0
    %5699 = vdwg.mxu0
    %5700 = vmatprep.subr.mxu0 0.0
    %5701 = vmatpush1.msra.mxu0 %v4857
    %5702 = vmatprep.subr.mxu0 0.0
    %5703 = vmatpush1.msra.mxu0 %v4856
    %5704 = vmatprep.subr.mxu0 0.0
    %5705 = vmatpush1.msra.mxu0 %v4855
    %5706 = vmatprep.subr.mxu0 0.0
    %5707 = vmatpush1.msra.mxu0 %v4854
    %5708 = vmatprep.subr.mxu0 0.0
    %5709 = vmatpush1.msra.mxu0 %v4853
    %5710 = vmatprep.subr.mxu0 0.0
    %5711 = vmatpush1.msra.mxu0 %v4852
    %5712 = vmatprep.subr.mxu0 0.0
    %5713 = vmatpush1.msra.mxu0 %v4851
    %5714 = vmatprep.subr.mxu0 0.0
    %5715 = vmatpush1.msra.mxu0 %v4850
    %5716 = vmatprep.subr.mxu0 0.0
    %5717 = vmatpush1.msra.mxu0 %v4849
    %5718 = vmatprep.subr.mxu0 0.0
    %5719 = vmatpush1.msra.mxu0 %v4848
    %5720 = vmatprep.subr.mxu0 0.0
    %5721 = vmatpush1.msra.mxu0 %v4847
    %5722 = vmatprep.subr.mxu0 0.0
    %5723 = vmatpush1.msra.mxu0 %v4846
    %5724 = vmatprep.subr.mxu0 0.0
    %5725 = vmatpush1.msra.mxu0 %v4845
    %5726 = vmatprep.subr.mxu0 0.0
    %5727 = vmatpush1.msra.mxu0 %v4844
    %5728 = vmatprep.subr.mxu0 0.0
    %5729 = vmatpush1.msra.mxu0 %v4843
    %5730 = vmatprep.subr.mxu0 0.0
    %5731 = vmatpush1.msra.mxu0 %v4842
    %5732 = vmatprep.subr.mxu0 0.0
    %5733 = vmatpush2.msra.mxu0 %v4873
    %5734 = vmatprep.subr.mxu0 0.0
    %5735 = vmatpush2.msra.mxu0 %v4872
    %5736 = vmatprep.subr.mxu0 0.0
    %5737 = vmatpush2.msra.mxu0 %v4871
    %5738 = vmatprep.subr.mxu0 0.0
    %5739 = vmatpush2.msra.mxu0 %v4870
    %5740 = vmatprep.subr.mxu0 0.0
    %5741 = vmatpush2.msra.mxu0 %v4869
    %5742 = vmatprep.subr.mxu0 0.0
    %5743 = vmatpush2.msra.mxu0 %v4868
    %5744 = vmatprep.subr.mxu0 0.0
    %5745 = vmatpush2.msra.mxu0 %v4867
    %5746 = vmatprep.subr.mxu0 0.0
    %5747 = vmatpush2.msra.mxu0 %v4866
    %5748 = vmatprep.subr.mxu0 0.0
    %5749 = vmatpush2.msra.mxu0 %v4865
    %5750 = vmatprep.subr.mxu0 0.0
    %5751 = vmatpush2.msra.mxu0 %v4864
    %5752 = vmatprep.subr.mxu0 0.0
    %5753 = vmatpush2.msra.mxu0 %v4863
    %5754 = vmatprep.subr.mxu0 0.0
    %5755 = vmatpush2.msra.mxu0 %v4862
    %5756 = vmatprep.subr.mxu0 0.0
    %5757 = vmatpush2.msra.mxu0 %v4861
    %5758 = vmatprep.subr.mxu0 0.0
    %5759 = vmatpush2.msra.mxu0 %v4860
    %5760 = vmatprep.subr.mxu0 0.0
    %5761 = vmatpush2.msra.mxu0 %v4859
    %5762 = vmatprep.subr.mxu0 0.0
    %5763 = vmatpush2.msra.mxu0 %v4858
    %5764 = vmatprep.mubr.f32.mxu0 %v4521
    %5765 = vmatmul.mubr.f32.gmra.mxu0 %v4457
    %v5766 = vpop.f32.mrf.mxu0
    %v5767 = vadd.f32 %v5382, %v5766
    %v5768 = vpop.f32.mrf.mxu0
    %5769 = vmatprep.mubr.f32.mxu0 %v4522
    %5770 = vmatmul.mubr.f32.gmra.mxu0 %v4458
    %v5771 = vpop.f32.mrf.mxu0
    %v5772 = vadd.f32 %v5387, %v5771
    %v5773 = vpop.f32.mrf.mxu0
    %5774 = vmatprep.mubr.f32.mxu0 %v4523
    %5775 = vmatmul.mubr.f32.gmra.mxu0 %v4459
    %v5776 = vpop.f32.mrf.mxu0
    %v5777 = vadd.f32 %v5392, %v5776
    %v5778 = vpop.f32.mrf.mxu0
    %5779 = vmatprep.mubr.f32.mxu0 %v4524
    %5780 = vmatmul.mubr.f32.gmra.mxu0 %v4460
    %v5781 = vpop.f32.mrf.mxu0
    %v5782 = vadd.f32 %v5397, %v5781
    %v5783 = vpop.f32.mrf.mxu0
    %5784 = vmatprep.mubr.f32.mxu0 %v4525
    %5785 = vmatmul.mubr.f32.gmra.mxu0 %v4461
    %v5786 = vpop.f32.mrf.mxu0
    %v5787 = vadd.f32 %v5402, %v5786
    %v5788 = vpop.f32.mrf.mxu0
    %5789 = vmatprep.mubr.f32.mxu0 %v4526
    %5790 = vmatmul.mubr.f32.gmra.mxu0 %v4462
    %v5791 = vpop.f32.mrf.mxu0
    %v5792 = vadd.f32 %v5407, %v5791
    %v5793 = vpop.f32.mrf.mxu0
    %5794 = vmatprep.mubr.f32.mxu0 %v4527
    %5795 = vmatmul.mubr.f32.gmra.mxu0 %v4463
    %v5796 = vpop.f32.mrf.mxu0
    %v5797 = vadd.f32 %v5412, %v5796
    %v5798 = vpop.f32.mrf.mxu0
    %5799 = vmatprep.mubr.f32.mxu0 %v4528
    %5800 = vmatmul.mubr.f32.gmra.mxu0 %v4464
    %v5801 = vpop.f32.mrf.mxu0
    %v5802 = vadd.f32 %v5417, %v5801
    %v5803 = vpop.f32.mrf.mxu0
    %5804 = vmatprep.mubr.f32.mxu0 %v4529
    %5805 = vmatmul.mubr.f32.gmra.mxu0 %v4465
    %v5806 = vpop.f32.mrf.mxu0
    %v5807 = vadd.f32 %v5422, %v5806
    %v5808 = vpop.f32.mrf.mxu0
    %5809 = vmatprep.mubr.f32.mxu0 %v4530
    %5810 = vmatmul.mubr.f32.gmra.mxu0 %v4466
    %v5811 = vpop.f32.mrf.mxu0
    %v5812 = vadd.f32 %v5427, %v5811
    %v5813 = vpop.f32.mrf.mxu0
    %5814 = vmatprep.mubr.f32.mxu0 %v4531
    %5815 = vmatmul.mubr.f32.gmra.mxu0 %v4467
    %v5816 = vpop.f32.mrf.mxu0
    %v5817 = vadd.f32 %v5432, %v5816
    %v5818 = vpop.f32.mrf.mxu0
    %5819 = vmatprep.mubr.f32.mxu0 %v4532
    %5820 = vmatmul.mubr.f32.gmra.mxu0 %v4468
    %v5821 = vpop.f32.mrf.mxu0
    %v5822 = vadd.f32 %v5437, %v5821
    %v5823 = vpop.f32.mrf.mxu0
    %5824 = vmatprep.mubr.f32.mxu0 %v4533
    %5825 = vmatmul.mubr.f32.gmra.mxu0 %v4469
    %v5826 = vpop.f32.mrf.mxu0
    %v5827 = vadd.f32 %v5442, %v5826
    %v5828 = vpop.f32.mrf.mxu0
    %5829 = vmatprep.mubr.f32.mxu0 %v4534
    %5830 = vmatmul.mubr.f32.gmra.mxu0 %v4470
    %v5831 = vpop.f32.mrf.mxu0
    %v5832 = vadd.f32 %v5447, %v5831
    %v5833 = vpop.f32.mrf.mxu0
    %5834 = vmatprep.mubr.f32.mxu0 %v4535
    %5835 = vmatmul.mubr.f32.gmra.mxu0 %v4471
    %v5836 = vpop.f32.mrf.mxu0
    %v5837 = vadd.f32 %v5452, %v5836
    %v5838 = vpop.f32.mrf.mxu0
    %5839 = vmatprep.mubr.f32.mxu0 %v4536
    %5840 = vmatmul.mubr.f32.gmra.mxu0 %v4472
    %v5841 = vpop.f32.mrf.mxu0
    %v5842 = vadd.f32 %v5457, %v5841
    %v5843 = vpop.f32.mrf.mxu0
    %5844 = vmatprep.mubr.f32.mxu0 %v4537
    %5845 = vmatmul.mubr.f32.gmra.mxu0 %v4473
    %v5846 = vpop.f32.mrf.mxu0
    %v5847 = vadd.f32 %v5462, %v5846
    %v5848 = vpop.f32.mrf.mxu0
    %5849 = vmatprep.mubr.f32.mxu0 %v4538
    %5850 = vmatmul.mubr.f32.gmra.mxu0 %v4474
    %v5851 = vpop.f32.mrf.mxu0
    %v5852 = vadd.f32 %v5467, %v5851
    %v5853 = vpop.f32.mrf.mxu0
    %5854 = vmatprep.mubr.f32.mxu0 %v4539
    %5855 = vmatmul.mubr.f32.gmra.mxu0 %v4475
    %v5856 = vpop.f32.mrf.mxu0
    %v5857 = vadd.f32 %v5472, %v5856
    %v5858 = vpop.f32.mrf.mxu0
    %5859 = vmatprep.mubr.f32.mxu0 %v4540
    %5860 = vmatmul.mubr.f32.gmra.mxu0 %v4476
    %v5861 = vpop.f32.mrf.mxu0
    %v5862 = vadd.f32 %v5477, %v5861
    %v5863 = vpop.f32.mrf.mxu0
    %5864 = vmatprep.mubr.f32.mxu0 %v4541
    %5865 = vmatmul.mubr.f32.gmra.mxu0 %v4477
    %v5866 = vpop.f32.mrf.mxu0
    %v5867 = vadd.f32 %v5482, %v5866
    %v5868 = vpop.f32.mrf.mxu0
    %5869 = vmatprep.mubr.f32.mxu0 %v4542
    %5870 = vmatmul.mubr.f32.gmra.mxu0 %v4478
    %v5871 = vpop.f32.mrf.mxu0
    %v5872 = vadd.f32 %v5487, %v5871
    %v5873 = vpop.f32.mrf.mxu0
    %5874 = vmatprep.mubr.f32.mxu0 %v4543
    %5875 = vmatmul.mubr.f32.gmra.mxu0 %v4479
    %v5876 = vpop.f32.mrf.mxu0
    %v5877 = vadd.f32 %v5492, %v5876
    %v5878 = vpop.f32.mrf.mxu0
    %5879 = vmatprep.mubr.f32.mxu0 %v4544
    %5880 = vmatmul.mubr.f32.gmra.mxu0 %v4480
    %v5881 = vpop.f32.mrf.mxu0
    %v5882 = vadd.f32 %v5497, %v5881
    %v5883 = vpop.f32.mrf.mxu0
    %5884 = vmatprep.mubr.f32.mxu0 %v4545
    %5885 = vmatmul.mubr.f32.gmra.mxu0 %v4481
    %v5886 = vpop.f32.mrf.mxu0
    %v5887 = vadd.f32 %v5502, %v5886
    %v5888 = vpop.f32.mrf.mxu0
    %5889 = vmatprep.mubr.f32.mxu0 %v4546
    %5890 = vmatmul.mubr.f32.gmra.mxu0 %v4482
    %v5891 = vpop.f32.mrf.mxu0
    %v5892 = vadd.f32 %v5507, %v5891
    %v5893 = vpop.f32.mrf.mxu0
    %5894 = vmatprep.mubr.f32.mxu0 %v4547
    %5895 = vmatmul.mubr.f32.gmra.mxu0 %v4483
    %v5896 = vpop.f32.mrf.mxu0
    %v5897 = vadd.f32 %v5512, %v5896
    %v5898 = vpop.f32.mrf.mxu0
    %5899 = vmatprep.mubr.f32.mxu0 %v4548
    %5900 = vmatmul.mubr.f32.gmra.mxu0 %v4484
    %v5901 = vpop.f32.mrf.mxu0
    %v5902 = vadd.f32 %v5517, %v5901
    %v5903 = vpop.f32.mrf.mxu0
    %5904 = vmatprep.mubr.f32.mxu0 %v4549
    %5905 = vmatmul.mubr.f32.gmra.mxu0 %v4485
    %v5906 = vpop.f32.mrf.mxu0
    %v5907 = vadd.f32 %v5522, %v5906
    %v5908 = vpop.f32.mrf.mxu0
    %5909 = vmatprep.mubr.f32.mxu0 %v4550
    %5910 = vmatmul.mubr.f32.gmra.mxu0 %v4486
    %v5911 = vpop.f32.mrf.mxu0
    %v5912 = vadd.f32 %v5527, %v5911
    %v5913 = vpop.f32.mrf.mxu0
    %5914 = vmatprep.mubr.f32.mxu0 %v4551
    %5915 = vmatmul.mubr.f32.gmra.mxu0 %v4487
    %v5916 = vpop.f32.mrf.mxu0
    %v5917 = vadd.f32 %v5532, %v5916
    %v5918 = vpop.f32.mrf.mxu0
    %5919 = vmatprep.mubr.f32.mxu0 %v4552
    %5920 = vmatmul.mubr.f32.gmra.mxu0 %v4488
    %v5921 = vpop.f32.mrf.mxu0
    %v5922 = vadd.f32 %v5537, %v5921
    %v5923 = vpop.f32.mrf.mxu0
    %5924 = vmatprep.mubr.f32.mxu0 %v4553
    %5925 = vmatmul.mubr.f32.gmra.mxu0 %v4489
    %v5926 = vpop.f32.mrf.mxu0
    %v5927 = vadd.f32 %v5542, %v5926
    %v5928 = vpop.f32.mrf.mxu0
    %5929 = vmatprep.mubr.f32.mxu0 %v4554
    %5930 = vmatmul.mubr.f32.gmra.mxu0 %v4490
    %v5931 = vpop.f32.mrf.mxu0
    %v5932 = vadd.f32 %v5547, %v5931
    %v5933 = vpop.f32.mrf.mxu0
    %5934 = vmatprep.mubr.f32.mxu0 %v4555
    %5935 = vmatmul.mubr.f32.gmra.mxu0 %v4491
    %v5936 = vpop.f32.mrf.mxu0
    %v5937 = vadd.f32 %v5552, %v5936
    %v5938 = vpop.f32.mrf.mxu0
    %5939 = vmatprep.mubr.f32.mxu0 %v4556
    %5940 = vmatmul.mubr.f32.gmra.mxu0 %v4492
    %v5941 = vpop.f32.mrf.mxu0
    %v5942 = vadd.f32 %v5557, %v5941
    %v5943 = vpop.f32.mrf.mxu0
    %5944 = vmatprep.mubr.f32.mxu0 %v4557
    %5945 = vmatmul.mubr.f32.gmra.mxu0 %v4493
    %v5946 = vpop.f32.mrf.mxu0
    %v5947 = vadd.f32 %v5562, %v5946
    %v5948 = vpop.f32.mrf.mxu0
    %5949 = vmatprep.mubr.f32.mxu0 %v4558
    %5950 = vmatmul.mubr.f32.gmra.mxu0 %v4494
    %v5951 = vpop.f32.mrf.mxu0
    %v5952 = vadd.f32 %v5567, %v5951
    %v5953 = vpop.f32.mrf.mxu0
    %5954 = vmatprep.mubr.f32.mxu0 %v4559
    %5955 = vmatmul.mubr.f32.gmra.mxu0 %v4495
    %v5956 = vpop.f32.mrf.mxu0
    %v5957 = vadd.f32 %v5572, %v5956
    %v5958 = vpop.f32.mrf.mxu0
    %5959 = vmatprep.mubr.f32.mxu0 %v4560
    %5960 = vmatmul.mubr.f32.gmra.mxu0 %v4496
    %v5961 = vpop.f32.mrf.mxu0
    %v5962 = vadd.f32 %v5577, %v5961
    %v5963 = vpop.f32.mrf.mxu0
    %5964 = vmatprep.mubr.f32.mxu0 %v4561
    %5965 = vmatmul.mubr.f32.gmra.mxu0 %v4497
    %v5966 = vpop.f32.mrf.mxu0
    %v5967 = vadd.f32 %v5582, %v5966
    %v5968 = vpop.f32.mrf.mxu0
    %5969 = vmatprep.mubr.f32.mxu0 %v4562
    %5970 = vmatmul.mubr.f32.gmra.mxu0 %v4498
    %v5971 = vpop.f32.mrf.mxu0
    %v5972 = vadd.f32 %v5587, %v5971
    %v5973 = vpop.f32.mrf.mxu0
    %5974 = vmatprep.mubr.f32.mxu0 %v4563
    %5975 = vmatmul.mubr.f32.gmra.mxu0 %v4499
    %v5976 = vpop.f32.mrf.mxu0
    %v5977 = vadd.f32 %v5592, %v5976
    %v5978 = vpop.f32.mrf.mxu0
    %5979 = vmatprep.mubr.f32.mxu0 %v4564
    %5980 = vmatmul.mubr.f32.gmra.mxu0 %v4500
    %v5981 = vpop.f32.mrf.mxu0
    %v5982 = vadd.f32 %v5597, %v5981
    %v5983 = vpop.f32.mrf.mxu0
    %5984 = vmatprep.mubr.f32.mxu0 %v4565
    %5985 = vmatmul.mubr.f32.gmra.mxu0 %v4501
    %v5986 = vpop.f32.mrf.mxu0
    %v5987 = vadd.f32 %v5602, %v5986
    %v5988 = vpop.f32.mrf.mxu0
    %5989 = vmatprep.mubr.f32.mxu0 %v4566
    %5990 = vmatmul.mubr.f32.gmra.mxu0 %v4502
    %v5991 = vpop.f32.mrf.mxu0
    %v5992 = vadd.f32 %v5607, %v5991
    %v5993 = vpop.f32.mrf.mxu0
    %5994 = vmatprep.mubr.f32.mxu0 %v4567
    %5995 = vmatmul.mubr.f32.gmra.mxu0 %v4503
    %v5996 = vpop.f32.mrf.mxu0
    %v5997 = vadd.f32 %v5612, %v5996
    %v5998 = vpop.f32.mrf.mxu0
    %5999 = vmatprep.mubr.f32.mxu0 %v4568
    %6000 = vmatmul.mubr.f32.gmra.mxu0 %v4504
    %v6001 = vpop.f32.mrf.mxu0
    %v6002 = vadd.f32 %v5617, %v6001
    %v6003 = vpop.f32.mrf.mxu0
    %6004 = vmatprep.mubr.f32.mxu0 %v4569
    %6005 = vmatmul.mubr.f32.gmra.mxu0 %v4505
    %v6006 = vpop.f32.mrf.mxu0
    %v6007 = vadd.f32 %v5622, %v6006
    %v6008 = vpop.f32.mrf.mxu0
    %6009 = vmatprep.mubr.f32.mxu0 %v4570
    %6010 = vmatmul.mubr.f32.gmra.mxu0 %v4506
    %v6011 = vpop.f32.mrf.mxu0
    %v6012 = vadd.f32 %v5627, %v6011
    %v6013 = vpop.f32.mrf.mxu0
    %6014 = vmatprep.mubr.f32.mxu0 %v4571
    %6015 = vmatmul.mubr.f32.gmra.mxu0 %v4507
    %v6016 = vpop.f32.mrf.mxu0
    %v6017 = vadd.f32 %v5632, %v6016
    %v6018 = vpop.f32.mrf.mxu0
    %6019 = vmatprep.mubr.f32.mxu0 %v4572
    %6020 = vmatmul.mubr.f32.gmra.mxu0 %v4508
    %v6021 = vpop.f32.mrf.mxu0
    %v6022 = vadd.f32 %v5637, %v6021
    %v6023 = vpop.f32.mrf.mxu0
    %6024 = vmatprep.mubr.f32.mxu0 %v4573
    %6025 = vmatmul.mubr.f32.gmra.mxu0 %v4509
    %v6026 = vpop.f32.mrf.mxu0
    %v6027 = vadd.f32 %v5642, %v6026
    %v6028 = vpop.f32.mrf.mxu0
    %6029 = vmatprep.mubr.f32.mxu0 %v4574
    %6030 = vmatmul.mubr.f32.gmra.mxu0 %v4510
    %v6031 = vpop.f32.mrf.mxu0
    %v6032 = vadd.f32 %v5647, %v6031
    %v6033 = vpop.f32.mrf.mxu0
    %6034 = vmatprep.mubr.f32.mxu0 %v4575
    %6035 = vmatmul.mubr.f32.gmra.mxu0 %v4511
    %v6036 = vpop.f32.mrf.mxu0
    %v6037 = vadd.f32 %v5652, %v6036
    %v6038 = vpop.f32.mrf.mxu0
    %6039 = vmatprep.mubr.f32.mxu0 %v4576
    %6040 = vmatmul.mubr.f32.gmra.mxu0 %v4512
    %v6041 = vpop.f32.mrf.mxu0
    %v6042 = vadd.f32 %v5657, %v6041
    %v6043 = vpop.f32.mrf.mxu0
    %6044 = vmatprep.mubr.f32.mxu0 %v4577
    %6045 = vmatmul.mubr.f32.gmra.mxu0 %v4513
    %v6046 = vpop.f32.mrf.mxu0
    %v6047 = vadd.f32 %v5662, %v6046
    %v6048 = vpop.f32.mrf.mxu0
    %6049 = vmatprep.mubr.f32.mxu0 %v4578
    %6050 = vmatmul.mubr.f32.gmra.mxu0 %v4514
    %v6051 = vpop.f32.mrf.mxu0
    %v6052 = vadd.f32 %v5667, %v6051
    %v6053 = vpop.f32.mrf.mxu0
    %6054 = vmatprep.mubr.f32.mxu0 %v4579
    %6055 = vmatmul.mubr.f32.gmra.mxu0 %v4515
    %v6056 = vpop.f32.mrf.mxu0
    %v6057 = vadd.f32 %v5672, %v6056
    %v6058 = vpop.f32.mrf.mxu0
    %6059 = vmatprep.mubr.f32.mxu0 %v4580
    %6060 = vmatmul.mubr.f32.gmra.mxu0 %v4516
    %v6061 = vpop.f32.mrf.mxu0
    %v6062 = vadd.f32 %v5677, %v6061
    %v6063 = vpop.f32.mrf.mxu0
    %6064 = vmatprep.mubr.f32.mxu0 %v4581
    %6065 = vmatmul.mubr.f32.gmra.mxu0 %v4517
    %v6066 = vpop.f32.mrf.mxu0
    %v6067 = vadd.f32 %v5682, %v6066
    %v6068 = vpop.f32.mrf.mxu0
    %6069 = vmatprep.mubr.f32.mxu0 %v4582
    %6070 = vmatmul.mubr.f32.gmra.mxu0 %v4518
    %v6071 = vpop.f32.mrf.mxu0
    %v6072 = vadd.f32 %v5687, %v6071
    %v6073 = vpop.f32.mrf.mxu0
    %6074 = vmatprep.mubr.f32.mxu0 %v4583
    %6075 = vmatmul.mubr.f32.gmra.mxu0 %v4519
    %v6076 = vpop.f32.mrf.mxu0
    %v6077 = vadd.f32 %v5692, %v6076
    %v6078 = vpop.f32.mrf.mxu0
    %6079 = vmatprep.mubr.f32.mxu0 %v4584
    %6080 = vmatmul.mubr.f32.gmra.mxu0 %v4520
    %v6081 = vpop.f32.mrf.mxu0
    %v6082 = vadd.f32 %v5697, %v6081
    %v6083 = vpop.f32.mrf.mxu0
    %6084 = vdwg.mxu0
    %6085 = vmatprep.subr.mxu0 0.0
    %6086 = vmatpush1.msra.mxu0 %v4889
    %6087 = vmatprep.subr.mxu0 0.0
    %6088 = vmatpush1.msra.mxu0 %v4888
    %6089 = vmatprep.subr.mxu0 0.0
    %6090 = vmatpush1.msra.mxu0 %v4887
    %6091 = vmatprep.subr.mxu0 0.0
    %6092 = vmatpush1.msra.mxu0 %v4886
    %6093 = vmatprep.subr.mxu0 0.0
    %6094 = vmatpush1.msra.mxu0 %v4885
    %6095 = vmatprep.subr.mxu0 0.0
    %6096 = vmatpush1.msra.mxu0 %v4884
    %6097 = vmatprep.subr.mxu0 0.0
    %6098 = vmatpush1.msra.mxu0 %v4883
    %6099 = vmatprep.subr.mxu0 0.0
    %6100 = vmatpush1.msra.mxu0 %v4882
    %6101 = vmatprep.subr.mxu0 0.0
    %6102 = vmatpush1.msra.mxu0 %v4881
    %6103 = vmatprep.subr.mxu0 0.0
    %6104 = vmatpush1.msra.mxu0 %v4880
    %6105 = vmatprep.subr.mxu0 0.0
    %6106 = vmatpush1.msra.mxu0 %v4879
    %6107 = vmatprep.subr.mxu0 0.0
    %6108 = vmatpush1.msra.mxu0 %v4878
    %6109 = vmatprep.subr.mxu0 0.0
    %6110 = vmatpush1.msra.mxu0 %v4877
    %6111 = vmatprep.subr.mxu0 0.0
    %6112 = vmatpush1.msra.mxu0 %v4876
    %6113 = vmatprep.subr.mxu0 0.0
    %6114 = vmatpush1.msra.mxu0 %v4875
    %6115 = vmatprep.subr.mxu0 0.0
    %6116 = vmatpush1.msra.mxu0 %v4874
    %6117 = vmatprep.subr.mxu0 0.0
    %6118 = vmatpush2.msra.mxu0 %v4905
    %6119 = vmatprep.subr.mxu0 0.0
    %6120 = vmatpush2.msra.mxu0 %v4904
    %6121 = vmatprep.subr.mxu0 0.0
    %6122 = vmatpush2.msra.mxu0 %v4903
    %6123 = vmatprep.subr.mxu0 0.0
    %6124 = vmatpush2.msra.mxu0 %v4902
    %6125 = vmatprep.subr.mxu0 0.0
    %6126 = vmatpush2.msra.mxu0 %v4901
    %6127 = vmatprep.subr.mxu0 0.0
    %6128 = vmatpush2.msra.mxu0 %v4900
    %6129 = vmatprep.subr.mxu0 0.0
    %6130 = vmatpush2.msra.mxu0 %v4899
    %6131 = vmatprep.subr.mxu0 0.0
    %6132 = vmatpush2.msra.mxu0 %v4898
    %6133 = vmatprep.subr.mxu0 0.0
    %6134 = vmatpush2.msra.mxu0 %v4897
    %6135 = vmatprep.subr.mxu0 0.0
    %6136 = vmatpush2.msra.mxu0 %v4896
    %6137 = vmatprep.subr.mxu0 0.0
    %6138 = vmatpush2.msra.mxu0 %v4895
    %6139 = vmatprep.subr.mxu0 0.0
    %6140 = vmatpush2.msra.mxu0 %v4894
    %6141 = vmatprep.subr.mxu0 0.0
    %6142 = vmatpush2.msra.mxu0 %v4893
    %6143 = vmatprep.subr.mxu0 0.0
    %6144 = vmatpush2.msra.mxu0 %v4892
    %6145 = vmatprep.subr.mxu0 0.0
    %6146 = vmatpush2.msra.mxu0 %v4891
    %6147 = vmatprep.subr.mxu0 0.0
    %6148 = vmatpush2.msra.mxu0 %v4890
    %6149 = vmatprep.mubr.f32.mxu0 %v4649
    %6150 = vmatmul.mubr.f32.gmra.mxu0 %v4585
    %v6151 = vpop.f32.mrf.mxu0
    %v6152 = vadd.f32 %v5767, %v6151
    %v6153 = vpop.f32.mrf.mxu0
    %6154 = vmatprep.mubr.f32.mxu0 %v4650
    %6155 = vmatmul.mubr.f32.gmra.mxu0 %v4586
    %v6156 = vpop.f32.mrf.mxu0
    %v6157 = vadd.f32 %v5772, %v6156
    %v6158 = vpop.f32.mrf.mxu0
    %6159 = vmatprep.mubr.f32.mxu0 %v4651
    %6160 = vmatmul.mubr.f32.gmra.mxu0 %v4587
    %v6161 = vpop.f32.mrf.mxu0
    %v6162 = vadd.f32 %v5777, %v6161
    %v6163 = vpop.f32.mrf.mxu0
    %6164 = vmatprep.mubr.f32.mxu0 %v4652
    %6165 = vmatmul.mubr.f32.gmra.mxu0 %v4588
    %v6166 = vpop.f32.mrf.mxu0
    %v6167 = vadd.f32 %v5782, %v6166
    %v6168 = vpop.f32.mrf.mxu0
    %6169 = vmatprep.mubr.f32.mxu0 %v4653
    %6170 = vmatmul.mubr.f32.gmra.mxu0 %v4589
    %v6171 = vpop.f32.mrf.mxu0
    %v6172 = vadd.f32 %v5787, %v6171
    %v6173 = vpop.f32.mrf.mxu0
    %6174 = vmatprep.mubr.f32.mxu0 %v4654
    %6175 = vmatmul.mubr.f32.gmra.mxu0 %v4590
    %v6176 = vpop.f32.mrf.mxu0
    %v6177 = vadd.f32 %v5792, %v6176
    %v6178 = vpop.f32.mrf.mxu0
    %6179 = vmatprep.mubr.f32.mxu0 %v4655
    %6180 = vmatmul.mubr.f32.gmra.mxu0 %v4591
    %v6181 = vpop.f32.mrf.mxu0
    %v6182 = vadd.f32 %v5797, %v6181
    %v6183 = vpop.f32.mrf.mxu0
    %6184 = vmatprep.mubr.f32.mxu0 %v4656
    %6185 = vmatmul.mubr.f32.gmra.mxu0 %v4592
    %v6186 = vpop.f32.mrf.mxu0
    %v6187 = vadd.f32 %v5802, %v6186
    %v6188 = vpop.f32.mrf.mxu0
    %6189 = vmatprep.mubr.f32.mxu0 %v4657
    %6190 = vmatmul.mubr.f32.gmra.mxu0 %v4593
    %v6191 = vpop.f32.mrf.mxu0
    %v6192 = vadd.f32 %v5807, %v6191
    %v6193 = vpop.f32.mrf.mxu0
    %6194 = vmatprep.mubr.f32.mxu0 %v4658
    %6195 = vmatmul.mubr.f32.gmra.mxu0 %v4594
    %v6196 = vpop.f32.mrf.mxu0
    %v6197 = vadd.f32 %v5812, %v6196
    %v6198 = vpop.f32.mrf.mxu0
    %6199 = vmatprep.mubr.f32.mxu0 %v4659
    %6200 = vmatmul.mubr.f32.gmra.mxu0 %v4595
    %v6201 = vpop.f32.mrf.mxu0
    %v6202 = vadd.f32 %v5817, %v6201
    %v6203 = vpop.f32.mrf.mxu0
    %6204 = vmatprep.mubr.f32.mxu0 %v4660
    %6205 = vmatmul.mubr.f32.gmra.mxu0 %v4596
    %v6206 = vpop.f32.mrf.mxu0
    %v6207 = vadd.f32 %v5822, %v6206
    %v6208 = vpop.f32.mrf.mxu0
    %6209 = vmatprep.mubr.f32.mxu0 %v4661
    %6210 = vmatmul.mubr.f32.gmra.mxu0 %v4597
    %v6211 = vpop.f32.mrf.mxu0
    %v6212 = vadd.f32 %v5827, %v6211
    %v6213 = vpop.f32.mrf.mxu0
    %6214 = vmatprep.mubr.f32.mxu0 %v4662
    %6215 = vmatmul.mubr.f32.gmra.mxu0 %v4598
    %v6216 = vpop.f32.mrf.mxu0
    %v6217 = vadd.f32 %v5832, %v6216
    %v6218 = vpop.f32.mrf.mxu0
    %6219 = vmatprep.mubr.f32.mxu0 %v4663
    %6220 = vmatmul.mubr.f32.gmra.mxu0 %v4599
    %v6221 = vpop.f32.mrf.mxu0
    %v6222 = vadd.f32 %v5837, %v6221
    %v6223 = vpop.f32.mrf.mxu0
    %6224 = vmatprep.mubr.f32.mxu0 %v4664
    %6225 = vmatmul.mubr.f32.gmra.mxu0 %v4600
    %v6226 = vpop.f32.mrf.mxu0
    %v6227 = vadd.f32 %v5842, %v6226
    %v6228 = vpop.f32.mrf.mxu0
    %6229 = vmatprep.mubr.f32.mxu0 %v4665
    %6230 = vmatmul.mubr.f32.gmra.mxu0 %v4601
    %v6231 = vpop.f32.mrf.mxu0
    %v6232 = vadd.f32 %v5847, %v6231
    %v6233 = vpop.f32.mrf.mxu0
    %6234 = vmatprep.mubr.f32.mxu0 %v4666
    %6235 = vmatmul.mubr.f32.gmra.mxu0 %v4602
    %v6236 = vpop.f32.mrf.mxu0
    %v6237 = vadd.f32 %v5852, %v6236
    %v6238 = vpop.f32.mrf.mxu0
    %6239 = vmatprep.mubr.f32.mxu0 %v4667
    %6240 = vmatmul.mubr.f32.gmra.mxu0 %v4603
    %v6241 = vpop.f32.mrf.mxu0
    %v6242 = vadd.f32 %v5857, %v6241
    %v6243 = vpop.f32.mrf.mxu0
    %6244 = vmatprep.mubr.f32.mxu0 %v4668
    %6245 = vmatmul.mubr.f32.gmra.mxu0 %v4604
    %v6246 = vpop.f32.mrf.mxu0
    %v6247 = vadd.f32 %v5862, %v6246
    %v6248 = vpop.f32.mrf.mxu0
    %6249 = vmatprep.mubr.f32.mxu0 %v4669
    %6250 = vmatmul.mubr.f32.gmra.mxu0 %v4605
    %v6251 = vpop.f32.mrf.mxu0
    %v6252 = vadd.f32 %v5867, %v6251
    %v6253 = vpop.f32.mrf.mxu0
    %6254 = vmatprep.mubr.f32.mxu0 %v4670
    %6255 = vmatmul.mubr.f32.gmra.mxu0 %v4606
    %v6256 = vpop.f32.mrf.mxu0
    %v6257 = vadd.f32 %v5872, %v6256
    %v6258 = vpop.f32.mrf.mxu0
    %6259 = vmatprep.mubr.f32.mxu0 %v4671
    %6260 = vmatmul.mubr.f32.gmra.mxu0 %v4607
    %v6261 = vpop.f32.mrf.mxu0
    %v6262 = vadd.f32 %v5877, %v6261
    %v6263 = vpop.f32.mrf.mxu0
    %6264 = vmatprep.mubr.f32.mxu0 %v4672
    %6265 = vmatmul.mubr.f32.gmra.mxu0 %v4608
    %v6266 = vpop.f32.mrf.mxu0
    %v6267 = vadd.f32 %v5882, %v6266
    %v6268 = vpop.f32.mrf.mxu0
    %6269 = vmatprep.mubr.f32.mxu0 %v4673
    %6270 = vmatmul.mubr.f32.gmra.mxu0 %v4609
    %v6271 = vpop.f32.mrf.mxu0
    %v6272 = vadd.f32 %v5887, %v6271
    %v6273 = vpop.f32.mrf.mxu0
    %6274 = vmatprep.mubr.f32.mxu0 %v4674
    %6275 = vmatmul.mubr.f32.gmra.mxu0 %v4610
    %v6276 = vpop.f32.mrf.mxu0
    %v6277 = vadd.f32 %v5892, %v6276
    %v6278 = vpop.f32.mrf.mxu0
    %6279 = vmatprep.mubr.f32.mxu0 %v4675
    %6280 = vmatmul.mubr.f32.gmra.mxu0 %v4611
    %v6281 = vpop.f32.mrf.mxu0
    %v6282 = vadd.f32 %v5897, %v6281
    %v6283 = vpop.f32.mrf.mxu0
    %6284 = vmatprep.mubr.f32.mxu0 %v4676
    %6285 = vmatmul.mubr.f32.gmra.mxu0 %v4612
    %v6286 = vpop.f32.mrf.mxu0
    %v6287 = vadd.f32 %v5902, %v6286
    %v6288 = vpop.f32.mrf.mxu0
    %6289 = vmatprep.mubr.f32.mxu0 %v4677
    %6290 = vmatmul.mubr.f32.gmra.mxu0 %v4613
    %v6291 = vpop.f32.mrf.mxu0
    %v6292 = vadd.f32 %v5907, %v6291
    %v6293 = vpop.f32.mrf.mxu0
    %6294 = vmatprep.mubr.f32.mxu0 %v4678
    %6295 = vmatmul.mubr.f32.gmra.mxu0 %v4614
    %v6296 = vpop.f32.mrf.mxu0
    %v6297 = vadd.f32 %v5912, %v6296
    %v6298 = vpop.f32.mrf.mxu0
    %6299 = vmatprep.mubr.f32.mxu0 %v4679
    %6300 = vmatmul.mubr.f32.gmra.mxu0 %v4615
    %v6301 = vpop.f32.mrf.mxu0
    %v6302 = vadd.f32 %v5917, %v6301
    %v6303 = vpop.f32.mrf.mxu0
    %6304 = vmatprep.mubr.f32.mxu0 %v4680
    %6305 = vmatmul.mubr.f32.gmra.mxu0 %v4616
    %v6306 = vpop.f32.mrf.mxu0
    %v6307 = vadd.f32 %v5922, %v6306
    %v6308 = vpop.f32.mrf.mxu0
    %6309 = vmatprep.mubr.f32.mxu0 %v4681
    %6310 = vmatmul.mubr.f32.gmra.mxu0 %v4617
    %v6311 = vpop.f32.mrf.mxu0
    %v6312 = vadd.f32 %v5927, %v6311
    %v6313 = vpop.f32.mrf.mxu0
    %6314 = vmatprep.mubr.f32.mxu0 %v4682
    %6315 = vmatmul.mubr.f32.gmra.mxu0 %v4618
    %v6316 = vpop.f32.mrf.mxu0
    %v6317 = vadd.f32 %v5932, %v6316
    %v6318 = vpop.f32.mrf.mxu0
    %6319 = vmatprep.mubr.f32.mxu0 %v4683
    %6320 = vmatmul.mubr.f32.gmra.mxu0 %v4619
    %v6321 = vpop.f32.mrf.mxu0
    %v6322 = vadd.f32 %v5937, %v6321
    %v6323 = vpop.f32.mrf.mxu0
    %6324 = vmatprep.mubr.f32.mxu0 %v4684
    %6325 = vmatmul.mubr.f32.gmra.mxu0 %v4620
    %v6326 = vpop.f32.mrf.mxu0
    %v6327 = vadd.f32 %v5942, %v6326
    %v6328 = vpop.f32.mrf.mxu0
    %6329 = vmatprep.mubr.f32.mxu0 %v4685
    %6330 = vmatmul.mubr.f32.gmra.mxu0 %v4621
    %v6331 = vpop.f32.mrf.mxu0
    %v6332 = vadd.f32 %v5947, %v6331
    %v6333 = vpop.f32.mrf.mxu0
    %6334 = vmatprep.mubr.f32.mxu0 %v4686
    %6335 = vmatmul.mubr.f32.gmra.mxu0 %v4622
    %v6336 = vpop.f32.mrf.mxu0
    %v6337 = vadd.f32 %v5952, %v6336
    %v6338 = vpop.f32.mrf.mxu0
    %6339 = vmatprep.mubr.f32.mxu0 %v4687
    %6340 = vmatmul.mubr.f32.gmra.mxu0 %v4623
    %v6341 = vpop.f32.mrf.mxu0
    %v6342 = vadd.f32 %v5957, %v6341
    %v6343 = vpop.f32.mrf.mxu0
    %6344 = vmatprep.mubr.f32.mxu0 %v4688
    %6345 = vmatmul.mubr.f32.gmra.mxu0 %v4624
    %v6346 = vpop.f32.mrf.mxu0
    %v6347 = vadd.f32 %v5962, %v6346
    %v6348 = vpop.f32.mrf.mxu0
    %6349 = vmatprep.mubr.f32.mxu0 %v4689
    %6350 = vmatmul.mubr.f32.gmra.mxu0 %v4625
    %v6351 = vpop.f32.mrf.mxu0
    %v6352 = vadd.f32 %v5967, %v6351
    %v6353 = vpop.f32.mrf.mxu0
    %6354 = vmatprep.mubr.f32.mxu0 %v4690
    %6355 = vmatmul.mubr.f32.gmra.mxu0 %v4626
    %v6356 = vpop.f32.mrf.mxu0
    %v6357 = vadd.f32 %v5972, %v6356
    %v6358 = vpop.f32.mrf.mxu0
    %6359 = vmatprep.mubr.f32.mxu0 %v4691
    %6360 = vmatmul.mubr.f32.gmra.mxu0 %v4627
    %v6361 = vpop.f32.mrf.mxu0
    %v6362 = vadd.f32 %v5977, %v6361
    %v6363 = vpop.f32.mrf.mxu0
    %6364 = vmatprep.mubr.f32.mxu0 %v4692
    %6365 = vmatmul.mubr.f32.gmra.mxu0 %v4628
    %v6366 = vpop.f32.mrf.mxu0
    %v6367 = vadd.f32 %v5982, %v6366
    %v6368 = vpop.f32.mrf.mxu0
    %6369 = vmatprep.mubr.f32.mxu0 %v4693
    %6370 = vmatmul.mubr.f32.gmra.mxu0 %v4629
    %v6371 = vpop.f32.mrf.mxu0
    %v6372 = vadd.f32 %v5987, %v6371
    %v6373 = vpop.f32.mrf.mxu0
    %6374 = vmatprep.mubr.f32.mxu0 %v4694
    %6375 = vmatmul.mubr.f32.gmra.mxu0 %v4630
    %v6376 = vpop.f32.mrf.mxu0
    %v6377 = vadd.f32 %v5992, %v6376
    %v6378 = vpop.f32.mrf.mxu0
    %6379 = vmatprep.mubr.f32.mxu0 %v4695
    %6380 = vmatmul.mubr.f32.gmra.mxu0 %v4631
    %v6381 = vpop.f32.mrf.mxu0
    %v6382 = vadd.f32 %v5997, %v6381
    %v6383 = vpop.f32.mrf.mxu0
    %6384 = vmatprep.mubr.f32.mxu0 %v4696
    %6385 = vmatmul.mubr.f32.gmra.mxu0 %v4632
    %v6386 = vpop.f32.mrf.mxu0
    %v6387 = vadd.f32 %v6002, %v6386
    %v6388 = vpop.f32.mrf.mxu0
    %6389 = vmatprep.mubr.f32.mxu0 %v4697
    %6390 = vmatmul.mubr.f32.gmra.mxu0 %v4633
    %v6391 = vpop.f32.mrf.mxu0
    %v6392 = vadd.f32 %v6007, %v6391
    %v6393 = vpop.f32.mrf.mxu0
    %6394 = vmatprep.mubr.f32.mxu0 %v4698
    %6395 = vmatmul.mubr.f32.gmra.mxu0 %v4634
    %v6396 = vpop.f32.mrf.mxu0
    %v6397 = vadd.f32 %v6012, %v6396
    %v6398 = vpop.f32.mrf.mxu0
    %6399 = vmatprep.mubr.f32.mxu0 %v4699
    %6400 = vmatmul.mubr.f32.gmra.mxu0 %v4635
    %v6401 = vpop.f32.mrf.mxu0
    %v6402 = vadd.f32 %v6017, %v6401
    %v6403 = vpop.f32.mrf.mxu0
    %6404 = vmatprep.mubr.f32.mxu0 %v4700
    %6405 = vmatmul.mubr.f32.gmra.mxu0 %v4636
    %v6406 = vpop.f32.mrf.mxu0
    %v6407 = vadd.f32 %v6022, %v6406
    %v6408 = vpop.f32.mrf.mxu0
    %6409 = vmatprep.mubr.f32.mxu0 %v4701
    %6410 = vmatmul.mubr.f32.gmra.mxu0 %v4637
    %v6411 = vpop.f32.mrf.mxu0
    %v6412 = vadd.f32 %v6027, %v6411
    %v6413 = vpop.f32.mrf.mxu0
    %6414 = vmatprep.mubr.f32.mxu0 %v4702
    %6415 = vmatmul.mubr.f32.gmra.mxu0 %v4638
    %v6416 = vpop.f32.mrf.mxu0
    %v6417 = vadd.f32 %v6032, %v6416
    %v6418 = vpop.f32.mrf.mxu0
    %6419 = vmatprep.mubr.f32.mxu0 %v4703
    %6420 = vmatmul.mubr.f32.gmra.mxu0 %v4639
    %v6421 = vpop.f32.mrf.mxu0
    %v6422 = vadd.f32 %v6037, %v6421
    %v6423 = vpop.f32.mrf.mxu0
    %6424 = vmatprep.mubr.f32.mxu0 %v4704
    %6425 = vmatmul.mubr.f32.gmra.mxu0 %v4640
    %v6426 = vpop.f32.mrf.mxu0
    %v6427 = vadd.f32 %v6042, %v6426
    %v6428 = vpop.f32.mrf.mxu0
    %6429 = vmatprep.mubr.f32.mxu0 %v4705
    %6430 = vmatmul.mubr.f32.gmra.mxu0 %v4641
    %v6431 = vpop.f32.mrf.mxu0
    %v6432 = vadd.f32 %v6047, %v6431
    %v6433 = vpop.f32.mrf.mxu0
    %6434 = vmatprep.mubr.f32.mxu0 %v4706
    %6435 = vmatmul.mubr.f32.gmra.mxu0 %v4642
    %v6436 = vpop.f32.mrf.mxu0
    %v6437 = vadd.f32 %v6052, %v6436
    %v6438 = vpop.f32.mrf.mxu0
    %6439 = vmatprep.mubr.f32.mxu0 %v4707
    %6440 = vmatmul.mubr.f32.gmra.mxu0 %v4643
    %v6441 = vpop.f32.mrf.mxu0
    %v6442 = vadd.f32 %v6057, %v6441
    %v6443 = vpop.f32.mrf.mxu0
    %6444 = vmatprep.mubr.f32.mxu0 %v4708
    %6445 = vmatmul.mubr.f32.gmra.mxu0 %v4644
    %v6446 = vpop.f32.mrf.mxu0
    %v6447 = vadd.f32 %v6062, %v6446
    %v6448 = vpop.f32.mrf.mxu0
    %6449 = vmatprep.mubr.f32.mxu0 %v4709
    %6450 = vmatmul.mubr.f32.gmra.mxu0 %v4645
    %v6451 = vpop.f32.mrf.mxu0
    %v6452 = vadd.f32 %v6067, %v6451
    %v6453 = vpop.f32.mrf.mxu0
    %6454 = vmatprep.mubr.f32.mxu0 %v4710
    %6455 = vmatmul.mubr.f32.gmra.mxu0 %v4646
    %v6456 = vpop.f32.mrf.mxu0
    %v6457 = vadd.f32 %v6072, %v6456
    %v6458 = vpop.f32.mrf.mxu0
    %6459 = vmatprep.mubr.f32.mxu0 %v4711
    %6460 = vmatmul.mubr.f32.gmra.mxu0 %v4647
    %v6461 = vpop.f32.mrf.mxu0
    %v6462 = vadd.f32 %v6077, %v6461
    %v6463 = vpop.f32.mrf.mxu0
    %6464 = vmatprep.mubr.f32.mxu0 %v4712
    %6465 = vmatmul.mubr.f32.gmra.mxu0 %v4648
    %v6466 = vpop.f32.mrf.mxu0
    %v6467 = vadd.f32 %v6082, %v6466
    %v6468 = vpop.f32.mrf.mxu0
    %6469 = vdwg.mxu0
    %6470 = vmatprep.subr.mxu0 0.0
    %6471 = vmatpush1.msra.mxu0 %v4921
    %6472 = vmatprep.subr.mxu0 0.0
    %6473 = vmatpush1.msra.mxu0 %v4920
    %6474 = vmatprep.subr.mxu0 0.0
    %6475 = vmatpush1.msra.mxu0 %v4919
    %6476 = vmatprep.subr.mxu0 0.0
    %6477 = vmatpush1.msra.mxu0 %v4918
    %6478 = vmatprep.subr.mxu0 0.0
    %6479 = vmatpush1.msra.mxu0 %v4917
    %6480 = vmatprep.subr.mxu0 0.0
    %6481 = vmatpush1.msra.mxu0 %v4916
    %6482 = vmatprep.subr.mxu0 0.0
    %6483 = vmatpush1.msra.mxu0 %v4915
    %6484 = vmatprep.subr.mxu0 0.0
    %6485 = vmatpush1.msra.mxu0 %v4914
    %6486 = vmatprep.subr.mxu0 0.0
    %6487 = vmatpush1.msra.mxu0 %v4913
    %6488 = vmatprep.subr.mxu0 0.0
    %6489 = vmatpush1.msra.mxu0 %v4912
    %6490 = vmatprep.subr.mxu0 0.0
    %6491 = vmatpush1.msra.mxu0 %v4911
    %6492 = vmatprep.subr.mxu0 0.0
    %6493 = vmatpush1.msra.mxu0 %v4910
    %6494 = vmatprep.subr.mxu0 0.0
    %6495 = vmatpush1.msra.mxu0 %v4909
    %6496 = vmatprep.subr.mxu0 0.0
    %6497 = vmatpush1.msra.mxu0 %v4908
    %6498 = vmatprep.subr.mxu0 0.0
    %6499 = vmatpush1.msra.mxu0 %v4907
    %6500 = vmatprep.subr.mxu0 0.0
    %6501 = vmatpush1.msra.mxu0 %v4906
    %6502 = vmatprep.subr.mxu0 0.0
    %6503 = vmatpush2.msra.mxu0 0.0
    %6504 = vmatprep.subr.mxu0 0.0
    %6505 = vmatpush2.msra.mxu0 0.0
    %6506 = vmatprep.subr.mxu0 0.0
    %6507 = vmatpush2.msra.mxu0 0.0
    %6508 = vmatprep.subr.mxu0 0.0
    %6509 = vmatpush2.msra.mxu0 0.0
    %6510 = vmatprep.subr.mxu0 0.0
    %6511 = vmatpush2.msra.mxu0 0.0
    %6512 = vmatprep.subr.mxu0 0.0
    %6513 = vmatpush2.msra.mxu0 0.0
    %6514 = vmatprep.subr.mxu0 0.0
    %6515 = vmatpush2.msra.mxu0 0.0
    %6516 = vmatprep.subr.mxu0 0.0
    %6517 = vmatpush2.msra.mxu0 0.0
    %6518 = vmatprep.subr.mxu0 0.0
    %6519 = vmatpush2.msra.mxu0 0.0
    %6520 = vmatprep.subr.mxu0 0.0
    %6521 = vmatpush2.msra.mxu0 0.0
    %6522 = vmatprep.subr.mxu0 0.0
    %6523 = vmatpush2.msra.mxu0 0.0
    %6524 = vmatprep.subr.mxu0 0.0
    %6525 = vmatpush2.msra.mxu0 0.0
    %6526 = vmatprep.subr.mxu0 0.0
    %6527 = vmatpush2.msra.mxu0 0.0
    %6528 = vmatprep.subr.mxu0 0.0
    %6529 = vmatpush2.msra.mxu0 0.0
    %6530 = vmatprep.subr.mxu0 0.0
    %6531 = vmatpush2.msra.mxu0 0.0
    %6532 = vmatprep.subr.mxu0 0.0
    %6533 = vmatpush2.msra.mxu0 0.0
    %6534 = vmatprep.mubr.f32.mxu0 0.0
    %6535 = vmatmul.mubr.f32.gmra.mxu0 %v4713
    %v6536 = vpop.f32.mrf.mxu0
    %v6537 = vadd.f32 %v6152, %v6536
    %v6538 = vpop.f32.mrf.mxu0
    %6539 = vmatprep.mubr.f32.mxu0 0.0
    %6540 = vmatmul.mubr.f32.gmra.mxu0 %v4714
    %v6541 = vpop.f32.mrf.mxu0
    %v6542 = vadd.f32 %v6157, %v6541
    %v6543 = vpop.f32.mrf.mxu0
    %6544 = vmatprep.mubr.f32.mxu0 0.0
    %6545 = vmatmul.mubr.f32.gmra.mxu0 %v4715
    %v6546 = vpop.f32.mrf.mxu0
    %v6547 = vadd.f32 %v6162, %v6546
    %v6548 = vpop.f32.mrf.mxu0
    %6549 = vmatprep.mubr.f32.mxu0 0.0
    %6550 = vmatmul.mubr.f32.gmra.mxu0 %v4716
    %v6551 = vpop.f32.mrf.mxu0
    %v6552 = vadd.f32 %v6167, %v6551
    %v6553 = vpop.f32.mrf.mxu0
    %6554 = vmatprep.mubr.f32.mxu0 0.0
    %6555 = vmatmul.mubr.f32.gmra.mxu0 %v4717
    %v6556 = vpop.f32.mrf.mxu0
    %v6557 = vadd.f32 %v6172, %v6556
    %v6558 = vpop.f32.mrf.mxu0
    %6559 = vmatprep.mubr.f32.mxu0 0.0
    %6560 = vmatmul.mubr.f32.gmra.mxu0 %v4718
    %v6561 = vpop.f32.mrf.mxu0
    %v6562 = vadd.f32 %v6177, %v6561
    %v6563 = vpop.f32.mrf.mxu0
    %6564 = vmatprep.mubr.f32.mxu0 0.0
    %6565 = vmatmul.mubr.f32.gmra.mxu0 %v4719
    %v6566 = vpop.f32.mrf.mxu0
    %v6567 = vadd.f32 %v6182, %v6566
    %v6568 = vpop.f32.mrf.mxu0
    %6569 = vmatprep.mubr.f32.mxu0 0.0
    %6570 = vmatmul.mubr.f32.gmra.mxu0 %v4720
    %v6571 = vpop.f32.mrf.mxu0
    %v6572 = vadd.f32 %v6187, %v6571
    %v6573 = vpop.f32.mrf.mxu0
    %6574 = vmatprep.mubr.f32.mxu0 0.0
    %6575 = vmatmul.mubr.f32.gmra.mxu0 %v4721
    %v6576 = vpop.f32.mrf.mxu0
    %v6577 = vadd.f32 %v6192, %v6576
    %v6578 = vpop.f32.mrf.mxu0
    %6579 = vmatprep.mubr.f32.mxu0 0.0
    %6580 = vmatmul.mubr.f32.gmra.mxu0 %v4722
    %v6581 = vpop.f32.mrf.mxu0
    %v6582 = vadd.f32 %v6197, %v6581
    %v6583 = vpop.f32.mrf.mxu0
    %6584 = vmatprep.mubr.f32.mxu0 0.0
    %6585 = vmatmul.mubr.f32.gmra.mxu0 %v4723
    %v6586 = vpop.f32.mrf.mxu0
    %v6587 = vadd.f32 %v6202, %v6586
    %v6588 = vpop.f32.mrf.mxu0
    %6589 = vmatprep.mubr.f32.mxu0 0.0
    %6590 = vmatmul.mubr.f32.gmra.mxu0 %v4724
    %v6591 = vpop.f32.mrf.mxu0
    %v6592 = vadd.f32 %v6207, %v6591
    %v6593 = vpop.f32.mrf.mxu0
    %6594 = vmatprep.mubr.f32.mxu0 0.0
    %6595 = vmatmul.mubr.f32.gmra.mxu0 %v4725
    %v6596 = vpop.f32.mrf.mxu0
    %v6597 = vadd.f32 %v6212, %v6596
    %v6598 = vpop.f32.mrf.mxu0
    %6599 = vmatprep.mubr.f32.mxu0 0.0
    %6600 = vmatmul.mubr.f32.gmra.mxu0 %v4726
    %v6601 = vpop.f32.mrf.mxu0
    %v6602 = vadd.f32 %v6217, %v6601
    %v6603 = vpop.f32.mrf.mxu0
    %6604 = vmatprep.mubr.f32.mxu0 0.0
    %6605 = vmatmul.mubr.f32.gmra.mxu0 %v4727
    %v6606 = vpop.f32.mrf.mxu0
    %v6607 = vadd.f32 %v6222, %v6606
    %v6608 = vpop.f32.mrf.mxu0
    %6609 = vmatprep.mubr.f32.mxu0 0.0
    %6610 = vmatmul.mubr.f32.gmra.mxu0 %v4728
    %v6611 = vpop.f32.mrf.mxu0
    %v6612 = vadd.f32 %v6227, %v6611
    %v6613 = vpop.f32.mrf.mxu0
    %6614 = vmatprep.mubr.f32.mxu0 0.0
    %6615 = vmatmul.mubr.f32.gmra.mxu0 %v4729
    %v6616 = vpop.f32.mrf.mxu0
    %v6617 = vadd.f32 %v6232, %v6616
    %v6618 = vpop.f32.mrf.mxu0
    %6619 = vmatprep.mubr.f32.mxu0 0.0
    %6620 = vmatmul.mubr.f32.gmra.mxu0 %v4730
    %v6621 = vpop.f32.mrf.mxu0
    %v6622 = vadd.f32 %v6237, %v6621
    %v6623 = vpop.f32.mrf.mxu0
    %6624 = vmatprep.mubr.f32.mxu0 0.0
    %6625 = vmatmul.mubr.f32.gmra.mxu0 %v4731
    %v6626 = vpop.f32.mrf.mxu0
    %v6627 = vadd.f32 %v6242, %v6626
    %v6628 = vpop.f32.mrf.mxu0
    %6629 = vmatprep.mubr.f32.mxu0 0.0
    %6630 = vmatmul.mubr.f32.gmra.mxu0 %v4732
    %v6631 = vpop.f32.mrf.mxu0
    %v6632 = vadd.f32 %v6247, %v6631
    %v6633 = vpop.f32.mrf.mxu0
    %6634 = vmatprep.mubr.f32.mxu0 0.0
    %6635 = vmatmul.mubr.f32.gmra.mxu0 %v4733
    %v6636 = vpop.f32.mrf.mxu0
    %v6637 = vadd.f32 %v6252, %v6636
    %v6638 = vpop.f32.mrf.mxu0
    %6639 = vmatprep.mubr.f32.mxu0 0.0
    %6640 = vmatmul.mubr.f32.gmra.mxu0 %v4734
    %v6641 = vpop.f32.mrf.mxu0
    %v6642 = vadd.f32 %v6257, %v6641
    %v6643 = vpop.f32.mrf.mxu0
    %6644 = vmatprep.mubr.f32.mxu0 0.0
    %6645 = vmatmul.mubr.f32.gmra.mxu0 %v4735
    %v6646 = vpop.f32.mrf.mxu0
    %v6647 = vadd.f32 %v6262, %v6646
    %v6648 = vpop.f32.mrf.mxu0
    %6649 = vmatprep.mubr.f32.mxu0 0.0
    %6650 = vmatmul.mubr.f32.gmra.mxu0 %v4736
    %v6651 = vpop.f32.mrf.mxu0
    %v6652 = vadd.f32 %v6267, %v6651
    %v6653 = vpop.f32.mrf.mxu0
    %6654 = vmatprep.mubr.f32.mxu0 0.0
    %6655 = vmatmul.mubr.f32.gmra.mxu0 %v4737
    %v6656 = vpop.f32.mrf.mxu0
    %v6657 = vadd.f32 %v6272, %v6656
    %v6658 = vpop.f32.mrf.mxu0
    %6659 = vmatprep.mubr.f32.mxu0 0.0
    %6660 = vmatmul.mubr.f32.gmra.mxu0 %v4738
    %v6661 = vpop.f32.mrf.mxu0
    %v6662 = vadd.f32 %v6277, %v6661
    %v6663 = vpop.f32.mrf.mxu0
    %6664 = vmatprep.mubr.f32.mxu0 0.0
    %6665 = vmatmul.mubr.f32.gmra.mxu0 %v4739
    %v6666 = vpop.f32.mrf.mxu0
    %v6667 = vadd.f32 %v6282, %v6666
    %v6668 = vpop.f32.mrf.mxu0
    %6669 = vmatprep.mubr.f32.mxu0 0.0
    %6670 = vmatmul.mubr.f32.gmra.mxu0 %v4740
    %v6671 = vpop.f32.mrf.mxu0
    %v6672 = vadd.f32 %v6287, %v6671
    %v6673 = vpop.f32.mrf.mxu0
    %6674 = vmatprep.mubr.f32.mxu0 0.0
    %6675 = vmatmul.mubr.f32.gmra.mxu0 %v4741
    %v6676 = vpop.f32.mrf.mxu0
    %v6677 = vadd.f32 %v6292, %v6676
    %v6678 = vpop.f32.mrf.mxu0
    %6679 = vmatprep.mubr.f32.mxu0 0.0
    %6680 = vmatmul.mubr.f32.gmra.mxu0 %v4742
    %v6681 = vpop.f32.mrf.mxu0
    %v6682 = vadd.f32 %v6297, %v6681
    %v6683 = vpop.f32.mrf.mxu0
    %6684 = vmatprep.mubr.f32.mxu0 0.0
    %6685 = vmatmul.mubr.f32.gmra.mxu0 %v4743
    %v6686 = vpop.f32.mrf.mxu0
    %v6687 = vadd.f32 %v6302, %v6686
    %v6688 = vpop.f32.mrf.mxu0
    %6689 = vmatprep.mubr.f32.mxu0 0.0
    %6690 = vmatmul.mubr.f32.gmra.mxu0 %v4744
    %v6691 = vpop.f32.mrf.mxu0
    %v6692 = vadd.f32 %v6307, %v6691
    %v6693 = vpop.f32.mrf.mxu0
    %6694 = vmatprep.mubr.f32.mxu0 0.0
    %6695 = vmatmul.mubr.f32.gmra.mxu0 %v4745
    %v6696 = vpop.f32.mrf.mxu0
    %v6697 = vadd.f32 %v6312, %v6696
    %v6698 = vpop.f32.mrf.mxu0
    %6699 = vmatprep.mubr.f32.mxu0 0.0
    %6700 = vmatmul.mubr.f32.gmra.mxu0 %v4746
    %v6701 = vpop.f32.mrf.mxu0
    %v6702 = vadd.f32 %v6317, %v6701
    %v6703 = vpop.f32.mrf.mxu0
    %6704 = vmatprep.mubr.f32.mxu0 0.0
    %6705 = vmatmul.mubr.f32.gmra.mxu0 %v4747
    %v6706 = vpop.f32.mrf.mxu0
    %v6707 = vadd.f32 %v6322, %v6706
    %v6708 = vpop.f32.mrf.mxu0
    %6709 = vmatprep.mubr.f32.mxu0 0.0
    %6710 = vmatmul.mubr.f32.gmra.mxu0 %v4748
    %v6711 = vpop.f32.mrf.mxu0
    %v6712 = vadd.f32 %v6327, %v6711
    %v6713 = vpop.f32.mrf.mxu0
    %6714 = vmatprep.mubr.f32.mxu0 0.0
    %6715 = vmatmul.mubr.f32.gmra.mxu0 %v4749
    %v6716 = vpop.f32.mrf.mxu0
    %v6717 = vadd.f32 %v6332, %v6716
    %v6718 = vpop.f32.mrf.mxu0
    %6719 = vmatprep.mubr.f32.mxu0 0.0
    %6720 = vmatmul.mubr.f32.gmra.mxu0 %v4750
    %v6721 = vpop.f32.mrf.mxu0
    %v6722 = vadd.f32 %v6337, %v6721
    %v6723 = vpop.f32.mrf.mxu0
    %6724 = vmatprep.mubr.f32.mxu0 0.0
    %6725 = vmatmul.mubr.f32.gmra.mxu0 %v4751
    %v6726 = vpop.f32.mrf.mxu0
    %v6727 = vadd.f32 %v6342, %v6726
    %v6728 = vpop.f32.mrf.mxu0
    %6729 = vmatprep.mubr.f32.mxu0 0.0
    %6730 = vmatmul.mubr.f32.gmra.mxu0 %v4752
    %v6731 = vpop.f32.mrf.mxu0
    %v6732 = vadd.f32 %v6347, %v6731
    %v6733 = vpop.f32.mrf.mxu0
    %6734 = vmatprep.mubr.f32.mxu0 0.0
    %6735 = vmatmul.mubr.f32.gmra.mxu0 %v4753
    %v6736 = vpop.f32.mrf.mxu0
    %v6737 = vadd.f32 %v6352, %v6736
    %v6738 = vpop.f32.mrf.mxu0
    %6739 = vmatprep.mubr.f32.mxu0 0.0
    %6740 = vmatmul.mubr.f32.gmra.mxu0 %v4754
    %v6741 = vpop.f32.mrf.mxu0
    %v6742 = vadd.f32 %v6357, %v6741
    %v6743 = vpop.f32.mrf.mxu0
    %6744 = vmatprep.mubr.f32.mxu0 0.0
    %6745 = vmatmul.mubr.f32.gmra.mxu0 %v4755
    %v6746 = vpop.f32.mrf.mxu0
    %v6747 = vadd.f32 %v6362, %v6746
    %v6748 = vpop.f32.mrf.mxu0
    %6749 = vmatprep.mubr.f32.mxu0 0.0
    %6750 = vmatmul.mubr.f32.gmra.mxu0 %v4756
    %v6751 = vpop.f32.mrf.mxu0
    %v6752 = vadd.f32 %v6367, %v6751
    %v6753 = vpop.f32.mrf.mxu0
    %6754 = vmatprep.mubr.f32.mxu0 0.0
    %6755 = vmatmul.mubr.f32.gmra.mxu0 %v4757
    %v6756 = vpop.f32.mrf.mxu0
    %v6757 = vadd.f32 %v6372, %v6756
    %v6758 = vpop.f32.mrf.mxu0
    %6759 = vmatprep.mubr.f32.mxu0 0.0
    %6760 = vmatmul.mubr.f32.gmra.mxu0 %v4758
    %v6761 = vpop.f32.mrf.mxu0
    %v6762 = vadd.f32 %v6377, %v6761
    %v6763 = vpop.f32.mrf.mxu0
    %6764 = vmatprep.mubr.f32.mxu0 0.0
    %6765 = vmatmul.mubr.f32.gmra.mxu0 %v4759
    %v6766 = vpop.f32.mrf.mxu0
    %v6767 = vadd.f32 %v6382, %v6766
    %v6768 = vpop.f32.mrf.mxu0
    %6769 = vmatprep.mubr.f32.mxu0 0.0
    %6770 = vmatmul.mubr.f32.gmra.mxu0 %v4760
    %v6771 = vpop.f32.mrf.mxu0
    %v6772 = vadd.f32 %v6387, %v6771
    %v6773 = vpop.f32.mrf.mxu0
    %6774 = vmatprep.mubr.f32.mxu0 0.0
    %6775 = vmatmul.mubr.f32.gmra.mxu0 %v4761
    %v6776 = vpop.f32.mrf.mxu0
    %v6777 = vadd.f32 %v6392, %v6776
    %v6778 = vpop.f32.mrf.mxu0
    %6779 = vmatprep.mubr.f32.mxu0 0.0
    %6780 = vmatmul.mubr.f32.gmra.mxu0 %v4762
    %v6781 = vpop.f32.mrf.mxu0
    %v6782 = vadd.f32 %v6397, %v6781
    %v6783 = vpop.f32.mrf.mxu0
    %6784 = vmatprep.mubr.f32.mxu0 0.0
    %6785 = vmatmul.mubr.f32.gmra.mxu0 %v4763
    %v6786 = vpop.f32.mrf.mxu0
    %v6787 = vadd.f32 %v6402, %v6786
    %v6788 = vpop.f32.mrf.mxu0
    %6789 = vmatprep.mubr.f32.mxu0 0.0
    %6790 = vmatmul.mubr.f32.gmra.mxu0 %v4764
    %v6791 = vpop.f32.mrf.mxu0
    %v6792 = vadd.f32 %v6407, %v6791
    %v6793 = vpop.f32.mrf.mxu0
    %6794 = vmatprep.mubr.f32.mxu0 0.0
    %6795 = vmatmul.mubr.f32.gmra.mxu0 %v4765
    %v6796 = vpop.f32.mrf.mxu0
    %v6797 = vadd.f32 %v6412, %v6796
    %v6798 = vpop.f32.mrf.mxu0
    %6799 = vmatprep.mubr.f32.mxu0 0.0
    %6800 = vmatmul.mubr.f32.gmra.mxu0 %v4766
    %v6801 = vpop.f32.mrf.mxu0
    %v6802 = vadd.f32 %v6417, %v6801
    %v6803 = vpop.f32.mrf.mxu0
    %6804 = vmatprep.mubr.f32.mxu0 0.0
    %6805 = vmatmul.mubr.f32.gmra.mxu0 %v4767
    %v6806 = vpop.f32.mrf.mxu0
    %v6807 = vadd.f32 %v6422, %v6806
    %v6808 = vpop.f32.mrf.mxu0
    %6809 = vmatprep.mubr.f32.mxu0 0.0
    %6810 = vmatmul.mubr.f32.gmra.mxu0 %v4768
    %v6811 = vpop.f32.mrf.mxu0
    %v6812 = vadd.f32 %v6427, %v6811
    %v6813 = vpop.f32.mrf.mxu0
    %6814 = vmatprep.mubr.f32.mxu0 0.0
    %6815 = vmatmul.mubr.f32.gmra.mxu0 %v4769
    %v6816 = vpop.f32.mrf.mxu0
    %v6817 = vadd.f32 %v6432, %v6816
    %v6818 = vpop.f32.mrf.mxu0
    %6819 = vmatprep.mubr.f32.mxu0 0.0
    %6820 = vmatmul.mubr.f32.gmra.mxu0 %v4770
    %v6821 = vpop.f32.mrf.mxu0
    %v6822 = vadd.f32 %v6437, %v6821
    %v6823 = vpop.f32.mrf.mxu0
    %6824 = vmatprep.mubr.f32.mxu0 0.0
    %6825 = vmatmul.mubr.f32.gmra.mxu0 %v4771
    %v6826 = vpop.f32.mrf.mxu0
    %v6827 = vadd.f32 %v6442, %v6826
    %v6828 = vpop.f32.mrf.mxu0
    %6829 = vmatprep.mubr.f32.mxu0 0.0
    %6830 = vmatmul.mubr.f32.gmra.mxu0 %v4772
    %v6831 = vpop.f32.mrf.mxu0
    %v6832 = vadd.f32 %v6447, %v6831
    %v6833 = vpop.f32.mrf.mxu0
    %6834 = vmatprep.mubr.f32.mxu0 0.0
    %6835 = vmatmul.mubr.f32.gmra.mxu0 %v4773
    %v6836 = vpop.f32.mrf.mxu0
    %v6837 = vadd.f32 %v6452, %v6836
    %v6838 = vpop.f32.mrf.mxu0
    %6839 = vmatprep.mubr.f32.mxu0 0.0
    %6840 = vmatmul.mubr.f32.gmra.mxu0 %v4774
    %v6841 = vpop.f32.mrf.mxu0
    %v6842 = vadd.f32 %v6457, %v6841
    %v6843 = vpop.f32.mrf.mxu0
    %6844 = vmatprep.mubr.f32.mxu0 0.0
    %6845 = vmatmul.mubr.f32.gmra.mxu0 %v4775
    %v6846 = vpop.f32.mrf.mxu0
    %v6847 = vadd.f32 %v6462, %v6846
    %v6848 = vpop.f32.mrf.mxu0
    %6849 = vmatprep.mubr.f32.mxu0 0.0
    %6850 = vmatmul.mubr.f32.gmra.mxu0 %v4776
    %v6851 = vpop.f32.mrf.mxu0
    %v6852 = vadd.f32 %v6467, %v6851
    %v6853 = vpop.f32.mrf.mxu0
    %6854 = vdwg.mxu0
    %v6855 = vadd.f32 %v3653, %v6537
    %v6856 = vadd.f32 %v3654, %v6542
    %v6857 = vadd.f32 %v3655, %v6547
    %v6858 = vadd.f32 %v3656, %v6552
    %v6859 = vadd.f32 %v3657, %v6557
    %v6860 = vadd.f32 %v3658, %v6562
    %v6861 = vadd.f32 %v3659, %v6567
    %v6862 = vadd.f32 %v3660, %v6572
    %v6863 = vadd.f32 %v3661, %v6577
    %v6864 = vadd.f32 %v3662, %v6582
    %v6865 = vadd.f32 %v3663, %v6587
    %v6866 = vadd.f32 %v3664, %v6592
    %v6867 = vadd.f32 %v3665, %v6597
    %v6868 = vadd.f32 %v3666, %v6602
    %v6869 = vadd.f32 %v3667, %v6607
    %v6870 = vadd.f32 %v3668, %v6612
    %v6871 = vadd.f32 %v3669, %v6617
    %v6872 = vadd.f32 %v3670, %v6622
    %v6873 = vadd.f32 %v3671, %v6627
    %v6874 = vadd.f32 %v3672, %v6632
    %v6875 = vadd.f32 %v3673, %v6637
    %v6876 = vadd.f32 %v3674, %v6642
    %v6877 = vadd.f32 %v3675, %v6647
    %v6878 = vadd.f32 %v3676, %v6652
    %v6879 = vadd.f32 %v3677, %v6657
    %v6880 = vadd.f32 %v3678, %v6662
    %v6881 = vadd.f32 %v3679, %v6667
    %v6882 = vadd.f32 %v3680, %v6672
    %v6883 = vadd.f32 %v3681, %v6677
    %v6884 = vadd.f32 %v3682, %v6682
    %v6885 = vadd.f32 %v3683, %v6687
    %v6886 = vadd.f32 %v3684, %v6692
    %v6887 = vadd.f32 %v3685, %v6697
    %v6888 = vadd.f32 %v3686, %v6702
    %v6889 = vadd.f32 %v3687, %v6707
    %v6890 = vadd.f32 %v3688, %v6712
    %v6891 = vadd.f32 %v3689, %v6717
    %v6892 = vadd.f32 %v3690, %v6722
    %v6893 = vadd.f32 %v3691, %v6727
    %v6894 = vadd.f32 %v3692, %v6732
    %v6895 = vadd.f32 %v3693, %v6737
    %v6896 = vadd.f32 %v3694, %v6742
    %v6897 = vadd.f32 %v3695, %v6747
    %v6898 = vadd.f32 %v3696, %v6752
    %v6899 = vadd.f32 %v3697, %v6757
    %v6900 = vadd.f32 %v3698, %v6762
    %v6901 = vadd.f32 %v3699, %v6767
    %v6902 = vadd.f32 %v3700, %v6772
    %v6903 = vadd.f32 %v3701, %v6777
    %v6904 = vadd.f32 %v3702, %v6782
    %v6905 = vadd.f32 %v3703, %v6787
    %v6906 = vadd.f32 %v3704, %v6792
    %v6907 = vadd.f32 %v3705, %v6797
    %v6908 = vadd.f32 %v3706, %v6802
    %v6909 = vadd.f32 %v3707, %v6807
    %v6910 = vadd.f32 %v3708, %v6812
    %v6911 = vadd.f32 %v3709, %v6817
    %v6912 = vadd.f32 %v3710, %v6822
    %v6913 = vadd.f32 %v3711, %v6827
    %v6914 = vadd.f32 %v3712, %v6832
    %v6915 = vadd.f32 %v3713, %v6837
    %v6916 = vadd.f32 %v3714, %v6842
    %v6917 = vadd.f32 %v3715, %v6847
    %v6918 = vadd.f32 %v3716, %v6852
    %6919 = vst [vmem:[#allocation12] sm:$0xff] %v6855
    %6920 = vst [vmem:[#allocation12 + $0x8] sm:$0xff] %v6856
    %6921 = vst [vmem:[#allocation12 + $0x10] sm:$0xff] %v6857
    %6922 = vst [vmem:[#allocation12 + $0x18] sm:$0xff] %v6858
    %6923 = vst [vmem:[#allocation12 + $0x20] sm:$0xff] %v6859
    %6924 = vst [vmem:[#allocation12 + $0x28] sm:$0xff] %v6860
    %6925 = vst [vmem:[#allocation12 + $0x30] sm:$0xff] %v6861
    %6926 = vst [vmem:[#allocation12 + $0x38] sm:$0xff] %v6862
    %6927 = vst [vmem:[#allocation12 + $0x40] sm:$0xff] %v6863
    %6928 = vst [vmem:[#allocation12 + $0x48] sm:$0xff] %v6864
    %6929 = vst [vmem:[#allocation12 + $0x50] sm:$0xff] %v6865
    %6930 = vst [vmem:[#allocation12 + $0x58] sm:$0xff] %v6866
    %6931 = vst [vmem:[#allocation12 + $0x60] sm:$0xff] %v6867
    %6932 = vst [vmem:[#allocation12 + $0x68] sm:$0xff] %v6868
    %6933 = vst [vmem:[#allocation12 + $0x70] sm:$0xff] %v6869
    %6934 = vst [vmem:[#allocation12 + $0x78] sm:$0xff] %v6870
    %6935 = vst [vmem:[#allocation12 + $0x80] sm:$0xff] %v6871
    %6936 = vst [vmem:[#allocation12 + $0x88] sm:$0xff] %v6872
    %6937 = vst [vmem:[#allocation12 + $0x90] sm:$0xff] %v6873
    %6938 = vst [vmem:[#allocation12 + $0x98] sm:$0xff] %v6874
    %6939 = vst [vmem:[#allocation12 + $0xa0] sm:$0xff] %v6875
    %6940 = vst [vmem:[#allocation12 + $0xa8] sm:$0xff] %v6876
    %6941 = vst [vmem:[#allocation12 + $0xb0] sm:$0xff] %v6877
    %6942 = vst [vmem:[#allocation12 + $0xb8] sm:$0xff] %v6878
    %6943 = vst [vmem:[#allocation12 + $0xc0] sm:$0xff] %v6879
    %6944 = vst [vmem:[#allocation12 + $0xc8] sm:$0xff] %v6880
    %6945 = vst [vmem:[#allocation12 + $0xd0] sm:$0xff] %v6881
    %6946 = vst [vmem:[#allocation12 + $0xd8] sm:$0xff] %v6882
    %6947 = vst [vmem:[#allocation12 + $0xe0] sm:$0xff] %v6883
    %6948 = vst [vmem:[#allocation12 + $0xe8] sm:$0xff] %v6884
    %6949 = vst [vmem:[#allocation12 + $0xf0] sm:$0xff] %v6885
    %6950 = vst [vmem:[#allocation12 + $0xf8] sm:$0xff] %v6886
    %6951 = vst [vmem:[#allocation12 + $0x100] sm:$0xff] %v6887
    %6952 = vst [vmem:[#allocation12 + $0x108] sm:$0xff] %v6888
    %6953 = vst [vmem:[#allocation12 + $0x110] sm:$0xff] %v6889
    %6954 = vst [vmem:[#allocation12 + $0x118] sm:$0xff] %v6890
    %6955 = vst [vmem:[#allocation12 + $0x120] sm:$0xff] %v6891
    %6956 = vst [vmem:[#allocation12 + $0x128] sm:$0xff] %v6892
    %6957 = vst [vmem:[#allocation12 + $0x130] sm:$0xff] %v6893
    %6958 = vst [vmem:[#allocation12 + $0x138] sm:$0xff] %v6894
    %6959 = vst [vmem:[#allocation12 + $0x140] sm:$0xff] %v6895
    %6960 = vst [vmem:[#allocation12 + $0x148] sm:$0xff] %v6896
    %6961 = vst [vmem:[#allocation12 + $0x150] sm:$0xff] %v6897
    %6962 = vst [vmem:[#allocation12 + $0x158] sm:$0xff] %v6898
    %6963 = vst [vmem:[#allocation12 + $0x160] sm:$0xff] %v6899
    %6964 = vst [vmem:[#allocation12 + $0x168] sm:$0xff] %v6900
    %6965 = vst [vmem:[#allocation12 + $0x170] sm:$0xff] %v6901
    %6966 = vst [vmem:[#allocation12 + $0x178] sm:$0xff] %v6902
    %6967 = vst [vmem:[#allocation12 + $0x180] sm:$0xff] %v6903
    %6968 = vst [vmem:[#allocation12 + $0x188] sm:$0xff] %v6904
    %6969 = vst [vmem:[#allocation12 + $0x190] sm:$0xff] %v6905
    %6970 = vst [vmem:[#allocation12 + $0x198] sm:$0xff] %v6906
    %6971 = vst [vmem:[#allocation12 + $0x1a0] sm:$0xff] %v6907
    %6972 = vst [vmem:[#allocation12 + $0x1a8] sm:$0xff] %v6908
    %6973 = vst [vmem:[#allocation12 + $0x1b0] sm:$0xff] %v6909
    %6974 = vst [vmem:[#allocation12 + $0x1b8] sm:$0xff] %v6910
    %6975 = vst [vmem:[#allocation12 + $0x1c0] sm:$0xff] %v6911
    %6976 = vst [vmem:[#allocation12 + $0x1c8] sm:$0xff] %v6912
    %6977 = vst [vmem:[#allocation12 + $0x1d0] sm:$0xff] %v6913
    %6978 = vst [vmem:[#allocation12 + $0x1d8] sm:$0xff] %v6914
    %6979 = vst [vmem:[#allocation12 + $0x1e0] sm:$0xff] %v6915
    %6980 = vst [vmem:[#allocation12 + $0x1e8] sm:$0xff] %v6916
    %6981 = vst [vmem:[#allocation12 + $0x1f0] sm:$0xff] %v6917
    %6982 = vst [vmem:[#allocation12 + $0x1f8] sm:$0xff] %v6918
    // Predicated region
    $region42: #{tpu_custom_call.1} parent=1 // pred_check
      _
    $region43: #{tpu_custom_call.1} parent=1 // pred_check_branch
      %6984 = sbr.rel (0) target = $region45
    $region44: #{tpu_custom_call.1} parent=1 // pred_region
      %s6986 = ssub.s32 8192, 8192
      %6987 = vsyncadd [#allocation5], %s6986
      %s6988 = sshll.u32 [#allocation12], 4
      %s6989 = int_to_ptr.vmem [resolvable:$true] %s6988
      %6994 = dma.vmem_to_hbm [thread:$0]  %s6989, 8192, %s5, [#allocation5], 128, 128, 8
    $region45: #{tpu_custom_call.1} parent=1 // pred_fallthru
      _
    // Predicated region
    $region46: #{tpu_custom_call.1} parent=1 // pred_check
      _
    $region47: #{tpu_custom_call.1} parent=1 // pred_check_branch
      %6996 = sbr.rel (0) target = $region49
    $region48: #{tpu_custom_call.1} parent=1 // pred_region
      %6997 = dma.done [#allocation5], 8192
    $region49: #{tpu_custom_call.1} parent=1 // pred_fallthru
      _
    %6998 = vsyncpa [#allocation4], 1
    %6999 = vsyncpa [#allocation7], 1
    %7000 = vsyncpa [#allocation10], 1
    %7001 = vsyncpa [#allocation5], 1

</llo_original>
